<compile_context>
chip_gen: v5e
topology: v5e:2x2
jax: 0.10.0
libtpu: 0.0.40
codegen_flags: <defaults>
</compile_context>

<pallas_src>
import numpy as np
import jax
import jax.numpy as jnp
from jax.experimental import pallas as pl
from jax.experimental.pallas import tpu as pltpu

_BN_EPS = 1e-5


def _vmem_limit_bytes():
    """Per-generation scoped-VMEM limit: ~3/4 of physical, capped at 100 MiB."""
    cap = 64 * 1024 * 1024
    try:
        info = pltpu.get_tpu_info()
        cap = int(getattr(info, "vmem_capacity_bytes", cap))
    except Exception:
        pass
    return int(min(cap * 3 // 4, 100 * 1024 * 1024))


# --------------------------------------------------------------------------
# K1: fused bilinear-x2-upsample(x1) + pad + concat([x2, up(x1)]) + conv1
#     (9 accumulated tap matmuls) + BN1 per-batch partial stats.
# --------------------------------------------------------------------------
def _make_concat_conv1_kernel(C1, C2, Cmid, H, W, Hup, Wup, py0, px0):
    Cin = C1 + C2
    HW = H * W

    def kernel(x1_ref, x2_ref, uh_ref, uwT_ref, w1_ref,
               y1_ref, s1_ref, q1_ref, pad_ref):
        # One-time zeroing of the persistent padded scratch.  The 1-pixel conv
        # halo ring and any interior strip not covered by up(x1) are never
        # written below, so the zeros survive across grid steps (the grid axis
        # is "arbitrary" == sequential, so step 0 always runs first).
        @pl.when(pl.program_id(0) == 0)
        def _():
            pad_ref[...] = jnp.zeros_like(pad_ref)

        # channel-concat directly into the padded scratch; x2 is channels-first
        # already (NCHW block) -> no transpose anywhere.
        pad_ref[0:C2, 1:H + 1, 1:W + 1] = x2_ref[...]

        # fused separable bilinear x2 upsample (align_corners=True) of x1,
        # written straight into the pad interior (no HBM round trip).
        uh = uh_ref[...]
        uwT = uwT_ref[...]
        for c in range(C1):
            t = jnp.dot(uh, x1_ref[c], preferred_element_type=jnp.float32)
            up = jnp.dot(t, uwT, preferred_element_type=jnp.float32)
            pad_ref[C2 + c:C2 + c + 1,
                    1 + py0:1 + py0 + Hup,
                    1 + px0:1 + px0 + Wup] = up[None]

        # conv1: 9 accumulated tap matmuls (no im2col buffer), HW on lanes.
        # TODO(synk): tap windows could use pltpu.roll to avoid misaligned
        # slice relayouts on very large H*W.
        acc = jnp.zeros((Cmid, HW), jnp.float32)
        for tap in range(9):
            dy, dx = tap // 3, tap % 3
            win = pad_ref[:, dy:dy + H, dx:dx + W].reshape(Cin, HW)
            acc = acc + jnp.dot(w1_ref[tap], win,
                                preferred_element_type=jnp.float32)
        y1_ref[...] = acc
        # BN1 per-batch partial stats fused into the same pass
        s1_ref[...] = jnp.sum(acc, axis=1, keepdims=True)
        q1_ref[...] = jnp.sum(acc * acc, axis=1, keepdims=True)

    return kernel


# --------------------------------------------------------------------------
# K2: BN1 (training-mode batch stats) + ReLU + conv2 (9 tap matmuls)
#     + BN2 per-batch partial stats.
# --------------------------------------------------------------------------
def _make_bn_relu_conv2_kernel(N, H, W, Cmid, Cout):
    HW = H * W
    inv_cnt = 1.0 / float(N * H * W)

    def kernel(y1_ref, s1_ref, q1_ref, g1_ref, b1_ref, w2_ref,
               y2_ref, s2_ref, q2_ref, pad_ref):
        @pl.when(pl.program_id(0) == 0)
        def _():
            pad_ref[...] = jnp.zeros_like(pad_ref)

        # global (training-mode, biased) BN1 stats from per-batch partials
        mean = jnp.sum(s1_ref[...], axis=0) * inv_cnt            # (Cmid, 1)
        var = jnp.sum(q1_ref[...], axis=0) * inv_cnt - mean * mean
        scale = g1_ref[...] * jax.lax.rsqrt(var + _BN_EPS)
        shift = b1_ref[...] - mean * scale
        z1 = jnp.maximum(y1_ref[...] * scale + shift, 0.0)       # (Cmid, HW)
        pad_ref[:, 1:H + 1, 1:W + 1] = z1.reshape(Cmid, H, W)

        acc = jnp.zeros((Cout, HW), jnp.float32)
        for tap in range(9):
            dy, dx = tap // 3, tap % 3
            win = pad_ref[:, dy:dy + H, dx:dx + W].reshape(Cmid, HW)
            acc = acc + jnp.dot(w2_ref[tap], win,
                                preferred_element_type=jnp.float32)
        y2_ref[...] = acc
        s2_ref[...] = jnp.sum(acc, axis=1, keepdims=True)
        q2_ref[...] = jnp.sum(acc * acc, axis=1, keepdims=True)

    return kernel


# --------------------------------------------------------------------------
# K3: BN2 (batch stats) + ReLU, emitted channels-first (already NCHW layout).
# --------------------------------------------------------------------------
def _make_bn_relu_kernel(N, H, W):
    inv_cnt = 1.0 / float(N * H * W)

    def kernel(y2_ref, s2_ref, q2_ref, g2_ref, b2_ref, o_ref):
        mean = jnp.sum(s2_ref[...], axis=0) * inv_cnt
        var = jnp.sum(q2_ref[...], axis=0) * inv_cnt - mean * mean
        scale = g2_ref[...] * jax.lax.rsqrt(var + _BN_EPS)
        shift = b2_ref[...] - mean * scale
        o_ref[...] = jnp.maximum(y2_ref[...] * scale + shift, 0.0)

    return kernel


# --------------------------------------------------------------------------
# host-side constants / parameters
# --------------------------------------------------------------------------
def _align_corners_matrix(n_in, n_out):
    """(n_out, n_in) interpolation matrix: out = M @ in (align_corners=True)."""
    M = np.zeros((n_out, n_in), np.float64)
    if n_in == 1 or n_out == 1:
        M[:, 0] = 1.0
        return M.astype(np.float32)
    src = np.arange(n_out) * (n_in - 1) / (n_out - 1)
    i0 = np.clip(np.floor(src).astype(np.int64), 0, n_in - 1)
    i1 = np.minimum(i0 + 1, n_in - 1)
    w1 = src - i0
    M[np.arange(n_out), i0] += 1.0 - w1
    M[np.arange(n_out), i1] += w1
    return M.astype(np.float32)


def init_upscaling_params(key, in_channels, out_channels):
    """Deterministic synthetic parameters (shapes match the nn.Module __init__)."""
    k1, k2, k3, k4, k5, k6 = jax.random.split(key, 6)
    return dict(
        w1=jax.random.normal(k1, (out_channels, in_channels, 3, 3), jnp.float32) * 0.1,
        w2=jax.random.normal(k2, (out_channels, out_channels, 3, 3), jnp.float32) * 0.1,
        g1=1.0 + 0.1 * jax.random.normal(k3, (out_channels,), jnp.float32),
        b1=0.1 * jax.random.normal(k4, (out_channels,), jnp.float32),
        g2=1.0 + 0.1 * jax.random.normal(k5, (out_channels,), jnp.float32),
        b2=0.1 * jax.random.normal(k6, (out_channels,), jnp.float32),
    )


# --------------------------------------------------------------------------
# forward wrapper (NCHW in / NCHW out, PyTorch convention)
# --------------------------------------------------------------------------
def upscaling_forward(params, x1, x2):
    N, C1, H1, W1 = x1.shape
    N2, C2, H, W = x2.shape
    assert N2 == N
    Hup, Wup = 2 * H1, 2 * W1
    diffY, diffX = H - Hup, W - Wup
    # TODO(synk): negative diffY/diffX (F.pad cropping case) not handled; the
    # reference example always has diff >= 0.
    assert diffY >= 0 and diffX >= 0
    py0, px0 = diffY // 2, diffX // 2

    Cin = C1 + C2
    Cmid = params["w1"].shape[0]
    Cout = params["w2"].shape[0]
    HW = H * W
    Hp, Wp = H + 2, W + 2

    uh = jnp.asarray(_align_corners_matrix(H1, Hup))             # (Hup, H1)
    uwT = jnp.asarray(_align_corners_matrix(W1, Wup).T)          # (W1, Wup)

    # conv weights as (tap, Cout, Cin) for the 9 accumulated tap matmuls
    w1_9 = jnp.transpose(params["w1"], (2, 3, 0, 1)).reshape(9, Cmid, Cin)
    w2_9 = jnp.transpose(params["w2"], (2, 3, 0, 1)).reshape(9, Cout, Cmid)
    g1 = params["g1"].reshape(Cmid, 1)
    b1 = params["b1"].reshape(Cmid, 1)
    g2 = params["g2"].reshape(Cout, 1)
    b2 = params["b2"].reshape(Cout, 1)

    vlim = _vmem_limit_bytes()
    # K1/K2 carry an init-once scratch -> keep the grid axis "arbitrary"
    # (sequential, megacore-safe); measured cost vs "parallel" is ~0.
    cp_seq = pltpu.CompilerParams(dimension_semantics=("arbitrary",),
                                  vmem_limit_bytes=vlim)
    cp_par = pltpu.CompilerParams(dimension_semantics=("parallel",),
                                  vmem_limit_bytes=vlim)

    # ---- K1: upsample + pad + concat + conv1 + BN1 partials (per batch)
    # TODO(synk): for real UNet sizes on v7x (64 MiB VMEM) tile H*W into
    # halo'd row strips; unnecessary at these shapes.
    y1, s1, q1 = pl.pallas_call(
        _make_concat_conv1_kernel(C1, C2, Cmid, H, W, Hup, Wup, py0, px0),
        grid=(N,),
        in_specs=[pl.BlockSpec((None, C1, H1, W1), lambda n: (n, 0, 0, 0)),
                  pl.BlockSpec((None, C2, H, W), lambda n: (n, 0, 0, 0)),
                  pl.BlockSpec((Hup, H1), lambda n: (0, 0)),
                  pl.BlockSpec((W1, Wup), lambda n: (0, 0)),
                  pl.BlockSpec((9, Cmid, Cin), lambda n: (0, 0, 0))],
        out_specs=(pl.BlockSpec((None, Cmid, HW), lambda n: (n, 0, 0)),
                   pl.BlockSpec((None, Cmid, 1), lambda n: (n, 0, 0)),
                   pl.BlockSpec((None, Cmid, 1), lambda n: (n, 0, 0))),
        out_shape=(jax.ShapeDtypeStruct((N, Cmid, HW), jnp.float32),
                   jax.ShapeDtypeStruct((N, Cmid, 1), jnp.float32),
                   jax.ShapeDtypeStruct((N, Cmid, 1), jnp.float32)),
        scratch_shapes=[pltpu.VMEM((Cin, Hp, Wp), jnp.float32)],
        compiler_params=cp_seq,
    )(x1, x2, uh, uwT, w1_9)

    # ---- K2: BN1 + ReLU + conv2 + BN2 partials (per batch)
    y2, s2, q2 = pl.pallas_call(
        _make_bn_relu_conv2_kernel(N, H, W, Cmid, Cout),
        grid=(N,),
        in_specs=[pl.BlockSpec((None, Cmid, HW), lambda n: (n, 0, 0)),
                  pl.BlockSpec((N, Cmid, 1), lambda n: (0, 0, 0)),
                  pl.BlockSpec((N, Cmid, 1), lambda n: (0, 0, 0)),
                  pl.BlockSpec((Cmid, 1), lambda n: (0, 0)),
                  pl.BlockSpec((Cmid, 1), lambda n: (0, 0)),
                  pl.BlockSpec((9, Cout, Cmid), lambda n: (0, 0, 0))],
        out_specs=(pl.BlockSpec((None, Cout, HW), lambda n: (n, 0, 0)),
                   pl.BlockSpec((None, Cout, 1), lambda n: (n, 0, 0)),
                   pl.BlockSpec((None, Cout, 1), lambda n: (n, 0, 0))),
        out_shape=(jax.ShapeDtypeStruct((N, Cout, HW), jnp.float32),
                   jax.ShapeDtypeStruct((N, Cout, 1), jnp.float32),
                   jax.ShapeDtypeStruct((N, Cout, 1), jnp.float32)),
        scratch_shapes=[pltpu.VMEM((Cmid, Hp, Wp), jnp.float32)],
        compiler_params=cp_seq,
    )(y1, s1, q1, g1, b1, w2_9)

    # ---- K3: BN2 + ReLU (per batch), already channels-first
    out = pl.pallas_call(
        _make_bn_relu_kernel(N, H, W),
        grid=(N,),
        in_specs=[pl.BlockSpec((None, Cout, HW), lambda n: (n, 0, 0)),
                  pl.BlockSpec((N, Cout, 1), lambda n: (0, 0, 0)),
                  pl.BlockSpec((N, Cout, 1), lambda n: (0, 0, 0)),
                  pl.BlockSpec((Cout, 1), lambda n: (0, 0)),
                  pl.BlockSpec((Cout, 1), lambda n: (0, 0))],
        out_specs=pl.BlockSpec((None, Cout, HW), lambda n: (n, 0, 0)),
        out_shape=jax.ShapeDtypeStruct((N, Cout, HW), jnp.float32),
        compiler_params=cp_par,
    )(y2, s2, q2, g2, b2)

    # (N, Cout, H*W) -> (N, Cout, H, W) is a free metadata reshape (NCHW).
    return out.reshape(N, Cout, H, W)


# --------------------------------------------------------------------------
# Pure-JAX reference (same math) for the correctness check.
# --------------------------------------------------------------------------
def upscaling_reference(params, x1, x2):
    N, C1, H1, W1 = x1.shape
    uh = _align_corners_matrix(H1, 2 * H1)
    uw = _align_corners_matrix(W1, 2 * W1)
    M = jnp.asarray(np.kron(uh, uw).T)
    x1u = (x1.reshape(N * C1, H1 * W1) @ M).reshape(N, C1, 2 * H1, 2 * W1)
    diffY = x2.shape[2] - x1u.shape[2]
    diffX = x2.shape[3] - x1u.shape[3]
    py0, px0 = diffY // 2, diffX // 2
    x1u = jnp.pad(x1u, ((0, 0), (0, 0), (py0, diffY - py0), (px0, diffX - px0)))
    x = jnp.concatenate([x2, x1u], axis=1)

    def conv_bn_relu(x, w, g, b):
        y = jax.lax.conv_general_dilated(
            x, w, (1, 1), ((1, 1), (1, 1)),
            dimension_numbers=("NCHW", "OIHW", "NCHW"))
        mean = y.mean(axis=(0, 2, 3), keepdims=True)
        var = ((y - mean) ** 2).mean(axis=(0, 2, 3), keepdims=True)
        y = (y - mean) * jax.lax.rsqrt(var + _BN_EPS)
        return jnp.maximum(y * g.reshape(1, -1, 1, 1) + b.reshape(1, -1, 1, 1), 0.0)

    y = conv_bn_relu(x, params["w1"], params["g1"], params["b1"])
    return conv_bn_relu(y, params["w2"], params["g2"], params["b2"])


if __name__ == "__main__":
    key = jax.random.PRNGKey(0)
    kx1, kx2, kp = jax.random.split(key, 3)

    in_channels, out_channels = 8, 4                          # DoubleConv(8 -> 4)
    x1 = jax.random.normal(kx1, (2, in_channels // 2, 8, 8), jnp.float32)
    x2 = jax.random.normal(kx2, (2, in_channels // 2, 16, 16), jnp.float32)
    params = init_upscaling_params(kp, in_channels, out_channels)

    fwd = jax.jit(upscaling_forward)
    out = jax.block_until_ready(fwd(params, x1, x2))

    ref = upscaling_reference(params, x1, x2)
    np.testing.assert_allclose(np.asarray(out), np.asarray(ref),
                               rtol=1e-4, atol=1e-4)
    print("KERNEL_OK")
</pallas_src>

<mosaic_0001>
module attributes {stable_mosaic.version = 11 : i64} {
  func.func @kernel(%arg0: i32, %arg1: memref<1x4x256xf32, #tpu.memory_space<vmem>>, %arg2: memref<2x4x1xf32, #tpu.memory_space<vmem>>, %arg3: memref<2x4x1xf32, #tpu.memory_space<vmem>>, %arg4: memref<4x1xf32, #tpu.memory_space<vmem>>, %arg5: memref<4x1xf32, #tpu.memory_space<vmem>>, %arg6: memref<1x4x256xf32, #tpu.memory_space<vmem>>) attributes {dimension_semantics = [#tpu.dimension_semantics<parallel>], iteration_bounds = array<i64: 2>, scalar_prefetch = 0 : i64, scratch_operands = 0 : i64, tpu.core_type = #tpu.core_type<tc>, window_params = [{transform_indices = @transform_0, window_bounds = array<i64: 1, 4, 256>}, {pipeline_mode = #tpu.pipeline_mode<synchronous>, transform_indices = @transform_1, window_bounds = array<i64: 2, 4, 1>}, {pipeline_mode = #tpu.pipeline_mode<synchronous>, transform_indices = @transform_2, window_bounds = array<i64: 2, 4, 1>}, {pipeline_mode = #tpu.pipeline_mode<synchronous>, transform_indices = @transform_3, window_bounds = array<i64: 4, 1>}, {pipeline_mode = #tpu.pipeline_mode<synchronous>, transform_indices = @transform_4, window_bounds = array<i64: 4, 1>}, {transform_indices = @transform_5, window_bounds = array<i64: 1, 4, 256>}]} {
    %c0 = arith.constant 0 : index
    %c0_0 = arith.constant 0 : index
    %c0_1 = arith.constant 0 : index
    %0 = vector.load %arg2[%c0, %c0_0, %c0_1] : memref<2x4x1xf32, #tpu.memory_space<vmem>>, vector<2x4x1xf32>
    %cst = arith.constant dense<0.000000e+00> : vector<4x1xf32>
    %1 = vector.multi_reduction <add>, %0, %cst [0] : vector<2x4x1xf32> to vector<4x1xf32>
    %cst_2 = arith.constant 0.001953125 : f32
    %2 = vector.broadcast %cst_2 : f32 to vector<4x1xf32>
    %3 = arith.mulf %1, %2 : vector<4x1xf32>
    %c0_3 = arith.constant 0 : index
    %c0_4 = arith.constant 0 : index
    %c0_5 = arith.constant 0 : index
    %4 = vector.load %arg3[%c0_3, %c0_4, %c0_5] : memref<2x4x1xf32, #tpu.memory_space<vmem>>, vector<2x4x1xf32>
    %cst_6 = arith.constant dense<0.000000e+00> : vector<4x1xf32>
    %5 = vector.multi_reduction <add>, %4, %cst_6 [0] : vector<2x4x1xf32> to vector<4x1xf32>
    %cst_7 = arith.constant 0.001953125 : f32
    %6 = vector.broadcast %cst_7 : f32 to vector<4x1xf32>
    %7 = arith.mulf %5, %6 : vector<4x1xf32>
    %8 = arith.mulf %3, %3 : vector<4x1xf32>
    %9 = arith.subf %7, %8 : vector<4x1xf32>
    %c0_8 = arith.constant 0 : index
    %c0_9 = arith.constant 0 : index
    %10 = vector.load %arg4[%c0_8, %c0_9] : memref<4x1xf32, #tpu.memory_space<vmem>>, vector<4x1xf32>
    %cst_10 = arith.constant 9.99999974E-6 : f32
    %11 = vector.broadcast %cst_10 : f32 to vector<4x1xf32>
    %12 = arith.addf %9, %11 : vector<4x1xf32>
    %13 = math.rsqrt %12 : vector<4x1xf32>
    %14 = arith.mulf %10, %13 : vector<4x1xf32>
    %c0_11 = arith.constant 0 : index
    %c0_12 = arith.constant 0 : index
    %15 = vector.load %arg5[%c0_11, %c0_12] : memref<4x1xf32, #tpu.memory_space<vmem>>, vector<4x1xf32>
    %16 = arith.mulf %3, %14 : vector<4x1xf32>
    %17 = arith.subf %15, %16 : vector<4x1xf32>
    %c0_13 = arith.constant 0 : index
    %c0_14 = arith.constant 0 : index
    %c0_15 = arith.constant 0 : index
    %18 = vector.load %arg1[%c0_13, %c0_14, %c0_15] : memref<1x4x256xf32, #tpu.memory_space<vmem>>, vector<1x4x256xf32>
    %19 = vector.shape_cast %18 : vector<1x4x256xf32> to vector<4x256xf32>
    %20 = vector.broadcast %14 : vector<4x1xf32> to vector<4x256xf32>
    %21 = arith.mulf %19, %20 : vector<4x256xf32>
    %22 = vector.broadcast %17 : vector<4x1xf32> to vector<4x256xf32>
    %23 = arith.addf %21, %22 : vector<4x256xf32>
    %cst_16 = arith.constant 0.000000e+00 : f32
    %24 = vector.broadcast %cst_16 : f32 to vector<4x256xf32>
    %25 = arith.maximumf %23, %24 : vector<4x256xf32>
    %c0_17 = arith.constant 0 : index
    %c0_18 = arith.constant 0 : index
    %c0_19 = arith.constant 0 : index
    %26 = vector.load %arg6[%c0_17, %c0_18, %c0_19] : memref<1x4x256xf32, #tpu.memory_space<vmem>>, vector<1x4x256xf32>
    %27 = vector.shape_cast %26 : vector<1x4x256xf32> to vector<4x256xf32>
    %28 = vector.shape_cast %25 : vector<4x256xf32> to vector<1x4x256xf32>
    tpu.vector_store %arg6[%c0_17, %c0_18, %c0_19], %28 {strides = array<i32>} : memref<1x4x256xf32, #tpu.memory_space<vmem>>, vector<1x4x256xf32>,
    return
  }
  func.func @transform_0(%arg0: i32) -> (i32, i32, i32) {
    %c0_i32 = arith.constant 0 : i32
    %c0_i32_0 = arith.constant 0 : i32
    %c0_i32_1 = arith.constant 0 : i32
    return %arg0, %c0_i32, %c0_i32_0 : i32, i32, i32
  }
  func.func @transform_1(%arg0: i32) -> (i32, i32, i32) {
    %c0_i32 = arith.constant 0 : i32
    %c0_i32_0 = arith.constant 0 : i32
    %c0_i32_1 = arith.constant 0 : i32
    %c0_i32_2 = arith.constant 0 : i32
    return %c0_i32, %c0_i32_0, %c0_i32_1 : i32, i32, i32
  }
  func.func @transform_2(%arg0: i32) -> (i32, i32, i32) {
    %c0_i32 = arith.constant 0 : i32
    %c0_i32_0 = arith.constant 0 : i32
    %c0_i32_1 = arith.constant 0 : i32
    %c0_i32_2 = arith.constant 0 : i32
    return %c0_i32, %c0_i32_0, %c0_i32_1 : i32, i32, i32
  }
  func.func @transform_3(%arg0: i32) -> (i32, i32) {
    %c0_i32 = arith.constant 0 : i32
    %c0_i32_0 = arith.constant 0 : i32
    %c0_i32_1 = arith.constant 0 : i32
    return %c0_i32, %c0_i32_0 : i32, i32
  }
  func.func @transform_4(%arg0: i32) -> (i32, i32) {
    %c0_i32 = arith.constant 0 : i32
    %c0_i32_0 = arith.constant 0 : i32
    %c0_i32_1 = arith.constant 0 : i32
    return %c0_i32, %c0_i32_0 : i32, i32
  }
  func.func @transform_5(%arg0: i32) -> (i32, i32, i32) {
    %c0_i32 = arith.constant 0 : i32
    %c0_i32_0 = arith.constant 0 : i32
    %c0_i32_1 = arith.constant 0 : i32
    return %arg0, %c0_i32, %c0_i32_0 : i32, i32, i32
  }
}

module attributes {stable_mosaic.version = 11 : i64} {
  func.func @kernel(%arg0: i32, %arg1: memref<1x4x8x8xf32, #tpu.memory_space<vmem>>, %arg2: memref<1x4x16x16xf32, #tpu.memory_space<vmem>>, %arg3: memref<16x8xf32, #tpu.memory_space<vmem>>, %arg4: memref<8x16xf32, #tpu.memory_space<vmem>>, %arg5: memref<9x4x8xf32, #tpu.memory_space<vmem>>, %arg6: memref<1x4x256xf32, #tpu.memory_space<vmem>>, %arg7: memref<1x4x1xf32, #tpu.memory_space<vmem>>, %arg8: memref<1x4x1xf32, #tpu.memory_space<vmem>>, %arg9: memref<8x18x18xf32, #tpu.memory_space<vmem>>) attributes {dimension_semantics = [#tpu.dimension_semantics<arbitrary>], iteration_bounds = array<i64: 2>, scalar_prefetch = 0 : i64, scratch_operands = 1 : i64, tpu.core_type = #tpu.core_type<tc>, window_params = [{transform_indices = @transform_0, window_bounds = array<i64: 1, 4, 8, 8>}, {transform_indices = @transform_1, window_bounds = array<i64: 1, 4, 16, 16>}, {pipeline_mode = #tpu.pipeline_mode<synchronous>, transform_indices = @transform_2, window_bounds = array<i64: 16, 8>}, {pipeline_mode = #tpu.pipeline_mode<synchronous>, transform_indices = @transform_3, window_bounds = array<i64: 8, 16>}, {pipeline_mode = #tpu.pipeline_mode<synchronous>, transform_indices = @transform_4, window_bounds = array<i64: 9, 4, 8>}, {transform_indices = @transform_5, window_bounds = array<i64: 1, 4, 256>}, {transform_indices = @transform_6, window_bounds = array<i64: 1, 4, 1>}, {transform_indices = @transform_7, window_bounds = array<i64: 1, 4, 1>}]} {
    %c0_i32 = arith.constant 0 : i32
    %0 = arith.cmpi eq, %arg0, %c0_i32 : i32
    %1 = arith.extui %0 : i1 to i32
    %c0_i32_0 = arith.constant 0 : i32
    %2 = arith.cmpi ne, %1, %c0_i32_0 : i32
    scf.if %2 {
      %cst_113 = arith.constant 0.000000e+00 : f32
      %101 = vector.broadcast %cst_113 : f32 to vector<8x18x18xf32>
      %c0_114 = arith.constant 0 : index
      %c0_115 = arith.constant 0 : index
      %c0_116 = arith.constant 0 : index
      %102 = vector.load %arg9[%c0_114, %c0_115, %c0_116] : memref<8x18x18xf32, #tpu.memory_space<vmem>>, vector<8x18x18xf32>
      tpu.vector_store %arg9[%c0_114, %c0_115, %c0_116], %101 {strides = array<i32>} : memref<8x18x18xf32, #tpu.memory_space<vmem>>, vector<8x18x18xf32>,
    } else {
    }
    %c0 = arith.constant 0 : index
    %c0_1 = arith.constant 0 : index
    %c0_2 = arith.constant 0 : index
    %c0_3 = arith.constant 0 : index
    %3 = vector.load %arg2[%c0, %c0_1, %c0_2, %c0_3] : memref<1x4x16x16xf32, #tpu.memory_space<vmem>>, vector<1x4x16x16xf32>
    %4 = vector.shape_cast %3 : vector<1x4x16x16xf32> to vector<4x16x16xf32>
    %c0_4 = arith.constant 0 : index
    %c1 = arith.constant 1 : index
    %c1_5 = arith.constant 1 : index
    %5 = vector.load %arg9[%c0_4, %c1, %c1_5] : memref<8x18x18xf32, #tpu.memory_space<vmem>>, vector<4x16x16xf32>
    tpu.vector_store %arg9[%c0_4, %c1, %c1_5], %4 {strides = array<i32>} : memref<8x18x18xf32, #tpu.memory_space<vmem>>, vector<4x16x16xf32>,
    %c0_6 = arith.constant 0 : index
    %c0_7 = arith.constant 0 : index
    %6 = vector.load %arg3[%c0_6, %c0_7] : memref<16x8xf32, #tpu.memory_space<vmem>>, vector<16x8xf32>
    %c0_8 = arith.constant 0 : index
    %c0_9 = arith.constant 0 : index
    %7 = vector.load %arg4[%c0_8, %c0_9] : memref<8x16xf32, #tpu.memory_space<vmem>>, vector<8x16xf32>
    %c0_10 = arith.constant 0 : index
    %c0_11 = arith.constant 0 : index
    %c0_12 = arith.constant 0 : index
    %c0_13 = arith.constant 0 : index
    %8 = vector.load %arg1[%c0_10, %c0_11, %c0_12, %c0_13] : memref<1x4x8x8xf32, #tpu.memory_space<vmem>>, vector<1x1x8x8xf32>
    %9 = vector.shape_cast %8 : vector<1x1x8x8xf32> to vector<8x8xf32>
    %cst = arith.constant dense<0.000000e+00> : vector<16x8xf32>
    %10 = tpu.matmul %6, %9, %cst {dimension_numbers = #tpu.dot_dimension_numbers<[1], [0], [0], [1], [0, 0, 1, 1], [], []>} : vector<16x8xf32>, vector<8x8xf32>, vector<16x8xf32> -> vector<16x8xf32>
    %cst_14 = arith.constant dense<0.000000e+00> : vector<16x16xf32>
    %11 = tpu.matmul %10, %7, %cst_14 {dimension_numbers = #tpu.dot_dimension_numbers<[1], [0], [0], [1], [0, 0, 1, 1], [], []>} : vector<16x8xf32>, vector<8x16xf32>, vector<16x16xf32> -> vector<16x16xf32>
    %12 = vector.shape_cast %11 : vector<16x16xf32> to vector<1x16x16xf32>
    %c4 = arith.constant 4 : index
    %c1_15 = arith.constant 1 : index
    %c1_16 = arith.constant 1 : index
    %13 = vector.load %arg9[%c4, %c1_15, %c1_16] : memref<8x18x18xf32, #tpu.memory_space<vmem>>, vector<1x16x16xf32>
    tpu.vector_store %arg9[%c4, %c1_15, %c1_16], %12 {strides = array<i32>} : memref<8x18x18xf32, #tpu.memory_space<vmem>>, vector<1x16x16xf32>,
    %c0_17 = arith.constant 0 : index
    %c1_18 = arith.constant 1 : index
    %c0_19 = arith.constant 0 : index
    %c0_20 = arith.constant 0 : index
    %14 = vector.load %arg1[%c0_17, %c1_18, %c0_19, %c0_20] : memref<1x4x8x8xf32, #tpu.memory_space<vmem>>, vector<1x1x8x8xf32>
    %15 = vector.shape_cast %14 : vector<1x1x8x8xf32> to vector<8x8xf32>
    %cst_21 = arith.constant dense<0.000000e+00> : vector<16x8xf32>
    %16 = tpu.matmul %6, %15, %cst_21 {dimension_numbers = #tpu.dot_dimension_numbers<[1], [0], [0], [1], [0, 0, 1, 1], [], []>} : vector<16x8xf32>, vector<8x8xf32>, vector<16x8xf32> -> vector<16x8xf32>
    %cst_22 = arith.constant dense<0.000000e+00> : vector<16x16xf32>
    %17 = tpu.matmul %16, %7, %cst_22 {dimension_numbers = #tpu.dot_dimension_numbers<[1], [0], [0], [1], [0, 0, 1, 1], [], []>} : vector<16x8xf32>, vector<8x16xf32>, vector<16x16xf32> -> vector<16x16xf32>
    %18 = vector.shape_cast %17 : vector<16x16xf32> to vector<1x16x16xf32>
    %c5 = arith.constant 5 : index
    %c1_23 = arith.constant 1 : index
    %c1_24 = arith.constant 1 : index
    %19 = vector.load %arg9[%c5, %c1_23, %c1_24] : memref<8x18x18xf32, #tpu.memory_space<vmem>>, vector<1x16x16xf32>
    tpu.vector_store %arg9[%c5, %c1_23, %c1_24], %18 {strides = array<i32>} : memref<8x18x18xf32, #tpu.memory_space<vmem>>, vector<1x16x16xf32>,
    %c0_25 = arith.constant 0 : index
    %c2 = arith.constant 2 : index
    %c0_26 = arith.constant 0 : index
    %c0_27 = arith.constant 0 : index
    %20 = vector.load %arg1[%c0_25, %c2, %c0_26, %c0_27] : memref<1x4x8x8xf32, #tpu.memory_space<vmem>>, vector<1x1x8x8xf32>
    %21 = vector.shape_cast %20 : vector<1x1x8x8xf32> to vector<8x8xf32>
    %cst_28 = arith.constant dense<0.000000e+00> : vector<16x8xf32>
    %22 = tpu.matmul %6, %21, %cst_28 {dimension_numbers = #tpu.dot_dimension_numbers<[1], [0], [0], [1], [0, 0, 1, 1], [], []>} : vector<16x8xf32>, vector<8x8xf32>, vector<16x8xf32> -> vector<16x8xf32>
    %cst_29 = arith.constant dense<0.000000e+00> : vector<16x16xf32>
    %23 = tpu.matmul %22, %7, %cst_29 {dimension_numbers = #tpu.dot_dimension_numbers<[1], [0], [0], [1], [0, 0, 1, 1], [], []>} : vector<16x8xf32>, vector<8x16xf32>, vector<16x16xf32> -> vector<16x16xf32>
    %24 = vector.shape_cast %23 : vector<16x16xf32> to vector<1x16x16xf32>
    %c6 = arith.constant 6 : index
    %c1_30 = arith.constant 1 : index
    %c1_31 = arith.constant 1 : index
    %25 = vector.load %arg9[%c6, %c1_30, %c1_31] : memref<8x18x18xf32, #tpu.memory_space<vmem>>, vector<1x16x16xf32>
    tpu.vector_store %arg9[%c6, %c1_30, %c1_31], %24 {strides = array<i32>} : memref<8x18x18xf32, #tpu.memory_space<vmem>>, vector<1x16x16xf32>,
    %c0_32 = arith.constant 0 : index
    %c3 = arith.constant 3 : index
    %c0_33 = arith.constant 0 : index
    %c0_34 = arith.constant 0 : index
    %26 = vector.load %arg1[%c0_32, %c3, %c0_33, %c0_34] : memref<1x4x8x8xf32, #tpu.memory_space<vmem>>, vector<1x1x8x8xf32>
    %27 = vector.shape_cast %26 : vector<1x1x8x8xf32> to vector<8x8xf32>
    %cst_35 = arith.constant dense<0.000000e+00> : vector<16x8xf32>
    %28 = tpu.matmul %6, %27, %cst_35 {dimension_numbers = #tpu.dot_dimension_numbers<[1], [0], [0], [1], [0, 0, 1, 1], [], []>} : vector<16x8xf32>, vector<8x8xf32>, vector<16x8xf32> -> vector<16x8xf32>
    %cst_36 = arith.constant dense<0.000000e+00> : vector<16x16xf32>
    %29 = tpu.matmul %28, %7, %cst_36 {dimension_numbers = #tpu.dot_dimension_numbers<[1], [0], [0], [1], [0, 0, 1, 1], [], []>} : vector<16x8xf32>, vector<8x16xf32>, vector<16x16xf32> -> vector<16x16xf32>
    %30 = vector.shape_cast %29 : vector<16x16xf32> to vector<1x16x16xf32>
    %c7 = arith.constant 7 : index
    %c1_37 = arith.constant 1 : index
    %c1_38 = arith.constant 1 : index
    %31 = vector.load %arg9[%c7, %c1_37, %c1_38] : memref<8x18x18xf32, #tpu.memory_space<vmem>>, vector<1x16x16xf32>
    tpu.vector_store %arg9[%c7, %c1_37, %c1_38], %30 {strides = array<i32>} : memref<8x18x18xf32, #tpu.memory_space<vmem>>, vector<1x16x16xf32>,
    %cst_39 = arith.constant 0.000000e+00 : f32
    %32 = vector.broadcast %cst_39 : f32 to vector<4x256xf32>
    %c0_40 = arith.constant 0 : index
    %c0_41 = arith.constant 0 : index
    %c0_42 = arith.constant 0 : index
    %33 = vector.load %arg9[%c0_40, %c0_41, %c0_42] : memref<8x18x18xf32, #tpu.memory_space<vmem>>, vector<8x16x16xf32>
    %34 = vector.shape_cast %33 : vector<8x16x16xf32> to vector<8x256xf32>
    %c0_43 = arith.constant 0 : index
    %c0_44 = arith.constant 0 : index
    %c0_45 = arith.constant 0 : index
    %35 = vector.load %arg5[%c0_43, %c0_44, %c0_45] : memref<9x4x8xf32, #tpu.memory_space<vmem>>, vector<1x4x8xf32>
    %36 = vector.shape_cast %35 : vector<1x4x8xf32> to vector<4x8xf32>
    %cst_46 = arith.constant dense<0.000000e+00> : vector<4x256xf32>
    %37 = tpu.matmul %36, %34, %cst_46 {dimension_numbers = #tpu.dot_dimension_numbers<[1], [0], [0], [1], [0, 0, 1, 1], [], []>} : vector<4x8xf32>, vector<8x256xf32>, vector<4x256xf32> -> vector<4x256xf32>
    %38 = arith.addf %32, %37 : vector<4x256xf32>
    %c0_47 = arith.constant 0 : index
    %c0_48 = arith.constant 0 : index
    %c1_49 = arith.constant 1 : index
    %39 = vector.load %arg9[%c0_47, %c0_48, %c1_49] : memref<8x18x18xf32, #tpu.memory_space<vmem>>, vector<8x16x16xf32>
    %40 = vector.shape_cast %39 : vector<8x16x16xf32> to vector<8x256xf32>
    %c1_50 = arith.constant 1 : index
    %c0_51 = arith.constant 0 : index
    %c0_52 = arith.constant 0 : index
    %41 = vector.load %arg5[%c1_50, %c0_51, %c0_52] : memref<9x4x8xf32, #tpu.memory_space<vmem>>, vector<1x4x8xf32>
    %42 = vector.shape_cast %41 : vector<1x4x8xf32> to vector<4x8xf32>
    %cst_53 = arith.constant dense<0.000000e+00> : vector<4x256xf32>
    %43 = tpu.matmul %42, %40, %cst_53 {dimension_numbers = #tpu.dot_dimension_numbers<[1], [0], [0], [1], [0, 0, 1, 1], [], []>} : vector<4x8xf32>, vector<8x256xf32>, vector<4x256xf32> -> vector<4x256xf32>
    %44 = arith.addf %38, %43 : vector<4x256xf32>
    %c0_54 = arith.constant 0 : index
    %c0_55 = arith.constant 0 : index
    %c2_56 = arith.constant 2 : index
    %45 = vector.load %arg9[%c0_54, %c0_55, %c2_56] : memref<8x18x18xf32, #tpu.memory_space<vmem>>, vector<8x16x16xf32>
    %46 = vector.shape_cast %45 : vector<8x16x16xf32> to vector<8x256xf32>
    %c2_57 = arith.constant 2 : index
    %c0_58 = arith.constant 0 : index
    %c0_59 = arith.constant 0 : index
    %47 = vector.load %arg5[%c2_57, %c0_58, %c0_59] : memref<9x4x8xf32, #tpu.memory_space<vmem>>, vector<1x4x8xf32>
    %48 = vector.shape_cast %47 : vector<1x4x8xf32> to vector<4x8xf32>
    %cst_60 = arith.constant dense<0.000000e+00> : vector<4x256xf32>
    %49 = tpu.matmul %48, %46, %cst_60 {dimension_numbers = #tpu.dot_dimension_numbers<[1], [0], [0], [1], [0, 0, 1, 1], [], []>} : vector<4x8xf32>, vector<8x256xf32>, vector<4x256xf32> -> vector<4x256xf32>
    %50 = arith.addf %44, %49 : vector<4x256xf32>
    %c0_61 = arith.constant 0 : index
    %c1_62 = arith.constant 1 : index
    %c0_63 = arith.constant 0 : index
    %51 = vector.load %arg9[%c0_61, %c1_62, %c0_63] : memref<8x18x18xf32, #tpu.memory_space<vmem>>, vector<8x16x16xf32>
    %52 = vector.shape_cast %51 : vector<8x16x16xf32> to vector<8x256xf32>
    %c3_64 = arith.constant 3 : index
    %c0_65 = arith.constant 0 : index
    %c0_66 = arith.constant 0 : index
    %53 = vector.load %arg5[%c3_64, %c0_65, %c0_66] : memref<9x4x8xf32, #tpu.memory_space<vmem>>, vector<1x4x8xf32>
    %54 = vector.shape_cast %53 : vector<1x4x8xf32> to vector<4x8xf32>
    %cst_67 = arith.constant dense<0.000000e+00> : vector<4x256xf32>
    %55 = tpu.matmul %54, %52, %cst_67 {dimension_numbers = #tpu.dot_dimension_numbers<[1], [0], [0], [1], [0, 0, 1, 1], [], []>} : vector<4x8xf32>, vector<8x256xf32>, vector<4x256xf32> -> vector<4x256xf32>
    %56 = arith.addf %50, %55 : vector<4x256xf32>
    %c0_68 = arith.constant 0 : index
    %c1_69 = arith.constant 1 : index
    %c1_70 = arith.constant 1 : index
    %57 = vector.load %arg9[%c0_68, %c1_69, %c1_70] : memref<8x18x18xf32, #tpu.memory_space<vmem>>, vector<8x16x16xf32>
    %58 = vector.shape_cast %57 : vector<8x16x16xf32> to vector<8x256xf32>
    %c4_71 = arith.constant 4 : index
    %c0_72 = arith.constant 0 : index
    %c0_73 = arith.constant 0 : index
    %59 = vector.load %arg5[%c4_71, %c0_72, %c0_73] : memref<9x4x8xf32, #tpu.memory_space<vmem>>, vector<1x4x8xf32>
    %60 = vector.shape_cast %59 : vector<1x4x8xf32> to vector<4x8xf32>
    %cst_74 = arith.constant dense<0.000000e+00> : vector<4x256xf32>
    %61 = tpu.matmul %60, %58, %cst_74 {dimension_numbers = #tpu.dot_dimension_numbers<[1], [0], [0], [1], [0, 0, 1, 1], [], []>} : vector<4x8xf32>, vector<8x256xf32>, vector<4x256xf32> -> vector<4x256xf32>
    %62 = arith.addf %56, %61 : vector<4x256xf32>
    %c0_75 = arith.constant 0 : index
    %c1_76 = arith.constant 1 : index
    %c2_77 = arith.constant 2 : index
    %63 = vector.load %arg9[%c0_75, %c1_76, %c2_77] : memref<8x18x18xf32, #tpu.memory_space<vmem>>, vector<8x16x16xf32>
    %64 = vector.shape_cast %63 : vector<8x16x16xf32> to vector<8x256xf32>
    %c5_78 = arith.constant 5 : index
    %c0_79 = arith.constant 0 : index
    %c0_80 = arith.constant 0 : index
    %65 = vector.load %arg5[%c5_78, %c0_79, %c0_80] : memref<9x4x8xf32, #tpu.memory_space<vmem>>, vector<1x4x8xf32>
    %66 = vector.shape_cast %65 : vector<1x4x8xf32> to vector<4x8xf32>
    %cst_81 = arith.constant dense<0.000000e+00> : vector<4x256xf32>
    %67 = tpu.matmul %66, %64, %cst_81 {dimension_numbers = #tpu.dot_dimension_numbers<[1], [0], [0], [1], [0, 0, 1, 1], [], []>} : vector<4x8xf32>, vector<8x256xf32>, vector<4x256xf32> -> vector<4x256xf32>
    %68 = arith.addf %62, %67 : vector<4x256xf32>
    %c0_82 = arith.constant 0 : index
    %c2_83 = arith.constant 2 : index
    %c0_84 = arith.constant 0 : index
    %69 = vector.load %arg9[%c0_82, %c2_83, %c0_84] : memref<8x18x18xf32, #tpu.memory_space<vmem>>, vector<8x16x16xf32>
    %70 = vector.shape_cast %69 : vector<8x16x16xf32> to vector<8x256xf32>
    %c6_85 = arith.constant 6 : index
    %c0_86 = arith.constant 0 : index
    %c0_87 = arith.constant 0 : index
    %71 = vector.load %arg5[%c6_85, %c0_86, %c0_87] : memref<9x4x8xf32, #tpu.memory_space<vmem>>, vector<1x4x8xf32>
    %72 = vector.shape_cast %71 : vector<1x4x8xf32> to vector<4x8xf32>
    %cst_88 = arith.constant dense<0.000000e+00> : vector<4x256xf32>
    %73 = tpu.matmul %72, %70, %cst_88 {dimension_numbers = #tpu.dot_dimension_numbers<[1], [0], [0], [1], [0, 0, 1, 1], [], []>} : vector<4x8xf32>, vector<8x256xf32>, vector<4x256xf32> -> vector<4x256xf32>
    %74 = arith.addf %68, %73 : vector<4x256xf32>
    %c0_89 = arith.constant 0 : index
    %c2_90 = arith.constant 2 : index
    %c1_91 = arith.constant 1 : index
    %75 = vector.load %arg9[%c0_89, %c2_90, %c1_91] : memref<8x18x18xf32, #tpu.memory_space<vmem>>, vector<8x16x16xf32>
    %76 = vector.shape_cast %75 : vector<8x16x16xf32> to vector<8x256xf32>
    %c7_92 = arith.constant 7 : index
    %c0_93 = arith.constant 0 : index
    %c0_94 = arith.constant 0 : index
    %77 = vector.load %arg5[%c7_92, %c0_93, %c0_94] : memref<9x4x8xf32, #tpu.memory_space<vmem>>, vector<1x4x8xf32>
    %78 = vector.shape_cast %77 : vector<1x4x8xf32> to vector<4x8xf32>
    %cst_95 = arith.constant dense<0.000000e+00> : vector<4x256xf32>
    %79 = tpu.matmul %78, %76, %cst_95 {dimension_numbers = #tpu.dot_dimension_numbers<[1], [0], [0], [1], [0, 0, 1, 1], [], []>} : vector<4x8xf32>, vector<8x256xf32>, vector<4x256xf32> -> vector<4x256xf32>
    %80 = arith.addf %74, %79 : vector<4x256xf32>
    %c0_96 = arith.constant 0 : index
    %c2_97 = arith.constant 2 : index
    %c2_98 = arith.constant 2 : index
    %81 = vector.load %arg9[%c0_96, %c2_97, %c2_98] : memref<8x18x18xf32, #tpu.memory_space<vmem>>, vector<8x16x16xf32>
    %82 = vector.shape_cast %81 : vector<8x16x16xf32> to vector<8x256xf32>
    %c8 = arith.constant 8 : index
    %c0_99 = arith.constant 0 : index
    %c0_100 = arith.constant 0 : index
    %83 = vector.load %arg5[%c8, %c0_99, %c0_100] : memref<9x4x8xf32, #tpu.memory_space<vmem>>, vector<1x4x8xf32>
    %84 = vector.shape_cast %83 : vector<1x4x8xf32> to vector<4x8xf32>
    %cst_101 = arith.constant dense<0.000000e+00> : vector<4x256xf32>
    %85 = tpu.matmul %84, %82, %cst_101 {dimension_numbers = #tpu.dot_dimension_numbers<[1], [0], [0], [1], [0, 0, 1, 1], [], []>} : vector<4x8xf32>, vector<8x256xf32>, vector<4x256xf32> -> vector<4x256xf32>
    %86 = arith.addf %80, %85 : vector<4x256xf32>
    %c0_102 = arith.constant 0 : index
    %c0_103 = arith.constant 0 : index
    %c0_104 = arith.constant 0 : index
    %87 = vector.load %arg6[%c0_102, %c0_103, %c0_104] : memref<1x4x256xf32, #tpu.memory_space<vmem>>, vector<1x4x256xf32>
    %88 = vector.shape_cast %87 : vector<1x4x256xf32> to vector<4x256xf32>
    %89 = vector.shape_cast %86 : vector<4x256xf32> to vector<1x4x256xf32>
    tpu.vector_store %arg6[%c0_102, %c0_103, %c0_104], %89 {strides = array<i32>} : memref<1x4x256xf32, #tpu.memory_space<vmem>>, vector<1x4x256xf32>,
    %cst_105 = arith.constant dense<0.000000e+00> : vector<4xf32>
    %90 = vector.multi_reduction <add>, %86, %cst_105 [1] : vector<4x256xf32> to vector<4xf32>
    %91 = vector.shape_cast %90 : vector<4xf32> to vector<4x1xf32>
    %c0_106 = arith.constant 0 : index
    %c0_107 = arith.constant 0 : index
    %c0_108 = arith.constant 0 : index
    %92 = vector.load %arg7[%c0_106, %c0_107, %c0_108] : memref<1x4x1xf32, #tpu.memory_space<vmem>>, vector<1x4x1xf32>
    %93 = vector.shape_cast %92 : vector<1x4x1xf32> to vector<4x1xf32>
    %94 = vector.shape_cast %91 : vector<4x1xf32> to vector<1x4x1xf32>
    tpu.vector_store %arg7[%c0_106, %c0_107, %c0_108], %94 {strides = array<i32>} : memref<1x4x1xf32, #tpu.memory_space<vmem>>, vector<1x4x1xf32>,
    %95 = arith.mulf %86, %86 : vector<4x256xf32>
    %cst_109 = arith.constant dense<0.000000e+00> : vector<4xf32>
    %96 = vector.multi_reduction <add>, %95, %cst_109 [1] : vector<4x256xf32> to vector<4xf32>
    %97 = vector.shape_cast %96 : vector<4xf32> to vector<4x1xf32>
    %c0_110 = arith.constant 0 : index
    %c0_111 = arith.constant 0 : index
    %c0_112 = arith.constant 0 : index
    %98 = vector.load %arg8[%c0_110, %c0_111, %c0_112] : memref<1x4x1xf32, #tpu.memory_space<vmem>>, vector<1x4x1xf32>
    %99 = vector.shape_cast %98 : vector<1x4x1xf32> to vector<4x1xf32>
    %100 = vector.shape_cast %97 : vector<4x1xf32> to vector<1x4x1xf32>
    tpu.vector_store %arg8[%c0_110, %c0_111, %c0_112], %100 {strides = array<i32>} : memref<1x4x1xf32, #tpu.memory_space<vmem>>, vector<1x4x1xf32>,
    return
  }
  func.func @transform_0(%arg0: i32) -> (i32, i32, i32, i32) {
    %c0_i32 = arith.constant 0 : i32
    %c0_i32_0 = arith.constant 0 : i32
    %c0_i32_1 = arith.constant 0 : i32
    %c0_i32_2 = arith.constant 0 : i32
    return %arg0, %c0_i32, %c0_i32_0, %c0_i32_1 : i32, i32, i32, i32
  }
  func.func @transform_1(%arg0: i32) -> (i32, i32, i32, i32) {
    %c0_i32 = arith.constant 0 : i32
    %c0_i32_0 = arith.constant 0 : i32
    %c0_i32_1 = arith.constant 0 : i32
    %c0_i32_2 = arith.constant 0 : i32
    return %arg0, %c0_i32, %c0_i32_0, %c0_i32_1 : i32, i32, i32, i32
  }
  func.func @transform_2(%arg0: i32) -> (i32, i32) {
    %c0_i32 = arith.constant 0 : i32
    %c0_i32_0 = arith.constant 0 : i32
    %c0_i32_1 = arith.constant 0 : i32
    return %c0_i32, %c0_i32_0 : i32, i32
  }
  func.func @transform_3(%arg0: i32) -> (i32, i32) {
    %c0_i32 = arith.constant 0 : i32
    %c0_i32_0 = arith.constant 0 : i32
    %c0_i32_1 = arith.constant 0 : i32
    return %c0_i32, %c0_i32_0 : i32, i32
  }
  func.func @transform_4(%arg0: i32) -> (i32, i32, i32) {
    %c0_i32 = arith.constant 0 : i32
    %c0_i32_0 = arith.constant 0 : i32
    %c0_i32_1 = arith.constant 0 : i32
    %c0_i32_2 = arith.constant 0 : i32
    return %c0_i32, %c0_i32_0, %c0_i32_1 : i32, i32, i32
  }
  func.func @transform_5(%arg0: i32) -> (i32, i32, i32) {
    %c0_i32 = arith.constant 0 : i32
    %c0_i32_0 = arith.constant 0 : i32
    %c0_i32_1 = arith.constant 0 : i32
    return %arg0, %c0_i32, %c0_i32_0 : i32, i32, i32
  }
  func.func @transform_6(%arg0: i32) -> (i32, i32, i32) {
    %c0_i32 = arith.constant 0 : i32
    %c0_i32_0 = arith.constant 0 : i32
    %c0_i32_1 = arith.constant 0 : i32
    return %arg0, %c0_i32, %c0_i32_0 : i32, i32, i32
  }
  func.func @transform_7(%arg0: i32) -> (i32, i32, i32) {
    %c0_i32 = arith.constant 0 : i32
    %c0_i32_0 = arith.constant 0 : i32
    %c0_i32_1 = arith.constant 0 : i32
    return %arg0, %c0_i32, %c0_i32_0 : i32, i32, i32
  }
}

module attributes {stable_mosaic.version = 11 : i64} {
  func.func @kernel(%arg0: i32, %arg1: memref<1x4x256xf32, #tpu.memory_space<vmem>>, %arg2: memref<2x4x1xf32, #tpu.memory_space<vmem>>, %arg3: memref<2x4x1xf32, #tpu.memory_space<vmem>>, %arg4: memref<4x1xf32, #tpu.memory_space<vmem>>, %arg5: memref<4x1xf32, #tpu.memory_space<vmem>>, %arg6: memref<9x4x4xf32, #tpu.memory_space<vmem>>, %arg7: memref<1x4x256xf32, #tpu.memory_space<vmem>>, %arg8: memref<1x4x1xf32, #tpu.memory_space<vmem>>, %arg9: memref<1x4x1xf32, #tpu.memory_space<vmem>>, %arg10: memref<4x18x18xf32, #tpu.memory_space<vmem>>) attributes {dimension_semantics = [#tpu.dimension_semantics<arbitrary>], iteration_bounds = array<i64: 2>, scalar_prefetch = 0 : i64, scratch_operands = 1 : i64, tpu.core_type = #tpu.core_type<tc>, window_params = [{transform_indices = @transform_0, window_bounds = array<i64: 1, 4, 256>}, {pipeline_mode = #tpu.pipeline_mode<synchronous>, transform_indices = @transform_1, window_bounds = array<i64: 2, 4, 1>}, {pipeline_mode = #tpu.pipeline_mode<synchronous>, transform_indices = @transform_2, window_bounds = array<i64: 2, 4, 1>}, {pipeline_mode = #tpu.pipeline_mode<synchronous>, transform_indices = @transform_3, window_bounds = array<i64: 4, 1>}, {pipeline_mode = #tpu.pipeline_mode<synchronous>, transform_indices = @transform_4, window_bounds = array<i64: 4, 1>}, {pipeline_mode = #tpu.pipeline_mode<synchronous>, transform_indices = @transform_5, window_bounds = array<i64: 9, 4, 4>}, {transform_indices = @transform_6, window_bounds = array<i64: 1, 4, 256>}, {transform_indices = @transform_7, window_bounds = array<i64: 1, 4, 1>}, {transform_indices = @transform_8, window_bounds = array<i64: 1, 4, 1>}]} {
    %c0_i32 = arith.constant 0 : i32
    %0 = arith.cmpi eq, %arg0, %c0_i32 : i32
    %1 = arith.extui %0 : i1 to i32
    %c0_i32_0 = arith.constant 0 : i32
    %2 = arith.cmpi ne, %1, %c0_i32_0 : i32
    scf.if %2 {
      %cst_88 = arith.constant 0.000000e+00 : f32
      %100 = vector.broadcast %cst_88 : f32 to vector<4x18x18xf32>
      %c0_89 = arith.constant 0 : index
      %c0_90 = arith.constant 0 : index
      %c0_91 = arith.constant 0 : index
      %101 = vector.load %arg10[%c0_89, %c0_90, %c0_91] : memref<4x18x18xf32, #tpu.memory_space<vmem>>, vector<4x18x18xf32>
      tpu.vector_store %arg10[%c0_89, %c0_90, %c0_91], %100 {strides = array<i32>} : memref<4x18x18xf32, #tpu.memory_space<vmem>>, vector<4x18x18xf32>,
    } else {
    }
    %c0 = arith.constant 0 : index
    %c0_1 = arith.constant 0 : index
    %c0_2 = arith.constant 0 : index
    %3 = vector.load %arg2[%c0, %c0_1, %c0_2] : memref<2x4x1xf32, #tpu.memory_space<vmem>>, vector<2x4x1xf32>
    %cst = arith.constant dense<0.000000e+00> : vector<4x1xf32>
    %4 = vector.multi_reduction <add>, %3, %cst [0] : vector<2x4x1xf32> to vector<4x1xf32>
    %cst_3 = arith.constant 0.001953125 : f32
    %5 = vector.broadcast %cst_3 : f32 to vector<4x1xf32>
    %6 = arith.mulf %4, %5 : vector<4x1xf32>
    %c0_4 = arith.constant 0 : index
    %c0_5 = arith.constant 0 : index
    %c0_6 = arith.constant 0 : index
    %7 = vector.load %arg3[%c0_4, %c0_5, %c0_6] : memref<2x4x1xf32, #tpu.memory_space<vmem>>, vector<2x4x1xf32>
    %cst_7 = arith.constant dense<0.000000e+00> : vector<4x1xf32>
    %8 = vector.multi_reduction <add>, %7, %cst_7 [0] : vector<2x4x1xf32> to vector<4x1xf32>
    %cst_8 = arith.constant 0.001953125 : f32
    %9 = vector.broadcast %cst_8 : f32 to vector<4x1xf32>
    %10 = arith.mulf %8, %9 : vector<4x1xf32>
    %11 = arith.mulf %6, %6 : vector<4x1xf32>
    %12 = arith.subf %10, %11 : vector<4x1xf32>
    %c0_9 = arith.constant 0 : index
    %c0_10 = arith.constant 0 : index
    %13 = vector.load %arg4[%c0_9, %c0_10] : memref<4x1xf32, #tpu.memory_space<vmem>>, vector<4x1xf32>
    %cst_11 = arith.constant 9.99999974E-6 : f32
    %14 = vector.broadcast %cst_11 : f32 to vector<4x1xf32>
    %15 = arith.addf %12, %14 : vector<4x1xf32>
    %16 = math.rsqrt %15 : vector<4x1xf32>
    %17 = arith.mulf %13, %16 : vector<4x1xf32>
    %c0_12 = arith.constant 0 : index
    %c0_13 = arith.constant 0 : index
    %18 = vector.load %arg5[%c0_12, %c0_13] : memref<4x1xf32, #tpu.memory_space<vmem>>, vector<4x1xf32>
    %19 = arith.mulf %6, %17 : vector<4x1xf32>
    %20 = arith.subf %18, %19 : vector<4x1xf32>
    %c0_14 = arith.constant 0 : index
    %c0_15 = arith.constant 0 : index
    %c0_16 = arith.constant 0 : index
    %21 = vector.load %arg1[%c0_14, %c0_15, %c0_16] : memref<1x4x256xf32, #tpu.memory_space<vmem>>, vector<1x4x256xf32>
    %22 = vector.shape_cast %21 : vector<1x4x256xf32> to vector<4x256xf32>
    %23 = vector.broadcast %17 : vector<4x1xf32> to vector<4x256xf32>
    %24 = arith.mulf %22, %23 : vector<4x256xf32>
    %25 = vector.broadcast %20 : vector<4x1xf32> to vector<4x256xf32>
    %26 = arith.addf %24, %25 : vector<4x256xf32>
    %cst_17 = arith.constant 0.000000e+00 : f32
    %27 = vector.broadcast %cst_17 : f32 to vector<4x256xf32>
    %28 = arith.maximumf %26, %27 : vector<4x256xf32>
    %29 = vector.shape_cast %28 : vector<4x256xf32> to vector<4x16x16xf32>
    %c0_18 = arith.constant 0 : index
    %c1 = arith.constant 1 : index
    %c1_19 = arith.constant 1 : index
    %30 = vector.load %arg10[%c0_18, %c1, %c1_19] : memref<4x18x18xf32, #tpu.memory_space<vmem>>, vector<4x16x16xf32>
    tpu.vector_store %arg10[%c0_18, %c1, %c1_19], %29 {strides = array<i32>} : memref<4x18x18xf32, #tpu.memory_space<vmem>>, vector<4x16x16xf32>,
    %cst_20 = arith.constant 0.000000e+00 : f32
    %31 = vector.broadcast %cst_20 : f32 to vector<4x256xf32>
    %c0_21 = arith.constant 0 : index
    %c0_22 = arith.constant 0 : index
    %c0_23 = arith.constant 0 : index
    %32 = vector.load %arg10[%c0_21, %c0_22, %c0_23] : memref<4x18x18xf32, #tpu.memory_space<vmem>>, vector<4x16x16xf32>
    %33 = vector.shape_cast %32 : vector<4x16x16xf32> to vector<4x256xf32>
    %c0_24 = arith.constant 0 : index
    %c0_25 = arith.constant 0 : index
    %c0_26 = arith.constant 0 : index
    %34 = vector.load %arg6[%c0_24, %c0_25, %c0_26] : memref<9x4x4xf32, #tpu.memory_space<vmem>>, vector<1x4x4xf32>
    %35 = vector.shape_cast %34 : vector<1x4x4xf32> to vector<4x4xf32>
    %cst_27 = arith.constant dense<0.000000e+00> : vector<4x256xf32>
    %36 = tpu.matmul %35, %33, %cst_27 {dimension_numbers = #tpu.dot_dimension_numbers<[1], [0], [0], [1], [0, 0, 1, 1], [], []>} : vector<4x4xf32>, vector<4x256xf32>, vector<4x256xf32> -> vector<4x256xf32>
    %37 = arith.addf %31, %36 : vector<4x256xf32>
    %c0_28 = arith.constant 0 : index
    %c0_29 = arith.constant 0 : index
    %c1_30 = arith.constant 1 : index
    %38 = vector.load %arg10[%c0_28, %c0_29, %c1_30] : memref<4x18x18xf32, #tpu.memory_space<vmem>>, vector<4x16x16xf32>
    %39 = vector.shape_cast %38 : vector<4x16x16xf32> to vector<4x256xf32>
    %c1_31 = arith.constant 1 : index
    %c0_32 = arith.constant 0 : index
    %c0_33 = arith.constant 0 : index
    %40 = vector.load %arg6[%c1_31, %c0_32, %c0_33] : memref<9x4x4xf32, #tpu.memory_space<vmem>>, vector<1x4x4xf32>
    %41 = vector.shape_cast %40 : vector<1x4x4xf32> to vector<4x4xf32>
    %cst_34 = arith.constant dense<0.000000e+00> : vector<4x256xf32>
    %42 = tpu.matmul %41, %39, %cst_34 {dimension_numbers = #tpu.dot_dimension_numbers<[1], [0], [0], [1], [0, 0, 1, 1], [], []>} : vector<4x4xf32>, vector<4x256xf32>, vector<4x256xf32> -> vector<4x256xf32>
    %43 = arith.addf %37, %42 : vector<4x256xf32>
    %c0_35 = arith.constant 0 : index
    %c0_36 = arith.constant 0 : index
    %c2 = arith.constant 2 : index
    %44 = vector.load %arg10[%c0_35, %c0_36, %c2] : memref<4x18x18xf32, #tpu.memory_space<vmem>>, vector<4x16x16xf32>
    %45 = vector.shape_cast %44 : vector<4x16x16xf32> to vector<4x256xf32>
    %c2_37 = arith.constant 2 : index
    %c0_38 = arith.constant 0 : index
    %c0_39 = arith.constant 0 : index
    %46 = vector.load %arg6[%c2_37, %c0_38, %c0_39] : memref<9x4x4xf32, #tpu.memory_space<vmem>>, vector<1x4x4xf32>
    %47 = vector.shape_cast %46 : vector<1x4x4xf32> to vector<4x4xf32>
    %cst_40 = arith.constant dense<0.000000e+00> : vector<4x256xf32>
    %48 = tpu.matmul %47, %45, %cst_40 {dimension_numbers = #tpu.dot_dimension_numbers<[1], [0], [0], [1], [0, 0, 1, 1], [], []>} : vector<4x4xf32>, vector<4x256xf32>, vector<4x256xf32> -> vector<4x256xf32>
    %49 = arith.addf %43, %48 : vector<4x256xf32>
    %c0_41 = arith.constant 0 : index
    %c1_42 = arith.constant 1 : index
    %c0_43 = arith.constant 0 : index
    %50 = vector.load %arg10[%c0_41, %c1_42, %c0_43] : memref<4x18x18xf32, #tpu.memory_space<vmem>>, vector<4x16x16xf32>
    %51 = vector.shape_cast %50 : vector<4x16x16xf32> to vector<4x256xf32>
    %c3 = arith.constant 3 : index
    %c0_44 = arith.constant 0 : index
    %c0_45 = arith.constant 0 : index
    %52 = vector.load %arg6[%c3, %c0_44, %c0_45] : memref<9x4x4xf32, #tpu.memory_space<vmem>>, vector<1x4x4xf32>
    %53 = vector.shape_cast %52 : vector<1x4x4xf32> to vector<4x4xf32>
    %cst_46 = arith.constant dense<0.000000e+00> : vector<4x256xf32>
    %54 = tpu.matmul %53, %51, %cst_46 {dimension_numbers = #tpu.dot_dimension_numbers<[1], [0], [0], [1], [0, 0, 1, 1], [], []>} : vector<4x4xf32>, vector<4x256xf32>, vector<4x256xf32> -> vector<4x256xf32>
    %55 = arith.addf %49, %54 : vector<4x256xf32>
    %c0_47 = arith.constant 0 : index
    %c1_48 = arith.constant 1 : index
    %c1_49 = arith.constant 1 : index
    %56 = vector.load %arg10[%c0_47, %c1_48, %c1_49] : memref<4x18x18xf32, #tpu.memory_space<vmem>>, vector<4x16x16xf32>
    %57 = vector.shape_cast %56 : vector<4x16x16xf32> to vector<4x256xf32>
    %c4 = arith.constant 4 : index
    %c0_50 = arith.constant 0 : index
    %c0_51 = arith.constant 0 : index
    %58 = vector.load %arg6[%c4, %c0_50, %c0_51] : memref<9x4x4xf32, #tpu.memory_space<vmem>>, vector<1x4x4xf32>
    %59 = vector.shape_cast %58 : vector<1x4x4xf32> to vector<4x4xf32>
    %cst_52 = arith.constant dense<0.000000e+00> : vector<4x256xf32>
    %60 = tpu.matmul %59, %57, %cst_52 {dimension_numbers = #tpu.dot_dimension_numbers<[1], [0], [0], [1], [0, 0, 1, 1], [], []>} : vector<4x4xf32>, vector<4x256xf32>, vector<4x256xf32> -> vector<4x256xf32>
    %61 = arith.addf %55, %60 : vector<4x256xf32>
    %c0_53 = arith.constant 0 : index
    %c1_54 = arith.constant 1 : index
    %c2_55 = arith.constant 2 : index
    %62 = vector.load %arg10[%c0_53, %c1_54, %c2_55] : memref<4x18x18xf32, #tpu.memory_space<vmem>>, vector<4x16x16xf32>
    %63 = vector.shape_cast %62 : vector<4x16x16xf32> to vector<4x256xf32>
    %c5 = arith.constant 5 : index
    %c0_56 = arith.constant 0 : index
    %c0_57 = arith.constant 0 : index
    %64 = vector.load %arg6[%c5, %c0_56, %c0_57] : memref<9x4x4xf32, #tpu.memory_space<vmem>>, vector<1x4x4xf32>
    %65 = vector.shape_cast %64 : vector<1x4x4xf32> to vector<4x4xf32>
    %cst_58 = arith.constant dense<0.000000e+00> : vector<4x256xf32>
    %66 = tpu.matmul %65, %63, %cst_58 {dimension_numbers = #tpu.dot_dimension_numbers<[1], [0], [0], [1], [0, 0, 1, 1], [], []>} : vector<4x4xf32>, vector<4x256xf32>, vector<4x256xf32> -> vector<4x256xf32>
    %67 = arith.addf %61, %66 : vector<4x256xf32>
    %c0_59 = arith.constant 0 : index
    %c2_60 = arith.constant 2 : index
    %c0_61 = arith.constant 0 : index
    %68 = vector.load %arg10[%c0_59, %c2_60, %c0_61] : memref<4x18x18xf32, #tpu.memory_space<vmem>>, vector<4x16x16xf32>
    %69 = vector.shape_cast %68 : vector<4x16x16xf32> to vector<4x256xf32>
    %c6 = arith.constant 6 : index
    %c0_62 = arith.constant 0 : index
    %c0_63 = arith.constant 0 : index
    %70 = vector.load %arg6[%c6, %c0_62, %c0_63] : memref<9x4x4xf32, #tpu.memory_space<vmem>>, vector<1x4x4xf32>
    %71 = vector.shape_cast %70 : vector<1x4x4xf32> to vector<4x4xf32>
    %cst_64 = arith.constant dense<0.000000e+00> : vector<4x256xf32>
    %72 = tpu.matmul %71, %69, %cst_64 {dimension_numbers = #tpu.dot_dimension_numbers<[1], [0], [0], [1], [0, 0, 1, 1], [], []>} : vector<4x4xf32>, vector<4x256xf32>, vector<4x256xf32> -> vector<4x256xf32>
    %73 = arith.addf %67, %72 : vector<4x256xf32>
    %c0_65 = arith.constant 0 : index
    %c2_66 = arith.constant 2 : index
    %c1_67 = arith.constant 1 : index
    %74 = vector.load %arg10[%c0_65, %c2_66, %c1_67] : memref<4x18x18xf32, #tpu.memory_space<vmem>>, vector<4x16x16xf32>
    %75 = vector.shape_cast %74 : vector<4x16x16xf32> to vector<4x256xf32>
    %c7 = arith.constant 7 : index
    %c0_68 = arith.constant 0 : index
    %c0_69 = arith.constant 0 : index
    %76 = vector.load %arg6[%c7, %c0_68, %c0_69] : memref<9x4x4xf32, #tpu.memory_space<vmem>>, vector<1x4x4xf32>
    %77 = vector.shape_cast %76 : vector<1x4x4xf32> to vector<4x4xf32>
    %cst_70 = arith.constant dense<0.000000e+00> : vector<4x256xf32>
    %78 = tpu.matmul %77, %75, %cst_70 {dimension_numbers = #tpu.dot_dimension_numbers<[1], [0], [0], [1], [0, 0, 1, 1], [], []>} : vector<4x4xf32>, vector<4x256xf32>, vector<4x256xf32> -> vector<4x256xf32>
    %79 = arith.addf %73, %78 : vector<4x256xf32>
    %c0_71 = arith.constant 0 : index
    %c2_72 = arith.constant 2 : index
    %c2_73 = arith.constant 2 : index
    %80 = vector.load %arg10[%c0_71, %c2_72, %c2_73] : memref<4x18x18xf32, #tpu.memory_space<vmem>>, vector<4x16x16xf32>
    %81 = vector.shape_cast %80 : vector<4x16x16xf32> to vector<4x256xf32>
    %c8 = arith.constant 8 : index
    %c0_74 = arith.constant 0 : index
    %c0_75 = arith.constant 0 : index
    %82 = vector.load %arg6[%c8, %c0_74, %c0_75] : memref<9x4x4xf32, #tpu.memory_space<vmem>>, vector<1x4x4xf32>
    %83 = vector.shape_cast %82 : vector<1x4x4xf32> to vector<4x4xf32>
    %cst_76 = arith.constant dense<0.000000e+00> : vector<4x256xf32>
    %84 = tpu.matmul %83, %81, %cst_76 {dimension_numbers = #tpu.dot_dimension_numbers<[1], [0], [0], [1], [0, 0, 1, 1], [], []>} : vector<4x4xf32>, vector<4x256xf32>, vector<4x256xf32> -> vector<4x256xf32>
    %85 = arith.addf %79, %84 : vector<4x256xf32>
    %c0_77 = arith.constant 0 : index
    %c0_78 = arith.constant 0 : index
    %c0_79 = arith.constant 0 : index
    %86 = vector.load %arg7[%c0_77, %c0_78, %c0_79] : memref<1x4x256xf32, #tpu.memory_space<vmem>>, vector<1x4x256xf32>
    %87 = vector.shape_cast %86 : vector<1x4x256xf32> to vector<4x256xf32>
    %88 = vector.shape_cast %85 : vector<4x256xf32> to vector<1x4x256xf32>
    tpu.vector_store %arg7[%c0_77, %c0_78, %c0_79], %88 {strides = array<i32>} : memref<1x4x256xf32, #tpu.memory_space<vmem>>, vector<1x4x256xf32>,
    %cst_80 = arith.constant dense<0.000000e+00> : vector<4xf32>
    %89 = vector.multi_reduction <add>, %85, %cst_80 [1] : vector<4x256xf32> to vector<4xf32>
    %90 = vector.shape_cast %89 : vector<4xf32> to vector<4x1xf32>
    %c0_81 = arith.constant 0 : index
    %c0_82 = arith.constant 0 : index
    %c0_83 = arith.constant 0 : index
    %91 = vector.load %arg8[%c0_81, %c0_82, %c0_83] : memref<1x4x1xf32, #tpu.memory_space<vmem>>, vector<1x4x1xf32>
    %92 = vector.shape_cast %91 : vector<1x4x1xf32> to vector<4x1xf32>
    %93 = vector.shape_cast %90 : vector<4x1xf32> to vector<1x4x1xf32>
    tpu.vector_store %arg8[%c0_81, %c0_82, %c0_83], %93 {strides = array<i32>} : memref<1x4x1xf32, #tpu.memory_space<vmem>>, vector<1x4x1xf32>,
    %94 = arith.mulf %85, %85 : vector<4x256xf32>
    %cst_84 = arith.constant dense<0.000000e+00> : vector<4xf32>
    %95 = vector.multi_reduction <add>, %94, %cst_84 [1] : vector<4x256xf32> to vector<4xf32>
    %96 = vector.shape_cast %95 : vector<4xf32> to vector<4x1xf32>
    %c0_85 = arith.constant 0 : index
    %c0_86 = arith.constant 0 : index
    %c0_87 = arith.constant 0 : index
    %97 = vector.load %arg9[%c0_85, %c0_86, %c0_87] : memref<1x4x1xf32, #tpu.memory_space<vmem>>, vector<1x4x1xf32>
    %98 = vector.shape_cast %97 : vector<1x4x1xf32> to vector<4x1xf32>
    %99 = vector.shape_cast %96 : vector<4x1xf32> to vector<1x4x1xf32>
    tpu.vector_store %arg9[%c0_85, %c0_86, %c0_87], %99 {strides = array<i32>} : memref<1x4x1xf32, #tpu.memory_space<vmem>>, vector<1x4x1xf32>,
    return
  }
  func.func @transform_0(%arg0: i32) -> (i32, i32, i32) {
    %c0_i32 = arith.constant 0 : i32
    %c0_i32_0 = arith.constant 0 : i32
    %c0_i32_1 = arith.constant 0 : i32
    return %arg0, %c0_i32, %c0_i32_0 : i32, i32, i32
  }
  func.func @transform_1(%arg0: i32) -> (i32, i32, i32) {
    %c0_i32 = arith.constant 0 : i32
    %c0_i32_0 = arith.constant 0 : i32
    %c0_i32_1 = arith.constant 0 : i32
    %c0_i32_2 = arith.constant 0 : i32
    return %c0_i32, %c0_i32_0, %c0_i32_1 : i32, i32, i32
  }
  func.func @transform_2(%arg0: i32) -> (i32, i32, i32) {
    %c0_i32 = arith.constant 0 : i32
    %c0_i32_0 = arith.constant 0 : i32
    %c0_i32_1 = arith.constant 0 : i32
    %c0_i32_2 = arith.constant 0 : i32
    return %c0_i32, %c0_i32_0, %c0_i32_1 : i32, i32, i32
  }
  func.func @transform_3(%arg0: i32) -> (i32, i32) {
    %c0_i32 = arith.constant 0 : i32
    %c0_i32_0 = arith.constant 0 : i32
    %c0_i32_1 = arith.constant 0 : i32
    return %c0_i32, %c0_i32_0 : i32, i32
  }
  func.func @transform_4(%arg0: i32) -> (i32, i32) {
    %c0_i32 = arith.constant 0 : i32
    %c0_i32_0 = arith.constant 0 : i32
    %c0_i32_1 = arith.constant 0 : i32
    return %c0_i32, %c0_i32_0 : i32, i32
  }
  func.func @transform_5(%arg0: i32) -> (i32, i32, i32) {
    %c0_i32 = arith.constant 0 : i32
    %c0_i32_0 = arith.constant 0 : i32
    %c0_i32_1 = arith.constant 0 : i32
    %c0_i32_2 = arith.constant 0 : i32
    return %c0_i32, %c0_i32_0, %c0_i32_1 : i32, i32, i32
  }
  func.func @transform_6(%arg0: i32) -> (i32, i32, i32) {
    %c0_i32 = arith.constant 0 : i32
    %c0_i32_0 = arith.constant 0 : i32
    %c0_i32_1 = arith.constant 0 : i32
    return %arg0, %c0_i32, %c0_i32_0 : i32, i32, i32
  }
  func.func @transform_7(%arg0: i32) -> (i32, i32, i32) {
    %c0_i32 = arith.constant 0 : i32
    %c0_i32_0 = arith.constant 0 : i32
    %c0_i32_1 = arith.constant 0 : i32
    return %arg0, %c0_i32, %c0_i32_0 : i32, i32, i32
  }
  func.func @transform_8(%arg0: i32) -> (i32, i32, i32) {
    %c0_i32 = arith.constant 0 : i32
    %c0_i32_0 = arith.constant 0 : i32
    %c0_i32_1 = arith.constant 0 : i32
    return %arg0, %c0_i32, %c0_i32_0 : i32, i32, i32
  }
}

</mosaic_0001>

<llo_original>
// kernel: upscaling_forward.5
$region0: #{upscaling_forward.5}
  #allocation0 [shape = 'u32[]', space=smem, size = 0x4, offset = 0x4, fixed_abs, tag = 'smem constant byte address 0x4 - core index']
  #allocation1 [shape = 'u32[72,128]{1,0:T(1,128)}', space=vmem, size = 0x9000, scoped, tag = 'internal scratch']
  %s0 = inlined_call_operand.vmem [shape: f32[2,4,256], index: 0, kind: input, shape index: {}]
  %s1 = inlined_call_operand.vmem [shape: f32[2,4,1], index: 1, kind: input, shape index: {}]
  %s2 = inlined_call_operand.vmem [shape: f32[2,4,1], index: 2, kind: input, shape index: {}]
  %s3 = inlined_call_operand.vmem [shape: f32[4,1], index: 3, kind: input, shape index: {}]
  %s4 = inlined_call_operand.vmem [shape: f32[4,1], index: 4, kind: input, shape index: {}]
  %s5 = inlined_call_operand.vmem [shape: f32[2,4,256], index: 5, kind: output, shape index: {}]
  %s6 = sld [smem:[#allocation0]]
  $region53: #{upscaling_forward.5} parent=0
    _
  %s8 = ssub.s32 1, %s6
  %s9 = scalar_select 0, %s8, %s6
  loop: start=0, step=1, limit=4
  $region2: #{upscaling_forward.5} parent=0 // loop_pre_header
    _
  $region3: #{upscaling_forward.5} parent=0 // loop_header
    %s11 = sphi 0, %s15
    %p12 = scmp.ge.s32.totalorder %s11, 4
    %s21 = sphi 0, %s23
    %s24 = sphi 0, %s21
    %s25 = sphi 0, %s24
    %s41 = sphi 0, %s25
    %s45 = sphi 0, %s45
    %s47 = sphi 0, %s45
    %s48 = sphi 0, %s47
    %s62 = sphi 0, %s48
    %s66 = sphi 0, %s66
    %s68 = sphi 0, %s66
    %s69 = sphi 0, %s68
    %s83 = sphi 0, %s69
    %s87 = sphi 0, %s87
    %s89 = sphi 0, %s87
    %s90 = sphi 0, %s89
    %s104 = sphi 0, %s90
    %s108 = sphi 0, %s108
    %s110 = sphi 0, %s108
    %s111 = sphi 0, %s110
    %s125 = sphi 0, %s111
    %s131 = sphi 0, %s133
    %s134 = sphi 0, %s131
    %s135 = sphi 0, %s134
    %s151 = sphi 0, %s135
  $region4: #{upscaling_forward.5} parent=0 // loop_header_branch
    %14 = sbr.rel (%p12) target = $region8
  $region5: #{upscaling_forward.5} parent=0 // loop_body
    %s16 = ssub.s32 %s11, 1
    %s17 = ssub.s32 %s11, 2
    %s18 = sadd.s32 %s11, 1
    %s19 = ssub.s32 %s11, %s18
    %p20 = scmp.eq.s32.totalorder %s19, 0
    %s22 = sadd.s32 %s21, 1
    %s23 = scalar_select %p20, %s21, %s22
    %p26 = pneg %p20
    %p27 = scmp.eq.s32.totalorder %s11, 1
    %p28 = por %p26, %p27
    %p29 = scmp.ne.s32.totalorder %s21, %s24
    %p30 = scmp.eq.s32.totalorder %s11, 0
    %p31 = por %p29, %p30
    %p32 = scmp.ne.s32.totalorder %s21, %s24
    %p33 = scmp.eq.s32.totalorder %s16, 1
    %p34 = por %p32, %p33
    %p35 = scmp.ne.s32.totalorder %s24, %s25
    %p36 = scmp.eq.s32.totalorder %s16, 0
    %p37 = por %p35, %p36
    %p38 = scmp.ne.s32.totalorder %s24, %s25
    %p39 = scmp.eq.s32.totalorder %s17, 1
    %p40 = por %p38, %p39
    %p42 = scmp.ne.s32.totalorder %s25, %s41
    %p43 = scmp.eq.s32.totalorder %s17, 0
    %p44 = por %p42, %p43
    %s46 = sadd.s32 %s45, 1
    %p49 = scmp.eq.s32.totalorder %s11, 1
    %p50 = scmp.ne.s32.totalorder %s45, %s47
    %p51 = scmp.eq.s32.totalorder %s11, 0
    %p52 = por %p50, %p51
    %p53 = scmp.ne.s32.totalorder %s45, %s47
    %p54 = scmp.eq.s32.totalorder %s16, 1
    %p55 = por %p53, %p54
    %p56 = scmp.ne.s32.totalorder %s47, %s48
    %p57 = scmp.eq.s32.totalorder %s16, 0
    %p58 = por %p56, %p57
    %p59 = scmp.ne.s32.totalorder %s47, %s48
    %p60 = scmp.eq.s32.totalorder %s17, 1
    %p61 = por %p59, %p60
    %p63 = scmp.ne.s32.totalorder %s48, %s62
    %p64 = scmp.eq.s32.totalorder %s17, 0
    %p65 = por %p63, %p64
    %s67 = sadd.s32 %s66, 1
    %p70 = scmp.eq.s32.totalorder %s11, 1
    %p71 = scmp.ne.s32.totalorder %s66, %s68
    %p72 = scmp.eq.s32.totalorder %s11, 0
    %p73 = por %p71, %p72
    %p74 = scmp.ne.s32.totalorder %s66, %s68
    %p75 = scmp.eq.s32.totalorder %s16, 1
    %p76 = por %p74, %p75
    %p77 = scmp.ne.s32.totalorder %s68, %s69
    %p78 = scmp.eq.s32.totalorder %s16, 0
    %p79 = por %p77, %p78
    %p80 = scmp.ne.s32.totalorder %s68, %s69
    %p81 = scmp.eq.s32.totalorder %s17, 1
    %p82 = por %p80, %p81
    %p84 = scmp.ne.s32.totalorder %s69, %s83
    %p85 = scmp.eq.s32.totalorder %s17, 0
    %p86 = por %p84, %p85
    %s88 = sadd.s32 %s87, 1
    %p91 = scmp.eq.s32.totalorder %s11, 1
    %p92 = scmp.ne.s32.totalorder %s87, %s89
    %p93 = scmp.eq.s32.totalorder %s11, 0
    %p94 = por %p92, %p93
    %p95 = scmp.ne.s32.totalorder %s87, %s89
    %p96 = scmp.eq.s32.totalorder %s16, 1
    %p97 = por %p95, %p96
    %p98 = scmp.ne.s32.totalorder %s89, %s90
    %p99 = scmp.eq.s32.totalorder %s16, 0
    %p100 = por %p98, %p99
    %p101 = scmp.ne.s32.totalorder %s89, %s90
    %p102 = scmp.eq.s32.totalorder %s17, 1
    %p103 = por %p101, %p102
    %p105 = scmp.ne.s32.totalorder %s90, %s104
    %p106 = scmp.eq.s32.totalorder %s17, 0
    %p107 = por %p105, %p106
    %s109 = sadd.s32 %s108, 1
    %p112 = scmp.eq.s32.totalorder %s11, 1
    %p113 = scmp.ne.s32.totalorder %s108, %s110
    %p114 = scmp.eq.s32.totalorder %s11, 0
    %p115 = por %p113, %p114
    %p116 = scmp.ne.s32.totalorder %s108, %s110
    %p117 = scmp.eq.s32.totalorder %s16, 1
    %p118 = por %p116, %p117
    %p119 = scmp.ne.s32.totalorder %s110, %s111
    %p120 = scmp.eq.s32.totalorder %s16, 0
    %p121 = por %p119, %p120
    %p122 = scmp.ne.s32.totalorder %s110, %s111
    %p123 = scmp.eq.s32.totalorder %s17, 1
    %p124 = por %p122, %p123
    %p126 = scmp.ne.s32.totalorder %s111, %s125
    %p127 = scmp.eq.s32.totalorder %s17, 0
    %p128 = por %p126, %p127
    %s129 = ssub.s32 %s11, %s18
    %p130 = scmp.eq.s32.totalorder %s129, 0
    %s132 = sadd.s32 %s131, 1
    %s133 = scalar_select %p130, %s131, %s132
    %p136 = pneg %p130
    %p137 = scmp.eq.s32.totalorder %s11, 1
    %p138 = por %p136, %p137
    %p139 = scmp.ne.s32.totalorder %s131, %s134
    %p140 = scmp.eq.s32.totalorder %s11, 0
    %p141 = por %p139, %p140
    %p142 = scmp.ne.s32.totalorder %s131, %s134
    %p143 = scmp.eq.s32.totalorder %s16, 1
    %p144 = por %p142, %p143
    %p145 = scmp.ne.s32.totalorder %s134, %s135
    %p146 = scmp.eq.s32.totalorder %s16, 0
    %p147 = por %p145, %p146
    %p148 = scmp.ne.s32.totalorder %s134, %s135
    %p149 = scmp.eq.s32.totalorder %s17, 1
    %p150 = por %p148, %p149
    %p152 = scmp.ne.s32.totalorder %s135, %s151
    %p153 = scmp.eq.s32.totalorder %s17, 0
    %p154 = por %p152, %p153
    %p155 = scmp.le.s32.totalorder 1, %s11
    %p156 = scmp.lt.s32.totalorder %s11, 3
    %p157 = pnand %p155, %p156
    %p158 = pneg %p157
    // Predicated region
    $region9: #{upscaling_forward.5} parent=5 // pred_check
      _
    $region10: #{upscaling_forward.5} parent=5 // pred_check_branch
      %160 = sbr.rel (%p157) target = $region12
    $region11: #{upscaling_forward.5} parent=5 // pred_region
      %s161 = ssub.s32 %s11, 1
      // Predicated region
      $region13: #{upscaling_forward.5} parent=11 // pred_check
        %p162 = pneg %p58
      $region14: #{upscaling_forward.5} parent=11 // pred_check_branch
        %164 = sbr.rel (%p162) target = $region16
      $region15: #{upscaling_forward.5} parent=11 // pred_region
        _
      $region16: #{upscaling_forward.5} parent=11 // pred_fallthru
        _
      // Predicated region
      $region17: #{upscaling_forward.5} parent=11 // pred_check
        %p165 = pneg %p79
      $region18: #{upscaling_forward.5} parent=11 // pred_check_branch
        %167 = sbr.rel (%p165) target = $region20
      $region19: #{upscaling_forward.5} parent=11 // pred_region
        _
      $region20: #{upscaling_forward.5} parent=11 // pred_fallthru
        _
      // Predicated region
      $region21: #{upscaling_forward.5} parent=11 // pred_check
        %p168 = pneg %p100
      $region22: #{upscaling_forward.5} parent=11 // pred_check_branch
        %170 = sbr.rel (%p168) target = $region24
      $region23: #{upscaling_forward.5} parent=11 // pred_region
        _
      $region24: #{upscaling_forward.5} parent=11 // pred_fallthru
        _
      // Predicated region
      $region25: #{upscaling_forward.5} parent=11 // pred_check
        %p171 = pneg %p121
      $region26: #{upscaling_forward.5} parent=11 // pred_check_branch
        %173 = sbr.rel (%p171) target = $region28
      $region27: #{upscaling_forward.5} parent=11 // pred_region
        _
      $region28: #{upscaling_forward.5} parent=11 // pred_fallthru
        _
    $region12: #{upscaling_forward.5} parent=5 // pred_fallthru
      _
    %p174 = scmp.lt.s32.totalorder %s11, 2
    // Predicated region
    $region29: #{upscaling_forward.5} parent=5 // pred_check
      %p175 = pneg %p174
    $region30: #{upscaling_forward.5} parent=5 // pred_check_branch
      %177 = sbr.rel (%p175) target = $region32
    $region31: #{upscaling_forward.5} parent=5 // pred_region
      // Predicated region
      $region33: #{upscaling_forward.5} parent=31 // pred_check
        %p178 = pneg %p31
      $region34: #{upscaling_forward.5} parent=31 // pred_check_branch
        %180 = sbr.rel (%p178) target = $region36
      $region35: #{upscaling_forward.5} parent=31 // pred_region
        %p181 = scmp.lt.s32.totalorder %s11, 1
        %s182 = scalar_select %p181, %s11, 1
        %s183 = smul.addr %s182, 2
        %s184 = smul.addr %s183, 4
        %s185 = scalar_lea.vmem %s0, %s184
      $region36: #{upscaling_forward.5} parent=31 // pred_fallthru
        _
    $region32: #{upscaling_forward.5} parent=5 // pred_fallthru
      _
    %p186 = scmp.le.s32.totalorder 1, %s11
    %p187 = scmp.lt.s32.totalorder %s11, 3
    %p188 = pnand %p186, %p187
    %p189 = pneg %p188
    // Predicated region
    $region37: #{upscaling_forward.5} parent=5 // pred_check
      _
    $region38: #{upscaling_forward.5} parent=5 // pred_check_branch
      %191 = sbr.rel (%p188) target = $region40
    $region39: #{upscaling_forward.5} parent=5 // pred_region
      %s192 = ssub.s32 %s11, 1
      %p193 = scmp.lt.s32.totalorder %s16, 1
      %s194 = scalar_select %p193, %s16, 1
      %s195 = smul.addr %s194, 2
      %s196 = smul.addr %s195, 4
      %s197 = scalar_lea.vmem %s0, %s196
      %p198 = pneg %p37
      %p199 = pneg %p34
      %p200 = pneg %p58
      %p201 = pneg %p55
      %p202 = pneg %p79
      %p203 = pneg %p76
      %p204 = pneg %p100
      %p205 = pneg %p97
      %p206 = pneg %p121
      %p207 = pneg %p118
      %p208 = pneg %p147
      %p209 = pneg %p144
      %p210 = scmp.lt.s32.totalorder %s16, 1
      %s211 = scalar_select %p210, %s16, 1
      %s212 = smul.addr %s211, 2
      %s213 = smul.addr %s212, 4
      %s214 = scalar_lea.vmem %s5, %s213
      %p215 = scmp.lt.s32.totalorder %s16, 1
      %s216 = scalar_select %p215, %s16, 1
      %s217 = smul.addr %s216, 2
      %s218 = smul.addr %s217, 4
      %s219 = scalar_lea.vmem %s0, %s218
      %p220 = scmp.lt.s32.totalorder %s16, 1
      %s221 = scalar_select %p220, %s16, 1
      %s222 = smul.addr %s221, 2
      %s223 = smul.addr %s222, 4
      %s224 = scalar_lea.vmem %s5, %s223
      %v225 = vld [vmem:[%s1] sm:$0xf]
      %v226 = vld [vmem:[%s1 + $0x4] sm:$0xf]
      %vm227 = vcmask 3072
      %v228 = vsel %vm227, %v225, 0.0
      %v229 = vsel %vm227, %v226, 0.0
      %v230 = vadd.f32 %v228, %v229
      %v231 = vmul.f32 %v230, 0.001953125
      %v232 = vld [vmem:[%s2] sm:$0xf]
      %v233 = vld [vmem:[%s2 + $0x4] sm:$0xf]
      %v234 = vsel %vm227, %v232, 0.0
      %v235 = vsel %vm227, %v233, 0.0
      %v236 = vadd.f32 %v234, %v235
      %v237 = vmul.f32 %v236, 0.001953125
      %v238 = vmul.f32 %v231, %v231
      %v239 = vsub.f32 %v237, %v238
      %v240 = vld [vmem:[%s3] sm:$0xf]
      %v241 = vadd.f32 %v239, 1e-05
      %v242 = vrsqrt.pop %v241
      %v243 = vmul.f32 %v242, %v241
      %v244 = vmul.f32 %v243, %v242
      %v245 = vmul.f32 0.5, %v244
      %v246 = vsub.f32 1.5, %v245
      %v247 = vmul.f32 %v242, %v246
      %vm248 = vweird.f32 %v241
      %vm249 = vweird.f32 %v242
      %vm250 = vmor %vm248, %vm249
      %v251 = vsel %vm250, %v242, %v247
      %v252 = vmul.f32 %v240, %v251
      %v253 = vld [vmem:[%s4] sm:$0xf]
      %v254 = vmul.f32 %v231, %v252
      %v255 = vsub.f32 %v253, %v254
      %v256 = vld [vmem:[%s219] sm:$0xff]
      %258 = vset.pattern.permute.xlu0 0
      %259 = vperm.xlu0 %258, %v252
      %v260 = vpop.permute.xlu0 %259
      %v262 = vunpack.c.l.s4 839922192
      %v263 = vunpack.c.0.s8 %v262
      %v264 = vperm.slane %v260, %v263
      %v266 = vmul.f32 %v256, %v264
      %268 = vset.pattern.permute.xlu0 0
      %269 = vperm.xlu0 %268, %v255
      %v270 = vpop.permute.xlu0 %269
      %v272 = vunpack.c.l.s4 839922192
      %v273 = vunpack.c.0.s8 %v272
      %v274 = vperm.slane %v270, %v273
      %v276 = vadd.f32 %v266, %v274
      %v277 = vmax.f32 %v276, 0.0
      %278 = vst [vmem:[%s224] sm:$0xff] %v277
      %p279 = scmp.lt.s32.totalorder %s16, 1
      %s280 = scalar_select %p279, %s16, 1
      %s281 = smul.addr %s280, 2
      %s282 = smul.addr %s281, 4
      %s283 = scalar_lea.vmem %s5, %s282
      // Predicated region
      $region41: #{upscaling_forward.5} parent=39 // pred_check
        %p284 = pneg %p144
      $region42: #{upscaling_forward.5} parent=39 // pred_check_branch
        %286 = sbr.rel (%p284) target = $region44
      $region43: #{upscaling_forward.5} parent=39 // pred_region
        _
      $region44: #{upscaling_forward.5} parent=39 // pred_fallthru
        _
    $region40: #{upscaling_forward.5} parent=5 // pred_fallthru
      _
    %p287 = scmp.le.s32.totalorder 2, %s11
    // Predicated region
    $region45: #{upscaling_forward.5} parent=5 // pred_check
      %p288 = pneg %p287
    $region46: #{upscaling_forward.5} parent=5 // pred_check_branch
      %290 = sbr.rel (%p288) target = $region48
    $region47: #{upscaling_forward.5} parent=5 // pred_region
      %s291 = ssub.s32 %s11, 2
      // Predicated region
      $region49: #{upscaling_forward.5} parent=47 // pred_check
        %p292 = pneg %p150
      $region50: #{upscaling_forward.5} parent=47 // pred_check_branch
        %294 = sbr.rel (%p292) target = $region52
      $region51: #{upscaling_forward.5} parent=47 // pred_region
        %p295 = scmp.lt.s32.totalorder %s17, 1
        %s296 = scalar_select %p295, %s17, 1
        %s297 = smul.addr %s296, 2
        %s298 = smul.addr %s297, 4
        %s299 = scalar_lea.vmem %s5, %s298
      $region52: #{upscaling_forward.5} parent=47 // pred_fallthru
        _
    $region48: #{upscaling_forward.5} parent=5 // pred_fallthru
      _
  $region6: #{upscaling_forward.5} parent=0 // loop_footer
    %s15 = sadd.s32 1, %s11
  $region7: #{upscaling_forward.5} parent=0 // loop_footer_branch
    %10 = sbr.rel target = $region3
  $region8: #{upscaling_forward.5} parent=0 // loop_exit
    _

// kernel: upscaling_forward.4
$region0: #{upscaling_forward.4}
  #allocation0 [shape = 'u32[]', space=smem, size = 0x4, offset = 0x4, fixed_abs, tag = 'smem constant byte address 0x4 - core index']
  #allocation1 [shape = 'u32[72,128]{1,0:T(1,128)}', space=vmem, size = 0x9000, scoped, tag = 'internal scratch']
  #allocation2 [shape = 'f32[4,18,18]{2,1,0:T(8,128)}', space=vmem, size = 0xc000, scoped, tag = 'scratch operand']
  %s0 = inlined_call_operand.vmem [shape: f32[2,4,256], index: 0, kind: input, shape index: {}]
  %s1 = inlined_call_operand.vmem [shape: f32[2,4,1], index: 1, kind: input, shape index: {}]
  %s2 = inlined_call_operand.vmem [shape: f32[2,4,1], index: 2, kind: input, shape index: {}]
  %s3 = inlined_call_operand.vmem [shape: f32[4,1], index: 3, kind: input, shape index: {}]
  %s4 = inlined_call_operand.vmem [shape: f32[4,1], index: 4, kind: input, shape index: {}]
  %s5 = inlined_call_operand.hbm [shape: f32[9,4,4], index: 5, kind: input, shape index: {}]
  %s6 = inlined_call_operand.vmem [shape: f32[2,4,256], index: 6, kind: output, shape index: {0}]
  %s7 = inlined_call_operand.vmem [shape: f32[2,4,1], index: 7, kind: output, shape index: {1}]
  %s8 = inlined_call_operand.vmem [shape: f32[2,4,1], index: 8, kind: output, shape index: {2}]
  %9 = xla_tuple %s6, %s7, %s8
  %s10 = sld [smem:[#allocation0]]
  $region81: #{upscaling_forward.4} parent=0
    _
  %s12 = ssub.s32 1, %s10
  %s13 = scalar_select 0, %s12, %s10
  $region1: #{upscaling_forward.4} parent=0
    #allocation3 [shape = 'u8[18432]{0}', space=vmem, size = 0x4800, scoped, tag = 'input window, operand 5, single buffered']
    #allocation4 [shape = 's32[2]{0}', space=sflag, size = 0x8, scoped, tag = 'scoped memory for upscaling_forward.4']
    %14 = vsyncpa [#allocation4], 0
    loop: start=0, step=1, limit=4
    $region2: #{upscaling_forward.4} parent=1 // loop_pre_header
      _
    $region3: #{upscaling_forward.4} parent=1 // loop_header
      %s16 = sphi 0, %s20
      %p17 = scmp.ge.s32.totalorder %s16, 4
      %s26 = sphi 0, %s28
      %s29 = sphi 0, %s26
      %s30 = sphi 0, %s29
      %s46 = sphi 0, %s30
      %s50 = sphi 0, %s50
      %s52 = sphi 0, %s50
      %s53 = sphi 0, %s52
      %s67 = sphi 0, %s53
      %s71 = sphi 0, %s71
      %s73 = sphi 0, %s71
      %s74 = sphi 0, %s73
      %s88 = sphi 0, %s74
      %s92 = sphi 0, %s92
      %s94 = sphi 0, %s92
      %s95 = sphi 0, %s94
      %s109 = sphi 0, %s95
      %s113 = sphi 0, %s113
      %s115 = sphi 0, %s113
      %s116 = sphi 0, %s115
      %s130 = sphi 0, %s116
      %s134 = sphi 0, %s134
      %s136 = sphi 0, %s134
      %s137 = sphi 0, %s136
      %s151 = sphi 0, %s137
      %s157 = sphi 0, %s159
      %s160 = sphi 0, %s157
      %s161 = sphi 0, %s160
      %s177 = sphi 0, %s161
      %s183 = sphi 0, %s185
      %s186 = sphi 0, %s183
      %s187 = sphi 0, %s186
      %s203 = sphi 0, %s187
      %s209 = sphi 0, %s211
      %s212 = sphi 0, %s209
      %s213 = sphi 0, %s212
      %s229 = sphi 0, %s213
    $region4: #{upscaling_forward.4} parent=1 // loop_header_branch
      %19 = sbr.rel (%p17) target = $region8
    $region5: #{upscaling_forward.4} parent=1 // loop_body
      %s21 = ssub.s32 %s16, 1
      %s22 = ssub.s32 %s16, 2
      %s23 = sadd.s32 %s16, 1
      %s24 = ssub.s32 %s16, %s23
      %p25 = scmp.eq.s32.totalorder %s24, 0
      %s27 = sadd.s32 %s26, 1
      %s28 = scalar_select %p25, %s26, %s27
      %p31 = pneg %p25
      %p32 = scmp.eq.s32.totalorder %s16, 1
      %p33 = por %p31, %p32
      %p34 = scmp.ne.s32.totalorder %s26, %s29
      %p35 = scmp.eq.s32.totalorder %s16, 0
      %p36 = por %p34, %p35
      %p37 = scmp.ne.s32.totalorder %s26, %s29
      %p38 = scmp.eq.s32.totalorder %s21, 1
      %p39 = por %p37, %p38
      %p40 = scmp.ne.s32.totalorder %s29, %s30
      %p41 = scmp.eq.s32.totalorder %s21, 0
      %p42 = por %p40, %p41
      %p43 = scmp.ne.s32.totalorder %s29, %s30
      %p44 = scmp.eq.s32.totalorder %s22, 1
      %p45 = por %p43, %p44
      %p47 = scmp.ne.s32.totalorder %s30, %s46
      %p48 = scmp.eq.s32.totalorder %s22, 0
      %p49 = por %p47, %p48
      %s51 = sadd.s32 %s50, 1
      %p54 = scmp.eq.s32.totalorder %s16, 1
      %p55 = scmp.ne.s32.totalorder %s50, %s52
      %p56 = scmp.eq.s32.totalorder %s16, 0
      %p57 = por %p55, %p56
      %p58 = scmp.ne.s32.totalorder %s50, %s52
      %p59 = scmp.eq.s32.totalorder %s21, 1
      %p60 = por %p58, %p59
      %p61 = scmp.ne.s32.totalorder %s52, %s53
      %p62 = scmp.eq.s32.totalorder %s21, 0
      %p63 = por %p61, %p62
      %p64 = scmp.ne.s32.totalorder %s52, %s53
      %p65 = scmp.eq.s32.totalorder %s22, 1
      %p66 = por %p64, %p65
      %p68 = scmp.ne.s32.totalorder %s53, %s67
      %p69 = scmp.eq.s32.totalorder %s22, 0
      %p70 = por %p68, %p69
      %s72 = sadd.s32 %s71, 1
      %p75 = scmp.eq.s32.totalorder %s16, 1
      %p76 = scmp.ne.s32.totalorder %s71, %s73
      %p77 = scmp.eq.s32.totalorder %s16, 0
      %p78 = por %p76, %p77
      %p79 = scmp.ne.s32.totalorder %s71, %s73
      %p80 = scmp.eq.s32.totalorder %s21, 1
      %p81 = por %p79, %p80
      %p82 = scmp.ne.s32.totalorder %s73, %s74
      %p83 = scmp.eq.s32.totalorder %s21, 0
      %p84 = por %p82, %p83
      %p85 = scmp.ne.s32.totalorder %s73, %s74
      %p86 = scmp.eq.s32.totalorder %s22, 1
      %p87 = por %p85, %p86
      %p89 = scmp.ne.s32.totalorder %s74, %s88
      %p90 = scmp.eq.s32.totalorder %s22, 0
      %p91 = por %p89, %p90
      %s93 = sadd.s32 %s92, 1
      %p96 = scmp.eq.s32.totalorder %s16, 1
      %p97 = scmp.ne.s32.totalorder %s92, %s94
      %p98 = scmp.eq.s32.totalorder %s16, 0
      %p99 = por %p97, %p98
      %p100 = scmp.ne.s32.totalorder %s92, %s94
      %p101 = scmp.eq.s32.totalorder %s21, 1
      %p102 = por %p100, %p101
      %p103 = scmp.ne.s32.totalorder %s94, %s95
      %p104 = scmp.eq.s32.totalorder %s21, 0
      %p105 = por %p103, %p104
      %p106 = scmp.ne.s32.totalorder %s94, %s95
      %p107 = scmp.eq.s32.totalorder %s22, 1
      %p108 = por %p106, %p107
      %p110 = scmp.ne.s32.totalorder %s95, %s109
      %p111 = scmp.eq.s32.totalorder %s22, 0
      %p112 = por %p110, %p111
      %s114 = sadd.s32 %s113, 1
      %p117 = scmp.eq.s32.totalorder %s16, 1
      %p118 = scmp.ne.s32.totalorder %s113, %s115
      %p119 = scmp.eq.s32.totalorder %s16, 0
      %p120 = por %p118, %p119
      %p121 = scmp.ne.s32.totalorder %s113, %s115
      %p122 = scmp.eq.s32.totalorder %s21, 1
      %p123 = por %p121, %p122
      %p124 = scmp.ne.s32.totalorder %s115, %s116
      %p125 = scmp.eq.s32.totalorder %s21, 0
      %p126 = por %p124, %p125
      %p127 = scmp.ne.s32.totalorder %s115, %s116
      %p128 = scmp.eq.s32.totalorder %s22, 1
      %p129 = por %p127, %p128
      %p131 = scmp.ne.s32.totalorder %s116, %s130
      %p132 = scmp.eq.s32.totalorder %s22, 0
      %p133 = por %p131, %p132
      %s135 = sadd.s32 %s134, 1
      %p138 = scmp.eq.s32.totalorder %s16, 1
      %p139 = scmp.ne.s32.totalorder %s134, %s136
      %p140 = scmp.eq.s32.totalorder %s16, 0
      %p141 = por %p139, %p140
      %p142 = scmp.ne.s32.totalorder %s134, %s136
      %p143 = scmp.eq.s32.totalorder %s21, 1
      %p144 = por %p142, %p143
      %p145 = scmp.ne.s32.totalorder %s136, %s137
      %p146 = scmp.eq.s32.totalorder %s21, 0
      %p147 = por %p145, %p146
      %p148 = scmp.ne.s32.totalorder %s136, %s137
      %p149 = scmp.eq.s32.totalorder %s22, 1
      %p150 = por %p148, %p149
      %p152 = scmp.ne.s32.totalorder %s137, %s151
      %p153 = scmp.eq.s32.totalorder %s22, 0
      %p154 = por %p152, %p153
      %s155 = ssub.s32 %s16, %s23
      %p156 = scmp.eq.s32.totalorder %s155, 0
      %s158 = sadd.s32 %s157, 1
      %s159 = scalar_select %p156, %s157, %s158
      %p162 = pneg %p156
      %p163 = scmp.eq.s32.totalorder %s16, 1
      %p164 = por %p162, %p163
      %p165 = scmp.ne.s32.totalorder %s157, %s160
      %p166 = scmp.eq.s32.totalorder %s16, 0
      %p167 = por %p165, %p166
      %p168 = scmp.ne.s32.totalorder %s157, %s160
      %p169 = scmp.eq.s32.totalorder %s21, 1
      %p170 = por %p168, %p169
      %p171 = scmp.ne.s32.totalorder %s160, %s161
      %p172 = scmp.eq.s32.totalorder %s21, 0
      %p173 = por %p171, %p172
      %p174 = scmp.ne.s32.totalorder %s160, %s161
      %p175 = scmp.eq.s32.totalorder %s22, 1
      %p176 = por %p174, %p175
      %p178 = scmp.ne.s32.totalorder %s161, %s177
      %p179 = scmp.eq.s32.totalorder %s22, 0
      %p180 = por %p178, %p179
      %s181 = ssub.s32 %s16, %s23
      %p182 = scmp.eq.s32.totalorder %s181, 0
      %s184 = sadd.s32 %s183, 1
      %s185 = scalar_select %p182, %s183, %s184
      %p188 = pneg %p182
      %p189 = scmp.eq.s32.totalorder %s16, 1
      %p190 = por %p188, %p189
      %p191 = scmp.ne.s32.totalorder %s183, %s186
      %p192 = scmp.eq.s32.totalorder %s16, 0
      %p193 = por %p191, %p192
      %p194 = scmp.ne.s32.totalorder %s183, %s186
      %p195 = scmp.eq.s32.totalorder %s21, 1
      %p196 = por %p194, %p195
      %p197 = scmp.ne.s32.totalorder %s186, %s187
      %p198 = scmp.eq.s32.totalorder %s21, 0
      %p199 = por %p197, %p198
      %p200 = scmp.ne.s32.totalorder %s186, %s187
      %p201 = scmp.eq.s32.totalorder %s22, 1
      %p202 = por %p200, %p201
      %p204 = scmp.ne.s32.totalorder %s187, %s203
      %p205 = scmp.eq.s32.totalorder %s22, 0
      %p206 = por %p204, %p205
      %s207 = ssub.s32 %s16, %s23
      %p208 = scmp.eq.s32.totalorder %s207, 0
      %s210 = sadd.s32 %s209, 1
      %s211 = scalar_select %p208, %s209, %s210
      %p214 = pneg %p208
      %p215 = scmp.eq.s32.totalorder %s16, 1
      %p216 = por %p214, %p215
      %p217 = scmp.ne.s32.totalorder %s209, %s212
      %p218 = scmp.eq.s32.totalorder %s16, 0
      %p219 = por %p217, %p218
      %p220 = scmp.ne.s32.totalorder %s209, %s212
      %p221 = scmp.eq.s32.totalorder %s21, 1
      %p222 = por %p220, %p221
      %p223 = scmp.ne.s32.totalorder %s212, %s213
      %p224 = scmp.eq.s32.totalorder %s21, 0
      %p225 = por %p223, %p224
      %p226 = scmp.ne.s32.totalorder %s212, %s213
      %p227 = scmp.eq.s32.totalorder %s22, 1
      %p228 = por %p226, %p227
      %p230 = scmp.ne.s32.totalorder %s213, %s229
      %p231 = scmp.eq.s32.totalorder %s22, 0
      %p232 = por %p230, %p231
      %p233 = scmp.le.s32.totalorder 1, %s16
      %p234 = scmp.lt.s32.totalorder %s16, 3
      %p235 = pnand %p233, %p234
      %p236 = pneg %p235
      // Predicated region
      $region9: #{upscaling_forward.4} parent=5 // pred_check
        _
      $region10: #{upscaling_forward.4} parent=5 // pred_check_branch
        %238 = sbr.rel (%p235) target = $region12
      $region11: #{upscaling_forward.4} parent=5 // pred_region
        %s239 = ssub.s32 %s16, 1
        // Predicated region
        $region13: #{upscaling_forward.4} parent=11 // pred_check
          %p240 = pneg %p63
        $region14: #{upscaling_forward.4} parent=11 // pred_check_branch
          %242 = sbr.rel (%p240) target = $region16
        $region15: #{upscaling_forward.4} parent=11 // pred_region
          _
        $region16: #{upscaling_forward.4} parent=11 // pred_fallthru
          _
        // Predicated region
        $region17: #{upscaling_forward.4} parent=11 // pred_check
          %p243 = pneg %p84
        $region18: #{upscaling_forward.4} parent=11 // pred_check_branch
          %245 = sbr.rel (%p243) target = $region20
        $region19: #{upscaling_forward.4} parent=11 // pred_region
          _
        $region20: #{upscaling_forward.4} parent=11 // pred_fallthru
          _
        // Predicated region
        $region21: #{upscaling_forward.4} parent=11 // pred_check
          %p246 = pneg %p105
        $region22: #{upscaling_forward.4} parent=11 // pred_check_branch
          %248 = sbr.rel (%p246) target = $region24
        $region23: #{upscaling_forward.4} parent=11 // pred_region
          _
        $region24: #{upscaling_forward.4} parent=11 // pred_fallthru
          _
        // Predicated region
        $region25: #{upscaling_forward.4} parent=11 // pred_check
          %p249 = pneg %p126
        $region26: #{upscaling_forward.4} parent=11 // pred_check_branch
          %251 = sbr.rel (%p249) target = $region28
        $region27: #{upscaling_forward.4} parent=11 // pred_region
          _
        $region28: #{upscaling_forward.4} parent=11 // pred_fallthru
          _
        // Predicated region
        $region29: #{upscaling_forward.4} parent=11 // pred_check
          %p252 = pneg %p147
        $region30: #{upscaling_forward.4} parent=11 // pred_check_branch
          %254 = sbr.rel (%p252) target = $region32
        $region31: #{upscaling_forward.4} parent=11 // pred_region
          %256 = vsyncadd [#allocation4], 0
          %s257 = sshll.u32 %s5, 4
          %s258 = int_to_ptr.hbm [resolvable:$true] %s257
          %s259 = sshll.u32 [#allocation3], 4
          %s260 = int_to_ptr.vmem [resolvable:$true] %s259
          %265 = dma.hbm_to_vmem [thread:$0]  %s258, 576, %s260, [#allocation4], 64, 64, 4
        $region32: #{upscaling_forward.4} parent=11 // pred_fallthru
          _
      $region12: #{upscaling_forward.4} parent=5 // pred_fallthru
        _
      %p266 = scmp.lt.s32.totalorder %s16, 2
      // Predicated region
      $region33: #{upscaling_forward.4} parent=5 // pred_check
        %p267 = pneg %p266
      $region34: #{upscaling_forward.4} parent=5 // pred_check_branch
        %269 = sbr.rel (%p267) target = $region36
      $region35: #{upscaling_forward.4} parent=5 // pred_region
        // Predicated region
        $region37: #{upscaling_forward.4} parent=35 // pred_check
          %p270 = pneg %p36
        $region38: #{upscaling_forward.4} parent=35 // pred_check_branch
          %272 = sbr.rel (%p270) target = $region40
        $region39: #{upscaling_forward.4} parent=35 // pred_region
          %p273 = scmp.lt.s32.totalorder %s16, 1
          %s274 = scalar_select %p273, %s16, 1
          %s275 = smul.addr %s274, 2
          %s276 = smul.addr %s275, 4
          %s277 = scalar_lea.vmem %s0, %s276
        $region40: #{upscaling_forward.4} parent=35 // pred_fallthru
          _
      $region36: #{upscaling_forward.4} parent=5 // pred_fallthru
        _
      %p278 = scmp.le.s32.totalorder 1, %s16
      %p279 = scmp.lt.s32.totalorder %s16, 3
      %p280 = pnand %p278, %p279
      %p281 = pneg %p280
      // Predicated region
      $region41: #{upscaling_forward.4} parent=5 // pred_check
        _
      $region42: #{upscaling_forward.4} parent=5 // pred_check_branch
        %283 = sbr.rel (%p280) target = $region44
      $region43: #{upscaling_forward.4} parent=5 // pred_region
        %s284 = ssub.s32 %s16, 1
        // Predicated region
        $region45: #{upscaling_forward.4} parent=43 // pred_check
          %p285 = pneg %p147
        $region46: #{upscaling_forward.4} parent=43 // pred_check_branch
          %287 = sbr.rel (%p285) target = $region48
        $region47: #{upscaling_forward.4} parent=43 // pred_region
          %289 = dma.done [#allocation4], 576
        $region48: #{upscaling_forward.4} parent=43 // pred_fallthru
          _
        %p290 = scmp.lt.s32.totalorder %s21, 1
        %s291 = scalar_select %p290, %s21, 1
        %s292 = smul.addr %s291, 2
        %s293 = smul.addr %s292, 4
        %s294 = scalar_lea.vmem %s0, %s293
        %p295 = pneg %p42
        %p296 = pneg %p39
        %p297 = pneg %p63
        %p298 = pneg %p60
        %p299 = pneg %p84
        %p300 = pneg %p81
        %p301 = pneg %p105
        %p302 = pneg %p102
        %p303 = pneg %p126
        %p304 = pneg %p123
        %p305 = pneg %p147
        %p306 = pneg %p144
        %p307 = pneg %p173
        %p308 = pneg %p170
        %p309 = scmp.lt.s32.totalorder %s21, 1
        %s310 = scalar_select %p309, %s21, 1
        %s311 = smul.addr %s310, 2
        %s312 = smul.addr %s311, 4
        %s313 = scalar_lea.vmem %s6, %s312
        %p314 = pneg %p199
        %p315 = pneg %p196
        %p316 = scmp.lt.s32.totalorder %s21, 1
        %s317 = scalar_select %p316, %s21, 1
        %s318 = smul.addr %s317, 4
        %s319 = scalar_lea.vmem %s7, %s318
        %p320 = pneg %p225
        %p321 = pneg %p222
        %p322 = scmp.lt.s32.totalorder %s21, 1
        %s323 = scalar_select %p322, %s21, 1
        %s324 = smul.addr %s323, 4
        %s325 = scalar_lea.vmem %s8, %s324
        %p326 = scmp.lt.s32.totalorder %s21, 1
        %s327 = scalar_select %p326, %s21, 1
        %s328 = smul.addr %s327, 2
        %s329 = smul.addr %s328, 4
        %s330 = scalar_lea.vmem %s0, %s329
        %p331 = scmp.lt.s32.totalorder %s21, 1
        %s332 = scalar_select %p331, %s21, 1
        %s333 = smul.addr %s332, 2
        %s334 = smul.addr %s333, 4
        %s335 = scalar_lea.vmem %s6, %s334
        %p336 = scmp.lt.s32.totalorder %s21, 1
        %s337 = scalar_select %p336, %s21, 1
        %s338 = smul.addr %s337, 4
        %s339 = scalar_lea.vmem %s7, %s338
        %p340 = scmp.lt.s32.totalorder %s21, 1
        %s341 = scalar_select %p340, %s21, 1
        %s342 = smul.addr %s341, 4
        %s343 = scalar_lea.vmem %s8, %s342
        %p344 = scmp.eq.s32.totalorder %s21, 0
        // Predicated region
        $region49: #{upscaling_forward.4} parent=43 // pred_check
          %p345 = pneg %p344
        $region50: #{upscaling_forward.4} parent=43 // pred_check_branch
          %347 = sbr.rel (%p345) target = $region52
        $region51: #{upscaling_forward.4} parent=43 // pred_region
          %vm348 = vcmask 146432
          %349 = vst.msk [vmem:[#allocation2] sm:$0xff] %vm348, 0.0
          %350 = vst.msk [vmem:[#allocation2 + $0x8] sm:$0xff] %vm348, 0.0
          %vm351 = vcmask 140288
          %352 = vst.msk [vmem:[#allocation2 + $0x10] sm:$0x3] %vm351, 0.0
          %353 = vst.msk [vmem:[#allocation2 + $0x18] sm:$0xff] %vm348, 0.0
          %354 = vst.msk [vmem:[#allocation2 + $0x20] sm:$0xff] %vm348, 0.0
          %355 = vst.msk [vmem:[#allocation2 + $0x28] sm:$0x3] %vm351, 0.0
          %356 = vst.msk [vmem:[#allocation2 + $0x30] sm:$0xff] %vm348, 0.0
          %357 = vst.msk [vmem:[#allocation2 + $0x38] sm:$0xff] %vm348, 0.0
          %358 = vst.msk [vmem:[#allocation2 + $0x40] sm:$0x3] %vm351, 0.0
          %359 = vst.msk [vmem:[#allocation2 + $0x48] sm:$0xff] %vm348, 0.0
          %360 = vst.msk [vmem:[#allocation2 + $0x50] sm:$0xff] %vm348, 0.0
          %361 = vst.msk [vmem:[#allocation2 + $0x58] sm:$0x3] %vm351, 0.0
        $region52: #{upscaling_forward.4} parent=43 // pred_fallthru
          _
        %v362 = vld [vmem:[%s1] sm:$0xf]
        %v363 = vld [vmem:[%s1 + $0x4] sm:$0xf]
        %vm364 = vcmask 3072
        %v365 = vsel %vm364, %v362, 0.0
        %v366 = vsel %vm364, %v363, 0.0
        %v367 = vadd.f32 %v365, %v366
        %v368 = vmul.f32 %v367, 0.001953125
        %v369 = vld [vmem:[%s2] sm:$0xf]
        %v370 = vld [vmem:[%s2 + $0x4] sm:$0xf]
        %v371 = vsel %vm364, %v369, 0.0
        %v372 = vsel %vm364, %v370, 0.0
        %v373 = vadd.f32 %v371, %v372
        %v374 = vmul.f32 %v373, 0.001953125
        %v375 = vmul.f32 %v368, %v368
        %v376 = vsub.f32 %v374, %v375
        %v377 = vld [vmem:[%s3] sm:$0xf]
        %v378 = vadd.f32 %v376, 1e-05
        %v379 = vrsqrt.pop %v378
        %v380 = vmul.f32 %v379, %v378
        %v381 = vmul.f32 %v380, %v379
        %v382 = vmul.f32 0.5, %v381
        %v383 = vsub.f32 1.5, %v382
        %v384 = vmul.f32 %v379, %v383
        %vm385 = vweird.f32 %v378
        %vm386 = vweird.f32 %v379
        %vm387 = vmor %vm385, %vm386
        %v388 = vsel %vm387, %v379, %v384
        %v389 = vmul.f32 %v377, %v388
        %v390 = vld [vmem:[%s4] sm:$0xf]
        %v391 = vmul.f32 %v368, %v389
        %v392 = vsub.f32 %v390, %v391
        %v393 = vld [vmem:[%s330] sm:$0xff]
        %395 = vset.pattern.permute.xlu0 0
        %396 = vperm.xlu0 %395, %v389
        %v397 = vpop.permute.xlu0 %396
        %v399 = vunpack.c.l.s4 839922192
        %v400 = vunpack.c.0.s8 %v399
        %v401 = vperm.slane %v397, %v400
        %v403 = vmul.f32 %v393, %v401
        %405 = vset.pattern.permute.xlu0 0
        %406 = vperm.xlu0 %405, %v392
        %v407 = vpop.permute.xlu0 %406
        %v409 = vunpack.c.l.s4 839922192
        %v410 = vunpack.c.0.s8 %v409
        %v411 = vperm.slane %v407, %v410
        %v413 = vadd.f32 %v403, %v411
        %v414 = vmax.f32 %v413, 0.0
        %v416 = vrot.slane %v414, 4
        %418 = vrot.lane.b32.xlu0 %v414, 112
        %v419 = vpop.permute.xlu0 %418
        %v420 = vrot.slane %v419, 4
        %422 = vrot.lane.b32.xlu0 %v414, 96
        %v423 = vpop.permute.xlu0 %422
        %v424 = vrot.slane %v423, 4
        %426 = vrot.lane.b32.xlu0 %v414, 80
        %v427 = vpop.permute.xlu0 %426
        %v428 = vrot.slane %v427, 4
        %430 = vrot.lane.b32.xlu0 %v414, 64
        %v431 = vpop.permute.xlu0 %430
        %v432 = vrot.slane %v431, 4
        %434 = vrot.lane.b32.xlu0 %v414, 48
        %v435 = vpop.permute.xlu0 %434
        %v436 = vrot.slane %v435, 4
        %438 = vrot.lane.b32.xlu0 %v414, 32
        %v439 = vpop.permute.xlu0 %438
        %v440 = vrot.slane %v439, 4
        %442 = vrot.lane.b32.xlu0 %v414, 16
        %v443 = vpop.permute.xlu0 %442
        %v444 = vrot.slane %v443, 4
        %v453 = vrot.slane %v423, 4
        %vm454 = vcmask 1047556
        %v455 = vsel %vm454, %v453, %v414
        %v457 = vunpack.c.l.s4 1983009808
        %v458 = vunpack.c.0.s8 %v457
        %v459 = vperm.slane %v455, %v458
        %v460 = vrot.slane %v427, 4
        %v461 = vsel %vm454, %v460, %v419
        %v463 = vunpack.c.l.s4 1983009808
        %v464 = vunpack.c.0.s8 %v463
        %v465 = vperm.slane %v461, %v464
        %v466 = vrot.slane %v465, 4
        %v467 = vsel %vm454, %v466, %v459
        %v468 = vrot.slane %v459, 4
        %v469 = vsel %vm454, %v465, %v468
        %v471 = vunpack.c.l.s4 1934713408
        %v472 = vunpack.c.0.s8 %v471
        %v473 = vperm.slane %v467, %v472
        %v475 = vunpack.c.l.s4 1934713408
        %v476 = vunpack.c.0.s8 %v475
        %v477 = vperm.slane %v469, %v476
        %v478 = vrot.slane %v473, 4
        %v479 = vsel %vm454, 0.0, %v478
        %v480 = vrot.slane %v477, 4
        %v481 = vsel %vm454, 0.0, %v480
        %v482 = vrot.slane %v439, 4
        %v483 = vsel %vm454, %v482, %v431
        %v485 = vunpack.c.l.s4 1983009808
        %v486 = vunpack.c.0.s8 %v485
        %v487 = vperm.slane %v483, %v486
        %v488 = vrot.slane %v443, 4
        %v489 = vsel %vm454, %v488, %v435
        %v491 = vunpack.c.l.s4 1983009808
        %v492 = vunpack.c.0.s8 %v491
        %v493 = vperm.slane %v489, %v492
        %v494 = vrot.slane %v493, 4
        %v495 = vsel %vm454, %v494, %v487
        %v496 = vrot.slane %v487, 4
        %v497 = vsel %vm454, %v493, %v496
        %v499 = vunpack.c.l.s4 1934713408
        %v500 = vunpack.c.0.s8 %v499
        %v501 = vperm.slane %v495, %v500
        %v503 = vunpack.c.l.s4 1934713408
        %v504 = vunpack.c.0.s8 %v503
        %v505 = vperm.slane %v497, %v504
        %v506 = vrot.slane %v501, 4
        %v507 = vsel %vm454, 0.0, %v506
        %v508 = vrot.slane %v505, 4
        %v509 = vsel %vm454, 0.0, %v508
        %v510 = vrot.slane %v424, 4
        %v511 = vsel %vm454, %v510, %v416
        %v513 = vunpack.c.l.s4 1983009808
        %v514 = vunpack.c.0.s8 %v513
        %v515 = vperm.slane %v511, %v514
        %v516 = vrot.slane %v428, 4
        %v517 = vsel %vm454, %v516, %v420
        %v519 = vunpack.c.l.s4 1983009808
        %v520 = vunpack.c.0.s8 %v519
        %v521 = vperm.slane %v517, %v520
        %v522 = vrot.slane %v521, 4
        %v523 = vsel %vm454, %v522, %v515
        %v524 = vrot.slane %v515, 4
        %v525 = vsel %vm454, %v521, %v524
        %v527 = vunpack.c.l.s4 1934713408
        %v528 = vunpack.c.0.s8 %v527
        %v529 = vperm.slane %v523, %v528
        %v531 = vunpack.c.l.s4 1934713408
        %v532 = vunpack.c.0.s8 %v531
        %v533 = vperm.slane %v525, %v532
        %v534 = vrot.slane %v529, 4
        %v535 = vsel %vm454, 0.0, %v534
        %v536 = vrot.slane %v533, 4
        %v537 = vsel %vm454, 0.0, %v536
        %v538 = vrot.slane %v440, 4
        %v539 = vsel %vm454, %v538, %v432
        %v541 = vunpack.c.l.s4 1983009808
        %v542 = vunpack.c.0.s8 %v541
        %v543 = vperm.slane %v539, %v542
        %v544 = vrot.slane %v444, 4
        %v545 = vsel %vm454, %v544, %v436
        %v547 = vunpack.c.l.s4 1983009808
        %v548 = vunpack.c.0.s8 %v547
        %v549 = vperm.slane %v545, %v548
        %v550 = vrot.slane %v549, 4
        %v551 = vsel %vm454, %v550, %v543
        %v552 = vrot.slane %v543, 4
        %v553 = vsel %vm454, %v549, %v552
        %v555 = vunpack.c.l.s4 1934713408
        %v556 = vunpack.c.0.s8 %v555
        %v557 = vperm.slane %v551, %v556
        %v559 = vunpack.c.l.s4 1934713408
        %v560 = vunpack.c.0.s8 %v559
        %v561 = vperm.slane %v553, %v560
        %v562 = vrot.slane %v557, 4
        %v563 = vsel %vm454, 0.0, %v562
        %v564 = vrot.slane %v561, 4
        %v565 = vsel %vm454, 0.0, %v564
        %582 = vst [vmem:[#allocation1] ss:$2 sm:$0xff] %v473
        %s583 = scalar_lea.vmem [#allocation1], 1
        %584 = vst [vmem:[%s583] ss:$2 sm:$0xff] %v501
        %s585 = scalar_lea.vmem [#allocation1], 16
        %586 = vst [vmem:[%s585] ss:$2 sm:$0xff] %v529
        %s587 = scalar_lea.vmem [#allocation1], 17
        %588 = vst [vmem:[%s587] ss:$2 sm:$0xff] %v557
        %v589 = vld.sshfl [vmem:[#allocation1] sm:$0xff pattern:$0x75316420]
        %v590 = vld.sshfl [vmem:[#allocation1 + $0x10] sm:$0xff pattern:$0x75316420]
        %s591 = scalar_lea.vmem [#allocation1], 32
        %592 = vst [vmem:[%s591] ss:$2 sm:$0xff] %v479
        %s593 = scalar_lea.vmem [#allocation1], 33
        %594 = vst [vmem:[%s593] ss:$2 sm:$0xff] %v507
        %s595 = scalar_lea.vmem [#allocation1], 48
        %596 = vst [vmem:[%s595] ss:$2 sm:$0xff] %v535
        %s597 = scalar_lea.vmem [#allocation1], 49
        %598 = vst [vmem:[%s597] ss:$2 sm:$0xff] %v563
        %v599 = vld.sshfl [vmem:[#allocation1 + $0x20] sm:$0xff pattern:$0x75316420]
        %v600 = vld.sshfl [vmem:[#allocation1 + $0x30] sm:$0xff pattern:$0x75316420]
        %601 = vst [vmem:[#allocation1] ss:$2 sm:$0xff] %v477
        %602 = vst [vmem:[%s583] ss:$2 sm:$0xff] %v505
        %603 = vst [vmem:[%s585] ss:$2 sm:$0xff] %v533
        %604 = vst [vmem:[%s587] ss:$2 sm:$0xff] %v561
        %v605 = vld.sshfl [vmem:[#allocation1] sm:$0xff pattern:$0x75316420]
        %v606 = vld.sshfl [vmem:[#allocation1 + $0x10] sm:$0xff pattern:$0x75316420]
        %607 = vst [vmem:[%s591] ss:$2 sm:$0xff] %v481
        %608 = vst [vmem:[%s593] ss:$2 sm:$0xff] %v509
        %609 = vst [vmem:[%s595] ss:$2 sm:$0xff] %v537
        %610 = vst [vmem:[%s597] ss:$2 sm:$0xff] %v565
        %v611 = vld.sshfl [vmem:[#allocation1 + $0x20] sm:$0xff pattern:$0x75316420]
        %v612 = vld.sshfl [vmem:[#allocation1 + $0x30] sm:$0xff pattern:$0x75316420]
        %613 = vrot.lane.b32.xlu0 %v589, 1
        %v614 = vpop.permute.xlu0 %613
        %615 = vrot.lane.b32.xlu0 %v590, 1
        %v616 = vpop.permute.xlu0 %615
        %617 = vrot.lane.b32.xlu0 %v599, 1
        %v618 = vpop.permute.xlu0 %617
        %619 = vrot.lane.b32.xlu0 %v600, 1
        %v620 = vpop.permute.xlu0 %619
        %621 = vrot.lane.b32.xlu0 %v605, 1
        %v622 = vpop.permute.xlu0 %621
        %623 = vrot.lane.b32.xlu0 %v606, 1
        %v624 = vpop.permute.xlu0 %623
        %625 = vrot.lane.b32.xlu0 %v611, 1
        %v626 = vpop.permute.xlu0 %625
        %627 = vrot.lane.b32.xlu0 %v612, 1
        %v628 = vpop.permute.xlu0 %627
        %vm637 = vcmask 138248
        %638 = vst.msk [vmem:[#allocation2 + $0x1] sm:$0xff] %vm637, %v614
        %639 = vst.msk [vmem:[#allocation2 + $0x9] sm:$0xff] %vm637, %v616
        %640 = vst.msk [vmem:[#allocation2 + $0x19] sm:$0xff] %vm637, %v618
        %641 = vst.msk [vmem:[#allocation2 + $0x21] sm:$0xff] %vm637, %v620
        %642 = vst.msk [vmem:[#allocation2 + $0x31] sm:$0xff] %vm637, %v622
        %643 = vst.msk [vmem:[#allocation2 + $0x39] sm:$0xff] %vm637, %v624
        %644 = vst.msk [vmem:[#allocation2 + $0x49] sm:$0xff] %vm637, %v626
        %645 = vst.msk [vmem:[#allocation2 + $0x51] sm:$0xff] %vm637, %v628
        %v646 = vld [vmem:[#allocation2] sm:$0xff]
        %v647 = vld [vmem:[#allocation2 + $0x8] sm:$0xff]
        %v648 = vld [vmem:[#allocation2 + $0x18] sm:$0xff]
        %v649 = vld [vmem:[#allocation2 + $0x20] sm:$0xff]
        %v650 = vld [vmem:[#allocation2 + $0x30] sm:$0xff]
        %v651 = vld [vmem:[#allocation2 + $0x38] sm:$0xff]
        %v652 = vld [vmem:[#allocation2 + $0x48] sm:$0xff]
        %v653 = vld [vmem:[#allocation2 + $0x50] sm:$0xff]
        %v654 = vrot.slane %v650, 4
        %v655 = vsel %vm454, %v654, %v646
        %v656 = vrot.slane %v646, 4
        %v657 = vsel %vm454, %v650, %v656
        %v659 = vunpack.c.l.s4 1983009808
        %v660 = vunpack.c.0.s8 %v659
        %v661 = vperm.slane %v655, %v660
        %v663 = vunpack.c.l.s4 1983009808
        %v664 = vunpack.c.0.s8 %v663
        %v665 = vperm.slane %v657, %v664
        %v666 = vrot.slane %v652, 4
        %v667 = vsel %vm454, %v666, %v648
        %v668 = vrot.slane %v648, 4
        %v669 = vsel %vm454, %v652, %v668
        %v671 = vunpack.c.l.s4 1983009808
        %v672 = vunpack.c.0.s8 %v671
        %v673 = vperm.slane %v667, %v672
        %v675 = vunpack.c.l.s4 1983009808
        %v676 = vunpack.c.0.s8 %v675
        %v677 = vperm.slane %v669, %v676
        %v678 = vrot.slane %v673, 4
        %v679 = vsel %vm454, %v678, %v661
        %v680 = vrot.slane %v661, 4
        %v681 = vsel %vm454, %v673, %v680
        %v683 = vunpack.c.l.s4 1934713408
        %v684 = vunpack.c.0.s8 %v683
        %v685 = vperm.slane %v679, %v684
        %v687 = vunpack.c.l.s4 1934713408
        %v688 = vunpack.c.0.s8 %v687
        %v689 = vperm.slane %v681, %v688
        %v690 = vrot.slane %v677, 4
        %v691 = vsel %vm454, %v690, %v665
        %v692 = vrot.slane %v665, 4
        %v693 = vsel %vm454, %v677, %v692
        %v695 = vunpack.c.l.s4 1934713408
        %v696 = vunpack.c.0.s8 %v695
        %v697 = vperm.slane %v691, %v696
        %v699 = vunpack.c.l.s4 1934713408
        %v700 = vunpack.c.0.s8 %v699
        %v701 = vperm.slane %v693, %v700
        %v702 = vrot.slane %v685, 4
        %v703 = vsel %vm454, 0.0, %v702
        %v704 = vrot.slane %v689, 4
        %v705 = vsel %vm454, 0.0, %v704
        %v706 = vrot.slane %v697, 4
        %v707 = vsel %vm454, 0.0, %v706
        %v708 = vrot.slane %v701, 4
        %v709 = vsel %vm454, 0.0, %v708
        %v710 = vrot.slane %v651, 4
        %v711 = vsel %vm454, %v710, %v647
        %v712 = vrot.slane %v647, 4
        %v713 = vsel %vm454, %v651, %v712
        %v715 = vunpack.c.l.s4 1983009808
        %v716 = vunpack.c.0.s8 %v715
        %v717 = vperm.slane %v711, %v716
        %v719 = vunpack.c.l.s4 1983009808
        %v720 = vunpack.c.0.s8 %v719
        %v721 = vperm.slane %v713, %v720
        %v722 = vrot.slane %v653, 4
        %v723 = vsel %vm454, %v722, %v649
        %v724 = vrot.slane %v649, 4
        %v725 = vsel %vm454, %v653, %v724
        %v727 = vunpack.c.l.s4 1983009808
        %v728 = vunpack.c.0.s8 %v727
        %v729 = vperm.slane %v723, %v728
        %v731 = vunpack.c.l.s4 1983009808
        %v732 = vunpack.c.0.s8 %v731
        %v733 = vperm.slane %v725, %v732
        %v734 = vrot.slane %v729, 4
        %v735 = vsel %vm454, %v734, %v717
        %v736 = vrot.slane %v717, 4
        %v737 = vsel %vm454, %v729, %v736
        %v739 = vunpack.c.l.s4 1934713408
        %v740 = vunpack.c.0.s8 %v739
        %v741 = vperm.slane %v735, %v740
        %v743 = vunpack.c.l.s4 1934713408
        %v744 = vunpack.c.0.s8 %v743
        %v745 = vperm.slane %v737, %v744
        %v746 = vrot.slane %v733, 4
        %v747 = vsel %vm454, %v746, %v721
        %v748 = vrot.slane %v721, 4
        %v749 = vsel %vm454, %v733, %v748
        %v751 = vunpack.c.l.s4 1934713408
        %v752 = vunpack.c.0.s8 %v751
        %v753 = vperm.slane %v747, %v752
        %v755 = vunpack.c.l.s4 1934713408
        %v756 = vunpack.c.0.s8 %v755
        %v757 = vperm.slane %v749, %v756
        %v758 = vrot.slane %v741, 4
        %v759 = vsel %vm454, 0.0, %v758
        %v760 = vrot.slane %v745, 4
        %v761 = vsel %vm454, 0.0, %v760
        %v762 = vrot.slane %v753, 4
        %v763 = vsel %vm454, 0.0, %v762
        %v764 = vrot.slane %v757, 4
        %v765 = vsel %vm454, 0.0, %v764
        %767 = vrot.lane.b32.xlu0 %v703, 16
        %v768 = vpop.permute.xlu0 %767
        %771 = vrot.lane.b32.xlu0 %v689, 32
        %v772 = vpop.permute.xlu0 %771
        %775 = vrot.lane.b32.xlu0 %v705, 48
        %v776 = vpop.permute.xlu0 %775
        %779 = vrot.lane.b32.xlu0 %v697, 64
        %v780 = vpop.permute.xlu0 %779
        %783 = vrot.lane.b32.xlu0 %v707, 80
        %v784 = vpop.permute.xlu0 %783
        %787 = vrot.lane.b32.xlu0 %v701, 96
        %v788 = vpop.permute.xlu0 %787
        %791 = vrot.lane.b32.xlu0 %v709, 112
        %v792 = vpop.permute.xlu0 %791
        %795 = vrot.lane.b32.xlu0 %v759, 16
        %v796 = vpop.permute.xlu0 %795
        %799 = vrot.lane.b32.xlu0 %v745, 32
        %v800 = vpop.permute.xlu0 %799
        %803 = vrot.lane.b32.xlu0 %v761, 48
        %v804 = vpop.permute.xlu0 %803
        %807 = vrot.lane.b32.xlu0 %v753, 64
        %v808 = vpop.permute.xlu0 %807
        %811 = vrot.lane.b32.xlu0 %v763, 80
        %v812 = vpop.permute.xlu0 %811
        %815 = vrot.lane.b32.xlu0 %v757, 96
        %v816 = vpop.permute.xlu0 %815
        %819 = vrot.lane.b32.xlu0 %v765, 112
        %v820 = vpop.permute.xlu0 %819
        %vm822 = vcmask 130048
        %v823 = vsel %vm822, %v685, %v768
        %vm824 = vcmask 261120
        %v825 = vsel %vm824, %v823, %v772
        %vm826 = vcmask 392192
        %v827 = vsel %vm826, %v825, %v776
        %vm828 = vcmask 523264
        %v829 = vsel %vm828, %v827, %v780
        %vm830 = vcmask 654336
        %v831 = vsel %vm830, %v829, %v784
        %vm832 = vcmask 785408
        %v833 = vsel %vm832, %v831, %v788
        %vm834 = vcmask 916480
        %v835 = vsel %vm834, %v833, %v792
        %v836 = vsel %vm822, %v741, %v796
        %v837 = vsel %vm824, %v836, %v800
        %v838 = vsel %vm826, %v837, %v804
        %v839 = vsel %vm828, %v838, %v808
        %v840 = vsel %vm830, %v839, %v812
        %v841 = vsel %vm832, %v840, %v816
        %v842 = vsel %vm834, %v841, %v820
        %v843 = vld [vmem:[#allocation3] sm:$0xf]
        %852 = vrot.lane.b32.xlu0 %v646, 127
        %v853 = vpop.permute.xlu0 %852
        %854 = vrot.lane.b32.xlu0 %v647, 127
        %v855 = vpop.permute.xlu0 %854
        %856 = vrot.lane.b32.xlu0 %v648, 127
        %v857 = vpop.permute.xlu0 %856
        %858 = vrot.lane.b32.xlu0 %v649, 127
        %v859 = vpop.permute.xlu0 %858
        %860 = vrot.lane.b32.xlu0 %v650, 127
        %v861 = vpop.permute.xlu0 %860
        %862 = vrot.lane.b32.xlu0 %v651, 127
        %v863 = vpop.permute.xlu0 %862
        %864 = vrot.lane.b32.xlu0 %v652, 127
        %v865 = vpop.permute.xlu0 %864
        %866 = vrot.lane.b32.xlu0 %v653, 127
        %v867 = vpop.permute.xlu0 %866
        %v876 = vrot.slane %v861, 4
        %v877 = vsel %vm454, %v876, %v853
        %v878 = vrot.slane %v853, 4
        %v879 = vsel %vm454, %v861, %v878
        %v881 = vunpack.c.l.s4 1983009808
        %v882 = vunpack.c.0.s8 %v881
        %v883 = vperm.slane %v877, %v882
        %v885 = vunpack.c.l.s4 1983009808
        %v886 = vunpack.c.0.s8 %v885
        %v887 = vperm.slane %v879, %v886
        %v888 = vrot.slane %v865, 4
        %v889 = vsel %vm454, %v888, %v857
        %v890 = vrot.slane %v857, 4
        %v891 = vsel %vm454, %v865, %v890
        %v893 = vunpack.c.l.s4 1983009808
        %v894 = vunpack.c.0.s8 %v893
        %v895 = vperm.slane %v889, %v894
        %v897 = vunpack.c.l.s4 1983009808
        %v898 = vunpack.c.0.s8 %v897
        %v899 = vperm.slane %v891, %v898
        %v900 = vrot.slane %v895, 4
        %v901 = vsel %vm454, %v900, %v883
        %v902 = vrot.slane %v883, 4
        %v903 = vsel %vm454, %v895, %v902
        %v905 = vunpack.c.l.s4 1934713408
        %v906 = vunpack.c.0.s8 %v905
        %v907 = vperm.slane %v901, %v906
        %v909 = vunpack.c.l.s4 1934713408
        %v910 = vunpack.c.0.s8 %v909
        %v911 = vperm.slane %v903, %v910
        %v912 = vrot.slane %v899, 4
        %v913 = vsel %vm454, %v912, %v887
        %v914 = vrot.slane %v887, 4
        %v915 = vsel %vm454, %v899, %v914
        %v917 = vunpack.c.l.s4 1934713408
        %v918 = vunpack.c.0.s8 %v917
        %v919 = vperm.slane %v913, %v918
        %v921 = vunpack.c.l.s4 1934713408
        %v922 = vunpack.c.0.s8 %v921
        %v923 = vperm.slane %v915, %v922
        %v924 = vrot.slane %v907, 4
        %v925 = vsel %vm454, 0.0, %v924
        %v926 = vrot.slane %v911, 4
        %v927 = vsel %vm454, 0.0, %v926
        %v928 = vrot.slane %v919, 4
        %v929 = vsel %vm454, 0.0, %v928
        %v930 = vrot.slane %v923, 4
        %v931 = vsel %vm454, 0.0, %v930
        %v932 = vrot.slane %v863, 4
        %v933 = vsel %vm454, %v932, %v855
        %v934 = vrot.slane %v855, 4
        %v935 = vsel %vm454, %v863, %v934
        %v937 = vunpack.c.l.s4 1983009808
        %v938 = vunpack.c.0.s8 %v937
        %v939 = vperm.slane %v933, %v938
        %v941 = vunpack.c.l.s4 1983009808
        %v942 = vunpack.c.0.s8 %v941
        %v943 = vperm.slane %v935, %v942
        %v944 = vrot.slane %v867, 4
        %v945 = vsel %vm454, %v944, %v859
        %v946 = vrot.slane %v859, 4
        %v947 = vsel %vm454, %v867, %v946
        %v949 = vunpack.c.l.s4 1983009808
        %v950 = vunpack.c.0.s8 %v949
        %v951 = vperm.slane %v945, %v950
        %v953 = vunpack.c.l.s4 1983009808
        %v954 = vunpack.c.0.s8 %v953
        %v955 = vperm.slane %v947, %v954
        %v956 = vrot.slane %v951, 4
        %v957 = vsel %vm454, %v956, %v939
        %v958 = vrot.slane %v939, 4
        %v959 = vsel %vm454, %v951, %v958
        %v961 = vunpack.c.l.s4 1934713408
        %v962 = vunpack.c.0.s8 %v961
        %v963 = vperm.slane %v957, %v962
        %v965 = vunpack.c.l.s4 1934713408
        %v966 = vunpack.c.0.s8 %v965
        %v967 = vperm.slane %v959, %v966
        %v968 = vrot.slane %v955, 4
        %v969 = vsel %vm454, %v968, %v943
        %v970 = vrot.slane %v943, 4
        %v971 = vsel %vm454, %v955, %v970
        %v973 = vunpack.c.l.s4 1934713408
        %v974 = vunpack.c.0.s8 %v973
        %v975 = vperm.slane %v969, %v974
        %v977 = vunpack.c.l.s4 1934713408
        %v978 = vunpack.c.0.s8 %v977
        %v979 = vperm.slane %v971, %v978
        %v980 = vrot.slane %v963, 4
        %v981 = vsel %vm454, 0.0, %v980
        %v982 = vrot.slane %v967, 4
        %v983 = vsel %vm454, 0.0, %v982
        %v984 = vrot.slane %v975, 4
        %v985 = vsel %vm454, 0.0, %v984
        %v986 = vrot.slane %v979, 4
        %v987 = vsel %vm454, 0.0, %v986
        %989 = vrot.lane.b32.xlu0 %v925, 16
        %v990 = vpop.permute.xlu0 %989
        %993 = vrot.lane.b32.xlu0 %v911, 32
        %v994 = vpop.permute.xlu0 %993
        %997 = vrot.lane.b32.xlu0 %v927, 48
        %v998 = vpop.permute.xlu0 %997
        %1001 = vrot.lane.b32.xlu0 %v919, 64
        %v1002 = vpop.permute.xlu0 %1001
        %1005 = vrot.lane.b32.xlu0 %v929, 80
        %v1006 = vpop.permute.xlu0 %1005
        %1009 = vrot.lane.b32.xlu0 %v923, 96
        %v1010 = vpop.permute.xlu0 %1009
        %1013 = vrot.lane.b32.xlu0 %v931, 112
        %v1014 = vpop.permute.xlu0 %1013
        %1017 = vrot.lane.b32.xlu0 %v981, 16
        %v1018 = vpop.permute.xlu0 %1017
        %1021 = vrot.lane.b32.xlu0 %v967, 32
        %v1022 = vpop.permute.xlu0 %1021
        %1025 = vrot.lane.b32.xlu0 %v983, 48
        %v1026 = vpop.permute.xlu0 %1025
        %1029 = vrot.lane.b32.xlu0 %v975, 64
        %v1030 = vpop.permute.xlu0 %1029
        %1033 = vrot.lane.b32.xlu0 %v985, 80
        %v1034 = vpop.permute.xlu0 %1033
        %1037 = vrot.lane.b32.xlu0 %v979, 96
        %v1038 = vpop.permute.xlu0 %1037
        %1041 = vrot.lane.b32.xlu0 %v987, 112
        %v1042 = vpop.permute.xlu0 %1041
        %v1044 = vsel %vm822, %v907, %v990
        %v1045 = vsel %vm824, %v1044, %v994
        %v1046 = vsel %vm826, %v1045, %v998
        %v1047 = vsel %vm828, %v1046, %v1002
        %v1048 = vsel %vm830, %v1047, %v1006
        %v1049 = vsel %vm832, %v1048, %v1010
        %v1050 = vsel %vm834, %v1049, %v1014
        %v1051 = vsel %vm822, %v963, %v1018
        %v1052 = vsel %vm824, %v1051, %v1022
        %v1053 = vsel %vm826, %v1052, %v1026
        %v1054 = vsel %vm828, %v1053, %v1030
        %v1055 = vsel %vm830, %v1054, %v1034
        %v1056 = vsel %vm832, %v1055, %v1038
        %v1057 = vsel %vm834, %v1056, %v1042
        %s1058 = scalar_lea.vmem [#allocation3], 4
        %v1059 = vld [vmem:[%s1058] sm:$0xf]
        %vm1060 = vcmask 31744
        %v1062 = vsel %vm1060, %v1059, 0
        %vm1064 = vcmask 1043456
        %v1066 = vsel %vm1064, %v1050, 0
        %v1069 = vsel %vm1064, %v1057, 0
        %1071 = vmatpush.msra.mxu0 0.0
        %1072 = vmatpush.msra.mxu0 0.0
        %1073 = vmatpush.msra.mxu0 0.0
        %1074 = vmatpush.msra.mxu0 0.0
        %1075 = vmatpush.msra.mxu0 0.0
        %1076 = vmatpush.msra.mxu0 0.0
        %1077 = vmatpush.msra.mxu0 0.0
        %1078 = vmatpush.msra.mxu0 0.0
        %1079 = vmatpush.msra.mxu0 0.0
        %1080 = vmatpush.msra.mxu0 0.0
        %1081 = vmatpush.msra.mxu0 0.0
        %1082 = vmatpush.msra.mxu0 0.0
        %1083 = vmatpush.msra.mxu0 0.0
        %1084 = vmatpush.msra.mxu0 0.0
        %1085 = vmatpush.msra.mxu0 0.0
        %1086 = vmatpush.msra.mxu0 %v1066
        %1087 = vmatmul.f32.gmra.mxu0 %v1062
        %v1088 = vpop.f32.mrf.mxu0
        %v1089 = vadd.f32 0.0, %v1088
        %1090 = vdwg.mxu0
        %1091 = vmatpush.msra.mxu0 0.0
        %1092 = vmatpush.msra.mxu0 0.0
        %1093 = vmatpush.msra.mxu0 0.0
        %1094 = vmatpush.msra.mxu0 0.0
        %1095 = vmatpush.msra.mxu0 0.0
        %1096 = vmatpush.msra.mxu0 0.0
        %1097 = vmatpush.msra.mxu0 0.0
        %1098 = vmatpush.msra.mxu0 0.0
        %1099 = vmatpush.msra.mxu0 0.0
        %1100 = vmatpush.msra.mxu0 0.0
        %1101 = vmatpush.msra.mxu0 0.0
        %1102 = vmatpush.msra.mxu0 0.0
        %1103 = vmatpush.msra.mxu0 0.0
        %1104 = vmatpush.msra.mxu0 0.0
        %1105 = vmatpush.msra.mxu0 0.0
        %1106 = vmatpush.msra.mxu0 %v1069
        %1107 = vmatmul.f32.gmra.mxu0 %v1062
        %v1108 = vpop.f32.mrf.mxu0
        %v1109 = vadd.f32 0.0, %v1108
        %1110 = vdwg.mxu0
        %v1112 = vsel %vm1060, %v843, 0
        %v1115 = vsel %vm1064, %v835, 0
        %v1118 = vsel %vm1064, %v842, 0
        %1120 = vmatpush.msra.mxu0 0.0
        %1121 = vmatpush.msra.mxu0 0.0
        %1122 = vmatpush.msra.mxu0 0.0
        %1123 = vmatpush.msra.mxu0 0.0
        %1124 = vmatpush.msra.mxu0 0.0
        %1125 = vmatpush.msra.mxu0 0.0
        %1126 = vmatpush.msra.mxu0 0.0
        %1127 = vmatpush.msra.mxu0 0.0
        %1128 = vmatpush.msra.mxu0 0.0
        %1129 = vmatpush.msra.mxu0 0.0
        %1130 = vmatpush.msra.mxu0 0.0
        %1131 = vmatpush.msra.mxu0 0.0
        %1132 = vmatpush.msra.mxu0 0.0
        %1133 = vmatpush.msra.mxu0 0.0
        %1134 = vmatpush.msra.mxu0 0.0
        %1135 = vmatpush.msra.mxu0 %v1115
        %1136 = vmatmul.f32.gmra.mxu0 %v1112
        %v1137 = vpop.f32.mrf.mxu0
        %v1138 = vadd.f32 %v1089, %v1137
        %1139 = vdwg.mxu0
        %1140 = vmatpush.msra.mxu0 0.0
        %1141 = vmatpush.msra.mxu0 0.0
        %1142 = vmatpush.msra.mxu0 0.0
        %1143 = vmatpush.msra.mxu0 0.0
        %1144 = vmatpush.msra.mxu0 0.0
        %1145 = vmatpush.msra.mxu0 0.0
        %1146 = vmatpush.msra.mxu0 0.0
        %1147 = vmatpush.msra.mxu0 0.0
        %1148 = vmatpush.msra.mxu0 0.0
        %1149 = vmatpush.msra.mxu0 0.0
        %1150 = vmatpush.msra.mxu0 0.0
        %1151 = vmatpush.msra.mxu0 0.0
        %1152 = vmatpush.msra.mxu0 0.0
        %1153 = vmatpush.msra.mxu0 0.0
        %1154 = vmatpush.msra.mxu0 0.0
        %1155 = vmatpush.msra.mxu0 %v1118
        %1156 = vmatmul.f32.gmra.mxu0 %v1112
        %v1157 = vpop.f32.mrf.mxu0
        %v1158 = vadd.f32 %v1109, %v1157
        %1159 = vdwg.mxu0
        %v1160 = vld [vmem:[#allocation2] sm:$0xff]
        %v1161 = vld [vmem:[#allocation2 + $0x8] sm:$0xff]
        %v1162 = vld [vmem:[#allocation2 + $0x18] sm:$0xff]
        %v1163 = vld [vmem:[#allocation2 + $0x20] sm:$0xff]
        %v1164 = vld [vmem:[#allocation2 + $0x30] sm:$0xff]
        %v1165 = vld [vmem:[#allocation2 + $0x38] sm:$0xff]
        %v1166 = vld [vmem:[#allocation2 + $0x48] sm:$0xff]
        %v1167 = vld [vmem:[#allocation2 + $0x50] sm:$0xff]
        %1176 = vrot.lane.b32.xlu0 %v1160, 126
        %v1177 = vpop.permute.xlu0 %1176
        %1178 = vrot.lane.b32.xlu0 %v1161, 126
        %v1179 = vpop.permute.xlu0 %1178
        %1180 = vrot.lane.b32.xlu0 %v1162, 126
        %v1181 = vpop.permute.xlu0 %1180
        %1182 = vrot.lane.b32.xlu0 %v1163, 126
        %v1183 = vpop.permute.xlu0 %1182
        %1184 = vrot.lane.b32.xlu0 %v1164, 126
        %v1185 = vpop.permute.xlu0 %1184
        %1186 = vrot.lane.b32.xlu0 %v1165, 126
        %v1187 = vpop.permute.xlu0 %1186
        %1188 = vrot.lane.b32.xlu0 %v1166, 126
        %v1189 = vpop.permute.xlu0 %1188
        %1190 = vrot.lane.b32.xlu0 %v1167, 126
        %v1191 = vpop.permute.xlu0 %1190
        %v1200 = vrot.slane %v1185, 4
        %v1201 = vsel %vm454, %v1200, %v1177
        %v1202 = vrot.slane %v1177, 4
        %v1203 = vsel %vm454, %v1185, %v1202
        %v1205 = vunpack.c.l.s4 1983009808
        %v1206 = vunpack.c.0.s8 %v1205
        %v1207 = vperm.slane %v1201, %v1206
        %v1209 = vunpack.c.l.s4 1983009808
        %v1210 = vunpack.c.0.s8 %v1209
        %v1211 = vperm.slane %v1203, %v1210
        %v1212 = vrot.slane %v1189, 4
        %v1213 = vsel %vm454, %v1212, %v1181
        %v1214 = vrot.slane %v1181, 4
        %v1215 = vsel %vm454, %v1189, %v1214
        %v1217 = vunpack.c.l.s4 1983009808
        %v1218 = vunpack.c.0.s8 %v1217
        %v1219 = vperm.slane %v1213, %v1218
        %v1221 = vunpack.c.l.s4 1983009808
        %v1222 = vunpack.c.0.s8 %v1221
        %v1223 = vperm.slane %v1215, %v1222
        %v1224 = vrot.slane %v1219, 4
        %v1225 = vsel %vm454, %v1224, %v1207
        %v1226 = vrot.slane %v1207, 4
        %v1227 = vsel %vm454, %v1219, %v1226
        %v1229 = vunpack.c.l.s4 1934713408
        %v1230 = vunpack.c.0.s8 %v1229
        %v1231 = vperm.slane %v1225, %v1230
        %v1233 = vunpack.c.l.s4 1934713408
        %v1234 = vunpack.c.0.s8 %v1233
        %v1235 = vperm.slane %v1227, %v1234
        %v1236 = vrot.slane %v1223, 4
        %v1237 = vsel %vm454, %v1236, %v1211
        %v1238 = vrot.slane %v1211, 4
        %v1239 = vsel %vm454, %v1223, %v1238
        %v1241 = vunpack.c.l.s4 1934713408
        %v1242 = vunpack.c.0.s8 %v1241
        %v1243 = vperm.slane %v1237, %v1242
        %v1245 = vunpack.c.l.s4 1934713408
        %v1246 = vunpack.c.0.s8 %v1245
        %v1247 = vperm.slane %v1239, %v1246
        %v1248 = vrot.slane %v1231, 4
        %v1249 = vsel %vm454, 0.0, %v1248
        %v1250 = vrot.slane %v1235, 4
        %v1251 = vsel %vm454, 0.0, %v1250
        %v1252 = vrot.slane %v1243, 4
        %v1253 = vsel %vm454, 0.0, %v1252
        %v1254 = vrot.slane %v1247, 4
        %v1255 = vsel %vm454, 0.0, %v1254
        %v1256 = vrot.slane %v1187, 4
        %v1257 = vsel %vm454, %v1256, %v1179
        %v1258 = vrot.slane %v1179, 4
        %v1259 = vsel %vm454, %v1187, %v1258
        %v1261 = vunpack.c.l.s4 1983009808
        %v1262 = vunpack.c.0.s8 %v1261
        %v1263 = vperm.slane %v1257, %v1262
        %v1265 = vunpack.c.l.s4 1983009808
        %v1266 = vunpack.c.0.s8 %v1265
        %v1267 = vperm.slane %v1259, %v1266
        %v1268 = vrot.slane %v1191, 4
        %v1269 = vsel %vm454, %v1268, %v1183
        %v1270 = vrot.slane %v1183, 4
        %v1271 = vsel %vm454, %v1191, %v1270
        %v1273 = vunpack.c.l.s4 1983009808
        %v1274 = vunpack.c.0.s8 %v1273
        %v1275 = vperm.slane %v1269, %v1274
        %v1277 = vunpack.c.l.s4 1983009808
        %v1278 = vunpack.c.0.s8 %v1277
        %v1279 = vperm.slane %v1271, %v1278
        %v1280 = vrot.slane %v1275, 4
        %v1281 = vsel %vm454, %v1280, %v1263
        %v1282 = vrot.slane %v1263, 4
        %v1283 = vsel %vm454, %v1275, %v1282
        %v1285 = vunpack.c.l.s4 1934713408
        %v1286 = vunpack.c.0.s8 %v1285
        %v1287 = vperm.slane %v1281, %v1286
        %v1289 = vunpack.c.l.s4 1934713408
        %v1290 = vunpack.c.0.s8 %v1289
        %v1291 = vperm.slane %v1283, %v1290
        %v1292 = vrot.slane %v1279, 4
        %v1293 = vsel %vm454, %v1292, %v1267
        %v1294 = vrot.slane %v1267, 4
        %v1295 = vsel %vm454, %v1279, %v1294
        %v1297 = vunpack.c.l.s4 1934713408
        %v1298 = vunpack.c.0.s8 %v1297
        %v1299 = vperm.slane %v1293, %v1298
        %v1301 = vunpack.c.l.s4 1934713408
        %v1302 = vunpack.c.0.s8 %v1301
        %v1303 = vperm.slane %v1295, %v1302
        %v1304 = vrot.slane %v1287, 4
        %v1305 = vsel %vm454, 0.0, %v1304
        %v1306 = vrot.slane %v1291, 4
        %v1307 = vsel %vm454, 0.0, %v1306
        %v1308 = vrot.slane %v1299, 4
        %v1309 = vsel %vm454, 0.0, %v1308
        %v1310 = vrot.slane %v1303, 4
        %v1311 = vsel %vm454, 0.0, %v1310
        %1313 = vrot.lane.b32.xlu0 %v1249, 16
        %v1314 = vpop.permute.xlu0 %1313
        %1317 = vrot.lane.b32.xlu0 %v1235, 32
        %v1318 = vpop.permute.xlu0 %1317
        %1321 = vrot.lane.b32.xlu0 %v1251, 48
        %v1322 = vpop.permute.xlu0 %1321
        %1325 = vrot.lane.b32.xlu0 %v1243, 64
        %v1326 = vpop.permute.xlu0 %1325
        %1329 = vrot.lane.b32.xlu0 %v1253, 80
        %v1330 = vpop.permute.xlu0 %1329
        %1333 = vrot.lane.b32.xlu0 %v1247, 96
        %v1334 = vpop.permute.xlu0 %1333
        %1337 = vrot.lane.b32.xlu0 %v1255, 112
        %v1338 = vpop.permute.xlu0 %1337
        %1341 = vrot.lane.b32.xlu0 %v1305, 16
        %v1342 = vpop.permute.xlu0 %1341
        %1345 = vrot.lane.b32.xlu0 %v1291, 32
        %v1346 = vpop.permute.xlu0 %1345
        %1349 = vrot.lane.b32.xlu0 %v1307, 48
        %v1350 = vpop.permute.xlu0 %1349
        %1353 = vrot.lane.b32.xlu0 %v1299, 64
        %v1354 = vpop.permute.xlu0 %1353
        %1357 = vrot.lane.b32.xlu0 %v1309, 80
        %v1358 = vpop.permute.xlu0 %1357
        %1361 = vrot.lane.b32.xlu0 %v1303, 96
        %v1362 = vpop.permute.xlu0 %1361
        %1365 = vrot.lane.b32.xlu0 %v1311, 112
        %v1366 = vpop.permute.xlu0 %1365
        %v1368 = vsel %vm822, %v1231, %v1314
        %v1369 = vsel %vm824, %v1368, %v1318
        %v1370 = vsel %vm826, %v1369, %v1322
        %v1371 = vsel %vm828, %v1370, %v1326
        %v1372 = vsel %vm830, %v1371, %v1330
        %v1373 = vsel %vm832, %v1372, %v1334
        %v1374 = vsel %vm834, %v1373, %v1338
        %v1375 = vsel %vm822, %v1287, %v1342
        %v1376 = vsel %vm824, %v1375, %v1346
        %v1377 = vsel %vm826, %v1376, %v1350
        %v1378 = vsel %vm828, %v1377, %v1354
        %v1379 = vsel %vm830, %v1378, %v1358
        %v1380 = vsel %vm832, %v1379, %v1362
        %v1381 = vsel %vm834, %v1380, %v1366
        %s1382 = scalar_lea.vmem [#allocation3], 8
        %v1383 = vld [vmem:[%s1382] sm:$0xf]
        %v1385 = vsel %vm1060, %v1383, 0
        %v1388 = vsel %vm1064, %v1374, 0
        %v1391 = vsel %vm1064, %v1381, 0
        %1393 = vmatpush.msra.mxu0 0.0
        %1394 = vmatpush.msra.mxu0 0.0
        %1395 = vmatpush.msra.mxu0 0.0
        %1396 = vmatpush.msra.mxu0 0.0
        %1397 = vmatpush.msra.mxu0 0.0
        %1398 = vmatpush.msra.mxu0 0.0
        %1399 = vmatpush.msra.mxu0 0.0
        %1400 = vmatpush.msra.mxu0 0.0
        %1401 = vmatpush.msra.mxu0 0.0
        %1402 = vmatpush.msra.mxu0 0.0
        %1403 = vmatpush.msra.mxu0 0.0
        %1404 = vmatpush.msra.mxu0 0.0
        %1405 = vmatpush.msra.mxu0 0.0
        %1406 = vmatpush.msra.mxu0 0.0
        %1407 = vmatpush.msra.mxu0 0.0
        %1408 = vmatpush.msra.mxu0 %v1388
        %1409 = vmatmul.f32.gmra.mxu0 %v1385
        %v1410 = vpop.f32.mrf.mxu0
        %v1411 = vadd.f32 0.0, %v1410
        %1412 = vdwg.mxu0
        %1413 = vmatpush.msra.mxu0 0.0
        %1414 = vmatpush.msra.mxu0 0.0
        %1415 = vmatpush.msra.mxu0 0.0
        %1416 = vmatpush.msra.mxu0 0.0
        %1417 = vmatpush.msra.mxu0 0.0
        %1418 = vmatpush.msra.mxu0 0.0
        %1419 = vmatpush.msra.mxu0 0.0
        %1420 = vmatpush.msra.mxu0 0.0
        %1421 = vmatpush.msra.mxu0 0.0
        %1422 = vmatpush.msra.mxu0 0.0
        %1423 = vmatpush.msra.mxu0 0.0
        %1424 = vmatpush.msra.mxu0 0.0
        %1425 = vmatpush.msra.mxu0 0.0
        %1426 = vmatpush.msra.mxu0 0.0
        %1427 = vmatpush.msra.mxu0 0.0
        %1428 = vmatpush.msra.mxu0 %v1391
        %1429 = vmatmul.f32.gmra.mxu0 %v1385
        %v1430 = vpop.f32.mrf.mxu0
        %v1431 = vadd.f32 0.0, %v1430
        %1432 = vdwg.mxu0
        %v1433 = vadd.f32 %v1138, %v1411
        %v1434 = vadd.f32 %v1158, %v1431
        %v1435 = vld [vmem:[#allocation2 + $0x1] sm:$0xff]
        %v1436 = vld [vmem:[#allocation2 + $0x9] sm:$0xff]
        %v1437 = vld [vmem:[#allocation2 + $0x19] sm:$0xff]
        %v1438 = vld [vmem:[#allocation2 + $0x21] sm:$0xff]
        %v1439 = vld [vmem:[#allocation2 + $0x31] sm:$0xff]
        %v1440 = vld [vmem:[#allocation2 + $0x39] sm:$0xff]
        %v1441 = vld [vmem:[#allocation2 + $0x49] sm:$0xff]
        %v1442 = vld [vmem:[#allocation2 + $0x51] sm:$0xff]
        %v1443 = vrot.slane %v1439, 4
        %v1444 = vsel %vm454, %v1443, %v1435
        %v1445 = vrot.slane %v1435, 4
        %v1446 = vsel %vm454, %v1439, %v1445
        %v1448 = vunpack.c.l.s4 1983009808
        %v1449 = vunpack.c.0.s8 %v1448
        %v1450 = vperm.slane %v1444, %v1449
        %v1452 = vunpack.c.l.s4 1983009808
        %v1453 = vunpack.c.0.s8 %v1452
        %v1454 = vperm.slane %v1446, %v1453
        %v1455 = vrot.slane %v1441, 4
        %v1456 = vsel %vm454, %v1455, %v1437
        %v1457 = vrot.slane %v1437, 4
        %v1458 = vsel %vm454, %v1441, %v1457
        %v1460 = vunpack.c.l.s4 1983009808
        %v1461 = vunpack.c.0.s8 %v1460
        %v1462 = vperm.slane %v1456, %v1461
        %v1464 = vunpack.c.l.s4 1983009808
        %v1465 = vunpack.c.0.s8 %v1464
        %v1466 = vperm.slane %v1458, %v1465
        %v1467 = vrot.slane %v1462, 4
        %v1468 = vsel %vm454, %v1467, %v1450
        %v1469 = vrot.slane %v1450, 4
        %v1470 = vsel %vm454, %v1462, %v1469
        %v1472 = vunpack.c.l.s4 1934713408
        %v1473 = vunpack.c.0.s8 %v1472
        %v1474 = vperm.slane %v1468, %v1473
        %v1476 = vunpack.c.l.s4 1934713408
        %v1477 = vunpack.c.0.s8 %v1476
        %v1478 = vperm.slane %v1470, %v1477
        %v1479 = vrot.slane %v1466, 4
        %v1480 = vsel %vm454, %v1479, %v1454
        %v1481 = vrot.slane %v1454, 4
        %v1482 = vsel %vm454, %v1466, %v1481
        %v1484 = vunpack.c.l.s4 1934713408
        %v1485 = vunpack.c.0.s8 %v1484
        %v1486 = vperm.slane %v1480, %v1485
        %v1488 = vunpack.c.l.s4 1934713408
        %v1489 = vunpack.c.0.s8 %v1488
        %v1490 = vperm.slane %v1482, %v1489
        %v1491 = vrot.slane %v1474, 4
        %v1492 = vsel %vm454, 0.0, %v1491
        %v1493 = vrot.slane %v1478, 4
        %v1494 = vsel %vm454, 0.0, %v1493
        %v1495 = vrot.slane %v1486, 4
        %v1496 = vsel %vm454, 0.0, %v1495
        %v1497 = vrot.slane %v1490, 4
        %v1498 = vsel %vm454, 0.0, %v1497
        %v1499 = vrot.slane %v1440, 4
        %v1500 = vsel %vm454, %v1499, %v1436
        %v1501 = vrot.slane %v1436, 4
        %v1502 = vsel %vm454, %v1440, %v1501
        %v1504 = vunpack.c.l.s4 1983009808
        %v1505 = vunpack.c.0.s8 %v1504
        %v1506 = vperm.slane %v1500, %v1505
        %v1508 = vunpack.c.l.s4 1983009808
        %v1509 = vunpack.c.0.s8 %v1508
        %v1510 = vperm.slane %v1502, %v1509
        %v1511 = vrot.slane %v1442, 4
        %v1512 = vsel %vm454, %v1511, %v1438
        %v1513 = vrot.slane %v1438, 4
        %v1514 = vsel %vm454, %v1442, %v1513
        %v1516 = vunpack.c.l.s4 1983009808
        %v1517 = vunpack.c.0.s8 %v1516
        %v1518 = vperm.slane %v1512, %v1517
        %v1520 = vunpack.c.l.s4 1983009808
        %v1521 = vunpack.c.0.s8 %v1520
        %v1522 = vperm.slane %v1514, %v1521
        %v1523 = vrot.slane %v1518, 4
        %v1524 = vsel %vm454, %v1523, %v1506
        %v1525 = vrot.slane %v1506, 4
        %v1526 = vsel %vm454, %v1518, %v1525
        %v1528 = vunpack.c.l.s4 1934713408
        %v1529 = vunpack.c.0.s8 %v1528
        %v1530 = vperm.slane %v1524, %v1529
        %v1532 = vunpack.c.l.s4 1934713408
        %v1533 = vunpack.c.0.s8 %v1532
        %v1534 = vperm.slane %v1526, %v1533
        %v1535 = vrot.slane %v1522, 4
        %v1536 = vsel %vm454, %v1535, %v1510
        %v1537 = vrot.slane %v1510, 4
        %v1538 = vsel %vm454, %v1522, %v1537
        %v1540 = vunpack.c.l.s4 1934713408
        %v1541 = vunpack.c.0.s8 %v1540
        %v1542 = vperm.slane %v1536, %v1541
        %v1544 = vunpack.c.l.s4 1934713408
        %v1545 = vunpack.c.0.s8 %v1544
        %v1546 = vperm.slane %v1538, %v1545
        %v1547 = vrot.slane %v1530, 4
        %v1548 = vsel %vm454, 0.0, %v1547
        %v1549 = vrot.slane %v1534, 4
        %v1550 = vsel %vm454, 0.0, %v1549
        %v1551 = vrot.slane %v1542, 4
        %v1552 = vsel %vm454, 0.0, %v1551
        %v1553 = vrot.slane %v1546, 4
        %v1554 = vsel %vm454, 0.0, %v1553
        %1556 = vrot.lane.b32.xlu0 %v1492, 16
        %v1557 = vpop.permute.xlu0 %1556
        %1560 = vrot.lane.b32.xlu0 %v1478, 32
        %v1561 = vpop.permute.xlu0 %1560
        %1564 = vrot.lane.b32.xlu0 %v1494, 48
        %v1565 = vpop.permute.xlu0 %1564
        %1568 = vrot.lane.b32.xlu0 %v1486, 64
        %v1569 = vpop.permute.xlu0 %1568
        %1572 = vrot.lane.b32.xlu0 %v1496, 80
        %v1573 = vpop.permute.xlu0 %1572
        %1576 = vrot.lane.b32.xlu0 %v1490, 96
        %v1577 = vpop.permute.xlu0 %1576
        %1580 = vrot.lane.b32.xlu0 %v1498, 112
        %v1581 = vpop.permute.xlu0 %1580
        %1584 = vrot.lane.b32.xlu0 %v1548, 16
        %v1585 = vpop.permute.xlu0 %1584
        %1588 = vrot.lane.b32.xlu0 %v1534, 32
        %v1589 = vpop.permute.xlu0 %1588
        %1592 = vrot.lane.b32.xlu0 %v1550, 48
        %v1593 = vpop.permute.xlu0 %1592
        %1596 = vrot.lane.b32.xlu0 %v1542, 64
        %v1597 = vpop.permute.xlu0 %1596
        %1600 = vrot.lane.b32.xlu0 %v1552, 80
        %v1601 = vpop.permute.xlu0 %1600
        %1604 = vrot.lane.b32.xlu0 %v1546, 96
        %v1605 = vpop.permute.xlu0 %1604
        %1608 = vrot.lane.b32.xlu0 %v1554, 112
        %v1609 = vpop.permute.xlu0 %1608
        %v1611 = vsel %vm822, %v1474, %v1557
        %v1612 = vsel %vm824, %v1611, %v1561
        %v1613 = vsel %vm826, %v1612, %v1565
        %v1614 = vsel %vm828, %v1613, %v1569
        %v1615 = vsel %vm830, %v1614, %v1573
        %v1616 = vsel %vm832, %v1615, %v1577
        %v1617 = vsel %vm834, %v1616, %v1581
        %v1618 = vsel %vm822, %v1530, %v1585
        %v1619 = vsel %vm824, %v1618, %v1589
        %v1620 = vsel %vm826, %v1619, %v1593
        %v1621 = vsel %vm828, %v1620, %v1597
        %v1622 = vsel %vm830, %v1621, %v1601
        %v1623 = vsel %vm832, %v1622, %v1605
        %v1624 = vsel %vm834, %v1623, %v1609
        %s1625 = scalar_lea.vmem [#allocation3], 12
        %v1626 = vld [vmem:[%s1625] sm:$0xf]
        %v1628 = vsel %vm1060, %v1626, 0
        %v1631 = vsel %vm1064, %v1617, 0
        %v1634 = vsel %vm1064, %v1624, 0
        %1636 = vmatpush.msra.mxu0 0.0
        %1637 = vmatpush.msra.mxu0 0.0
        %1638 = vmatpush.msra.mxu0 0.0
        %1639 = vmatpush.msra.mxu0 0.0
        %1640 = vmatpush.msra.mxu0 0.0
        %1641 = vmatpush.msra.mxu0 0.0
        %1642 = vmatpush.msra.mxu0 0.0
        %1643 = vmatpush.msra.mxu0 0.0
        %1644 = vmatpush.msra.mxu0 0.0
        %1645 = vmatpush.msra.mxu0 0.0
        %1646 = vmatpush.msra.mxu0 0.0
        %1647 = vmatpush.msra.mxu0 0.0
        %1648 = vmatpush.msra.mxu0 0.0
        %1649 = vmatpush.msra.mxu0 0.0
        %1650 = vmatpush.msra.mxu0 0.0
        %1651 = vmatpush.msra.mxu0 %v1631
        %1652 = vmatmul.f32.gmra.mxu0 %v1628
        %v1653 = vpop.f32.mrf.mxu0
        %v1654 = vadd.f32 0.0, %v1653
        %1655 = vdwg.mxu0
        %1656 = vmatpush.msra.mxu0 0.0
        %1657 = vmatpush.msra.mxu0 0.0
        %1658 = vmatpush.msra.mxu0 0.0
        %1659 = vmatpush.msra.mxu0 0.0
        %1660 = vmatpush.msra.mxu0 0.0
        %1661 = vmatpush.msra.mxu0 0.0
        %1662 = vmatpush.msra.mxu0 0.0
        %1663 = vmatpush.msra.mxu0 0.0
        %1664 = vmatpush.msra.mxu0 0.0
        %1665 = vmatpush.msra.mxu0 0.0
        %1666 = vmatpush.msra.mxu0 0.0
        %1667 = vmatpush.msra.mxu0 0.0
        %1668 = vmatpush.msra.mxu0 0.0
        %1669 = vmatpush.msra.mxu0 0.0
        %1670 = vmatpush.msra.mxu0 0.0
        %1671 = vmatpush.msra.mxu0 %v1634
        %1672 = vmatmul.f32.gmra.mxu0 %v1628
        %v1673 = vpop.f32.mrf.mxu0
        %v1674 = vadd.f32 0.0, %v1673
        %1675 = vdwg.mxu0
        %v1676 = vadd.f32 %v1433, %v1654
        %v1677 = vadd.f32 %v1434, %v1674
        %v1678 = vld [vmem:[#allocation2 + $0x1] sm:$0xff]
        %v1679 = vld [vmem:[#allocation2 + $0x9] sm:$0xff]
        %v1680 = vld [vmem:[#allocation2 + $0x19] sm:$0xff]
        %v1681 = vld [vmem:[#allocation2 + $0x21] sm:$0xff]
        %v1682 = vld [vmem:[#allocation2 + $0x31] sm:$0xff]
        %v1683 = vld [vmem:[#allocation2 + $0x39] sm:$0xff]
        %v1684 = vld [vmem:[#allocation2 + $0x49] sm:$0xff]
        %v1685 = vld [vmem:[#allocation2 + $0x51] sm:$0xff]
        %1694 = vrot.lane.b32.xlu0 %v1678, 127
        %v1695 = vpop.permute.xlu0 %1694
        %1696 = vrot.lane.b32.xlu0 %v1679, 127
        %v1697 = vpop.permute.xlu0 %1696
        %1698 = vrot.lane.b32.xlu0 %v1680, 127
        %v1699 = vpop.permute.xlu0 %1698
        %1700 = vrot.lane.b32.xlu0 %v1681, 127
        %v1701 = vpop.permute.xlu0 %1700
        %1702 = vrot.lane.b32.xlu0 %v1682, 127
        %v1703 = vpop.permute.xlu0 %1702
        %1704 = vrot.lane.b32.xlu0 %v1683, 127
        %v1705 = vpop.permute.xlu0 %1704
        %1706 = vrot.lane.b32.xlu0 %v1684, 127
        %v1707 = vpop.permute.xlu0 %1706
        %1708 = vrot.lane.b32.xlu0 %v1685, 127
        %v1709 = vpop.permute.xlu0 %1708
        %v1718 = vrot.slane %v1703, 4
        %v1719 = vsel %vm454, %v1718, %v1695
        %v1720 = vrot.slane %v1695, 4
        %v1721 = vsel %vm454, %v1703, %v1720
        %v1723 = vunpack.c.l.s4 1983009808
        %v1724 = vunpack.c.0.s8 %v1723
        %v1725 = vperm.slane %v1719, %v1724
        %v1727 = vunpack.c.l.s4 1983009808
        %v1728 = vunpack.c.0.s8 %v1727
        %v1729 = vperm.slane %v1721, %v1728
        %v1730 = vrot.slane %v1707, 4
        %v1731 = vsel %vm454, %v1730, %v1699
        %v1732 = vrot.slane %v1699, 4
        %v1733 = vsel %vm454, %v1707, %v1732
        %v1735 = vunpack.c.l.s4 1983009808
        %v1736 = vunpack.c.0.s8 %v1735
        %v1737 = vperm.slane %v1731, %v1736
        %v1739 = vunpack.c.l.s4 1983009808
        %v1740 = vunpack.c.0.s8 %v1739
        %v1741 = vperm.slane %v1733, %v1740
        %v1742 = vrot.slane %v1737, 4
        %v1743 = vsel %vm454, %v1742, %v1725
        %v1744 = vrot.slane %v1725, 4
        %v1745 = vsel %vm454, %v1737, %v1744
        %v1747 = vunpack.c.l.s4 1934713408
        %v1748 = vunpack.c.0.s8 %v1747
        %v1749 = vperm.slane %v1743, %v1748
        %v1751 = vunpack.c.l.s4 1934713408
        %v1752 = vunpack.c.0.s8 %v1751
        %v1753 = vperm.slane %v1745, %v1752
        %v1754 = vrot.slane %v1741, 4
        %v1755 = vsel %vm454, %v1754, %v1729
        %v1756 = vrot.slane %v1729, 4
        %v1757 = vsel %vm454, %v1741, %v1756
        %v1759 = vunpack.c.l.s4 1934713408
        %v1760 = vunpack.c.0.s8 %v1759
        %v1761 = vperm.slane %v1755, %v1760
        %v1763 = vunpack.c.l.s4 1934713408
        %v1764 = vunpack.c.0.s8 %v1763
        %v1765 = vperm.slane %v1757, %v1764
        %v1766 = vrot.slane %v1749, 4
        %v1767 = vsel %vm454, 0.0, %v1766
        %v1768 = vrot.slane %v1753, 4
        %v1769 = vsel %vm454, 0.0, %v1768
        %v1770 = vrot.slane %v1761, 4
        %v1771 = vsel %vm454, 0.0, %v1770
        %v1772 = vrot.slane %v1765, 4
        %v1773 = vsel %vm454, 0.0, %v1772
        %v1774 = vrot.slane %v1705, 4
        %v1775 = vsel %vm454, %v1774, %v1697
        %v1776 = vrot.slane %v1697, 4
        %v1777 = vsel %vm454, %v1705, %v1776
        %v1779 = vunpack.c.l.s4 1983009808
        %v1780 = vunpack.c.0.s8 %v1779
        %v1781 = vperm.slane %v1775, %v1780
        %v1783 = vunpack.c.l.s4 1983009808
        %v1784 = vunpack.c.0.s8 %v1783
        %v1785 = vperm.slane %v1777, %v1784
        %v1786 = vrot.slane %v1709, 4
        %v1787 = vsel %vm454, %v1786, %v1701
        %v1788 = vrot.slane %v1701, 4
        %v1789 = vsel %vm454, %v1709, %v1788
        %v1791 = vunpack.c.l.s4 1983009808
        %v1792 = vunpack.c.0.s8 %v1791
        %v1793 = vperm.slane %v1787, %v1792
        %v1795 = vunpack.c.l.s4 1983009808
        %v1796 = vunpack.c.0.s8 %v1795
        %v1797 = vperm.slane %v1789, %v1796
        %v1798 = vrot.slane %v1793, 4
        %v1799 = vsel %vm454, %v1798, %v1781
        %v1800 = vrot.slane %v1781, 4
        %v1801 = vsel %vm454, %v1793, %v1800
        %v1803 = vunpack.c.l.s4 1934713408
        %v1804 = vunpack.c.0.s8 %v1803
        %v1805 = vperm.slane %v1799, %v1804
        %v1807 = vunpack.c.l.s4 1934713408
        %v1808 = vunpack.c.0.s8 %v1807
        %v1809 = vperm.slane %v1801, %v1808
        %v1810 = vrot.slane %v1797, 4
        %v1811 = vsel %vm454, %v1810, %v1785
        %v1812 = vrot.slane %v1785, 4
        %v1813 = vsel %vm454, %v1797, %v1812
        %v1815 = vunpack.c.l.s4 1934713408
        %v1816 = vunpack.c.0.s8 %v1815
        %v1817 = vperm.slane %v1811, %v1816
        %v1819 = vunpack.c.l.s4 1934713408
        %v1820 = vunpack.c.0.s8 %v1819
        %v1821 = vperm.slane %v1813, %v1820
        %v1822 = vrot.slane %v1805, 4
        %v1823 = vsel %vm454, 0.0, %v1822
        %v1824 = vrot.slane %v1809, 4
        %v1825 = vsel %vm454, 0.0, %v1824
        %v1826 = vrot.slane %v1817, 4
        %v1827 = vsel %vm454, 0.0, %v1826
        %v1828 = vrot.slane %v1821, 4
        %v1829 = vsel %vm454, 0.0, %v1828
        %1831 = vrot.lane.b32.xlu0 %v1767, 16
        %v1832 = vpop.permute.xlu0 %1831
        %1835 = vrot.lane.b32.xlu0 %v1753, 32
        %v1836 = vpop.permute.xlu0 %1835
        %1839 = vrot.lane.b32.xlu0 %v1769, 48
        %v1840 = vpop.permute.xlu0 %1839
        %1843 = vrot.lane.b32.xlu0 %v1761, 64
        %v1844 = vpop.permute.xlu0 %1843
        %1847 = vrot.lane.b32.xlu0 %v1771, 80
        %v1848 = vpop.permute.xlu0 %1847
        %1851 = vrot.lane.b32.xlu0 %v1765, 96
        %v1852 = vpop.permute.xlu0 %1851
        %1855 = vrot.lane.b32.xlu0 %v1773, 112
        %v1856 = vpop.permute.xlu0 %1855
        %1859 = vrot.lane.b32.xlu0 %v1823, 16
        %v1860 = vpop.permute.xlu0 %1859
        %1863 = vrot.lane.b32.xlu0 %v1809, 32
        %v1864 = vpop.permute.xlu0 %1863
        %1867 = vrot.lane.b32.xlu0 %v1825, 48
        %v1868 = vpop.permute.xlu0 %1867
        %1871 = vrot.lane.b32.xlu0 %v1817, 64
        %v1872 = vpop.permute.xlu0 %1871
        %1875 = vrot.lane.b32.xlu0 %v1827, 80
        %v1876 = vpop.permute.xlu0 %1875
        %1879 = vrot.lane.b32.xlu0 %v1821, 96
        %v1880 = vpop.permute.xlu0 %1879
        %1883 = vrot.lane.b32.xlu0 %v1829, 112
        %v1884 = vpop.permute.xlu0 %1883
        %v1886 = vsel %vm822, %v1749, %v1832
        %v1887 = vsel %vm824, %v1886, %v1836
        %v1888 = vsel %vm826, %v1887, %v1840
        %v1889 = vsel %vm828, %v1888, %v1844
        %v1890 = vsel %vm830, %v1889, %v1848
        %v1891 = vsel %vm832, %v1890, %v1852
        %v1892 = vsel %vm834, %v1891, %v1856
        %v1893 = vsel %vm822, %v1805, %v1860
        %v1894 = vsel %vm824, %v1893, %v1864
        %v1895 = vsel %vm826, %v1894, %v1868
        %v1896 = vsel %vm828, %v1895, %v1872
        %v1897 = vsel %vm830, %v1896, %v1876
        %v1898 = vsel %vm832, %v1897, %v1880
        %v1899 = vsel %vm834, %v1898, %v1884
        %s1900 = scalar_lea.vmem [#allocation3], 16
        %v1901 = vld [vmem:[%s1900] sm:$0xf]
        %v1903 = vsel %vm1060, %v1901, 0
        %v1906 = vsel %vm1064, %v1892, 0
        %v1909 = vsel %vm1064, %v1899, 0
        %1911 = vmatpush.msra.mxu0 0.0
        %1912 = vmatpush.msra.mxu0 0.0
        %1913 = vmatpush.msra.mxu0 0.0
        %1914 = vmatpush.msra.mxu0 0.0
        %1915 = vmatpush.msra.mxu0 0.0
        %1916 = vmatpush.msra.mxu0 0.0
        %1917 = vmatpush.msra.mxu0 0.0
        %1918 = vmatpush.msra.mxu0 0.0
        %1919 = vmatpush.msra.mxu0 0.0
        %1920 = vmatpush.msra.mxu0 0.0
        %1921 = vmatpush.msra.mxu0 0.0
        %1922 = vmatpush.msra.mxu0 0.0
        %1923 = vmatpush.msra.mxu0 0.0
        %1924 = vmatpush.msra.mxu0 0.0
        %1925 = vmatpush.msra.mxu0 0.0
        %1926 = vmatpush.msra.mxu0 %v1906
        %1927 = vmatmul.f32.gmra.mxu0 %v1903
        %v1928 = vpop.f32.mrf.mxu0
        %v1929 = vadd.f32 0.0, %v1928
        %1930 = vdwg.mxu0
        %1931 = vmatpush.msra.mxu0 0.0
        %1932 = vmatpush.msra.mxu0 0.0
        %1933 = vmatpush.msra.mxu0 0.0
        %1934 = vmatpush.msra.mxu0 0.0
        %1935 = vmatpush.msra.mxu0 0.0
        %1936 = vmatpush.msra.mxu0 0.0
        %1937 = vmatpush.msra.mxu0 0.0
        %1938 = vmatpush.msra.mxu0 0.0
        %1939 = vmatpush.msra.mxu0 0.0
        %1940 = vmatpush.msra.mxu0 0.0
        %1941 = vmatpush.msra.mxu0 0.0
        %1942 = vmatpush.msra.mxu0 0.0
        %1943 = vmatpush.msra.mxu0 0.0
        %1944 = vmatpush.msra.mxu0 0.0
        %1945 = vmatpush.msra.mxu0 0.0
        %1946 = vmatpush.msra.mxu0 %v1909
        %1947 = vmatmul.f32.gmra.mxu0 %v1903
        %v1948 = vpop.f32.mrf.mxu0
        %v1949 = vadd.f32 0.0, %v1948
        %1950 = vdwg.mxu0
        %v1951 = vadd.f32 %v1676, %v1929
        %v1952 = vadd.f32 %v1677, %v1949
        %v1953 = vld [vmem:[#allocation2 + $0x1] sm:$0xff]
        %v1954 = vld [vmem:[#allocation2 + $0x9] sm:$0xff]
        %v1955 = vld [vmem:[#allocation2 + $0x19] sm:$0xff]
        %v1956 = vld [vmem:[#allocation2 + $0x21] sm:$0xff]
        %v1957 = vld [vmem:[#allocation2 + $0x31] sm:$0xff]
        %v1958 = vld [vmem:[#allocation2 + $0x39] sm:$0xff]
        %v1959 = vld [vmem:[#allocation2 + $0x49] sm:$0xff]
        %v1960 = vld [vmem:[#allocation2 + $0x51] sm:$0xff]
        %1969 = vrot.lane.b32.xlu0 %v1953, 126
        %v1970 = vpop.permute.xlu0 %1969
        %1971 = vrot.lane.b32.xlu0 %v1954, 126
        %v1972 = vpop.permute.xlu0 %1971
        %1973 = vrot.lane.b32.xlu0 %v1955, 126
        %v1974 = vpop.permute.xlu0 %1973
        %1975 = vrot.lane.b32.xlu0 %v1956, 126
        %v1976 = vpop.permute.xlu0 %1975
        %1977 = vrot.lane.b32.xlu0 %v1957, 126
        %v1978 = vpop.permute.xlu0 %1977
        %1979 = vrot.lane.b32.xlu0 %v1958, 126
        %v1980 = vpop.permute.xlu0 %1979
        %1981 = vrot.lane.b32.xlu0 %v1959, 126
        %v1982 = vpop.permute.xlu0 %1981
        %1983 = vrot.lane.b32.xlu0 %v1960, 126
        %v1984 = vpop.permute.xlu0 %1983
        %v1993 = vrot.slane %v1978, 4
        %v1994 = vsel %vm454, %v1993, %v1970
        %v1995 = vrot.slane %v1970, 4
        %v1996 = vsel %vm454, %v1978, %v1995
        %v1998 = vunpack.c.l.s4 1983009808
        %v1999 = vunpack.c.0.s8 %v1998
        %v2000 = vperm.slane %v1994, %v1999
        %v2002 = vunpack.c.l.s4 1983009808
        %v2003 = vunpack.c.0.s8 %v2002
        %v2004 = vperm.slane %v1996, %v2003
        %v2005 = vrot.slane %v1982, 4
        %v2006 = vsel %vm454, %v2005, %v1974
        %v2007 = vrot.slane %v1974, 4
        %v2008 = vsel %vm454, %v1982, %v2007
        %v2010 = vunpack.c.l.s4 1983009808
        %v2011 = vunpack.c.0.s8 %v2010
        %v2012 = vperm.slane %v2006, %v2011
        %v2014 = vunpack.c.l.s4 1983009808
        %v2015 = vunpack.c.0.s8 %v2014
        %v2016 = vperm.slane %v2008, %v2015
        %v2017 = vrot.slane %v2012, 4
        %v2018 = vsel %vm454, %v2017, %v2000
        %v2019 = vrot.slane %v2000, 4
        %v2020 = vsel %vm454, %v2012, %v2019
        %v2022 = vunpack.c.l.s4 1934713408
        %v2023 = vunpack.c.0.s8 %v2022
        %v2024 = vperm.slane %v2018, %v2023
        %v2026 = vunpack.c.l.s4 1934713408
        %v2027 = vunpack.c.0.s8 %v2026
        %v2028 = vperm.slane %v2020, %v2027
        %v2029 = vrot.slane %v2016, 4
        %v2030 = vsel %vm454, %v2029, %v2004
        %v2031 = vrot.slane %v2004, 4
        %v2032 = vsel %vm454, %v2016, %v2031
        %v2034 = vunpack.c.l.s4 1934713408
        %v2035 = vunpack.c.0.s8 %v2034
        %v2036 = vperm.slane %v2030, %v2035
        %v2038 = vunpack.c.l.s4 1934713408
        %v2039 = vunpack.c.0.s8 %v2038
        %v2040 = vperm.slane %v2032, %v2039
        %v2041 = vrot.slane %v2024, 4
        %v2042 = vsel %vm454, 0.0, %v2041
        %v2043 = vrot.slane %v2028, 4
        %v2044 = vsel %vm454, 0.0, %v2043
        %v2045 = vrot.slane %v2036, 4
        %v2046 = vsel %vm454, 0.0, %v2045
        %v2047 = vrot.slane %v2040, 4
        %v2048 = vsel %vm454, 0.0, %v2047
        %v2049 = vrot.slane %v1980, 4
        %v2050 = vsel %vm454, %v2049, %v1972
        %v2051 = vrot.slane %v1972, 4
        %v2052 = vsel %vm454, %v1980, %v2051
        %v2054 = vunpack.c.l.s4 1983009808
        %v2055 = vunpack.c.0.s8 %v2054
        %v2056 = vperm.slane %v2050, %v2055
        %v2058 = vunpack.c.l.s4 1983009808
        %v2059 = vunpack.c.0.s8 %v2058
        %v2060 = vperm.slane %v2052, %v2059
        %v2061 = vrot.slane %v1984, 4
        %v2062 = vsel %vm454, %v2061, %v1976
        %v2063 = vrot.slane %v1976, 4
        %v2064 = vsel %vm454, %v1984, %v2063
        %v2066 = vunpack.c.l.s4 1983009808
        %v2067 = vunpack.c.0.s8 %v2066
        %v2068 = vperm.slane %v2062, %v2067
        %v2070 = vunpack.c.l.s4 1983009808
        %v2071 = vunpack.c.0.s8 %v2070
        %v2072 = vperm.slane %v2064, %v2071
        %v2073 = vrot.slane %v2068, 4
        %v2074 = vsel %vm454, %v2073, %v2056
        %v2075 = vrot.slane %v2056, 4
        %v2076 = vsel %vm454, %v2068, %v2075
        %v2078 = vunpack.c.l.s4 1934713408
        %v2079 = vunpack.c.0.s8 %v2078
        %v2080 = vperm.slane %v2074, %v2079
        %v2082 = vunpack.c.l.s4 1934713408
        %v2083 = vunpack.c.0.s8 %v2082
        %v2084 = vperm.slane %v2076, %v2083
        %v2085 = vrot.slane %v2072, 4
        %v2086 = vsel %vm454, %v2085, %v2060
        %v2087 = vrot.slane %v2060, 4
        %v2088 = vsel %vm454, %v2072, %v2087
        %v2090 = vunpack.c.l.s4 1934713408
        %v2091 = vunpack.c.0.s8 %v2090
        %v2092 = vperm.slane %v2086, %v2091
        %v2094 = vunpack.c.l.s4 1934713408
        %v2095 = vunpack.c.0.s8 %v2094
        %v2096 = vperm.slane %v2088, %v2095
        %v2097 = vrot.slane %v2080, 4
        %v2098 = vsel %vm454, 0.0, %v2097
        %v2099 = vrot.slane %v2084, 4
        %v2100 = vsel %vm454, 0.0, %v2099
        %v2101 = vrot.slane %v2092, 4
        %v2102 = vsel %vm454, 0.0, %v2101
        %v2103 = vrot.slane %v2096, 4
        %v2104 = vsel %vm454, 0.0, %v2103
        %2106 = vrot.lane.b32.xlu0 %v2042, 16
        %v2107 = vpop.permute.xlu0 %2106
        %2110 = vrot.lane.b32.xlu0 %v2028, 32
        %v2111 = vpop.permute.xlu0 %2110
        %2114 = vrot.lane.b32.xlu0 %v2044, 48
        %v2115 = vpop.permute.xlu0 %2114
        %2118 = vrot.lane.b32.xlu0 %v2036, 64
        %v2119 = vpop.permute.xlu0 %2118
        %2122 = vrot.lane.b32.xlu0 %v2046, 80
        %v2123 = vpop.permute.xlu0 %2122
        %2126 = vrot.lane.b32.xlu0 %v2040, 96
        %v2127 = vpop.permute.xlu0 %2126
        %2130 = vrot.lane.b32.xlu0 %v2048, 112
        %v2131 = vpop.permute.xlu0 %2130
        %2134 = vrot.lane.b32.xlu0 %v2098, 16
        %v2135 = vpop.permute.xlu0 %2134
        %2138 = vrot.lane.b32.xlu0 %v2084, 32
        %v2139 = vpop.permute.xlu0 %2138
        %2142 = vrot.lane.b32.xlu0 %v2100, 48
        %v2143 = vpop.permute.xlu0 %2142
        %2146 = vrot.lane.b32.xlu0 %v2092, 64
        %v2147 = vpop.permute.xlu0 %2146
        %2150 = vrot.lane.b32.xlu0 %v2102, 80
        %v2151 = vpop.permute.xlu0 %2150
        %2154 = vrot.lane.b32.xlu0 %v2096, 96
        %v2155 = vpop.permute.xlu0 %2154
        %2158 = vrot.lane.b32.xlu0 %v2104, 112
        %v2159 = vpop.permute.xlu0 %2158
        %v2161 = vsel %vm822, %v2024, %v2107
        %v2162 = vsel %vm824, %v2161, %v2111
        %v2163 = vsel %vm826, %v2162, %v2115
        %v2164 = vsel %vm828, %v2163, %v2119
        %v2165 = vsel %vm830, %v2164, %v2123
        %v2166 = vsel %vm832, %v2165, %v2127
        %v2167 = vsel %vm834, %v2166, %v2131
        %v2168 = vsel %vm822, %v2080, %v2135
        %v2169 = vsel %vm824, %v2168, %v2139
        %v2170 = vsel %vm826, %v2169, %v2143
        %v2171 = vsel %vm828, %v2170, %v2147
        %v2172 = vsel %vm830, %v2171, %v2151
        %v2173 = vsel %vm832, %v2172, %v2155
        %v2174 = vsel %vm834, %v2173, %v2159
        %s2175 = scalar_lea.vmem [#allocation3], 20
        %v2176 = vld [vmem:[%s2175] sm:$0xf]
        %v2178 = vsel %vm1060, %v2176, 0
        %v2181 = vsel %vm1064, %v2167, 0
        %v2184 = vsel %vm1064, %v2174, 0
        %2186 = vmatpush.msra.mxu0 0.0
        %2187 = vmatpush.msra.mxu0 0.0
        %2188 = vmatpush.msra.mxu0 0.0
        %2189 = vmatpush.msra.mxu0 0.0
        %2190 = vmatpush.msra.mxu0 0.0
        %2191 = vmatpush.msra.mxu0 0.0
        %2192 = vmatpush.msra.mxu0 0.0
        %2193 = vmatpush.msra.mxu0 0.0
        %2194 = vmatpush.msra.mxu0 0.0
        %2195 = vmatpush.msra.mxu0 0.0
        %2196 = vmatpush.msra.mxu0 0.0
        %2197 = vmatpush.msra.mxu0 0.0
        %2198 = vmatpush.msra.mxu0 0.0
        %2199 = vmatpush.msra.mxu0 0.0
        %2200 = vmatpush.msra.mxu0 0.0
        %2201 = vmatpush.msra.mxu0 %v2181
        %2202 = vmatmul.f32.gmra.mxu0 %v2178
        %v2203 = vpop.f32.mrf.mxu0
        %v2204 = vadd.f32 0.0, %v2203
        %2205 = vdwg.mxu0
        %2206 = vmatpush.msra.mxu0 0.0
        %2207 = vmatpush.msra.mxu0 0.0
        %2208 = vmatpush.msra.mxu0 0.0
        %2209 = vmatpush.msra.mxu0 0.0
        %2210 = vmatpush.msra.mxu0 0.0
        %2211 = vmatpush.msra.mxu0 0.0
        %2212 = vmatpush.msra.mxu0 0.0
        %2213 = vmatpush.msra.mxu0 0.0
        %2214 = vmatpush.msra.mxu0 0.0
        %2215 = vmatpush.msra.mxu0 0.0
        %2216 = vmatpush.msra.mxu0 0.0
        %2217 = vmatpush.msra.mxu0 0.0
        %2218 = vmatpush.msra.mxu0 0.0
        %2219 = vmatpush.msra.mxu0 0.0
        %2220 = vmatpush.msra.mxu0 0.0
        %2221 = vmatpush.msra.mxu0 %v2184
        %2222 = vmatmul.f32.gmra.mxu0 %v2178
        %v2223 = vpop.f32.mrf.mxu0
        %v2224 = vadd.f32 0.0, %v2223
        %2225 = vdwg.mxu0
        %v2226 = vadd.f32 %v1951, %v2204
        %v2227 = vadd.f32 %v1952, %v2224
        %v2228 = vld [vmem:[#allocation2 + $0x2] sm:$0xff]
        %v2229 = vld [vmem:[#allocation2 + $0xa] sm:$0xff]
        %v2230 = vld [vmem:[#allocation2 + $0x1a] sm:$0xff]
        %v2231 = vld [vmem:[#allocation2 + $0x22] sm:$0xff]
        %v2232 = vld [vmem:[#allocation2 + $0x32] sm:$0xff]
        %v2233 = vld [vmem:[#allocation2 + $0x3a] sm:$0xff]
        %v2234 = vld [vmem:[#allocation2 + $0x4a] sm:$0xff]
        %v2235 = vld [vmem:[#allocation2 + $0x52] sm:$0xff]
        %v2236 = vrot.slane %v2232, 4
        %v2237 = vsel %vm454, %v2236, %v2228
        %v2238 = vrot.slane %v2228, 4
        %v2239 = vsel %vm454, %v2232, %v2238
        %v2241 = vunpack.c.l.s4 1983009808
        %v2242 = vunpack.c.0.s8 %v2241
        %v2243 = vperm.slane %v2237, %v2242
        %v2245 = vunpack.c.l.s4 1983009808
        %v2246 = vunpack.c.0.s8 %v2245
        %v2247 = vperm.slane %v2239, %v2246
        %v2248 = vrot.slane %v2234, 4
        %v2249 = vsel %vm454, %v2248, %v2230
        %v2250 = vrot.slane %v2230, 4
        %v2251 = vsel %vm454, %v2234, %v2250
        %v2253 = vunpack.c.l.s4 1983009808
        %v2254 = vunpack.c.0.s8 %v2253
        %v2255 = vperm.slane %v2249, %v2254
        %v2257 = vunpack.c.l.s4 1983009808
        %v2258 = vunpack.c.0.s8 %v2257
        %v2259 = vperm.slane %v2251, %v2258
        %v2260 = vrot.slane %v2255, 4
        %v2261 = vsel %vm454, %v2260, %v2243
        %v2262 = vrot.slane %v2243, 4
        %v2263 = vsel %vm454, %v2255, %v2262
        %v2265 = vunpack.c.l.s4 1934713408
        %v2266 = vunpack.c.0.s8 %v2265
        %v2267 = vperm.slane %v2261, %v2266
        %v2269 = vunpack.c.l.s4 1934713408
        %v2270 = vunpack.c.0.s8 %v2269
        %v2271 = vperm.slane %v2263, %v2270
        %v2272 = vrot.slane %v2259, 4
        %v2273 = vsel %vm454, %v2272, %v2247
        %v2274 = vrot.slane %v2247, 4
        %v2275 = vsel %vm454, %v2259, %v2274
        %v2277 = vunpack.c.l.s4 1934713408
        %v2278 = vunpack.c.0.s8 %v2277
        %v2279 = vperm.slane %v2273, %v2278
        %v2281 = vunpack.c.l.s4 1934713408
        %v2282 = vunpack.c.0.s8 %v2281
        %v2283 = vperm.slane %v2275, %v2282
        %v2284 = vrot.slane %v2267, 4
        %v2285 = vsel %vm454, 0.0, %v2284
        %v2286 = vrot.slane %v2271, 4
        %v2287 = vsel %vm454, 0.0, %v2286
        %v2288 = vrot.slane %v2279, 4
        %v2289 = vsel %vm454, 0.0, %v2288
        %v2290 = vrot.slane %v2283, 4
        %v2291 = vsel %vm454, 0.0, %v2290
        %v2292 = vrot.slane %v2233, 4
        %v2293 = vsel %vm454, %v2292, %v2229
        %v2294 = vrot.slane %v2229, 4
        %v2295 = vsel %vm454, %v2233, %v2294
        %v2297 = vunpack.c.l.s4 1983009808
        %v2298 = vunpack.c.0.s8 %v2297
        %v2299 = vperm.slane %v2293, %v2298
        %v2301 = vunpack.c.l.s4 1983009808
        %v2302 = vunpack.c.0.s8 %v2301
        %v2303 = vperm.slane %v2295, %v2302
        %v2304 = vrot.slane %v2235, 4
        %v2305 = vsel %vm454, %v2304, %v2231
        %v2306 = vrot.slane %v2231, 4
        %v2307 = vsel %vm454, %v2235, %v2306
        %v2309 = vunpack.c.l.s4 1983009808
        %v2310 = vunpack.c.0.s8 %v2309
        %v2311 = vperm.slane %v2305, %v2310
        %v2313 = vunpack.c.l.s4 1983009808
        %v2314 = vunpack.c.0.s8 %v2313
        %v2315 = vperm.slane %v2307, %v2314
        %v2316 = vrot.slane %v2311, 4
        %v2317 = vsel %vm454, %v2316, %v2299
        %v2318 = vrot.slane %v2299, 4
        %v2319 = vsel %vm454, %v2311, %v2318
        %v2321 = vunpack.c.l.s4 1934713408
        %v2322 = vunpack.c.0.s8 %v2321
        %v2323 = vperm.slane %v2317, %v2322
        %v2325 = vunpack.c.l.s4 1934713408
        %v2326 = vunpack.c.0.s8 %v2325
        %v2327 = vperm.slane %v2319, %v2326
        %v2328 = vrot.slane %v2315, 4
        %v2329 = vsel %vm454, %v2328, %v2303
        %v2330 = vrot.slane %v2303, 4
        %v2331 = vsel %vm454, %v2315, %v2330
        %v2333 = vunpack.c.l.s4 1934713408
        %v2334 = vunpack.c.0.s8 %v2333
        %v2335 = vperm.slane %v2329, %v2334
        %v2337 = vunpack.c.l.s4 1934713408
        %v2338 = vunpack.c.0.s8 %v2337
        %v2339 = vperm.slane %v2331, %v2338
        %v2340 = vrot.slane %v2323, 4
        %v2341 = vsel %vm454, 0.0, %v2340
        %v2342 = vrot.slane %v2327, 4
        %v2343 = vsel %vm454, 0.0, %v2342
        %v2344 = vrot.slane %v2335, 4
        %v2345 = vsel %vm454, 0.0, %v2344
        %v2346 = vrot.slane %v2339, 4
        %v2347 = vsel %vm454, 0.0, %v2346
        %2349 = vrot.lane.b32.xlu0 %v2285, 16
        %v2350 = vpop.permute.xlu0 %2349
        %2353 = vrot.lane.b32.xlu0 %v2271, 32
        %v2354 = vpop.permute.xlu0 %2353
        %2357 = vrot.lane.b32.xlu0 %v2287, 48
        %v2358 = vpop.permute.xlu0 %2357
        %2361 = vrot.lane.b32.xlu0 %v2279, 64
        %v2362 = vpop.permute.xlu0 %2361
        %2365 = vrot.lane.b32.xlu0 %v2289, 80
        %v2366 = vpop.permute.xlu0 %2365
        %2369 = vrot.lane.b32.xlu0 %v2283, 96
        %v2370 = vpop.permute.xlu0 %2369
        %2373 = vrot.lane.b32.xlu0 %v2291, 112
        %v2374 = vpop.permute.xlu0 %2373
        %2377 = vrot.lane.b32.xlu0 %v2341, 16
        %v2378 = vpop.permute.xlu0 %2377
        %2381 = vrot.lane.b32.xlu0 %v2327, 32
        %v2382 = vpop.permute.xlu0 %2381
        %2385 = vrot.lane.b32.xlu0 %v2343, 48
        %v2386 = vpop.permute.xlu0 %2385
        %2389 = vrot.lane.b32.xlu0 %v2335, 64
        %v2390 = vpop.permute.xlu0 %2389
        %2393 = vrot.lane.b32.xlu0 %v2345, 80
        %v2394 = vpop.permute.xlu0 %2393
        %2397 = vrot.lane.b32.xlu0 %v2339, 96
        %v2398 = vpop.permute.xlu0 %2397
        %2401 = vrot.lane.b32.xlu0 %v2347, 112
        %v2402 = vpop.permute.xlu0 %2401
        %v2404 = vsel %vm822, %v2267, %v2350
        %v2405 = vsel %vm824, %v2404, %v2354
        %v2406 = vsel %vm826, %v2405, %v2358
        %v2407 = vsel %vm828, %v2406, %v2362
        %v2408 = vsel %vm830, %v2407, %v2366
        %v2409 = vsel %vm832, %v2408, %v2370
        %v2410 = vsel %vm834, %v2409, %v2374
        %v2411 = vsel %vm822, %v2323, %v2378
        %v2412 = vsel %vm824, %v2411, %v2382
        %v2413 = vsel %vm826, %v2412, %v2386
        %v2414 = vsel %vm828, %v2413, %v2390
        %v2415 = vsel %vm830, %v2414, %v2394
        %v2416 = vsel %vm832, %v2415, %v2398
        %v2417 = vsel %vm834, %v2416, %v2402
        %s2418 = scalar_lea.vmem [#allocation3], 24
        %v2419 = vld [vmem:[%s2418] sm:$0xf]
        %v2421 = vsel %vm1060, %v2419, 0
        %v2424 = vsel %vm1064, %v2410, 0
        %v2427 = vsel %vm1064, %v2417, 0
        %2429 = vmatpush.msra.mxu0 0.0
        %2430 = vmatpush.msra.mxu0 0.0
        %2431 = vmatpush.msra.mxu0 0.0
        %2432 = vmatpush.msra.mxu0 0.0
        %2433 = vmatpush.msra.mxu0 0.0
        %2434 = vmatpush.msra.mxu0 0.0
        %2435 = vmatpush.msra.mxu0 0.0
        %2436 = vmatpush.msra.mxu0 0.0
        %2437 = vmatpush.msra.mxu0 0.0
        %2438 = vmatpush.msra.mxu0 0.0
        %2439 = vmatpush.msra.mxu0 0.0
        %2440 = vmatpush.msra.mxu0 0.0
        %2441 = vmatpush.msra.mxu0 0.0
        %2442 = vmatpush.msra.mxu0 0.0
        %2443 = vmatpush.msra.mxu0 0.0
        %2444 = vmatpush.msra.mxu0 %v2424
        %2445 = vmatmul.f32.gmra.mxu0 %v2421
        %v2446 = vpop.f32.mrf.mxu0
        %v2447 = vadd.f32 0.0, %v2446
        %2448 = vdwg.mxu0
        %2449 = vmatpush.msra.mxu0 0.0
        %2450 = vmatpush.msra.mxu0 0.0
        %2451 = vmatpush.msra.mxu0 0.0
        %2452 = vmatpush.msra.mxu0 0.0
        %2453 = vmatpush.msra.mxu0 0.0
        %2454 = vmatpush.msra.mxu0 0.0
        %2455 = vmatpush.msra.mxu0 0.0
        %2456 = vmatpush.msra.mxu0 0.0
        %2457 = vmatpush.msra.mxu0 0.0
        %2458 = vmatpush.msra.mxu0 0.0
        %2459 = vmatpush.msra.mxu0 0.0
        %2460 = vmatpush.msra.mxu0 0.0
        %2461 = vmatpush.msra.mxu0 0.0
        %2462 = vmatpush.msra.mxu0 0.0
        %2463 = vmatpush.msra.mxu0 0.0
        %2464 = vmatpush.msra.mxu0 %v2427
        %2465 = vmatmul.f32.gmra.mxu0 %v2421
        %v2466 = vpop.f32.mrf.mxu0
        %v2467 = vadd.f32 0.0, %v2466
        %2468 = vdwg.mxu0
        %v2469 = vadd.f32 %v2226, %v2447
        %v2470 = vadd.f32 %v2227, %v2467
        %v2471 = vld [vmem:[#allocation2 + $0x2] sm:$0xff]
        %v2472 = vld [vmem:[#allocation2 + $0xa] sm:$0xff]
        %v2473 = vld [vmem:[#allocation2 + $0x1a] sm:$0xff]
        %v2474 = vld [vmem:[#allocation2 + $0x22] sm:$0xff]
        %v2475 = vld [vmem:[#allocation2 + $0x32] sm:$0xff]
        %v2476 = vld [vmem:[#allocation2 + $0x3a] sm:$0xff]
        %v2477 = vld [vmem:[#allocation2 + $0x4a] sm:$0xff]
        %v2478 = vld [vmem:[#allocation2 + $0x52] sm:$0xff]
        %2487 = vrot.lane.b32.xlu0 %v2471, 127
        %v2488 = vpop.permute.xlu0 %2487
        %2489 = vrot.lane.b32.xlu0 %v2472, 127
        %v2490 = vpop.permute.xlu0 %2489
        %2491 = vrot.lane.b32.xlu0 %v2473, 127
        %v2492 = vpop.permute.xlu0 %2491
        %2493 = vrot.lane.b32.xlu0 %v2474, 127
        %v2494 = vpop.permute.xlu0 %2493
        %2495 = vrot.lane.b32.xlu0 %v2475, 127
        %v2496 = vpop.permute.xlu0 %2495
        %2497 = vrot.lane.b32.xlu0 %v2476, 127
        %v2498 = vpop.permute.xlu0 %2497
        %2499 = vrot.lane.b32.xlu0 %v2477, 127
        %v2500 = vpop.permute.xlu0 %2499
        %2501 = vrot.lane.b32.xlu0 %v2478, 127
        %v2502 = vpop.permute.xlu0 %2501
        %v2511 = vrot.slane %v2496, 4
        %v2512 = vsel %vm454, %v2511, %v2488
        %v2513 = vrot.slane %v2488, 4
        %v2514 = vsel %vm454, %v2496, %v2513
        %v2516 = vunpack.c.l.s4 1983009808
        %v2517 = vunpack.c.0.s8 %v2516
        %v2518 = vperm.slane %v2512, %v2517
        %v2520 = vunpack.c.l.s4 1983009808
        %v2521 = vunpack.c.0.s8 %v2520
        %v2522 = vperm.slane %v2514, %v2521
        %v2523 = vrot.slane %v2500, 4
        %v2524 = vsel %vm454, %v2523, %v2492
        %v2525 = vrot.slane %v2492, 4
        %v2526 = vsel %vm454, %v2500, %v2525
        %v2528 = vunpack.c.l.s4 1983009808
        %v2529 = vunpack.c.0.s8 %v2528
        %v2530 = vperm.slane %v2524, %v2529
        %v2532 = vunpack.c.l.s4 1983009808
        %v2533 = vunpack.c.0.s8 %v2532
        %v2534 = vperm.slane %v2526, %v2533
        %v2535 = vrot.slane %v2530, 4
        %v2536 = vsel %vm454, %v2535, %v2518
        %v2537 = vrot.slane %v2518, 4
        %v2538 = vsel %vm454, %v2530, %v2537
        %v2540 = vunpack.c.l.s4 1934713408
        %v2541 = vunpack.c.0.s8 %v2540
        %v2542 = vperm.slane %v2536, %v2541
        %v2544 = vunpack.c.l.s4 1934713408
        %v2545 = vunpack.c.0.s8 %v2544
        %v2546 = vperm.slane %v2538, %v2545
        %v2547 = vrot.slane %v2534, 4
        %v2548 = vsel %vm454, %v2547, %v2522
        %v2549 = vrot.slane %v2522, 4
        %v2550 = vsel %vm454, %v2534, %v2549
        %v2552 = vunpack.c.l.s4 1934713408
        %v2553 = vunpack.c.0.s8 %v2552
        %v2554 = vperm.slane %v2548, %v2553
        %v2556 = vunpack.c.l.s4 1934713408
        %v2557 = vunpack.c.0.s8 %v2556
        %v2558 = vperm.slane %v2550, %v2557
        %v2559 = vrot.slane %v2542, 4
        %v2560 = vsel %vm454, 0.0, %v2559
        %v2561 = vrot.slane %v2546, 4
        %v2562 = vsel %vm454, 0.0, %v2561
        %v2563 = vrot.slane %v2554, 4
        %v2564 = vsel %vm454, 0.0, %v2563
        %v2565 = vrot.slane %v2558, 4
        %v2566 = vsel %vm454, 0.0, %v2565
        %v2567 = vrot.slane %v2498, 4
        %v2568 = vsel %vm454, %v2567, %v2490
        %v2569 = vrot.slane %v2490, 4
        %v2570 = vsel %vm454, %v2498, %v2569
        %v2572 = vunpack.c.l.s4 1983009808
        %v2573 = vunpack.c.0.s8 %v2572
        %v2574 = vperm.slane %v2568, %v2573
        %v2576 = vunpack.c.l.s4 1983009808
        %v2577 = vunpack.c.0.s8 %v2576
        %v2578 = vperm.slane %v2570, %v2577
        %v2579 = vrot.slane %v2502, 4
        %v2580 = vsel %vm454, %v2579, %v2494
        %v2581 = vrot.slane %v2494, 4
        %v2582 = vsel %vm454, %v2502, %v2581
        %v2584 = vunpack.c.l.s4 1983009808
        %v2585 = vunpack.c.0.s8 %v2584
        %v2586 = vperm.slane %v2580, %v2585
        %v2588 = vunpack.c.l.s4 1983009808
        %v2589 = vunpack.c.0.s8 %v2588
        %v2590 = vperm.slane %v2582, %v2589
        %v2591 = vrot.slane %v2586, 4
        %v2592 = vsel %vm454, %v2591, %v2574
        %v2593 = vrot.slane %v2574, 4
        %v2594 = vsel %vm454, %v2586, %v2593
        %v2596 = vunpack.c.l.s4 1934713408
        %v2597 = vunpack.c.0.s8 %v2596
        %v2598 = vperm.slane %v2592, %v2597
        %v2600 = vunpack.c.l.s4 1934713408
        %v2601 = vunpack.c.0.s8 %v2600
        %v2602 = vperm.slane %v2594, %v2601
        %v2603 = vrot.slane %v2590, 4
        %v2604 = vsel %vm454, %v2603, %v2578
        %v2605 = vrot.slane %v2578, 4
        %v2606 = vsel %vm454, %v2590, %v2605
        %v2608 = vunpack.c.l.s4 1934713408
        %v2609 = vunpack.c.0.s8 %v2608
        %v2610 = vperm.slane %v2604, %v2609
        %v2612 = vunpack.c.l.s4 1934713408
        %v2613 = vunpack.c.0.s8 %v2612
        %v2614 = vperm.slane %v2606, %v2613
        %v2615 = vrot.slane %v2598, 4
        %v2616 = vsel %vm454, 0.0, %v2615
        %v2617 = vrot.slane %v2602, 4
        %v2618 = vsel %vm454, 0.0, %v2617
        %v2619 = vrot.slane %v2610, 4
        %v2620 = vsel %vm454, 0.0, %v2619
        %v2621 = vrot.slane %v2614, 4
        %v2622 = vsel %vm454, 0.0, %v2621
        %2624 = vrot.lane.b32.xlu0 %v2560, 16
        %v2625 = vpop.permute.xlu0 %2624
        %2628 = vrot.lane.b32.xlu0 %v2546, 32
        %v2629 = vpop.permute.xlu0 %2628
        %2632 = vrot.lane.b32.xlu0 %v2562, 48
        %v2633 = vpop.permute.xlu0 %2632
        %2636 = vrot.lane.b32.xlu0 %v2554, 64
        %v2637 = vpop.permute.xlu0 %2636
        %2640 = vrot.lane.b32.xlu0 %v2564, 80
        %v2641 = vpop.permute.xlu0 %2640
        %2644 = vrot.lane.b32.xlu0 %v2558, 96
        %v2645 = vpop.permute.xlu0 %2644
        %2648 = vrot.lane.b32.xlu0 %v2566, 112
        %v2649 = vpop.permute.xlu0 %2648
        %2652 = vrot.lane.b32.xlu0 %v2616, 16
        %v2653 = vpop.permute.xlu0 %2652
        %2656 = vrot.lane.b32.xlu0 %v2602, 32
        %v2657 = vpop.permute.xlu0 %2656
        %2660 = vrot.lane.b32.xlu0 %v2618, 48
        %v2661 = vpop.permute.xlu0 %2660
        %2664 = vrot.lane.b32.xlu0 %v2610, 64
        %v2665 = vpop.permute.xlu0 %2664
        %2668 = vrot.lane.b32.xlu0 %v2620, 80
        %v2669 = vpop.permute.xlu0 %2668
        %2672 = vrot.lane.b32.xlu0 %v2614, 96
        %v2673 = vpop.permute.xlu0 %2672
        %2676 = vrot.lane.b32.xlu0 %v2622, 112
        %v2677 = vpop.permute.xlu0 %2676
        %v2679 = vsel %vm822, %v2542, %v2625
        %v2680 = vsel %vm824, %v2679, %v2629
        %v2681 = vsel %vm826, %v2680, %v2633
        %v2682 = vsel %vm828, %v2681, %v2637
        %v2683 = vsel %vm830, %v2682, %v2641
        %v2684 = vsel %vm832, %v2683, %v2645
        %v2685 = vsel %vm834, %v2684, %v2649
        %v2686 = vsel %vm822, %v2598, %v2653
        %v2687 = vsel %vm824, %v2686, %v2657
        %v2688 = vsel %vm826, %v2687, %v2661
        %v2689 = vsel %vm828, %v2688, %v2665
        %v2690 = vsel %vm830, %v2689, %v2669
        %v2691 = vsel %vm832, %v2690, %v2673
        %v2692 = vsel %vm834, %v2691, %v2677
        %s2693 = scalar_lea.vmem [#allocation3], 28
        %v2694 = vld [vmem:[%s2693] sm:$0xf]
        %v2696 = vsel %vm1060, %v2694, 0
        %v2699 = vsel %vm1064, %v2685, 0
        %v2702 = vsel %vm1064, %v2692, 0
        %2704 = vmatpush.msra.mxu0 0.0
        %2705 = vmatpush.msra.mxu0 0.0
        %2706 = vmatpush.msra.mxu0 0.0
        %2707 = vmatpush.msra.mxu0 0.0
        %2708 = vmatpush.msra.mxu0 0.0
        %2709 = vmatpush.msra.mxu0 0.0
        %2710 = vmatpush.msra.mxu0 0.0
        %2711 = vmatpush.msra.mxu0 0.0
        %2712 = vmatpush.msra.mxu0 0.0
        %2713 = vmatpush.msra.mxu0 0.0
        %2714 = vmatpush.msra.mxu0 0.0
        %2715 = vmatpush.msra.mxu0 0.0
        %2716 = vmatpush.msra.mxu0 0.0
        %2717 = vmatpush.msra.mxu0 0.0
        %2718 = vmatpush.msra.mxu0 0.0
        %2719 = vmatpush.msra.mxu0 %v2699
        %2720 = vmatmul.f32.gmra.mxu0 %v2696
        %v2721 = vpop.f32.mrf.mxu0
        %v2722 = vadd.f32 0.0, %v2721
        %2723 = vdwg.mxu0
        %2724 = vmatpush.msra.mxu0 0.0
        %2725 = vmatpush.msra.mxu0 0.0
        %2726 = vmatpush.msra.mxu0 0.0
        %2727 = vmatpush.msra.mxu0 0.0
        %2728 = vmatpush.msra.mxu0 0.0
        %2729 = vmatpush.msra.mxu0 0.0
        %2730 = vmatpush.msra.mxu0 0.0
        %2731 = vmatpush.msra.mxu0 0.0
        %2732 = vmatpush.msra.mxu0 0.0
        %2733 = vmatpush.msra.mxu0 0.0
        %2734 = vmatpush.msra.mxu0 0.0
        %2735 = vmatpush.msra.mxu0 0.0
        %2736 = vmatpush.msra.mxu0 0.0
        %2737 = vmatpush.msra.mxu0 0.0
        %2738 = vmatpush.msra.mxu0 0.0
        %2739 = vmatpush.msra.mxu0 %v2702
        %2740 = vmatmul.f32.gmra.mxu0 %v2696
        %v2741 = vpop.f32.mrf.mxu0
        %v2742 = vadd.f32 0.0, %v2741
        %2743 = vdwg.mxu0
        %v2744 = vadd.f32 %v2469, %v2722
        %v2745 = vadd.f32 %v2470, %v2742
        %v2746 = vld [vmem:[#allocation2 + $0x2] sm:$0xff]
        %v2747 = vld [vmem:[#allocation2 + $0xa] sm:$0xff]
        %v2748 = vld [vmem:[#allocation2 + $0x1a] sm:$0xff]
        %v2749 = vld [vmem:[#allocation2 + $0x22] sm:$0xff]
        %v2750 = vld [vmem:[#allocation2 + $0x32] sm:$0xff]
        %v2751 = vld [vmem:[#allocation2 + $0x3a] sm:$0xff]
        %v2752 = vld [vmem:[#allocation2 + $0x4a] sm:$0xff]
        %v2753 = vld [vmem:[#allocation2 + $0x52] sm:$0xff]
        %2762 = vrot.lane.b32.xlu0 %v2746, 126
        %v2763 = vpop.permute.xlu0 %2762
        %2764 = vrot.lane.b32.xlu0 %v2747, 126
        %v2765 = vpop.permute.xlu0 %2764
        %2766 = vrot.lane.b32.xlu0 %v2748, 126
        %v2767 = vpop.permute.xlu0 %2766
        %2768 = vrot.lane.b32.xlu0 %v2749, 126
        %v2769 = vpop.permute.xlu0 %2768
        %2770 = vrot.lane.b32.xlu0 %v2750, 126
        %v2771 = vpop.permute.xlu0 %2770
        %2772 = vrot.lane.b32.xlu0 %v2751, 126
        %v2773 = vpop.permute.xlu0 %2772
        %2774 = vrot.lane.b32.xlu0 %v2752, 126
        %v2775 = vpop.permute.xlu0 %2774
        %2776 = vrot.lane.b32.xlu0 %v2753, 126
        %v2777 = vpop.permute.xlu0 %2776
        %v2786 = vrot.slane %v2771, 4
        %v2787 = vsel %vm454, %v2786, %v2763
        %v2788 = vrot.slane %v2763, 4
        %v2789 = vsel %vm454, %v2771, %v2788
        %v2791 = vunpack.c.l.s4 1983009808
        %v2792 = vunpack.c.0.s8 %v2791
        %v2793 = vperm.slane %v2787, %v2792
        %v2795 = vunpack.c.l.s4 1983009808
        %v2796 = vunpack.c.0.s8 %v2795
        %v2797 = vperm.slane %v2789, %v2796
        %v2798 = vrot.slane %v2775, 4
        %v2799 = vsel %vm454, %v2798, %v2767
        %v2800 = vrot.slane %v2767, 4
        %v2801 = vsel %vm454, %v2775, %v2800
        %v2803 = vunpack.c.l.s4 1983009808
        %v2804 = vunpack.c.0.s8 %v2803
        %v2805 = vperm.slane %v2799, %v2804
        %v2807 = vunpack.c.l.s4 1983009808
        %v2808 = vunpack.c.0.s8 %v2807
        %v2809 = vperm.slane %v2801, %v2808
        %v2810 = vrot.slane %v2805, 4
        %v2811 = vsel %vm454, %v2810, %v2793
        %v2812 = vrot.slane %v2793, 4
        %v2813 = vsel %vm454, %v2805, %v2812
        %v2815 = vunpack.c.l.s4 1934713408
        %v2816 = vunpack.c.0.s8 %v2815
        %v2817 = vperm.slane %v2811, %v2816
        %v2819 = vunpack.c.l.s4 1934713408
        %v2820 = vunpack.c.0.s8 %v2819
        %v2821 = vperm.slane %v2813, %v2820
        %v2822 = vrot.slane %v2809, 4
        %v2823 = vsel %vm454, %v2822, %v2797
        %v2824 = vrot.slane %v2797, 4
        %v2825 = vsel %vm454, %v2809, %v2824
        %v2827 = vunpack.c.l.s4 1934713408
        %v2828 = vunpack.c.0.s8 %v2827
        %v2829 = vperm.slane %v2823, %v2828
        %v2831 = vunpack.c.l.s4 1934713408
        %v2832 = vunpack.c.0.s8 %v2831
        %v2833 = vperm.slane %v2825, %v2832
        %v2834 = vrot.slane %v2817, 4
        %v2835 = vsel %vm454, 0.0, %v2834
        %v2836 = vrot.slane %v2821, 4
        %v2837 = vsel %vm454, 0.0, %v2836
        %v2838 = vrot.slane %v2829, 4
        %v2839 = vsel %vm454, 0.0, %v2838
        %v2840 = vrot.slane %v2833, 4
        %v2841 = vsel %vm454, 0.0, %v2840
        %v2842 = vrot.slane %v2773, 4
        %v2843 = vsel %vm454, %v2842, %v2765
        %v2844 = vrot.slane %v2765, 4
        %v2845 = vsel %vm454, %v2773, %v2844
        %v2847 = vunpack.c.l.s4 1983009808
        %v2848 = vunpack.c.0.s8 %v2847
        %v2849 = vperm.slane %v2843, %v2848
        %v2851 = vunpack.c.l.s4 1983009808
        %v2852 = vunpack.c.0.s8 %v2851
        %v2853 = vperm.slane %v2845, %v2852
        %v2854 = vrot.slane %v2777, 4
        %v2855 = vsel %vm454, %v2854, %v2769
        %v2856 = vrot.slane %v2769, 4
        %v2857 = vsel %vm454, %v2777, %v2856
        %v2859 = vunpack.c.l.s4 1983009808
        %v2860 = vunpack.c.0.s8 %v2859
        %v2861 = vperm.slane %v2855, %v2860
        %v2863 = vunpack.c.l.s4 1983009808
        %v2864 = vunpack.c.0.s8 %v2863
        %v2865 = vperm.slane %v2857, %v2864
        %v2866 = vrot.slane %v2861, 4
        %v2867 = vsel %vm454, %v2866, %v2849
        %v2868 = vrot.slane %v2849, 4
        %v2869 = vsel %vm454, %v2861, %v2868
        %v2871 = vunpack.c.l.s4 1934713408
        %v2872 = vunpack.c.0.s8 %v2871
        %v2873 = vperm.slane %v2867, %v2872
        %v2875 = vunpack.c.l.s4 1934713408
        %v2876 = vunpack.c.0.s8 %v2875
        %v2877 = vperm.slane %v2869, %v2876
        %v2878 = vrot.slane %v2865, 4
        %v2879 = vsel %vm454, %v2878, %v2853
        %v2880 = vrot.slane %v2853, 4
        %v2881 = vsel %vm454, %v2865, %v2880
        %v2883 = vunpack.c.l.s4 1934713408
        %v2884 = vunpack.c.0.s8 %v2883
        %v2885 = vperm.slane %v2879, %v2884
        %v2887 = vunpack.c.l.s4 1934713408
        %v2888 = vunpack.c.0.s8 %v2887
        %v2889 = vperm.slane %v2881, %v2888
        %v2890 = vrot.slane %v2873, 4
        %v2891 = vsel %vm454, 0.0, %v2890
        %v2892 = vrot.slane %v2877, 4
        %v2893 = vsel %vm454, 0.0, %v2892
        %v2894 = vrot.slane %v2885, 4
        %v2895 = vsel %vm454, 0.0, %v2894
        %v2896 = vrot.slane %v2889, 4
        %v2897 = vsel %vm454, 0.0, %v2896
        %2899 = vrot.lane.b32.xlu0 %v2835, 16
        %v2900 = vpop.permute.xlu0 %2899
        %2903 = vrot.lane.b32.xlu0 %v2821, 32
        %v2904 = vpop.permute.xlu0 %2903
        %2907 = vrot.lane.b32.xlu0 %v2837, 48
        %v2908 = vpop.permute.xlu0 %2907
        %2911 = vrot.lane.b32.xlu0 %v2829, 64
        %v2912 = vpop.permute.xlu0 %2911
        %2915 = vrot.lane.b32.xlu0 %v2839, 80
        %v2916 = vpop.permute.xlu0 %2915
        %2919 = vrot.lane.b32.xlu0 %v2833, 96
        %v2920 = vpop.permute.xlu0 %2919
        %2923 = vrot.lane.b32.xlu0 %v2841, 112
        %v2924 = vpop.permute.xlu0 %2923
        %2927 = vrot.lane.b32.xlu0 %v2891, 16
        %v2928 = vpop.permute.xlu0 %2927
        %2931 = vrot.lane.b32.xlu0 %v2877, 32
        %v2932 = vpop.permute.xlu0 %2931
        %2935 = vrot.lane.b32.xlu0 %v2893, 48
        %v2936 = vpop.permute.xlu0 %2935
        %2939 = vrot.lane.b32.xlu0 %v2885, 64
        %v2940 = vpop.permute.xlu0 %2939
        %2943 = vrot.lane.b32.xlu0 %v2895, 80
        %v2944 = vpop.permute.xlu0 %2943
        %2947 = vrot.lane.b32.xlu0 %v2889, 96
        %v2948 = vpop.permute.xlu0 %2947
        %2951 = vrot.lane.b32.xlu0 %v2897, 112
        %v2952 = vpop.permute.xlu0 %2951
        %v2954 = vsel %vm822, %v2817, %v2900
        %v2955 = vsel %vm824, %v2954, %v2904
        %v2956 = vsel %vm826, %v2955, %v2908
        %v2957 = vsel %vm828, %v2956, %v2912
        %v2958 = vsel %vm830, %v2957, %v2916
        %v2959 = vsel %vm832, %v2958, %v2920
        %v2960 = vsel %vm834, %v2959, %v2924
        %v2961 = vsel %vm822, %v2873, %v2928
        %v2962 = vsel %vm824, %v2961, %v2932
        %v2963 = vsel %vm826, %v2962, %v2936
        %v2964 = vsel %vm828, %v2963, %v2940
        %v2965 = vsel %vm830, %v2964, %v2944
        %v2966 = vsel %vm832, %v2965, %v2948
        %v2967 = vsel %vm834, %v2966, %v2952
        %s2968 = scalar_lea.vmem [#allocation3], 32
        %v2969 = vld [vmem:[%s2968] sm:$0xf]
        %v2971 = vsel %vm1060, %v2969, 0
        %v2974 = vsel %vm1064, %v2960, 0
        %v2977 = vsel %vm1064, %v2967, 0
        %2979 = vmatpush.msra.mxu0 0.0
        %2980 = vmatpush.msra.mxu0 0.0
        %2981 = vmatpush.msra.mxu0 0.0
        %2982 = vmatpush.msra.mxu0 0.0
        %2983 = vmatpush.msra.mxu0 0.0
        %2984 = vmatpush.msra.mxu0 0.0
        %2985 = vmatpush.msra.mxu0 0.0
        %2986 = vmatpush.msra.mxu0 0.0
        %2987 = vmatpush.msra.mxu0 0.0
        %2988 = vmatpush.msra.mxu0 0.0
        %2989 = vmatpush.msra.mxu0 0.0
        %2990 = vmatpush.msra.mxu0 0.0
        %2991 = vmatpush.msra.mxu0 0.0
        %2992 = vmatpush.msra.mxu0 0.0
        %2993 = vmatpush.msra.mxu0 0.0
        %2994 = vmatpush.msra.mxu0 %v2974
        %2995 = vmatmul.f32.gmra.mxu0 %v2971
        %v2996 = vpop.f32.mrf.mxu0
        %v2997 = vadd.f32 0.0, %v2996
        %2998 = vdwg.mxu0
        %2999 = vmatpush.msra.mxu0 0.0
        %3000 = vmatpush.msra.mxu0 0.0
        %3001 = vmatpush.msra.mxu0 0.0
        %3002 = vmatpush.msra.mxu0 0.0
        %3003 = vmatpush.msra.mxu0 0.0
        %3004 = vmatpush.msra.mxu0 0.0
        %3005 = vmatpush.msra.mxu0 0.0
        %3006 = vmatpush.msra.mxu0 0.0
        %3007 = vmatpush.msra.mxu0 0.0
        %3008 = vmatpush.msra.mxu0 0.0
        %3009 = vmatpush.msra.mxu0 0.0
        %3010 = vmatpush.msra.mxu0 0.0
        %3011 = vmatpush.msra.mxu0 0.0
        %3012 = vmatpush.msra.mxu0 0.0
        %3013 = vmatpush.msra.mxu0 0.0
        %3014 = vmatpush.msra.mxu0 %v2977
        %3015 = vmatmul.f32.gmra.mxu0 %v2971
        %v3016 = vpop.f32.mrf.mxu0
        %v3017 = vadd.f32 0.0, %v3016
        %3018 = vdwg.mxu0
        %v3019 = vadd.f32 %v2744, %v2997
        %v3020 = vadd.f32 %v2745, %v3017
        %v3023 = vrot.slane %v3020, 4
        %v3024 = vsel %vm1064, %v3019, %v3023
        %3026 = vst [vmem:[%s335] sm:$0xff] %v3024
        %v3027 = vsel %vm1064, %v3019, 0.0
        %v3028 = vsel %vm1064, %v3020, 0.0
        %v3029 = vadd.f32 %v3027, %v3028
        %3030 = vadd.xlane.f32.xlu0 %v3029
        %v3031 = vpop.xlane.xlu0 %3030
        %3032 = vst.msk [vmem:[%s339] sm:$0xf] %vm364, %v3031
        %v3033 = vmul.f32 %v3019, %v3019
        %v3034 = vmul.f32 %v3020, %v3020
        %v3035 = vsel %vm1064, %v3033, 0.0
        %v3036 = vsel %vm1064, %v3034, 0.0
        %v3037 = vadd.f32 %v3035, %v3036
        %3038 = vadd.xlane.f32.xlu0 %v3037
        %v3039 = vpop.xlane.xlu0 %3038
        %3040 = vst.msk [vmem:[%s343] sm:$0xf] %vm364, %v3039
        %p3041 = scmp.lt.s32.totalorder %s21, 1
        %s3042 = scalar_select %p3041, %s21, 1
        %s3043 = smul.addr %s3042, 2
        %s3044 = smul.addr %s3043, 4
        %s3045 = scalar_lea.vmem %s6, %s3044
        %p3046 = scmp.lt.s32.totalorder %s21, 1
        %s3047 = scalar_select %p3046, %s21, 1
        %s3048 = smul.addr %s3047, 4
        %s3049 = scalar_lea.vmem %s7, %s3048
        %p3050 = scmp.lt.s32.totalorder %s21, 1
        %s3051 = scalar_select %p3050, %s21, 1
        %s3052 = smul.addr %s3051, 4
        %s3053 = scalar_lea.vmem %s8, %s3052
        // Predicated region
        $region53: #{upscaling_forward.4} parent=43 // pred_check
          %p3054 = pneg %p170
        $region54: #{upscaling_forward.4} parent=43 // pred_check_branch
          %3056 = sbr.rel (%p3054) target = $region56
        $region55: #{upscaling_forward.4} parent=43 // pred_region
          _
        $region56: #{upscaling_forward.4} parent=43 // pred_fallthru
          _
        // Predicated region
        $region57: #{upscaling_forward.4} parent=43 // pred_check
          %p3057 = pneg %p196
        $region58: #{upscaling_forward.4} parent=43 // pred_check_branch
          %3059 = sbr.rel (%p3057) target = $region60
        $region59: #{upscaling_forward.4} parent=43 // pred_region
          _
        $region60: #{upscaling_forward.4} parent=43 // pred_fallthru
          _
        // Predicated region
        $region61: #{upscaling_forward.4} parent=43 // pred_check
          %p3060 = pneg %p222
        $region62: #{upscaling_forward.4} parent=43 // pred_check_branch
          %3062 = sbr.rel (%p3060) target = $region64
        $region63: #{upscaling_forward.4} parent=43 // pred_region
          _
        $region64: #{upscaling_forward.4} parent=43 // pred_fallthru
          _
      $region44: #{upscaling_forward.4} parent=5 // pred_fallthru
        _
      %p3063 = scmp.le.s32.totalorder 2, %s16
      // Predicated region
      $region65: #{upscaling_forward.4} parent=5 // pred_check
        %p3064 = pneg %p3063
      $region66: #{upscaling_forward.4} parent=5 // pred_check_branch
        %3066 = sbr.rel (%p3064) target = $region68
      $region67: #{upscaling_forward.4} parent=5 // pred_region
        %s3067 = ssub.s32 %s16, 2
        // Predicated region
        $region69: #{upscaling_forward.4} parent=67 // pred_check
          %p3068 = pneg %p176
        $region70: #{upscaling_forward.4} parent=67 // pred_check_branch
          %3070 = sbr.rel (%p3068) target = $region72
        $region71: #{upscaling_forward.4} parent=67 // pred_region
          %p3071 = scmp.lt.s32.totalorder %s22, 1
          %s3072 = scalar_select %p3071, %s22, 1
          %s3073 = smul.addr %s3072, 2
          %s3074 = smul.addr %s3073, 4
          %s3075 = scalar_lea.vmem %s6, %s3074
        $region72: #{upscaling_forward.4} parent=67 // pred_fallthru
          _
        // Predicated region
        $region73: #{upscaling_forward.4} parent=67 // pred_check
          %p3076 = pneg %p202
        $region74: #{upscaling_forward.4} parent=67 // pred_check_branch
          %3078 = sbr.rel (%p3076) target = $region76
        $region75: #{upscaling_forward.4} parent=67 // pred_region
          %p3079 = scmp.lt.s32.totalorder %s22, 1
          %s3080 = scalar_select %p3079, %s22, 1
          %s3081 = smul.addr %s3080, 4
          %s3082 = scalar_lea.vmem %s7, %s3081
        $region76: #{upscaling_forward.4} parent=67 // pred_fallthru
          _
        // Predicated region
        $region77: #{upscaling_forward.4} parent=67 // pred_check
          %p3083 = pneg %p228
        $region78: #{upscaling_forward.4} parent=67 // pred_check_branch
          %3085 = sbr.rel (%p3083) target = $region80
        $region79: #{upscaling_forward.4} parent=67 // pred_region
          %p3086 = scmp.lt.s32.totalorder %s22, 1
          %s3087 = scalar_select %p3086, %s22, 1
          %s3088 = smul.addr %s3087, 4
          %s3089 = scalar_lea.vmem %s8, %s3088
        $region80: #{upscaling_forward.4} parent=67 // pred_fallthru
          _
      $region68: #{upscaling_forward.4} parent=5 // pred_fallthru
        _
    $region6: #{upscaling_forward.4} parent=1 // loop_footer
      %s20 = sadd.s32 1, %s16
    $region7: #{upscaling_forward.4} parent=1 // loop_footer_branch
      %15 = sbr.rel target = $region3
    $region8: #{upscaling_forward.4} parent=1 // loop_exit
      _
    %3090 = vsyncpa [#allocation4], 1
    %s3091 = scalar_lea.sflag [#allocation4], 1
    %3092 = vsyncpa %s3091, 1

// kernel: upscaling_forward.3
$region0: #{upscaling_forward.3}
  #allocation0 [shape = 'u32[]', space=smem, size = 0x4, offset = 0x4, fixed_abs, tag = 'smem constant byte address 0x4 - core index']
  #allocation1 [shape = 'u32[72,128]{1,0:T(1,128)}', space=vmem, size = 0x9000, scoped, tag = 'internal scratch']
  #allocation2 [shape = 'f32[8,18,18]{2,1,0:T(8,128)}', space=vmem, size = 0x18000, scoped, tag = 'scratch operand']
  %s0 = inlined_call_operand.hbm [shape: f32[2,4,8,8], index: 0, kind: input, shape index: {}]
  %s1 = inlined_call_operand.hbm [shape: f32[2,4,16,16], index: 1, kind: input, shape index: {}]
  %s2 = inlined_call_operand.hbm [shape: f32[16,8], index: 2, kind: input, shape index: {}]
  %s3 = inlined_call_operand.vmem [shape: f32[8,16], index: 3, kind: input, shape index: {}]
  %s4 = inlined_call_operand.hbm [shape: f32[9,4,8], index: 4, kind: input, shape index: {}]
  %s5 = inlined_call_operand.vmem [shape: f32[2,4,256], index: 5, kind: output, shape index: {0}]
  %s6 = inlined_call_operand.vmem [shape: f32[2,4,1], index: 6, kind: output, shape index: {1}]
  %s7 = inlined_call_operand.vmem [shape: f32[2,4,1], index: 7, kind: output, shape index: {2}]
  %8 = xla_tuple %s5, %s6, %s7
  %s9 = sld [smem:[#allocation0]]
  $region89: #{upscaling_forward.3} parent=0
    _
  %s11 = ssub.s32 1, %s9
  %s12 = scalar_select 0, %s11, %s9
  $region1: #{upscaling_forward.3} parent=0
    #allocation3 [shape = 'u8[32768]{0}', space=vmem, size = 0x8000, scoped, tag = 'input window, operand 0']
    #allocation4 [shape = 's32[2]{0}', space=sflag, size = 0x8, scoped, tag = 'scoped memory for upscaling_forward.3']
    #allocation5 [shape = 'u8[65536]{0}', space=vmem, size = 0x10000, scoped, tag = 'input window, operand 1']
    #allocation6 [shape = 's32[2]{0}', space=sflag, size = 0x8, scoped, tag = 'scoped memory for upscaling_forward.3']
    #allocation7 [shape = 'u8[8192]{0}', space=vmem, size = 0x2000, scoped, tag = 'input window, operand 2, single buffered']
    #allocation8 [shape = 'u8[18432]{0}', space=vmem, size = 0x4800, scoped, tag = 'input window, operand 4, single buffered']
    #allocation9 [shape = 's32[1]{0}', space=sflag, size = 0x4, scoped, tag = 'scoped memory for upscaling_forward.3']
    %13 = vsyncpa [#allocation4], 0
    %s14 = scalar_lea.sflag [#allocation4], 1
    %15 = vsyncpa %s14, 0
    %16 = vsyncpa [#allocation6], 0
    %s17 = scalar_lea.sflag [#allocation6], 1
    %18 = vsyncpa %s17, 0
    %19 = vsyncpa [#allocation9], 0
    loop: start=0, step=1, limit=4
    $region2: #{upscaling_forward.3} parent=1 // loop_pre_header
      _
    $region3: #{upscaling_forward.3} parent=1 // loop_header
      %s21 = sphi 0, %s25
      %p22 = scmp.ge.s32.totalorder %s21, 4
      %s31 = sphi 0, %s33
      %s34 = sphi 0, %s31
      %s35 = sphi 0, %s34
      %s51 = sphi 0, %s35
      %s57 = sphi 0, %s59
      %s60 = sphi 0, %s57
      %s61 = sphi 0, %s60
      %s77 = sphi 0, %s61
      %s81 = sphi 0, %s81
      %s83 = sphi 0, %s81
      %s84 = sphi 0, %s83
      %s98 = sphi 0, %s84
      %s102 = sphi 0, %s102
      %s104 = sphi 0, %s102
      %s105 = sphi 0, %s104
      %s119 = sphi 0, %s105
      %s123 = sphi 0, %s123
      %s125 = sphi 0, %s123
      %s126 = sphi 0, %s125
      %s140 = sphi 0, %s126
      %s146 = sphi 0, %s148
      %s149 = sphi 0, %s146
      %s150 = sphi 0, %s149
      %s166 = sphi 0, %s150
      %s172 = sphi 0, %s174
      %s175 = sphi 0, %s172
      %s176 = sphi 0, %s175
      %s192 = sphi 0, %s176
      %s198 = sphi 0, %s200
      %s201 = sphi 0, %s198
      %s202 = sphi 0, %s201
      %s218 = sphi 0, %s202
    $region4: #{upscaling_forward.3} parent=1 // loop_header_branch
      %24 = sbr.rel (%p22) target = $region8
    $region5: #{upscaling_forward.3} parent=1 // loop_body
      %s26 = ssub.s32 %s21, 1
      %s27 = ssub.s32 %s21, 2
      %s28 = sadd.s32 %s21, 1
      %s29 = ssub.s32 %s21, %s28
      %p30 = scmp.eq.s32.totalorder %s29, 0
      %s32 = sadd.s32 %s31, 1
      %s33 = scalar_select %p30, %s31, %s32
      %p36 = pneg %p30
      %p37 = scmp.eq.s32.totalorder %s21, 1
      %p38 = por %p36, %p37
      %p39 = scmp.ne.s32.totalorder %s31, %s34
      %p40 = scmp.eq.s32.totalorder %s21, 0
      %p41 = por %p39, %p40
      %p42 = scmp.ne.s32.totalorder %s31, %s34
      %p43 = scmp.eq.s32.totalorder %s26, 1
      %p44 = por %p42, %p43
      %p45 = scmp.ne.s32.totalorder %s34, %s35
      %p46 = scmp.eq.s32.totalorder %s26, 0
      %p47 = por %p45, %p46
      %p48 = scmp.ne.s32.totalorder %s34, %s35
      %p49 = scmp.eq.s32.totalorder %s27, 1
      %p50 = por %p48, %p49
      %p52 = scmp.ne.s32.totalorder %s35, %s51
      %p53 = scmp.eq.s32.totalorder %s27, 0
      %p54 = por %p52, %p53
      %s55 = ssub.s32 %s21, %s28
      %p56 = scmp.eq.s32.totalorder %s55, 0
      %s58 = sadd.s32 %s57, 1
      %s59 = scalar_select %p56, %s57, %s58
      %p62 = pneg %p56
      %p63 = scmp.eq.s32.totalorder %s21, 1
      %p64 = por %p62, %p63
      %p65 = scmp.ne.s32.totalorder %s57, %s60
      %p66 = scmp.eq.s32.totalorder %s21, 0
      %p67 = por %p65, %p66
      %p68 = scmp.ne.s32.totalorder %s57, %s60
      %p69 = scmp.eq.s32.totalorder %s26, 1
      %p70 = por %p68, %p69
      %p71 = scmp.ne.s32.totalorder %s60, %s61
      %p72 = scmp.eq.s32.totalorder %s26, 0
      %p73 = por %p71, %p72
      %p74 = scmp.ne.s32.totalorder %s60, %s61
      %p75 = scmp.eq.s32.totalorder %s27, 1
      %p76 = por %p74, %p75
      %p78 = scmp.ne.s32.totalorder %s61, %s77
      %p79 = scmp.eq.s32.totalorder %s27, 0
      %p80 = por %p78, %p79
      %s82 = sadd.s32 %s81, 1
      %p85 = scmp.eq.s32.totalorder %s21, 1
      %p86 = scmp.ne.s32.totalorder %s81, %s83
      %p87 = scmp.eq.s32.totalorder %s21, 0
      %p88 = por %p86, %p87
      %p89 = scmp.ne.s32.totalorder %s81, %s83
      %p90 = scmp.eq.s32.totalorder %s26, 1
      %p91 = por %p89, %p90
      %p92 = scmp.ne.s32.totalorder %s83, %s84
      %p93 = scmp.eq.s32.totalorder %s26, 0
      %p94 = por %p92, %p93
      %p95 = scmp.ne.s32.totalorder %s83, %s84
      %p96 = scmp.eq.s32.totalorder %s27, 1
      %p97 = por %p95, %p96
      %p99 = scmp.ne.s32.totalorder %s84, %s98
      %p100 = scmp.eq.s32.totalorder %s27, 0
      %p101 = por %p99, %p100
      %s103 = sadd.s32 %s102, 1
      %p106 = scmp.eq.s32.totalorder %s21, 1
      %p107 = scmp.ne.s32.totalorder %s102, %s104
      %p108 = scmp.eq.s32.totalorder %s21, 0
      %p109 = por %p107, %p108
      %p110 = scmp.ne.s32.totalorder %s102, %s104
      %p111 = scmp.eq.s32.totalorder %s26, 1
      %p112 = por %p110, %p111
      %p113 = scmp.ne.s32.totalorder %s104, %s105
      %p114 = scmp.eq.s32.totalorder %s26, 0
      %p115 = por %p113, %p114
      %p116 = scmp.ne.s32.totalorder %s104, %s105
      %p117 = scmp.eq.s32.totalorder %s27, 1
      %p118 = por %p116, %p117
      %p120 = scmp.ne.s32.totalorder %s105, %s119
      %p121 = scmp.eq.s32.totalorder %s27, 0
      %p122 = por %p120, %p121
      %s124 = sadd.s32 %s123, 1
      %p127 = scmp.eq.s32.totalorder %s21, 1
      %p128 = scmp.ne.s32.totalorder %s123, %s125
      %p129 = scmp.eq.s32.totalorder %s21, 0
      %p130 = por %p128, %p129
      %p131 = scmp.ne.s32.totalorder %s123, %s125
      %p132 = scmp.eq.s32.totalorder %s26, 1
      %p133 = por %p131, %p132
      %p134 = scmp.ne.s32.totalorder %s125, %s126
      %p135 = scmp.eq.s32.totalorder %s26, 0
      %p136 = por %p134, %p135
      %p137 = scmp.ne.s32.totalorder %s125, %s126
      %p138 = scmp.eq.s32.totalorder %s27, 1
      %p139 = por %p137, %p138
      %p141 = scmp.ne.s32.totalorder %s126, %s140
      %p142 = scmp.eq.s32.totalorder %s27, 0
      %p143 = por %p141, %p142
      %s144 = ssub.s32 %s21, %s28
      %p145 = scmp.eq.s32.totalorder %s144, 0
      %s147 = sadd.s32 %s146, 1
      %s148 = scalar_select %p145, %s146, %s147
      %p151 = pneg %p145
      %p152 = scmp.eq.s32.totalorder %s21, 1
      %p153 = por %p151, %p152
      %p154 = scmp.ne.s32.totalorder %s146, %s149
      %p155 = scmp.eq.s32.totalorder %s21, 0
      %p156 = por %p154, %p155
      %p157 = scmp.ne.s32.totalorder %s146, %s149
      %p158 = scmp.eq.s32.totalorder %s26, 1
      %p159 = por %p157, %p158
      %p160 = scmp.ne.s32.totalorder %s149, %s150
      %p161 = scmp.eq.s32.totalorder %s26, 0
      %p162 = por %p160, %p161
      %p163 = scmp.ne.s32.totalorder %s149, %s150
      %p164 = scmp.eq.s32.totalorder %s27, 1
      %p165 = por %p163, %p164
      %p167 = scmp.ne.s32.totalorder %s150, %s166
      %p168 = scmp.eq.s32.totalorder %s27, 0
      %p169 = por %p167, %p168
      %s170 = ssub.s32 %s21, %s28
      %p171 = scmp.eq.s32.totalorder %s170, 0
      %s173 = sadd.s32 %s172, 1
      %s174 = scalar_select %p171, %s172, %s173
      %p177 = pneg %p171
      %p178 = scmp.eq.s32.totalorder %s21, 1
      %p179 = por %p177, %p178
      %p180 = scmp.ne.s32.totalorder %s172, %s175
      %p181 = scmp.eq.s32.totalorder %s21, 0
      %p182 = por %p180, %p181
      %p183 = scmp.ne.s32.totalorder %s172, %s175
      %p184 = scmp.eq.s32.totalorder %s26, 1
      %p185 = por %p183, %p184
      %p186 = scmp.ne.s32.totalorder %s175, %s176
      %p187 = scmp.eq.s32.totalorder %s26, 0
      %p188 = por %p186, %p187
      %p189 = scmp.ne.s32.totalorder %s175, %s176
      %p190 = scmp.eq.s32.totalorder %s27, 1
      %p191 = por %p189, %p190
      %p193 = scmp.ne.s32.totalorder %s176, %s192
      %p194 = scmp.eq.s32.totalorder %s27, 0
      %p195 = por %p193, %p194
      %s196 = ssub.s32 %s21, %s28
      %p197 = scmp.eq.s32.totalorder %s196, 0
      %s199 = sadd.s32 %s198, 1
      %s200 = scalar_select %p197, %s198, %s199
      %p203 = pneg %p197
      %p204 = scmp.eq.s32.totalorder %s21, 1
      %p205 = por %p203, %p204
      %p206 = scmp.ne.s32.totalorder %s198, %s201
      %p207 = scmp.eq.s32.totalorder %s21, 0
      %p208 = por %p206, %p207
      %p209 = scmp.ne.s32.totalorder %s198, %s201
      %p210 = scmp.eq.s32.totalorder %s26, 1
      %p211 = por %p209, %p210
      %p212 = scmp.ne.s32.totalorder %s201, %s202
      %p213 = scmp.eq.s32.totalorder %s26, 0
      %p214 = por %p212, %p213
      %p215 = scmp.ne.s32.totalorder %s201, %s202
      %p216 = scmp.eq.s32.totalorder %s27, 1
      %p217 = por %p215, %p216
      %p219 = scmp.ne.s32.totalorder %s202, %s218
      %p220 = scmp.eq.s32.totalorder %s27, 0
      %p221 = por %p219, %p220
      %p222 = scmp.le.s32.totalorder 1, %s21
      %p223 = scmp.lt.s32.totalorder %s21, 3
      %p224 = pnand %p222, %p223
      %p225 = pneg %p224
      // Predicated region
      $region9: #{upscaling_forward.3} parent=5 // pred_check
        _
      $region10: #{upscaling_forward.3} parent=5 // pred_check_branch
        %227 = sbr.rel (%p224) target = $region12
      $region11: #{upscaling_forward.3} parent=5 // pred_region
        %s228 = ssub.s32 %s21, 1
        // Predicated region
        $region13: #{upscaling_forward.3} parent=11 // pred_check
          %p229 = pneg %p94
        $region14: #{upscaling_forward.3} parent=11 // pred_check_branch
          %231 = sbr.rel (%p229) target = $region16
        $region15: #{upscaling_forward.3} parent=11 // pred_region
          %233 = vsyncadd [#allocation6], 0
          %s234 = sshll.u32 %s2, 4
          %s235 = int_to_ptr.hbm [resolvable:$true] %s234
          %s236 = sshll.u32 [#allocation7], 4
          %s237 = int_to_ptr.vmem [resolvable:$true] %s236
          %242 = dma.hbm_to_vmem [thread:$0]  %s235, 256, %s237, [#allocation6], 128, 128, 8
        $region16: #{upscaling_forward.3} parent=11 // pred_fallthru
          _
        // Predicated region
        $region17: #{upscaling_forward.3} parent=11 // pred_check
          %p243 = pneg %p115
        $region18: #{upscaling_forward.3} parent=11 // pred_check_branch
          %245 = sbr.rel (%p243) target = $region20
        $region19: #{upscaling_forward.3} parent=11 // pred_region
          _
        $region20: #{upscaling_forward.3} parent=11 // pred_fallthru
          _
        // Predicated region
        $region21: #{upscaling_forward.3} parent=11 // pred_check
          %p246 = pneg %p136
        $region22: #{upscaling_forward.3} parent=11 // pred_check_branch
          %248 = sbr.rel (%p246) target = $region24
        $region23: #{upscaling_forward.3} parent=11 // pred_region
          %250 = vsyncadd [#allocation9], 0
          %s251 = sshll.u32 %s4, 4
          %s252 = int_to_ptr.hbm [resolvable:$true] %s251
          %s253 = sshll.u32 [#allocation8], 4
          %s254 = int_to_ptr.vmem [resolvable:$true] %s253
          %259 = dma.hbm_to_vmem [thread:$0]  %s252, 576, %s254, [#allocation9], 64, 64, 4
        $region24: #{upscaling_forward.3} parent=11 // pred_fallthru
          _
      $region12: #{upscaling_forward.3} parent=5 // pred_fallthru
        _
      %p260 = scmp.lt.s32.totalorder %s21, 2
      // Predicated region
      $region25: #{upscaling_forward.3} parent=5 // pred_check
        %p261 = pneg %p260
      $region26: #{upscaling_forward.3} parent=5 // pred_check_branch
        %263 = sbr.rel (%p261) target = $region28
      $region27: #{upscaling_forward.3} parent=5 // pred_region
        // Predicated region
        $region29: #{upscaling_forward.3} parent=27 // pred_check
          %p264 = pneg %p41
        $region30: #{upscaling_forward.3} parent=27 // pred_check_branch
          %266 = sbr.rel (%p264) target = $region32
        $region31: #{upscaling_forward.3} parent=27 // pred_region
          %s267 = sand.u32 %s31, 1
          %s268 = scalar_lea.sflag [#allocation4], %s267
          %s269 = sand.u32 %s31, 1
          %s270 = smul.addr %s269, 32
          %s271 = scalar_lea.vmem [#allocation3], %s270
          %273 = vsyncadd %s268, 0
          %s274 = smul.addr %s21, 4
          %s275 = smul.addr %s274, 8
          %s276 = scalar_lea.hbm %s0, %s275
          %s277 = sshll.u32 %s276, 4
          %s278 = int_to_ptr.hbm [resolvable:$true] %s277
          %s279 = sshll.u32 %s271, 4
          %s280 = int_to_ptr.vmem [resolvable:$true] %s279
          %285 = dma.hbm_to_vmem [thread:$0]  %s278, 512, %s280, %s268, 128, 128, 8
        $region32: #{upscaling_forward.3} parent=27 // pred_fallthru
          _
        // Predicated region
        $region33: #{upscaling_forward.3} parent=27 // pred_check
          %p286 = pneg %p67
        $region34: #{upscaling_forward.3} parent=27 // pred_check_branch
          %288 = sbr.rel (%p286) target = $region36
        $region35: #{upscaling_forward.3} parent=27 // pred_region
          %s289 = sand.u32 %s21, 1
          %s290 = scalar_lea.sflag [#allocation6], %s289
          %s291 = sand.u32 %s57, 1
          %s292 = smul.addr %s291, 64
          %s293 = scalar_lea.vmem [#allocation5], %s292
          %295 = vsyncadd %s290, 0
          %s296 = smul.addr %s21, 8
          %s297 = smul.addr %s296, 8
          %s298 = scalar_lea.hbm %s1, %s297
          %s299 = sshll.u32 %s298, 4
          %s300 = int_to_ptr.hbm [resolvable:$true] %s299
          %s301 = sshll.u32 %s293, 4
          %s302 = int_to_ptr.vmem [resolvable:$true] %s301
          %307 = dma.hbm_to_vmem [thread:$0]  %s300, 1024, %s302, %s290, 128, 128, 8
        $region36: #{upscaling_forward.3} parent=27 // pred_fallthru
          _
      $region28: #{upscaling_forward.3} parent=5 // pred_fallthru
        _
      %p308 = scmp.le.s32.totalorder 1, %s21
      %p309 = scmp.lt.s32.totalorder %s21, 3
      %p310 = pnand %p308, %p309
      %p311 = pneg %p310
      // Predicated region
      $region37: #{upscaling_forward.3} parent=5 // pred_check
        _
      $region38: #{upscaling_forward.3} parent=5 // pred_check_branch
        %313 = sbr.rel (%p310) target = $region40
      $region39: #{upscaling_forward.3} parent=5 // pred_region
        %s314 = ssub.s32 %s21, 1
        %s315 = sand.u32 %s34, 1
        %s316 = scalar_lea.sflag [#allocation4], %s315
        %s317 = sand.u32 %s34, 1
        %s318 = smul.addr %s317, 32
        %s319 = scalar_lea.vmem [#allocation3], %s318
        // Predicated region
        $region41: #{upscaling_forward.3} parent=39 // pred_check
          %p320 = pneg %p47
        $region42: #{upscaling_forward.3} parent=39 // pred_check_branch
          %322 = sbr.rel (%p320) target = $region44
        $region43: #{upscaling_forward.3} parent=39 // pred_region
          %324 = dma.done %s316, 512
        $region44: #{upscaling_forward.3} parent=39 // pred_fallthru
          _
        %s325 = sand.u32 %s26, 1
        %s326 = scalar_lea.sflag [#allocation6], %s325
        %s327 = sand.u32 %s60, 1
        %s328 = smul.addr %s327, 64
        %s329 = scalar_lea.vmem [#allocation5], %s328
        // Predicated region
        $region45: #{upscaling_forward.3} parent=39 // pred_check
          %p330 = pneg %p73
        $region46: #{upscaling_forward.3} parent=39 // pred_check_branch
          %332 = sbr.rel (%p330) target = $region48
        $region47: #{upscaling_forward.3} parent=39 // pred_region
          %334 = dma.done %s326, 1024
        $region48: #{upscaling_forward.3} parent=39 // pred_fallthru
          _
        // Predicated region
        $region49: #{upscaling_forward.3} parent=39 // pred_check
          %p335 = pneg %p94
        $region50: #{upscaling_forward.3} parent=39 // pred_check_branch
          %337 = sbr.rel (%p335) target = $region52
        $region51: #{upscaling_forward.3} parent=39 // pred_region
          %339 = dma.done [#allocation6], 256
        $region52: #{upscaling_forward.3} parent=39 // pred_fallthru
          _
        // Predicated region
        $region53: #{upscaling_forward.3} parent=39 // pred_check
          %p340 = pneg %p136
        $region54: #{upscaling_forward.3} parent=39 // pred_check_branch
          %342 = sbr.rel (%p340) target = $region56
        $region55: #{upscaling_forward.3} parent=39 // pred_region
          %344 = dma.done [#allocation9], 576
        $region56: #{upscaling_forward.3} parent=39 // pred_fallthru
          _
        %s345 = sand.u32 %s34, 1
        %s346 = scalar_lea.sflag [#allocation4], %s345
        %s347 = sand.u32 %s34, 1
        %s348 = smul.addr %s347, 32
        %s349 = scalar_lea.vmem [#allocation3], %s348
        %p350 = pneg %p47
        %p351 = pneg %p44
        %s352 = sand.u32 %s26, 1
        %s353 = scalar_lea.sflag [#allocation6], %s352
        %s354 = sand.u32 %s60, 1
        %s355 = smul.addr %s354, 64
        %s356 = scalar_lea.vmem [#allocation5], %s355
        %p357 = pneg %p73
        %p358 = pneg %p70
        %p359 = pneg %p94
        %p360 = pneg %p91
        %p361 = pneg %p115
        %p362 = pneg %p112
        %p363 = pneg %p136
        %p364 = pneg %p133
        %p365 = pneg %p162
        %p366 = pneg %p159
        %p367 = scmp.lt.s32.totalorder %s26, 1
        %s368 = scalar_select %p367, %s26, 1
        %s369 = smul.addr %s368, 2
        %s370 = smul.addr %s369, 4
        %s371 = scalar_lea.vmem %s5, %s370
        %p372 = pneg %p188
        %p373 = pneg %p185
        %p374 = scmp.lt.s32.totalorder %s26, 1
        %s375 = scalar_select %p374, %s26, 1
        %s376 = smul.addr %s375, 4
        %s377 = scalar_lea.vmem %s6, %s376
        %p378 = pneg %p214
        %p379 = pneg %p211
        %p380 = scmp.lt.s32.totalorder %s26, 1
        %s381 = scalar_select %p380, %s26, 1
        %s382 = smul.addr %s381, 4
        %s383 = scalar_lea.vmem %s7, %s382
        %p384 = scmp.lt.s32.totalorder %s26, 1
        %s385 = scalar_select %p384, %s26, 1
        %s386 = smul.addr %s385, 2
        %s387 = smul.addr %s386, 4
        %s388 = scalar_lea.vmem %s5, %s387
        %p389 = scmp.lt.s32.totalorder %s26, 1
        %s390 = scalar_select %p389, %s26, 1
        %s391 = smul.addr %s390, 4
        %s392 = scalar_lea.vmem %s6, %s391
        %p393 = scmp.lt.s32.totalorder %s26, 1
        %s394 = scalar_select %p393, %s26, 1
        %s395 = smul.addr %s394, 4
        %s396 = scalar_lea.vmem %s7, %s395
        %p397 = scmp.eq.s32.totalorder %s26, 0
        // Predicated region
        $region57: #{upscaling_forward.3} parent=39 // pred_check
          %p398 = pneg %p397
        $region58: #{upscaling_forward.3} parent=39 // pred_check_branch
          %400 = sbr.rel (%p398) target = $region60
        $region59: #{upscaling_forward.3} parent=39 // pred_region
          %vm401 = vcmask 146432
          %402 = vst.msk [vmem:[#allocation2] sm:$0xff] %vm401, 0.0
          %403 = vst.msk [vmem:[#allocation2 + $0x8] sm:$0xff] %vm401, 0.0
          %vm404 = vcmask 140288
          %405 = vst.msk [vmem:[#allocation2 + $0x10] sm:$0x3] %vm404, 0.0
          %406 = vst.msk [vmem:[#allocation2 + $0x18] sm:$0xff] %vm401, 0.0
          %407 = vst.msk [vmem:[#allocation2 + $0x20] sm:$0xff] %vm401, 0.0
          %408 = vst.msk [vmem:[#allocation2 + $0x28] sm:$0x3] %vm404, 0.0
          %409 = vst.msk [vmem:[#allocation2 + $0x30] sm:$0xff] %vm401, 0.0
          %410 = vst.msk [vmem:[#allocation2 + $0x38] sm:$0xff] %vm401, 0.0
          %411 = vst.msk [vmem:[#allocation2 + $0x40] sm:$0x3] %vm404, 0.0
          %412 = vst.msk [vmem:[#allocation2 + $0x48] sm:$0xff] %vm401, 0.0
          %413 = vst.msk [vmem:[#allocation2 + $0x50] sm:$0xff] %vm401, 0.0
          %414 = vst.msk [vmem:[#allocation2 + $0x58] sm:$0x3] %vm404, 0.0
          %415 = vst.msk [vmem:[#allocation2 + $0x60] sm:$0xff] %vm401, 0.0
          %416 = vst.msk [vmem:[#allocation2 + $0x68] sm:$0xff] %vm401, 0.0
          %417 = vst.msk [vmem:[#allocation2 + $0x70] sm:$0x3] %vm404, 0.0
          %418 = vst.msk [vmem:[#allocation2 + $0x78] sm:$0xff] %vm401, 0.0
          %419 = vst.msk [vmem:[#allocation2 + $0x80] sm:$0xff] %vm401, 0.0
          %420 = vst.msk [vmem:[#allocation2 + $0x88] sm:$0x3] %vm404, 0.0
          %421 = vst.msk [vmem:[#allocation2 + $0x90] sm:$0xff] %vm401, 0.0
          %422 = vst.msk [vmem:[#allocation2 + $0x98] sm:$0xff] %vm401, 0.0
          %423 = vst.msk [vmem:[#allocation2 + $0xa0] sm:$0x3] %vm404, 0.0
          %424 = vst.msk [vmem:[#allocation2 + $0xa8] sm:$0xff] %vm401, 0.0
          %425 = vst.msk [vmem:[#allocation2 + $0xb0] sm:$0xff] %vm401, 0.0
          %426 = vst.msk [vmem:[#allocation2 + $0xb8] sm:$0x3] %vm404, 0.0
        $region60: #{upscaling_forward.3} parent=39 // pred_fallthru
          _
        %v427 = vld [vmem:[%s329] sm:$0xff]
        %v428 = vld [vmem:[%s329 + $0x8] sm:$0xff]
        %v429 = vld [vmem:[%s329 + $0x10] sm:$0xff]
        %v430 = vld [vmem:[%s329 + $0x18] sm:$0xff]
        %v431 = vld [vmem:[%s329 + $0x20] sm:$0xff]
        %v432 = vld [vmem:[%s329 + $0x28] sm:$0xff]
        %v433 = vld [vmem:[%s329 + $0x30] sm:$0xff]
        %v434 = vld [vmem:[%s329 + $0x38] sm:$0xff]
        %443 = vrot.lane.b32.xlu0 %v427, 1
        %v444 = vpop.permute.xlu0 %443
        %445 = vrot.lane.b32.xlu0 %v428, 1
        %v446 = vpop.permute.xlu0 %445
        %447 = vrot.lane.b32.xlu0 %v429, 1
        %v448 = vpop.permute.xlu0 %447
        %449 = vrot.lane.b32.xlu0 %v430, 1
        %v450 = vpop.permute.xlu0 %449
        %451 = vrot.lane.b32.xlu0 %v431, 1
        %v452 = vpop.permute.xlu0 %451
        %453 = vrot.lane.b32.xlu0 %v432, 1
        %v454 = vpop.permute.xlu0 %453
        %455 = vrot.lane.b32.xlu0 %v433, 1
        %v456 = vpop.permute.xlu0 %455
        %457 = vrot.lane.b32.xlu0 %v434, 1
        %v458 = vpop.permute.xlu0 %457
        %vm467 = vcmask 138248
        %468 = vst.msk [vmem:[#allocation2 + $0x1] sm:$0xff] %vm467, %v444
        %469 = vst.msk [vmem:[#allocation2 + $0x9] sm:$0xff] %vm467, %v446
        %470 = vst.msk [vmem:[#allocation2 + $0x19] sm:$0xff] %vm467, %v448
        %471 = vst.msk [vmem:[#allocation2 + $0x21] sm:$0xff] %vm467, %v450
        %472 = vst.msk [vmem:[#allocation2 + $0x31] sm:$0xff] %vm467, %v452
        %473 = vst.msk [vmem:[#allocation2 + $0x39] sm:$0xff] %vm467, %v454
        %474 = vst.msk [vmem:[#allocation2 + $0x49] sm:$0xff] %vm467, %v456
        %475 = vst.msk [vmem:[#allocation2 + $0x51] sm:$0xff] %vm467, %v458
        %v476 = vld [vmem:[#allocation7] sm:$0xff]
        %v477 = vld [vmem:[#allocation7 + $0x8] sm:$0xff]
        %v478 = vld [vmem:[%s3] sm:$0xff]
        %v479 = vld [vmem:[%s319] sm:$0xff]
        %vm480 = vcmask 64512
        %v482 = vsel %vm480, %v476, 0
        %v485 = vsel %vm480, %v477, 0
        %487 = vmatpush.msra.mxu0 0.0
        %488 = vmatpush.msra.mxu0 0.0
        %489 = vmatpush.msra.mxu0 0.0
        %490 = vmatpush.msra.mxu0 0.0
        %491 = vmatpush.msra.mxu0 0.0
        %492 = vmatpush.msra.mxu0 0.0
        %493 = vmatpush.msra.mxu0 0.0
        %494 = vmatpush.msra.mxu0 0.0
        %495 = vmatpush.msra.mxu0 0.0
        %496 = vmatpush.msra.mxu0 0.0
        %497 = vmatpush.msra.mxu0 0.0
        %498 = vmatpush.msra.mxu0 0.0
        %499 = vmatpush.msra.mxu0 0.0
        %500 = vmatpush.msra.mxu0 0.0
        %501 = vmatpush.msra.mxu0 0.0
        %502 = vmatpush.msra.mxu0 %v479
        %503 = vmatmul.f32.gmra.mxu0 %v482
        %v504 = vpop.f32.mrf.mxu0
        %v505 = vadd.f32 0.0, %v504
        %506 = vmatmul.f32.gmra.mxu0 %v485
        %v507 = vpop.f32.mrf.mxu0
        %v508 = vadd.f32 0.0, %v507
        %509 = vdwg.mxu0
        %v511 = vsel %vm480, %v505, 0
        %v514 = vsel %vm480, %v508, 0
        %516 = vmatpush.msra.mxu0 0.0
        %517 = vmatpush.msra.mxu0 0.0
        %518 = vmatpush.msra.mxu0 0.0
        %519 = vmatpush.msra.mxu0 0.0
        %520 = vmatpush.msra.mxu0 0.0
        %521 = vmatpush.msra.mxu0 0.0
        %522 = vmatpush.msra.mxu0 0.0
        %523 = vmatpush.msra.mxu0 0.0
        %524 = vmatpush.msra.mxu0 0.0
        %525 = vmatpush.msra.mxu0 0.0
        %526 = vmatpush.msra.mxu0 0.0
        %527 = vmatpush.msra.mxu0 0.0
        %528 = vmatpush.msra.mxu0 0.0
        %529 = vmatpush.msra.mxu0 0.0
        %530 = vmatpush.msra.mxu0 0.0
        %531 = vmatpush.msra.mxu0 %v478
        %532 = vmatmul.f32.gmra.mxu0 %v511
        %v533 = vpop.f32.mrf.mxu0
        %v534 = vadd.f32 0.0, %v533
        %535 = vmatmul.f32.gmra.mxu0 %v514
        %v536 = vpop.f32.mrf.mxu0
        %v537 = vadd.f32 0.0, %v536
        %538 = vdwg.mxu0
        %541 = vrot.lane.b32.xlu0 %v534, 1
        %v542 = vpop.permute.xlu0 %541
        %543 = vrot.lane.b32.xlu0 %v537, 1
        %v544 = vpop.permute.xlu0 %543
        %s547 = scalar_lea.vmem [#allocation2], 96
        %548 = vst.msk [vmem:[%s547 + $0x1] sm:$0xff] %vm467, %v542
        %549 = vst.msk [vmem:[%s547 + $0x9] sm:$0xff] %vm467, %v544
        %s550 = scalar_lea.vmem %s319, 8 [#allocation3]
        %v551 = vld [vmem:[%s550] sm:$0xff]
        %552 = vmatpush.msra.mxu0 0.0
        %553 = vmatpush.msra.mxu0 0.0
        %554 = vmatpush.msra.mxu0 0.0
        %555 = vmatpush.msra.mxu0 0.0
        %556 = vmatpush.msra.mxu0 0.0
        %557 = vmatpush.msra.mxu0 0.0
        %558 = vmatpush.msra.mxu0 0.0
        %559 = vmatpush.msra.mxu0 0.0
        %560 = vmatpush.msra.mxu0 0.0
        %561 = vmatpush.msra.mxu0 0.0
        %562 = vmatpush.msra.mxu0 0.0
        %563 = vmatpush.msra.mxu0 0.0
        %564 = vmatpush.msra.mxu0 0.0
        %565 = vmatpush.msra.mxu0 0.0
        %566 = vmatpush.msra.mxu0 0.0
        %567 = vmatpush.msra.mxu0 %v551
        %568 = vmatmul.f32.gmra.mxu0 %v482
        %v569 = vpop.f32.mrf.mxu0
        %v570 = vadd.f32 0.0, %v569
        %571 = vmatmul.f32.gmra.mxu0 %v485
        %v572 = vpop.f32.mrf.mxu0
        %v573 = vadd.f32 0.0, %v572
        %574 = vdwg.mxu0
        %v576 = vsel %vm480, %v570, 0
        %v579 = vsel %vm480, %v573, 0
        %581 = vmatpush.msra.mxu0 0.0
        %582 = vmatpush.msra.mxu0 0.0
        %583 = vmatpush.msra.mxu0 0.0
        %584 = vmatpush.msra.mxu0 0.0
        %585 = vmatpush.msra.mxu0 0.0
        %586 = vmatpush.msra.mxu0 0.0
        %587 = vmatpush.msra.mxu0 0.0
        %588 = vmatpush.msra.mxu0 0.0
        %589 = vmatpush.msra.mxu0 0.0
        %590 = vmatpush.msra.mxu0 0.0
        %591 = vmatpush.msra.mxu0 0.0
        %592 = vmatpush.msra.mxu0 0.0
        %593 = vmatpush.msra.mxu0 0.0
        %594 = vmatpush.msra.mxu0 0.0
        %595 = vmatpush.msra.mxu0 0.0
        %596 = vmatpush.msra.mxu0 %v478
        %597 = vmatmul.f32.gmra.mxu0 %v576
        %v598 = vpop.f32.mrf.mxu0
        %v599 = vadd.f32 0.0, %v598
        %600 = vmatmul.f32.gmra.mxu0 %v579
        %v601 = vpop.f32.mrf.mxu0
        %v602 = vadd.f32 0.0, %v601
        %603 = vdwg.mxu0
        %606 = vrot.lane.b32.xlu0 %v599, 1
        %v607 = vpop.permute.xlu0 %606
        %608 = vrot.lane.b32.xlu0 %v602, 1
        %v609 = vpop.permute.xlu0 %608
        %s612 = scalar_lea.vmem [#allocation2], 120
        %613 = vst.msk [vmem:[%s612 + $0x1] sm:$0xff] %vm467, %v607
        %614 = vst.msk [vmem:[%s612 + $0x9] sm:$0xff] %vm467, %v609
        %s615 = scalar_lea.vmem %s319, 16 [#allocation3]
        %v616 = vld [vmem:[%s615] sm:$0xff]
        %617 = vmatpush.msra.mxu0 0.0
        %618 = vmatpush.msra.mxu0 0.0
        %619 = vmatpush.msra.mxu0 0.0
        %620 = vmatpush.msra.mxu0 0.0
        %621 = vmatpush.msra.mxu0 0.0
        %622 = vmatpush.msra.mxu0 0.0
        %623 = vmatpush.msra.mxu0 0.0
        %624 = vmatpush.msra.mxu0 0.0
        %625 = vmatpush.msra.mxu0 0.0
        %626 = vmatpush.msra.mxu0 0.0
        %627 = vmatpush.msra.mxu0 0.0
        %628 = vmatpush.msra.mxu0 0.0
        %629 = vmatpush.msra.mxu0 0.0
        %630 = vmatpush.msra.mxu0 0.0
        %631 = vmatpush.msra.mxu0 0.0
        %632 = vmatpush.msra.mxu0 %v616
        %633 = vmatmul.f32.gmra.mxu0 %v482
        %v634 = vpop.f32.mrf.mxu0
        %v635 = vadd.f32 0.0, %v634
        %636 = vmatmul.f32.gmra.mxu0 %v485
        %v637 = vpop.f32.mrf.mxu0
        %v638 = vadd.f32 0.0, %v637
        %639 = vdwg.mxu0
        %v641 = vsel %vm480, %v635, 0
        %v644 = vsel %vm480, %v638, 0
        %646 = vmatpush.msra.mxu0 0.0
        %647 = vmatpush.msra.mxu0 0.0
        %648 = vmatpush.msra.mxu0 0.0
        %649 = vmatpush.msra.mxu0 0.0
        %650 = vmatpush.msra.mxu0 0.0
        %651 = vmatpush.msra.mxu0 0.0
        %652 = vmatpush.msra.mxu0 0.0
        %653 = vmatpush.msra.mxu0 0.0
        %654 = vmatpush.msra.mxu0 0.0
        %655 = vmatpush.msra.mxu0 0.0
        %656 = vmatpush.msra.mxu0 0.0
        %657 = vmatpush.msra.mxu0 0.0
        %658 = vmatpush.msra.mxu0 0.0
        %659 = vmatpush.msra.mxu0 0.0
        %660 = vmatpush.msra.mxu0 0.0
        %661 = vmatpush.msra.mxu0 %v478
        %662 = vmatmul.f32.gmra.mxu0 %v641
        %v663 = vpop.f32.mrf.mxu0
        %v664 = vadd.f32 0.0, %v663
        %665 = vmatmul.f32.gmra.mxu0 %v644
        %v666 = vpop.f32.mrf.mxu0
        %v667 = vadd.f32 0.0, %v666
        %668 = vdwg.mxu0
        %671 = vrot.lane.b32.xlu0 %v664, 1
        %v672 = vpop.permute.xlu0 %671
        %673 = vrot.lane.b32.xlu0 %v667, 1
        %v674 = vpop.permute.xlu0 %673
        %s677 = scalar_lea.vmem [#allocation2], 144
        %678 = vst.msk [vmem:[%s677 + $0x1] sm:$0xff] %vm467, %v672
        %679 = vst.msk [vmem:[%s677 + $0x9] sm:$0xff] %vm467, %v674
        %s680 = scalar_lea.vmem %s319, 24 [#allocation3]
        %v681 = vld [vmem:[%s680] sm:$0xff]
        %682 = vmatpush.msra.mxu0 0.0
        %683 = vmatpush.msra.mxu0 0.0
        %684 = vmatpush.msra.mxu0 0.0
        %685 = vmatpush.msra.mxu0 0.0
        %686 = vmatpush.msra.mxu0 0.0
        %687 = vmatpush.msra.mxu0 0.0
        %688 = vmatpush.msra.mxu0 0.0
        %689 = vmatpush.msra.mxu0 0.0
        %690 = vmatpush.msra.mxu0 0.0
        %691 = vmatpush.msra.mxu0 0.0
        %692 = vmatpush.msra.mxu0 0.0
        %693 = vmatpush.msra.mxu0 0.0
        %694 = vmatpush.msra.mxu0 0.0
        %695 = vmatpush.msra.mxu0 0.0
        %696 = vmatpush.msra.mxu0 0.0
        %697 = vmatpush.msra.mxu0 %v681
        %698 = vmatmul.f32.gmra.mxu0 %v482
        %v699 = vpop.f32.mrf.mxu0
        %v700 = vadd.f32 0.0, %v699
        %701 = vmatmul.f32.gmra.mxu0 %v485
        %v702 = vpop.f32.mrf.mxu0
        %v703 = vadd.f32 0.0, %v702
        %704 = vdwg.mxu0
        %v706 = vsel %vm480, %v700, 0
        %v709 = vsel %vm480, %v703, 0
        %711 = vmatpush.msra.mxu0 0.0
        %712 = vmatpush.msra.mxu0 0.0
        %713 = vmatpush.msra.mxu0 0.0
        %714 = vmatpush.msra.mxu0 0.0
        %715 = vmatpush.msra.mxu0 0.0
        %716 = vmatpush.msra.mxu0 0.0
        %717 = vmatpush.msra.mxu0 0.0
        %718 = vmatpush.msra.mxu0 0.0
        %719 = vmatpush.msra.mxu0 0.0
        %720 = vmatpush.msra.mxu0 0.0
        %721 = vmatpush.msra.mxu0 0.0
        %722 = vmatpush.msra.mxu0 0.0
        %723 = vmatpush.msra.mxu0 0.0
        %724 = vmatpush.msra.mxu0 0.0
        %725 = vmatpush.msra.mxu0 0.0
        %726 = vmatpush.msra.mxu0 %v478
        %727 = vmatmul.f32.gmra.mxu0 %v706
        %v728 = vpop.f32.mrf.mxu0
        %v729 = vadd.f32 0.0, %v728
        %730 = vmatmul.f32.gmra.mxu0 %v709
        %v731 = vpop.f32.mrf.mxu0
        %v732 = vadd.f32 0.0, %v731
        %733 = vdwg.mxu0
        %736 = vrot.lane.b32.xlu0 %v729, 1
        %v737 = vpop.permute.xlu0 %736
        %738 = vrot.lane.b32.xlu0 %v732, 1
        %v739 = vpop.permute.xlu0 %738
        %s742 = scalar_lea.vmem [#allocation2], 168
        %743 = vst.msk [vmem:[%s742 + $0x1] sm:$0xff] %vm467, %v737
        %744 = vst.msk [vmem:[%s742 + $0x9] sm:$0xff] %vm467, %v739
        %v745 = vld [vmem:[#allocation2] sm:$0xff]
        %v746 = vld [vmem:[#allocation2 + $0x8] sm:$0xff]
        %v747 = vld [vmem:[#allocation2 + $0x18] sm:$0xff]
        %v748 = vld [vmem:[#allocation2 + $0x20] sm:$0xff]
        %v749 = vld [vmem:[#allocation2 + $0x30] sm:$0xff]
        %v750 = vld [vmem:[#allocation2 + $0x38] sm:$0xff]
        %v751 = vld [vmem:[#allocation2 + $0x48] sm:$0xff]
        %v752 = vld [vmem:[#allocation2 + $0x50] sm:$0xff]
        %v753 = vld [vmem:[#allocation2 + $0x60] sm:$0xff]
        %v754 = vld [vmem:[#allocation2 + $0x68] sm:$0xff]
        %v755 = vld [vmem:[#allocation2 + $0x78] sm:$0xff]
        %v756 = vld [vmem:[#allocation2 + $0x80] sm:$0xff]
        %v757 = vld [vmem:[#allocation2 + $0x90] sm:$0xff]
        %v758 = vld [vmem:[#allocation2 + $0x98] sm:$0xff]
        %v759 = vld [vmem:[#allocation2 + $0xa8] sm:$0xff]
        %v760 = vld [vmem:[#allocation2 + $0xb0] sm:$0xff]
        %v761 = vrot.slane %v749, 4
        %vm762 = vcmask 1047556
        %v763 = vsel %vm762, %v761, %v745
        %v764 = vrot.slane %v745, 4
        %v765 = vsel %vm762, %v749, %v764
        %v767 = vunpack.c.l.s4 1983009808
        %v768 = vunpack.c.0.s8 %v767
        %v769 = vperm.slane %v763, %v768
        %v771 = vunpack.c.l.s4 1983009808
        %v772 = vunpack.c.0.s8 %v771
        %v773 = vperm.slane %v765, %v772
        %v774 = vrot.slane %v751, 4
        %v775 = vsel %vm762, %v774, %v747
        %v776 = vrot.slane %v747, 4
        %v777 = vsel %vm762, %v751, %v776
        %v779 = vunpack.c.l.s4 1983009808
        %v780 = vunpack.c.0.s8 %v779
        %v781 = vperm.slane %v775, %v780
        %v783 = vunpack.c.l.s4 1983009808
        %v784 = vunpack.c.0.s8 %v783
        %v785 = vperm.slane %v777, %v784
        %v786 = vrot.slane %v757, 4
        %v787 = vsel %vm762, %v786, %v753
        %v788 = vrot.slane %v753, 4
        %v789 = vsel %vm762, %v757, %v788
        %v791 = vunpack.c.l.s4 1983009808
        %v792 = vunpack.c.0.s8 %v791
        %v793 = vperm.slane %v787, %v792
        %v795 = vunpack.c.l.s4 1983009808
        %v796 = vunpack.c.0.s8 %v795
        %v797 = vperm.slane %v789, %v796
        %v798 = vrot.slane %v759, 4
        %v799 = vsel %vm762, %v798, %v755
        %v800 = vrot.slane %v755, 4
        %v801 = vsel %vm762, %v759, %v800
        %v803 = vunpack.c.l.s4 1983009808
        %v804 = vunpack.c.0.s8 %v803
        %v805 = vperm.slane %v799, %v804
        %v807 = vunpack.c.l.s4 1983009808
        %v808 = vunpack.c.0.s8 %v807
        %v809 = vperm.slane %v801, %v808
        %v810 = vrot.slane %v781, 4
        %v811 = vsel %vm762, %v810, %v769
        %v812 = vrot.slane %v769, 4
        %v813 = vsel %vm762, %v781, %v812
        %v815 = vunpack.c.l.s4 1934713408
        %v816 = vunpack.c.0.s8 %v815
        %v817 = vperm.slane %v811, %v816
        %v819 = vunpack.c.l.s4 1934713408
        %v820 = vunpack.c.0.s8 %v819
        %v821 = vperm.slane %v813, %v820
        %v822 = vrot.slane %v785, 4
        %v823 = vsel %vm762, %v822, %v773
        %v824 = vrot.slane %v773, 4
        %v825 = vsel %vm762, %v785, %v824
        %v827 = vunpack.c.l.s4 1934713408
        %v828 = vunpack.c.0.s8 %v827
        %v829 = vperm.slane %v823, %v828
        %v831 = vunpack.c.l.s4 1934713408
        %v832 = vunpack.c.0.s8 %v831
        %v833 = vperm.slane %v825, %v832
        %v834 = vrot.slane %v805, 4
        %v835 = vsel %vm762, %v834, %v793
        %v836 = vrot.slane %v793, 4
        %v837 = vsel %vm762, %v805, %v836
        %v839 = vunpack.c.l.s4 1934713408
        %v840 = vunpack.c.0.s8 %v839
        %v841 = vperm.slane %v835, %v840
        %v843 = vunpack.c.l.s4 1934713408
        %v844 = vunpack.c.0.s8 %v843
        %v845 = vperm.slane %v837, %v844
        %v846 = vrot.slane %v809, 4
        %v847 = vsel %vm762, %v846, %v797
        %v848 = vrot.slane %v797, 4
        %v849 = vsel %vm762, %v809, %v848
        %v851 = vunpack.c.l.s4 1934713408
        %v852 = vunpack.c.0.s8 %v851
        %v853 = vperm.slane %v847, %v852
        %v855 = vunpack.c.l.s4 1934713408
        %v856 = vunpack.c.0.s8 %v855
        %v857 = vperm.slane %v849, %v856
        %v858 = vrot.slane %v841, 4
        %v859 = vsel %vm762, %v858, %v817
        %v860 = vrot.slane %v817, 4
        %v861 = vsel %vm762, %v841, %v860
        %v862 = vrot.slane %v845, 4
        %v863 = vsel %vm762, %v862, %v821
        %v864 = vrot.slane %v821, 4
        %v865 = vsel %vm762, %v845, %v864
        %v866 = vrot.slane %v853, 4
        %v867 = vsel %vm762, %v866, %v829
        %v868 = vrot.slane %v829, 4
        %v869 = vsel %vm762, %v853, %v868
        %v870 = vrot.slane %v857, 4
        %v871 = vsel %vm762, %v870, %v833
        %v872 = vrot.slane %v833, 4
        %v873 = vsel %vm762, %v857, %v872
        %v874 = vrot.slane %v750, 4
        %v875 = vsel %vm762, %v874, %v746
        %v876 = vrot.slane %v746, 4
        %v877 = vsel %vm762, %v750, %v876
        %v879 = vunpack.c.l.s4 1983009808
        %v880 = vunpack.c.0.s8 %v879
        %v881 = vperm.slane %v875, %v880
        %v883 = vunpack.c.l.s4 1983009808
        %v884 = vunpack.c.0.s8 %v883
        %v885 = vperm.slane %v877, %v884
        %v886 = vrot.slane %v752, 4
        %v887 = vsel %vm762, %v886, %v748
        %v888 = vrot.slane %v748, 4
        %v889 = vsel %vm762, %v752, %v888
        %v891 = vunpack.c.l.s4 1983009808
        %v892 = vunpack.c.0.s8 %v891
        %v893 = vperm.slane %v887, %v892
        %v895 = vunpack.c.l.s4 1983009808
        %v896 = vunpack.c.0.s8 %v895
        %v897 = vperm.slane %v889, %v896
        %v898 = vrot.slane %v758, 4
        %v899 = vsel %vm762, %v898, %v754
        %v900 = vrot.slane %v754, 4
        %v901 = vsel %vm762, %v758, %v900
        %v903 = vunpack.c.l.s4 1983009808
        %v904 = vunpack.c.0.s8 %v903
        %v905 = vperm.slane %v899, %v904
        %v907 = vunpack.c.l.s4 1983009808
        %v908 = vunpack.c.0.s8 %v907
        %v909 = vperm.slane %v901, %v908
        %v910 = vrot.slane %v760, 4
        %v911 = vsel %vm762, %v910, %v756
        %v912 = vrot.slane %v756, 4
        %v913 = vsel %vm762, %v760, %v912
        %v915 = vunpack.c.l.s4 1983009808
        %v916 = vunpack.c.0.s8 %v915
        %v917 = vperm.slane %v911, %v916
        %v919 = vunpack.c.l.s4 1983009808
        %v920 = vunpack.c.0.s8 %v919
        %v921 = vperm.slane %v913, %v920
        %v922 = vrot.slane %v893, 4
        %v923 = vsel %vm762, %v922, %v881
        %v924 = vrot.slane %v881, 4
        %v925 = vsel %vm762, %v893, %v924
        %v927 = vunpack.c.l.s4 1934713408
        %v928 = vunpack.c.0.s8 %v927
        %v929 = vperm.slane %v923, %v928
        %v931 = vunpack.c.l.s4 1934713408
        %v932 = vunpack.c.0.s8 %v931
        %v933 = vperm.slane %v925, %v932
        %v934 = vrot.slane %v897, 4
        %v935 = vsel %vm762, %v934, %v885
        %v936 = vrot.slane %v885, 4
        %v937 = vsel %vm762, %v897, %v936
        %v939 = vunpack.c.l.s4 1934713408
        %v940 = vunpack.c.0.s8 %v939
        %v941 = vperm.slane %v935, %v940
        %v943 = vunpack.c.l.s4 1934713408
        %v944 = vunpack.c.0.s8 %v943
        %v945 = vperm.slane %v937, %v944
        %v946 = vrot.slane %v917, 4
        %v947 = vsel %vm762, %v946, %v905
        %v948 = vrot.slane %v905, 4
        %v949 = vsel %vm762, %v917, %v948
        %v951 = vunpack.c.l.s4 1934713408
        %v952 = vunpack.c.0.s8 %v951
        %v953 = vperm.slane %v947, %v952
        %v955 = vunpack.c.l.s4 1934713408
        %v956 = vunpack.c.0.s8 %v955
        %v957 = vperm.slane %v949, %v956
        %v958 = vrot.slane %v921, 4
        %v959 = vsel %vm762, %v958, %v909
        %v960 = vrot.slane %v909, 4
        %v961 = vsel %vm762, %v921, %v960
        %v963 = vunpack.c.l.s4 1934713408
        %v964 = vunpack.c.0.s8 %v963
        %v965 = vperm.slane %v959, %v964
        %v967 = vunpack.c.l.s4 1934713408
        %v968 = vunpack.c.0.s8 %v967
        %v969 = vperm.slane %v961, %v968
        %v970 = vrot.slane %v953, 4
        %v971 = vsel %vm762, %v970, %v929
        %v972 = vrot.slane %v929, 4
        %v973 = vsel %vm762, %v953, %v972
        %v974 = vrot.slane %v957, 4
        %v975 = vsel %vm762, %v974, %v933
        %v976 = vrot.slane %v933, 4
        %v977 = vsel %vm762, %v957, %v976
        %v978 = vrot.slane %v965, 4
        %v979 = vsel %vm762, %v978, %v941
        %v980 = vrot.slane %v941, 4
        %v981 = vsel %vm762, %v965, %v980
        %v982 = vrot.slane %v969, 4
        %v983 = vsel %vm762, %v982, %v945
        %v984 = vrot.slane %v945, 4
        %v985 = vsel %vm762, %v969, %v984
        %987 = vrot.lane.b32.xlu0 %v861, 16
        %v988 = vpop.permute.xlu0 %987
        %991 = vrot.lane.b32.xlu0 %v863, 32
        %v992 = vpop.permute.xlu0 %991
        %995 = vrot.lane.b32.xlu0 %v865, 48
        %v996 = vpop.permute.xlu0 %995
        %999 = vrot.lane.b32.xlu0 %v867, 64
        %v1000 = vpop.permute.xlu0 %999
        %1003 = vrot.lane.b32.xlu0 %v869, 80
        %v1004 = vpop.permute.xlu0 %1003
        %1007 = vrot.lane.b32.xlu0 %v871, 96
        %v1008 = vpop.permute.xlu0 %1007
        %1011 = vrot.lane.b32.xlu0 %v873, 112
        %v1012 = vpop.permute.xlu0 %1011
        %1015 = vrot.lane.b32.xlu0 %v973, 16
        %v1016 = vpop.permute.xlu0 %1015
        %1019 = vrot.lane.b32.xlu0 %v975, 32
        %v1020 = vpop.permute.xlu0 %1019
        %1023 = vrot.lane.b32.xlu0 %v977, 48
        %v1024 = vpop.permute.xlu0 %1023
        %1027 = vrot.lane.b32.xlu0 %v979, 64
        %v1028 = vpop.permute.xlu0 %1027
        %1031 = vrot.lane.b32.xlu0 %v981, 80
        %v1032 = vpop.permute.xlu0 %1031
        %1035 = vrot.lane.b32.xlu0 %v983, 96
        %v1036 = vpop.permute.xlu0 %1035
        %1039 = vrot.lane.b32.xlu0 %v985, 112
        %v1040 = vpop.permute.xlu0 %1039
        %vm1042 = vcmask 130048
        %v1043 = vsel %vm1042, %v859, %v988
        %vm1044 = vcmask 261120
        %v1045 = vsel %vm1044, %v1043, %v992
        %vm1046 = vcmask 392192
        %v1047 = vsel %vm1046, %v1045, %v996
        %vm1048 = vcmask 523264
        %v1049 = vsel %vm1048, %v1047, %v1000
        %vm1050 = vcmask 654336
        %v1051 = vsel %vm1050, %v1049, %v1004
        %vm1052 = vcmask 785408
        %v1053 = vsel %vm1052, %v1051, %v1008
        %vm1054 = vcmask 916480
        %v1055 = vsel %vm1054, %v1053, %v1012
        %v1056 = vsel %vm1042, %v971, %v1016
        %v1057 = vsel %vm1044, %v1056, %v1020
        %v1058 = vsel %vm1046, %v1057, %v1024
        %v1059 = vsel %vm1048, %v1058, %v1028
        %v1060 = vsel %vm1050, %v1059, %v1032
        %v1061 = vsel %vm1052, %v1060, %v1036
        %v1062 = vsel %vm1054, %v1061, %v1040
        %v1063 = vld [vmem:[#allocation8] sm:$0xf]
        %1080 = vrot.lane.b32.xlu0 %v745, 127
        %v1081 = vpop.permute.xlu0 %1080
        %1082 = vrot.lane.b32.xlu0 %v746, 127
        %v1083 = vpop.permute.xlu0 %1082
        %1084 = vrot.lane.b32.xlu0 %v747, 127
        %v1085 = vpop.permute.xlu0 %1084
        %1086 = vrot.lane.b32.xlu0 %v748, 127
        %v1087 = vpop.permute.xlu0 %1086
        %1088 = vrot.lane.b32.xlu0 %v749, 127
        %v1089 = vpop.permute.xlu0 %1088
        %1090 = vrot.lane.b32.xlu0 %v750, 127
        %v1091 = vpop.permute.xlu0 %1090
        %1092 = vrot.lane.b32.xlu0 %v751, 127
        %v1093 = vpop.permute.xlu0 %1092
        %1094 = vrot.lane.b32.xlu0 %v752, 127
        %v1095 = vpop.permute.xlu0 %1094
        %1096 = vrot.lane.b32.xlu0 %v753, 127
        %v1097 = vpop.permute.xlu0 %1096
        %1098 = vrot.lane.b32.xlu0 %v754, 127
        %v1099 = vpop.permute.xlu0 %1098
        %1100 = vrot.lane.b32.xlu0 %v755, 127
        %v1101 = vpop.permute.xlu0 %1100
        %1102 = vrot.lane.b32.xlu0 %v756, 127
        %v1103 = vpop.permute.xlu0 %1102
        %1104 = vrot.lane.b32.xlu0 %v757, 127
        %v1105 = vpop.permute.xlu0 %1104
        %1106 = vrot.lane.b32.xlu0 %v758, 127
        %v1107 = vpop.permute.xlu0 %1106
        %1108 = vrot.lane.b32.xlu0 %v759, 127
        %v1109 = vpop.permute.xlu0 %1108
        %1110 = vrot.lane.b32.xlu0 %v760, 127
        %v1111 = vpop.permute.xlu0 %1110
        %v1128 = vrot.slane %v1089, 4
        %v1129 = vsel %vm762, %v1128, %v1081
        %v1130 = vrot.slane %v1081, 4
        %v1131 = vsel %vm762, %v1089, %v1130
        %v1133 = vunpack.c.l.s4 1983009808
        %v1134 = vunpack.c.0.s8 %v1133
        %v1135 = vperm.slane %v1129, %v1134
        %v1137 = vunpack.c.l.s4 1983009808
        %v1138 = vunpack.c.0.s8 %v1137
        %v1139 = vperm.slane %v1131, %v1138
        %v1140 = vrot.slane %v1093, 4
        %v1141 = vsel %vm762, %v1140, %v1085
        %v1142 = vrot.slane %v1085, 4
        %v1143 = vsel %vm762, %v1093, %v1142
        %v1145 = vunpack.c.l.s4 1983009808
        %v1146 = vunpack.c.0.s8 %v1145
        %v1147 = vperm.slane %v1141, %v1146
        %v1149 = vunpack.c.l.s4 1983009808
        %v1150 = vunpack.c.0.s8 %v1149
        %v1151 = vperm.slane %v1143, %v1150
        %v1152 = vrot.slane %v1105, 4
        %v1153 = vsel %vm762, %v1152, %v1097
        %v1154 = vrot.slane %v1097, 4
        %v1155 = vsel %vm762, %v1105, %v1154
        %v1157 = vunpack.c.l.s4 1983009808
        %v1158 = vunpack.c.0.s8 %v1157
        %v1159 = vperm.slane %v1153, %v1158
        %v1161 = vunpack.c.l.s4 1983009808
        %v1162 = vunpack.c.0.s8 %v1161
        %v1163 = vperm.slane %v1155, %v1162
        %v1164 = vrot.slane %v1109, 4
        %v1165 = vsel %vm762, %v1164, %v1101
        %v1166 = vrot.slane %v1101, 4
        %v1167 = vsel %vm762, %v1109, %v1166
        %v1169 = vunpack.c.l.s4 1983009808
        %v1170 = vunpack.c.0.s8 %v1169
        %v1171 = vperm.slane %v1165, %v1170
        %v1173 = vunpack.c.l.s4 1983009808
        %v1174 = vunpack.c.0.s8 %v1173
        %v1175 = vperm.slane %v1167, %v1174
        %v1176 = vrot.slane %v1147, 4
        %v1177 = vsel %vm762, %v1176, %v1135
        %v1178 = vrot.slane %v1135, 4
        %v1179 = vsel %vm762, %v1147, %v1178
        %v1181 = vunpack.c.l.s4 1934713408
        %v1182 = vunpack.c.0.s8 %v1181
        %v1183 = vperm.slane %v1177, %v1182
        %v1185 = vunpack.c.l.s4 1934713408
        %v1186 = vunpack.c.0.s8 %v1185
        %v1187 = vperm.slane %v1179, %v1186
        %v1188 = vrot.slane %v1151, 4
        %v1189 = vsel %vm762, %v1188, %v1139
        %v1190 = vrot.slane %v1139, 4
        %v1191 = vsel %vm762, %v1151, %v1190
        %v1193 = vunpack.c.l.s4 1934713408
        %v1194 = vunpack.c.0.s8 %v1193
        %v1195 = vperm.slane %v1189, %v1194
        %v1197 = vunpack.c.l.s4 1934713408
        %v1198 = vunpack.c.0.s8 %v1197
        %v1199 = vperm.slane %v1191, %v1198
        %v1200 = vrot.slane %v1171, 4
        %v1201 = vsel %vm762, %v1200, %v1159
        %v1202 = vrot.slane %v1159, 4
        %v1203 = vsel %vm762, %v1171, %v1202
        %v1205 = vunpack.c.l.s4 1934713408
        %v1206 = vunpack.c.0.s8 %v1205
        %v1207 = vperm.slane %v1201, %v1206
        %v1209 = vunpack.c.l.s4 1934713408
        %v1210 = vunpack.c.0.s8 %v1209
        %v1211 = vperm.slane %v1203, %v1210
        %v1212 = vrot.slane %v1175, 4
        %v1213 = vsel %vm762, %v1212, %v1163
        %v1214 = vrot.slane %v1163, 4
        %v1215 = vsel %vm762, %v1175, %v1214
        %v1217 = vunpack.c.l.s4 1934713408
        %v1218 = vunpack.c.0.s8 %v1217
        %v1219 = vperm.slane %v1213, %v1218
        %v1221 = vunpack.c.l.s4 1934713408
        %v1222 = vunpack.c.0.s8 %v1221
        %v1223 = vperm.slane %v1215, %v1222
        %v1224 = vrot.slane %v1207, 4
        %v1225 = vsel %vm762, %v1224, %v1183
        %v1226 = vrot.slane %v1183, 4
        %v1227 = vsel %vm762, %v1207, %v1226
        %v1228 = vrot.slane %v1211, 4
        %v1229 = vsel %vm762, %v1228, %v1187
        %v1230 = vrot.slane %v1187, 4
        %v1231 = vsel %vm762, %v1211, %v1230
        %v1232 = vrot.slane %v1219, 4
        %v1233 = vsel %vm762, %v1232, %v1195
        %v1234 = vrot.slane %v1195, 4
        %v1235 = vsel %vm762, %v1219, %v1234
        %v1236 = vrot.slane %v1223, 4
        %v1237 = vsel %vm762, %v1236, %v1199
        %v1238 = vrot.slane %v1199, 4
        %v1239 = vsel %vm762, %v1223, %v1238
        %v1240 = vrot.slane %v1091, 4
        %v1241 = vsel %vm762, %v1240, %v1083
        %v1242 = vrot.slane %v1083, 4
        %v1243 = vsel %vm762, %v1091, %v1242
        %v1245 = vunpack.c.l.s4 1983009808
        %v1246 = vunpack.c.0.s8 %v1245
        %v1247 = vperm.slane %v1241, %v1246
        %v1249 = vunpack.c.l.s4 1983009808
        %v1250 = vunpack.c.0.s8 %v1249
        %v1251 = vperm.slane %v1243, %v1250
        %v1252 = vrot.slane %v1095, 4
        %v1253 = vsel %vm762, %v1252, %v1087
        %v1254 = vrot.slane %v1087, 4
        %v1255 = vsel %vm762, %v1095, %v1254
        %v1257 = vunpack.c.l.s4 1983009808
        %v1258 = vunpack.c.0.s8 %v1257
        %v1259 = vperm.slane %v1253, %v1258
        %v1261 = vunpack.c.l.s4 1983009808
        %v1262 = vunpack.c.0.s8 %v1261
        %v1263 = vperm.slane %v1255, %v1262
        %v1264 = vrot.slane %v1107, 4
        %v1265 = vsel %vm762, %v1264, %v1099
        %v1266 = vrot.slane %v1099, 4
        %v1267 = vsel %vm762, %v1107, %v1266
        %v1269 = vunpack.c.l.s4 1983009808
        %v1270 = vunpack.c.0.s8 %v1269
        %v1271 = vperm.slane %v1265, %v1270
        %v1273 = vunpack.c.l.s4 1983009808
        %v1274 = vunpack.c.0.s8 %v1273
        %v1275 = vperm.slane %v1267, %v1274
        %v1276 = vrot.slane %v1111, 4
        %v1277 = vsel %vm762, %v1276, %v1103
        %v1278 = vrot.slane %v1103, 4
        %v1279 = vsel %vm762, %v1111, %v1278
        %v1281 = vunpack.c.l.s4 1983009808
        %v1282 = vunpack.c.0.s8 %v1281
        %v1283 = vperm.slane %v1277, %v1282
        %v1285 = vunpack.c.l.s4 1983009808
        %v1286 = vunpack.c.0.s8 %v1285
        %v1287 = vperm.slane %v1279, %v1286
        %v1288 = vrot.slane %v1259, 4
        %v1289 = vsel %vm762, %v1288, %v1247
        %v1290 = vrot.slane %v1247, 4
        %v1291 = vsel %vm762, %v1259, %v1290
        %v1293 = vunpack.c.l.s4 1934713408
        %v1294 = vunpack.c.0.s8 %v1293
        %v1295 = vperm.slane %v1289, %v1294
        %v1297 = vunpack.c.l.s4 1934713408
        %v1298 = vunpack.c.0.s8 %v1297
        %v1299 = vperm.slane %v1291, %v1298
        %v1300 = vrot.slane %v1263, 4
        %v1301 = vsel %vm762, %v1300, %v1251
        %v1302 = vrot.slane %v1251, 4
        %v1303 = vsel %vm762, %v1263, %v1302
        %v1305 = vunpack.c.l.s4 1934713408
        %v1306 = vunpack.c.0.s8 %v1305
        %v1307 = vperm.slane %v1301, %v1306
        %v1309 = vunpack.c.l.s4 1934713408
        %v1310 = vunpack.c.0.s8 %v1309
        %v1311 = vperm.slane %v1303, %v1310
        %v1312 = vrot.slane %v1283, 4
        %v1313 = vsel %vm762, %v1312, %v1271
        %v1314 = vrot.slane %v1271, 4
        %v1315 = vsel %vm762, %v1283, %v1314
        %v1317 = vunpack.c.l.s4 1934713408
        %v1318 = vunpack.c.0.s8 %v1317
        %v1319 = vperm.slane %v1313, %v1318
        %v1321 = vunpack.c.l.s4 1934713408
        %v1322 = vunpack.c.0.s8 %v1321
        %v1323 = vperm.slane %v1315, %v1322
        %v1324 = vrot.slane %v1287, 4
        %v1325 = vsel %vm762, %v1324, %v1275
        %v1326 = vrot.slane %v1275, 4
        %v1327 = vsel %vm762, %v1287, %v1326
        %v1329 = vunpack.c.l.s4 1934713408
        %v1330 = vunpack.c.0.s8 %v1329
        %v1331 = vperm.slane %v1325, %v1330
        %v1333 = vunpack.c.l.s4 1934713408
        %v1334 = vunpack.c.0.s8 %v1333
        %v1335 = vperm.slane %v1327, %v1334
        %v1336 = vrot.slane %v1319, 4
        %v1337 = vsel %vm762, %v1336, %v1295
        %v1338 = vrot.slane %v1295, 4
        %v1339 = vsel %vm762, %v1319, %v1338
        %v1340 = vrot.slane %v1323, 4
        %v1341 = vsel %vm762, %v1340, %v1299
        %v1342 = vrot.slane %v1299, 4
        %v1343 = vsel %vm762, %v1323, %v1342
        %v1344 = vrot.slane %v1331, 4
        %v1345 = vsel %vm762, %v1344, %v1307
        %v1346 = vrot.slane %v1307, 4
        %v1347 = vsel %vm762, %v1331, %v1346
        %v1348 = vrot.slane %v1335, 4
        %v1349 = vsel %vm762, %v1348, %v1311
        %v1350 = vrot.slane %v1311, 4
        %v1351 = vsel %vm762, %v1335, %v1350
        %1353 = vrot.lane.b32.xlu0 %v1227, 16
        %v1354 = vpop.permute.xlu0 %1353
        %1357 = vrot.lane.b32.xlu0 %v1229, 32
        %v1358 = vpop.permute.xlu0 %1357
        %1361 = vrot.lane.b32.xlu0 %v1231, 48
        %v1362 = vpop.permute.xlu0 %1361
        %1365 = vrot.lane.b32.xlu0 %v1233, 64
        %v1366 = vpop.permute.xlu0 %1365
        %1369 = vrot.lane.b32.xlu0 %v1235, 80
        %v1370 = vpop.permute.xlu0 %1369
        %1373 = vrot.lane.b32.xlu0 %v1237, 96
        %v1374 = vpop.permute.xlu0 %1373
        %1377 = vrot.lane.b32.xlu0 %v1239, 112
        %v1378 = vpop.permute.xlu0 %1377
        %1381 = vrot.lane.b32.xlu0 %v1339, 16
        %v1382 = vpop.permute.xlu0 %1381
        %1385 = vrot.lane.b32.xlu0 %v1341, 32
        %v1386 = vpop.permute.xlu0 %1385
        %1389 = vrot.lane.b32.xlu0 %v1343, 48
        %v1390 = vpop.permute.xlu0 %1389
        %1393 = vrot.lane.b32.xlu0 %v1345, 64
        %v1394 = vpop.permute.xlu0 %1393
        %1397 = vrot.lane.b32.xlu0 %v1347, 80
        %v1398 = vpop.permute.xlu0 %1397
        %1401 = vrot.lane.b32.xlu0 %v1349, 96
        %v1402 = vpop.permute.xlu0 %1401
        %1405 = vrot.lane.b32.xlu0 %v1351, 112
        %v1406 = vpop.permute.xlu0 %1405
        %v1408 = vsel %vm1042, %v1225, %v1354
        %v1409 = vsel %vm1044, %v1408, %v1358
        %v1410 = vsel %vm1046, %v1409, %v1362
        %v1411 = vsel %vm1048, %v1410, %v1366
        %v1412 = vsel %vm1050, %v1411, %v1370
        %v1413 = vsel %vm1052, %v1412, %v1374
        %v1414 = vsel %vm1054, %v1413, %v1378
        %v1415 = vsel %vm1042, %v1337, %v1382
        %v1416 = vsel %vm1044, %v1415, %v1386
        %v1417 = vsel %vm1046, %v1416, %v1390
        %v1418 = vsel %vm1048, %v1417, %v1394
        %v1419 = vsel %vm1050, %v1418, %v1398
        %v1420 = vsel %vm1052, %v1419, %v1402
        %v1421 = vsel %vm1054, %v1420, %v1406
        %s1422 = scalar_lea.vmem [#allocation8], 4
        %v1423 = vld [vmem:[%s1422] sm:$0xf]
        %v1425 = vsel %vm480, %v1423, 0
        %1427 = vmatpush.msra.mxu0 0.0
        %1428 = vmatpush.msra.mxu0 0.0
        %1429 = vmatpush.msra.mxu0 0.0
        %1430 = vmatpush.msra.mxu0 0.0
        %1431 = vmatpush.msra.mxu0 0.0
        %1432 = vmatpush.msra.mxu0 0.0
        %1433 = vmatpush.msra.mxu0 0.0
        %1434 = vmatpush.msra.mxu0 0.0
        %1435 = vmatpush.msra.mxu0 0.0
        %1436 = vmatpush.msra.mxu0 0.0
        %1437 = vmatpush.msra.mxu0 0.0
        %1438 = vmatpush.msra.mxu0 0.0
        %1439 = vmatpush.msra.mxu0 0.0
        %1440 = vmatpush.msra.mxu0 0.0
        %1441 = vmatpush.msra.mxu0 0.0
        %1442 = vmatpush.msra.mxu0 %v1414
        %1443 = vmatmul.f32.gmra.mxu0 %v1425
        %v1444 = vpop.f32.mrf.mxu0
        %v1445 = vadd.f32 0.0, %v1444
        %1446 = vdwg.mxu0
        %1447 = vmatpush.msra.mxu0 0.0
        %1448 = vmatpush.msra.mxu0 0.0
        %1449 = vmatpush.msra.mxu0 0.0
        %1450 = vmatpush.msra.mxu0 0.0
        %1451 = vmatpush.msra.mxu0 0.0
        %1452 = vmatpush.msra.mxu0 0.0
        %1453 = vmatpush.msra.mxu0 0.0
        %1454 = vmatpush.msra.mxu0 0.0
        %1455 = vmatpush.msra.mxu0 0.0
        %1456 = vmatpush.msra.mxu0 0.0
        %1457 = vmatpush.msra.mxu0 0.0
        %1458 = vmatpush.msra.mxu0 0.0
        %1459 = vmatpush.msra.mxu0 0.0
        %1460 = vmatpush.msra.mxu0 0.0
        %1461 = vmatpush.msra.mxu0 0.0
        %1462 = vmatpush.msra.mxu0 %v1421
        %1463 = vmatmul.f32.gmra.mxu0 %v1425
        %v1464 = vpop.f32.mrf.mxu0
        %v1465 = vadd.f32 0.0, %v1464
        %1466 = vdwg.mxu0
        %v1468 = vsel %vm480, %v1063, 0
        %1470 = vmatpush.msra.mxu0 0.0
        %1471 = vmatpush.msra.mxu0 0.0
        %1472 = vmatpush.msra.mxu0 0.0
        %1473 = vmatpush.msra.mxu0 0.0
        %1474 = vmatpush.msra.mxu0 0.0
        %1475 = vmatpush.msra.mxu0 0.0
        %1476 = vmatpush.msra.mxu0 0.0
        %1477 = vmatpush.msra.mxu0 0.0
        %1478 = vmatpush.msra.mxu0 0.0
        %1479 = vmatpush.msra.mxu0 0.0
        %1480 = vmatpush.msra.mxu0 0.0
        %1481 = vmatpush.msra.mxu0 0.0
        %1482 = vmatpush.msra.mxu0 0.0
        %1483 = vmatpush.msra.mxu0 0.0
        %1484 = vmatpush.msra.mxu0 0.0
        %1485 = vmatpush.msra.mxu0 %v1055
        %1486 = vmatmul.f32.gmra.mxu0 %v1468
        %v1487 = vpop.f32.mrf.mxu0
        %v1488 = vadd.f32 %v1445, %v1487
        %1489 = vdwg.mxu0
        %1490 = vmatpush.msra.mxu0 0.0
        %1491 = vmatpush.msra.mxu0 0.0
        %1492 = vmatpush.msra.mxu0 0.0
        %1493 = vmatpush.msra.mxu0 0.0
        %1494 = vmatpush.msra.mxu0 0.0
        %1495 = vmatpush.msra.mxu0 0.0
        %1496 = vmatpush.msra.mxu0 0.0
        %1497 = vmatpush.msra.mxu0 0.0
        %1498 = vmatpush.msra.mxu0 0.0
        %1499 = vmatpush.msra.mxu0 0.0
        %1500 = vmatpush.msra.mxu0 0.0
        %1501 = vmatpush.msra.mxu0 0.0
        %1502 = vmatpush.msra.mxu0 0.0
        %1503 = vmatpush.msra.mxu0 0.0
        %1504 = vmatpush.msra.mxu0 0.0
        %1505 = vmatpush.msra.mxu0 %v1062
        %1506 = vmatmul.f32.gmra.mxu0 %v1468
        %v1507 = vpop.f32.mrf.mxu0
        %v1508 = vadd.f32 %v1465, %v1507
        %1509 = vdwg.mxu0
        %v1510 = vld [vmem:[#allocation2] sm:$0xff]
        %v1511 = vld [vmem:[#allocation2 + $0x8] sm:$0xff]
        %v1512 = vld [vmem:[#allocation2 + $0x18] sm:$0xff]
        %v1513 = vld [vmem:[#allocation2 + $0x20] sm:$0xff]
        %v1514 = vld [vmem:[#allocation2 + $0x30] sm:$0xff]
        %v1515 = vld [vmem:[#allocation2 + $0x38] sm:$0xff]
        %v1516 = vld [vmem:[#allocation2 + $0x48] sm:$0xff]
        %v1517 = vld [vmem:[#allocation2 + $0x50] sm:$0xff]
        %v1518 = vld [vmem:[#allocation2 + $0x60] sm:$0xff]
        %v1519 = vld [vmem:[#allocation2 + $0x68] sm:$0xff]
        %v1520 = vld [vmem:[#allocation2 + $0x78] sm:$0xff]
        %v1521 = vld [vmem:[#allocation2 + $0x80] sm:$0xff]
        %v1522 = vld [vmem:[#allocation2 + $0x90] sm:$0xff]
        %v1523 = vld [vmem:[#allocation2 + $0x98] sm:$0xff]
        %v1524 = vld [vmem:[#allocation2 + $0xa8] sm:$0xff]
        %v1525 = vld [vmem:[#allocation2 + $0xb0] sm:$0xff]
        %1542 = vrot.lane.b32.xlu0 %v1510, 126
        %v1543 = vpop.permute.xlu0 %1542
        %1544 = vrot.lane.b32.xlu0 %v1511, 126
        %v1545 = vpop.permute.xlu0 %1544
        %1546 = vrot.lane.b32.xlu0 %v1512, 126
        %v1547 = vpop.permute.xlu0 %1546
        %1548 = vrot.lane.b32.xlu0 %v1513, 126
        %v1549 = vpop.permute.xlu0 %1548
        %1550 = vrot.lane.b32.xlu0 %v1514, 126
        %v1551 = vpop.permute.xlu0 %1550
        %1552 = vrot.lane.b32.xlu0 %v1515, 126
        %v1553 = vpop.permute.xlu0 %1552
        %1554 = vrot.lane.b32.xlu0 %v1516, 126
        %v1555 = vpop.permute.xlu0 %1554
        %1556 = vrot.lane.b32.xlu0 %v1517, 126
        %v1557 = vpop.permute.xlu0 %1556
        %1558 = vrot.lane.b32.xlu0 %v1518, 126
        %v1559 = vpop.permute.xlu0 %1558
        %1560 = vrot.lane.b32.xlu0 %v1519, 126
        %v1561 = vpop.permute.xlu0 %1560
        %1562 = vrot.lane.b32.xlu0 %v1520, 126
        %v1563 = vpop.permute.xlu0 %1562
        %1564 = vrot.lane.b32.xlu0 %v1521, 126
        %v1565 = vpop.permute.xlu0 %1564
        %1566 = vrot.lane.b32.xlu0 %v1522, 126
        %v1567 = vpop.permute.xlu0 %1566
        %1568 = vrot.lane.b32.xlu0 %v1523, 126
        %v1569 = vpop.permute.xlu0 %1568
        %1570 = vrot.lane.b32.xlu0 %v1524, 126
        %v1571 = vpop.permute.xlu0 %1570
        %1572 = vrot.lane.b32.xlu0 %v1525, 126
        %v1573 = vpop.permute.xlu0 %1572
        %v1590 = vrot.slane %v1551, 4
        %v1591 = vsel %vm762, %v1590, %v1543
        %v1592 = vrot.slane %v1543, 4
        %v1593 = vsel %vm762, %v1551, %v1592
        %v1595 = vunpack.c.l.s4 1983009808
        %v1596 = vunpack.c.0.s8 %v1595
        %v1597 = vperm.slane %v1591, %v1596
        %v1599 = vunpack.c.l.s4 1983009808
        %v1600 = vunpack.c.0.s8 %v1599
        %v1601 = vperm.slane %v1593, %v1600
        %v1602 = vrot.slane %v1555, 4
        %v1603 = vsel %vm762, %v1602, %v1547
        %v1604 = vrot.slane %v1547, 4
        %v1605 = vsel %vm762, %v1555, %v1604
        %v1607 = vunpack.c.l.s4 1983009808
        %v1608 = vunpack.c.0.s8 %v1607
        %v1609 = vperm.slane %v1603, %v1608
        %v1611 = vunpack.c.l.s4 1983009808
        %v1612 = vunpack.c.0.s8 %v1611
        %v1613 = vperm.slane %v1605, %v1612
        %v1614 = vrot.slane %v1567, 4
        %v1615 = vsel %vm762, %v1614, %v1559
        %v1616 = vrot.slane %v1559, 4
        %v1617 = vsel %vm762, %v1567, %v1616
        %v1619 = vunpack.c.l.s4 1983009808
        %v1620 = vunpack.c.0.s8 %v1619
        %v1621 = vperm.slane %v1615, %v1620
        %v1623 = vunpack.c.l.s4 1983009808
        %v1624 = vunpack.c.0.s8 %v1623
        %v1625 = vperm.slane %v1617, %v1624
        %v1626 = vrot.slane %v1571, 4
        %v1627 = vsel %vm762, %v1626, %v1563
        %v1628 = vrot.slane %v1563, 4
        %v1629 = vsel %vm762, %v1571, %v1628
        %v1631 = vunpack.c.l.s4 1983009808
        %v1632 = vunpack.c.0.s8 %v1631
        %v1633 = vperm.slane %v1627, %v1632
        %v1635 = vunpack.c.l.s4 1983009808
        %v1636 = vunpack.c.0.s8 %v1635
        %v1637 = vperm.slane %v1629, %v1636
        %v1638 = vrot.slane %v1609, 4
        %v1639 = vsel %vm762, %v1638, %v1597
        %v1640 = vrot.slane %v1597, 4
        %v1641 = vsel %vm762, %v1609, %v1640
        %v1643 = vunpack.c.l.s4 1934713408
        %v1644 = vunpack.c.0.s8 %v1643
        %v1645 = vperm.slane %v1639, %v1644
        %v1647 = vunpack.c.l.s4 1934713408
        %v1648 = vunpack.c.0.s8 %v1647
        %v1649 = vperm.slane %v1641, %v1648
        %v1650 = vrot.slane %v1613, 4
        %v1651 = vsel %vm762, %v1650, %v1601
        %v1652 = vrot.slane %v1601, 4
        %v1653 = vsel %vm762, %v1613, %v1652
        %v1655 = vunpack.c.l.s4 1934713408
        %v1656 = vunpack.c.0.s8 %v1655
        %v1657 = vperm.slane %v1651, %v1656
        %v1659 = vunpack.c.l.s4 1934713408
        %v1660 = vunpack.c.0.s8 %v1659
        %v1661 = vperm.slane %v1653, %v1660
        %v1662 = vrot.slane %v1633, 4
        %v1663 = vsel %vm762, %v1662, %v1621
        %v1664 = vrot.slane %v1621, 4
        %v1665 = vsel %vm762, %v1633, %v1664
        %v1667 = vunpack.c.l.s4 1934713408
        %v1668 = vunpack.c.0.s8 %v1667
        %v1669 = vperm.slane %v1663, %v1668
        %v1671 = vunpack.c.l.s4 1934713408
        %v1672 = vunpack.c.0.s8 %v1671
        %v1673 = vperm.slane %v1665, %v1672
        %v1674 = vrot.slane %v1637, 4
        %v1675 = vsel %vm762, %v1674, %v1625
        %v1676 = vrot.slane %v1625, 4
        %v1677 = vsel %vm762, %v1637, %v1676
        %v1679 = vunpack.c.l.s4 1934713408
        %v1680 = vunpack.c.0.s8 %v1679
        %v1681 = vperm.slane %v1675, %v1680
        %v1683 = vunpack.c.l.s4 1934713408
        %v1684 = vunpack.c.0.s8 %v1683
        %v1685 = vperm.slane %v1677, %v1684
        %v1686 = vrot.slane %v1669, 4
        %v1687 = vsel %vm762, %v1686, %v1645
        %v1688 = vrot.slane %v1645, 4
        %v1689 = vsel %vm762, %v1669, %v1688
        %v1690 = vrot.slane %v1673, 4
        %v1691 = vsel %vm762, %v1690, %v1649
        %v1692 = vrot.slane %v1649, 4
        %v1693 = vsel %vm762, %v1673, %v1692
        %v1694 = vrot.slane %v1681, 4
        %v1695 = vsel %vm762, %v1694, %v1657
        %v1696 = vrot.slane %v1657, 4
        %v1697 = vsel %vm762, %v1681, %v1696
        %v1698 = vrot.slane %v1685, 4
        %v1699 = vsel %vm762, %v1698, %v1661
        %v1700 = vrot.slane %v1661, 4
        %v1701 = vsel %vm762, %v1685, %v1700
        %v1702 = vrot.slane %v1553, 4
        %v1703 = vsel %vm762, %v1702, %v1545
        %v1704 = vrot.slane %v1545, 4
        %v1705 = vsel %vm762, %v1553, %v1704
        %v1707 = vunpack.c.l.s4 1983009808
        %v1708 = vunpack.c.0.s8 %v1707
        %v1709 = vperm.slane %v1703, %v1708
        %v1711 = vunpack.c.l.s4 1983009808
        %v1712 = vunpack.c.0.s8 %v1711
        %v1713 = vperm.slane %v1705, %v1712
        %v1714 = vrot.slane %v1557, 4
        %v1715 = vsel %vm762, %v1714, %v1549
        %v1716 = vrot.slane %v1549, 4
        %v1717 = vsel %vm762, %v1557, %v1716
        %v1719 = vunpack.c.l.s4 1983009808
        %v1720 = vunpack.c.0.s8 %v1719
        %v1721 = vperm.slane %v1715, %v1720
        %v1723 = vunpack.c.l.s4 1983009808
        %v1724 = vunpack.c.0.s8 %v1723
        %v1725 = vperm.slane %v1717, %v1724
        %v1726 = vrot.slane %v1569, 4
        %v1727 = vsel %vm762, %v1726, %v1561
        %v1728 = vrot.slane %v1561, 4
        %v1729 = vsel %vm762, %v1569, %v1728
        %v1731 = vunpack.c.l.s4 1983009808
        %v1732 = vunpack.c.0.s8 %v1731
        %v1733 = vperm.slane %v1727, %v1732
        %v1735 = vunpack.c.l.s4 1983009808
        %v1736 = vunpack.c.0.s8 %v1735
        %v1737 = vperm.slane %v1729, %v1736
        %v1738 = vrot.slane %v1573, 4
        %v1739 = vsel %vm762, %v1738, %v1565
        %v1740 = vrot.slane %v1565, 4
        %v1741 = vsel %vm762, %v1573, %v1740
        %v1743 = vunpack.c.l.s4 1983009808
        %v1744 = vunpack.c.0.s8 %v1743
        %v1745 = vperm.slane %v1739, %v1744
        %v1747 = vunpack.c.l.s4 1983009808
        %v1748 = vunpack.c.0.s8 %v1747
        %v1749 = vperm.slane %v1741, %v1748
        %v1750 = vrot.slane %v1721, 4
        %v1751 = vsel %vm762, %v1750, %v1709
        %v1752 = vrot.slane %v1709, 4
        %v1753 = vsel %vm762, %v1721, %v1752
        %v1755 = vunpack.c.l.s4 1934713408
        %v1756 = vunpack.c.0.s8 %v1755
        %v1757 = vperm.slane %v1751, %v1756
        %v1759 = vunpack.c.l.s4 1934713408
        %v1760 = vunpack.c.0.s8 %v1759
        %v1761 = vperm.slane %v1753, %v1760
        %v1762 = vrot.slane %v1725, 4
        %v1763 = vsel %vm762, %v1762, %v1713
        %v1764 = vrot.slane %v1713, 4
        %v1765 = vsel %vm762, %v1725, %v1764
        %v1767 = vunpack.c.l.s4 1934713408
        %v1768 = vunpack.c.0.s8 %v1767
        %v1769 = vperm.slane %v1763, %v1768
        %v1771 = vunpack.c.l.s4 1934713408
        %v1772 = vunpack.c.0.s8 %v1771
        %v1773 = vperm.slane %v1765, %v1772
        %v1774 = vrot.slane %v1745, 4
        %v1775 = vsel %vm762, %v1774, %v1733
        %v1776 = vrot.slane %v1733, 4
        %v1777 = vsel %vm762, %v1745, %v1776
        %v1779 = vunpack.c.l.s4 1934713408
        %v1780 = vunpack.c.0.s8 %v1779
        %v1781 = vperm.slane %v1775, %v1780
        %v1783 = vunpack.c.l.s4 1934713408
        %v1784 = vunpack.c.0.s8 %v1783
        %v1785 = vperm.slane %v1777, %v1784
        %v1786 = vrot.slane %v1749, 4
        %v1787 = vsel %vm762, %v1786, %v1737
        %v1788 = vrot.slane %v1737, 4
        %v1789 = vsel %vm762, %v1749, %v1788
        %v1791 = vunpack.c.l.s4 1934713408
        %v1792 = vunpack.c.0.s8 %v1791
        %v1793 = vperm.slane %v1787, %v1792
        %v1795 = vunpack.c.l.s4 1934713408
        %v1796 = vunpack.c.0.s8 %v1795
        %v1797 = vperm.slane %v1789, %v1796
        %v1798 = vrot.slane %v1781, 4
        %v1799 = vsel %vm762, %v1798, %v1757
        %v1800 = vrot.slane %v1757, 4
        %v1801 = vsel %vm762, %v1781, %v1800
        %v1802 = vrot.slane %v1785, 4
        %v1803 = vsel %vm762, %v1802, %v1761
        %v1804 = vrot.slane %v1761, 4
        %v1805 = vsel %vm762, %v1785, %v1804
        %v1806 = vrot.slane %v1793, 4
        %v1807 = vsel %vm762, %v1806, %v1769
        %v1808 = vrot.slane %v1769, 4
        %v1809 = vsel %vm762, %v1793, %v1808
        %v1810 = vrot.slane %v1797, 4
        %v1811 = vsel %vm762, %v1810, %v1773
        %v1812 = vrot.slane %v1773, 4
        %v1813 = vsel %vm762, %v1797, %v1812
        %1815 = vrot.lane.b32.xlu0 %v1689, 16
        %v1816 = vpop.permute.xlu0 %1815
        %1819 = vrot.lane.b32.xlu0 %v1691, 32
        %v1820 = vpop.permute.xlu0 %1819
        %1823 = vrot.lane.b32.xlu0 %v1693, 48
        %v1824 = vpop.permute.xlu0 %1823
        %1827 = vrot.lane.b32.xlu0 %v1695, 64
        %v1828 = vpop.permute.xlu0 %1827
        %1831 = vrot.lane.b32.xlu0 %v1697, 80
        %v1832 = vpop.permute.xlu0 %1831
        %1835 = vrot.lane.b32.xlu0 %v1699, 96
        %v1836 = vpop.permute.xlu0 %1835
        %1839 = vrot.lane.b32.xlu0 %v1701, 112
        %v1840 = vpop.permute.xlu0 %1839
        %1843 = vrot.lane.b32.xlu0 %v1801, 16
        %v1844 = vpop.permute.xlu0 %1843
        %1847 = vrot.lane.b32.xlu0 %v1803, 32
        %v1848 = vpop.permute.xlu0 %1847
        %1851 = vrot.lane.b32.xlu0 %v1805, 48
        %v1852 = vpop.permute.xlu0 %1851
        %1855 = vrot.lane.b32.xlu0 %v1807, 64
        %v1856 = vpop.permute.xlu0 %1855
        %1859 = vrot.lane.b32.xlu0 %v1809, 80
        %v1860 = vpop.permute.xlu0 %1859
        %1863 = vrot.lane.b32.xlu0 %v1811, 96
        %v1864 = vpop.permute.xlu0 %1863
        %1867 = vrot.lane.b32.xlu0 %v1813, 112
        %v1868 = vpop.permute.xlu0 %1867
        %v1870 = vsel %vm1042, %v1687, %v1816
        %v1871 = vsel %vm1044, %v1870, %v1820
        %v1872 = vsel %vm1046, %v1871, %v1824
        %v1873 = vsel %vm1048, %v1872, %v1828
        %v1874 = vsel %vm1050, %v1873, %v1832
        %v1875 = vsel %vm1052, %v1874, %v1836
        %v1876 = vsel %vm1054, %v1875, %v1840
        %v1877 = vsel %vm1042, %v1799, %v1844
        %v1878 = vsel %vm1044, %v1877, %v1848
        %v1879 = vsel %vm1046, %v1878, %v1852
        %v1880 = vsel %vm1048, %v1879, %v1856
        %v1881 = vsel %vm1050, %v1880, %v1860
        %v1882 = vsel %vm1052, %v1881, %v1864
        %v1883 = vsel %vm1054, %v1882, %v1868
        %s1884 = scalar_lea.vmem [#allocation8], 8
        %v1885 = vld [vmem:[%s1884] sm:$0xf]
        %v1887 = vsel %vm480, %v1885, 0
        %1889 = vmatpush.msra.mxu0 0.0
        %1890 = vmatpush.msra.mxu0 0.0
        %1891 = vmatpush.msra.mxu0 0.0
        %1892 = vmatpush.msra.mxu0 0.0
        %1893 = vmatpush.msra.mxu0 0.0
        %1894 = vmatpush.msra.mxu0 0.0
        %1895 = vmatpush.msra.mxu0 0.0
        %1896 = vmatpush.msra.mxu0 0.0
        %1897 = vmatpush.msra.mxu0 0.0
        %1898 = vmatpush.msra.mxu0 0.0
        %1899 = vmatpush.msra.mxu0 0.0
        %1900 = vmatpush.msra.mxu0 0.0
        %1901 = vmatpush.msra.mxu0 0.0
        %1902 = vmatpush.msra.mxu0 0.0
        %1903 = vmatpush.msra.mxu0 0.0
        %1904 = vmatpush.msra.mxu0 %v1876
        %1905 = vmatmul.f32.gmra.mxu0 %v1887
        %v1906 = vpop.f32.mrf.mxu0
        %v1907 = vadd.f32 0.0, %v1906
        %1908 = vdwg.mxu0
        %1909 = vmatpush.msra.mxu0 0.0
        %1910 = vmatpush.msra.mxu0 0.0
        %1911 = vmatpush.msra.mxu0 0.0
        %1912 = vmatpush.msra.mxu0 0.0
        %1913 = vmatpush.msra.mxu0 0.0
        %1914 = vmatpush.msra.mxu0 0.0
        %1915 = vmatpush.msra.mxu0 0.0
        %1916 = vmatpush.msra.mxu0 0.0
        %1917 = vmatpush.msra.mxu0 0.0
        %1918 = vmatpush.msra.mxu0 0.0
        %1919 = vmatpush.msra.mxu0 0.0
        %1920 = vmatpush.msra.mxu0 0.0
        %1921 = vmatpush.msra.mxu0 0.0
        %1922 = vmatpush.msra.mxu0 0.0
        %1923 = vmatpush.msra.mxu0 0.0
        %1924 = vmatpush.msra.mxu0 %v1883
        %1925 = vmatmul.f32.gmra.mxu0 %v1887
        %v1926 = vpop.f32.mrf.mxu0
        %v1927 = vadd.f32 0.0, %v1926
        %1928 = vdwg.mxu0
        %v1929 = vadd.f32 %v1488, %v1907
        %v1930 = vadd.f32 %v1508, %v1927
        %v1931 = vld [vmem:[#allocation2 + $0x1] sm:$0xff]
        %v1932 = vld [vmem:[#allocation2 + $0x9] sm:$0xff]
        %v1933 = vld [vmem:[#allocation2 + $0x19] sm:$0xff]
        %v1934 = vld [vmem:[#allocation2 + $0x21] sm:$0xff]
        %v1935 = vld [vmem:[#allocation2 + $0x31] sm:$0xff]
        %v1936 = vld [vmem:[#allocation2 + $0x39] sm:$0xff]
        %v1937 = vld [vmem:[#allocation2 + $0x49] sm:$0xff]
        %v1938 = vld [vmem:[#allocation2 + $0x51] sm:$0xff]
        %v1939 = vld [vmem:[#allocation2 + $0x61] sm:$0xff]
        %v1940 = vld [vmem:[#allocation2 + $0x69] sm:$0xff]
        %v1941 = vld [vmem:[#allocation2 + $0x79] sm:$0xff]
        %v1942 = vld [vmem:[#allocation2 + $0x81] sm:$0xff]
        %v1943 = vld [vmem:[#allocation2 + $0x91] sm:$0xff]
        %v1944 = vld [vmem:[#allocation2 + $0x99] sm:$0xff]
        %v1945 = vld [vmem:[#allocation2 + $0xa9] sm:$0xff]
        %v1946 = vld [vmem:[#allocation2 + $0xb1] sm:$0xff]
        %v1947 = vrot.slane %v1935, 4
        %v1948 = vsel %vm762, %v1947, %v1931
        %v1949 = vrot.slane %v1931, 4
        %v1950 = vsel %vm762, %v1935, %v1949
        %v1952 = vunpack.c.l.s4 1983009808
        %v1953 = vunpack.c.0.s8 %v1952
        %v1954 = vperm.slane %v1948, %v1953
        %v1956 = vunpack.c.l.s4 1983009808
        %v1957 = vunpack.c.0.s8 %v1956
        %v1958 = vperm.slane %v1950, %v1957
        %v1959 = vrot.slane %v1937, 4
        %v1960 = vsel %vm762, %v1959, %v1933
        %v1961 = vrot.slane %v1933, 4
        %v1962 = vsel %vm762, %v1937, %v1961
        %v1964 = vunpack.c.l.s4 1983009808
        %v1965 = vunpack.c.0.s8 %v1964
        %v1966 = vperm.slane %v1960, %v1965
        %v1968 = vunpack.c.l.s4 1983009808
        %v1969 = vunpack.c.0.s8 %v1968
        %v1970 = vperm.slane %v1962, %v1969
        %v1971 = vrot.slane %v1943, 4
        %v1972 = vsel %vm762, %v1971, %v1939
        %v1973 = vrot.slane %v1939, 4
        %v1974 = vsel %vm762, %v1943, %v1973
        %v1976 = vunpack.c.l.s4 1983009808
        %v1977 = vunpack.c.0.s8 %v1976
        %v1978 = vperm.slane %v1972, %v1977
        %v1980 = vunpack.c.l.s4 1983009808
        %v1981 = vunpack.c.0.s8 %v1980
        %v1982 = vperm.slane %v1974, %v1981
        %v1983 = vrot.slane %v1945, 4
        %v1984 = vsel %vm762, %v1983, %v1941
        %v1985 = vrot.slane %v1941, 4
        %v1986 = vsel %vm762, %v1945, %v1985
        %v1988 = vunpack.c.l.s4 1983009808
        %v1989 = vunpack.c.0.s8 %v1988
        %v1990 = vperm.slane %v1984, %v1989
        %v1992 = vunpack.c.l.s4 1983009808
        %v1993 = vunpack.c.0.s8 %v1992
        %v1994 = vperm.slane %v1986, %v1993
        %v1995 = vrot.slane %v1966, 4
        %v1996 = vsel %vm762, %v1995, %v1954
        %v1997 = vrot.slane %v1954, 4
        %v1998 = vsel %vm762, %v1966, %v1997
        %v2000 = vunpack.c.l.s4 1934713408
        %v2001 = vunpack.c.0.s8 %v2000
        %v2002 = vperm.slane %v1996, %v2001
        %v2004 = vunpack.c.l.s4 1934713408
        %v2005 = vunpack.c.0.s8 %v2004
        %v2006 = vperm.slane %v1998, %v2005
        %v2007 = vrot.slane %v1970, 4
        %v2008 = vsel %vm762, %v2007, %v1958
        %v2009 = vrot.slane %v1958, 4
        %v2010 = vsel %vm762, %v1970, %v2009
        %v2012 = vunpack.c.l.s4 1934713408
        %v2013 = vunpack.c.0.s8 %v2012
        %v2014 = vperm.slane %v2008, %v2013
        %v2016 = vunpack.c.l.s4 1934713408
        %v2017 = vunpack.c.0.s8 %v2016
        %v2018 = vperm.slane %v2010, %v2017
        %v2019 = vrot.slane %v1990, 4
        %v2020 = vsel %vm762, %v2019, %v1978
        %v2021 = vrot.slane %v1978, 4
        %v2022 = vsel %vm762, %v1990, %v2021
        %v2024 = vunpack.c.l.s4 1934713408
        %v2025 = vunpack.c.0.s8 %v2024
        %v2026 = vperm.slane %v2020, %v2025
        %v2028 = vunpack.c.l.s4 1934713408
        %v2029 = vunpack.c.0.s8 %v2028
        %v2030 = vperm.slane %v2022, %v2029
        %v2031 = vrot.slane %v1994, 4
        %v2032 = vsel %vm762, %v2031, %v1982
        %v2033 = vrot.slane %v1982, 4
        %v2034 = vsel %vm762, %v1994, %v2033
        %v2036 = vunpack.c.l.s4 1934713408
        %v2037 = vunpack.c.0.s8 %v2036
        %v2038 = vperm.slane %v2032, %v2037
        %v2040 = vunpack.c.l.s4 1934713408
        %v2041 = vunpack.c.0.s8 %v2040
        %v2042 = vperm.slane %v2034, %v2041
        %v2043 = vrot.slane %v2026, 4
        %v2044 = vsel %vm762, %v2043, %v2002
        %v2045 = vrot.slane %v2002, 4
        %v2046 = vsel %vm762, %v2026, %v2045
        %v2047 = vrot.slane %v2030, 4
        %v2048 = vsel %vm762, %v2047, %v2006
        %v2049 = vrot.slane %v2006, 4
        %v2050 = vsel %vm762, %v2030, %v2049
        %v2051 = vrot.slane %v2038, 4
        %v2052 = vsel %vm762, %v2051, %v2014
        %v2053 = vrot.slane %v2014, 4
        %v2054 = vsel %vm762, %v2038, %v2053
        %v2055 = vrot.slane %v2042, 4
        %v2056 = vsel %vm762, %v2055, %v2018
        %v2057 = vrot.slane %v2018, 4
        %v2058 = vsel %vm762, %v2042, %v2057
        %v2059 = vrot.slane %v1936, 4
        %v2060 = vsel %vm762, %v2059, %v1932
        %v2061 = vrot.slane %v1932, 4
        %v2062 = vsel %vm762, %v1936, %v2061
        %v2064 = vunpack.c.l.s4 1983009808
        %v2065 = vunpack.c.0.s8 %v2064
        %v2066 = vperm.slane %v2060, %v2065
        %v2068 = vunpack.c.l.s4 1983009808
        %v2069 = vunpack.c.0.s8 %v2068
        %v2070 = vperm.slane %v2062, %v2069
        %v2071 = vrot.slane %v1938, 4
        %v2072 = vsel %vm762, %v2071, %v1934
        %v2073 = vrot.slane %v1934, 4
        %v2074 = vsel %vm762, %v1938, %v2073
        %v2076 = vunpack.c.l.s4 1983009808
        %v2077 = vunpack.c.0.s8 %v2076
        %v2078 = vperm.slane %v2072, %v2077
        %v2080 = vunpack.c.l.s4 1983009808
        %v2081 = vunpack.c.0.s8 %v2080
        %v2082 = vperm.slane %v2074, %v2081
        %v2083 = vrot.slane %v1944, 4
        %v2084 = vsel %vm762, %v2083, %v1940
        %v2085 = vrot.slane %v1940, 4
        %v2086 = vsel %vm762, %v1944, %v2085
        %v2088 = vunpack.c.l.s4 1983009808
        %v2089 = vunpack.c.0.s8 %v2088
        %v2090 = vperm.slane %v2084, %v2089
        %v2092 = vunpack.c.l.s4 1983009808
        %v2093 = vunpack.c.0.s8 %v2092
        %v2094 = vperm.slane %v2086, %v2093
        %v2095 = vrot.slane %v1946, 4
        %v2096 = vsel %vm762, %v2095, %v1942
        %v2097 = vrot.slane %v1942, 4
        %v2098 = vsel %vm762, %v1946, %v2097
        %v2100 = vunpack.c.l.s4 1983009808
        %v2101 = vunpack.c.0.s8 %v2100
        %v2102 = vperm.slane %v2096, %v2101
        %v2104 = vunpack.c.l.s4 1983009808
        %v2105 = vunpack.c.0.s8 %v2104
        %v2106 = vperm.slane %v2098, %v2105
        %v2107 = vrot.slane %v2078, 4
        %v2108 = vsel %vm762, %v2107, %v2066
        %v2109 = vrot.slane %v2066, 4
        %v2110 = vsel %vm762, %v2078, %v2109
        %v2112 = vunpack.c.l.s4 1934713408
        %v2113 = vunpack.c.0.s8 %v2112
        %v2114 = vperm.slane %v2108, %v2113
        %v2116 = vunpack.c.l.s4 1934713408
        %v2117 = vunpack.c.0.s8 %v2116
        %v2118 = vperm.slane %v2110, %v2117
        %v2119 = vrot.slane %v2082, 4
        %v2120 = vsel %vm762, %v2119, %v2070
        %v2121 = vrot.slane %v2070, 4
        %v2122 = vsel %vm762, %v2082, %v2121
        %v2124 = vunpack.c.l.s4 1934713408
        %v2125 = vunpack.c.0.s8 %v2124
        %v2126 = vperm.slane %v2120, %v2125
        %v2128 = vunpack.c.l.s4 1934713408
        %v2129 = vunpack.c.0.s8 %v2128
        %v2130 = vperm.slane %v2122, %v2129
        %v2131 = vrot.slane %v2102, 4
        %v2132 = vsel %vm762, %v2131, %v2090
        %v2133 = vrot.slane %v2090, 4
        %v2134 = vsel %vm762, %v2102, %v2133
        %v2136 = vunpack.c.l.s4 1934713408
        %v2137 = vunpack.c.0.s8 %v2136
        %v2138 = vperm.slane %v2132, %v2137
        %v2140 = vunpack.c.l.s4 1934713408
        %v2141 = vunpack.c.0.s8 %v2140
        %v2142 = vperm.slane %v2134, %v2141
        %v2143 = vrot.slane %v2106, 4
        %v2144 = vsel %vm762, %v2143, %v2094
        %v2145 = vrot.slane %v2094, 4
        %v2146 = vsel %vm762, %v2106, %v2145
        %v2148 = vunpack.c.l.s4 1934713408
        %v2149 = vunpack.c.0.s8 %v2148
        %v2150 = vperm.slane %v2144, %v2149
        %v2152 = vunpack.c.l.s4 1934713408
        %v2153 = vunpack.c.0.s8 %v2152
        %v2154 = vperm.slane %v2146, %v2153
        %v2155 = vrot.slane %v2138, 4
        %v2156 = vsel %vm762, %v2155, %v2114
        %v2157 = vrot.slane %v2114, 4
        %v2158 = vsel %vm762, %v2138, %v2157
        %v2159 = vrot.slane %v2142, 4
        %v2160 = vsel %vm762, %v2159, %v2118
        %v2161 = vrot.slane %v2118, 4
        %v2162 = vsel %vm762, %v2142, %v2161
        %v2163 = vrot.slane %v2150, 4
        %v2164 = vsel %vm762, %v2163, %v2126
        %v2165 = vrot.slane %v2126, 4
        %v2166 = vsel %vm762, %v2150, %v2165
        %v2167 = vrot.slane %v2154, 4
        %v2168 = vsel %vm762, %v2167, %v2130
        %v2169 = vrot.slane %v2130, 4
        %v2170 = vsel %vm762, %v2154, %v2169
        %2172 = vrot.lane.b32.xlu0 %v2046, 16
        %v2173 = vpop.permute.xlu0 %2172
        %2176 = vrot.lane.b32.xlu0 %v2048, 32
        %v2177 = vpop.permute.xlu0 %2176
        %2180 = vrot.lane.b32.xlu0 %v2050, 48
        %v2181 = vpop.permute.xlu0 %2180
        %2184 = vrot.lane.b32.xlu0 %v2052, 64
        %v2185 = vpop.permute.xlu0 %2184
        %2188 = vrot.lane.b32.xlu0 %v2054, 80
        %v2189 = vpop.permute.xlu0 %2188
        %2192 = vrot.lane.b32.xlu0 %v2056, 96
        %v2193 = vpop.permute.xlu0 %2192
        %2196 = vrot.lane.b32.xlu0 %v2058, 112
        %v2197 = vpop.permute.xlu0 %2196
        %2200 = vrot.lane.b32.xlu0 %v2158, 16
        %v2201 = vpop.permute.xlu0 %2200
        %2204 = vrot.lane.b32.xlu0 %v2160, 32
        %v2205 = vpop.permute.xlu0 %2204
        %2208 = vrot.lane.b32.xlu0 %v2162, 48
        %v2209 = vpop.permute.xlu0 %2208
        %2212 = vrot.lane.b32.xlu0 %v2164, 64
        %v2213 = vpop.permute.xlu0 %2212
        %2216 = vrot.lane.b32.xlu0 %v2166, 80
        %v2217 = vpop.permute.xlu0 %2216
        %2220 = vrot.lane.b32.xlu0 %v2168, 96
        %v2221 = vpop.permute.xlu0 %2220
        %2224 = vrot.lane.b32.xlu0 %v2170, 112
        %v2225 = vpop.permute.xlu0 %2224
        %v2227 = vsel %vm1042, %v2044, %v2173
        %v2228 = vsel %vm1044, %v2227, %v2177
        %v2229 = vsel %vm1046, %v2228, %v2181
        %v2230 = vsel %vm1048, %v2229, %v2185
        %v2231 = vsel %vm1050, %v2230, %v2189
        %v2232 = vsel %vm1052, %v2231, %v2193
        %v2233 = vsel %vm1054, %v2232, %v2197
        %v2234 = vsel %vm1042, %v2156, %v2201
        %v2235 = vsel %vm1044, %v2234, %v2205
        %v2236 = vsel %vm1046, %v2235, %v2209
        %v2237 = vsel %vm1048, %v2236, %v2213
        %v2238 = vsel %vm1050, %v2237, %v2217
        %v2239 = vsel %vm1052, %v2238, %v2221
        %v2240 = vsel %vm1054, %v2239, %v2225
        %s2241 = scalar_lea.vmem [#allocation8], 12
        %v2242 = vld [vmem:[%s2241] sm:$0xf]
        %v2244 = vsel %vm480, %v2242, 0
        %2246 = vmatpush.msra.mxu0 0.0
        %2247 = vmatpush.msra.mxu0 0.0
        %2248 = vmatpush.msra.mxu0 0.0
        %2249 = vmatpush.msra.mxu0 0.0
        %2250 = vmatpush.msra.mxu0 0.0
        %2251 = vmatpush.msra.mxu0 0.0
        %2252 = vmatpush.msra.mxu0 0.0
        %2253 = vmatpush.msra.mxu0 0.0
        %2254 = vmatpush.msra.mxu0 0.0
        %2255 = vmatpush.msra.mxu0 0.0
        %2256 = vmatpush.msra.mxu0 0.0
        %2257 = vmatpush.msra.mxu0 0.0
        %2258 = vmatpush.msra.mxu0 0.0
        %2259 = vmatpush.msra.mxu0 0.0
        %2260 = vmatpush.msra.mxu0 0.0
        %2261 = vmatpush.msra.mxu0 %v2233
        %2262 = vmatmul.f32.gmra.mxu0 %v2244
        %v2263 = vpop.f32.mrf.mxu0
        %v2264 = vadd.f32 0.0, %v2263
        %2265 = vdwg.mxu0
        %2266 = vmatpush.msra.mxu0 0.0
        %2267 = vmatpush.msra.mxu0 0.0
        %2268 = vmatpush.msra.mxu0 0.0
        %2269 = vmatpush.msra.mxu0 0.0
        %2270 = vmatpush.msra.mxu0 0.0
        %2271 = vmatpush.msra.mxu0 0.0
        %2272 = vmatpush.msra.mxu0 0.0
        %2273 = vmatpush.msra.mxu0 0.0
        %2274 = vmatpush.msra.mxu0 0.0
        %2275 = vmatpush.msra.mxu0 0.0
        %2276 = vmatpush.msra.mxu0 0.0
        %2277 = vmatpush.msra.mxu0 0.0
        %2278 = vmatpush.msra.mxu0 0.0
        %2279 = vmatpush.msra.mxu0 0.0
        %2280 = vmatpush.msra.mxu0 0.0
        %2281 = vmatpush.msra.mxu0 %v2240
        %2282 = vmatmul.f32.gmra.mxu0 %v2244
        %v2283 = vpop.f32.mrf.mxu0
        %v2284 = vadd.f32 0.0, %v2283
        %2285 = vdwg.mxu0
        %v2286 = vadd.f32 %v1929, %v2264
        %v2287 = vadd.f32 %v1930, %v2284
        %v2288 = vld [vmem:[#allocation2 + $0x1] sm:$0xff]
        %v2289 = vld [vmem:[#allocation2 + $0x9] sm:$0xff]
        %v2290 = vld [vmem:[#allocation2 + $0x19] sm:$0xff]
        %v2291 = vld [vmem:[#allocation2 + $0x21] sm:$0xff]
        %v2292 = vld [vmem:[#allocation2 + $0x31] sm:$0xff]
        %v2293 = vld [vmem:[#allocation2 + $0x39] sm:$0xff]
        %v2294 = vld [vmem:[#allocation2 + $0x49] sm:$0xff]
        %v2295 = vld [vmem:[#allocation2 + $0x51] sm:$0xff]
        %v2296 = vld [vmem:[#allocation2 + $0x61] sm:$0xff]
        %v2297 = vld [vmem:[#allocation2 + $0x69] sm:$0xff]
        %v2298 = vld [vmem:[#allocation2 + $0x79] sm:$0xff]
        %v2299 = vld [vmem:[#allocation2 + $0x81] sm:$0xff]
        %v2300 = vld [vmem:[#allocation2 + $0x91] sm:$0xff]
        %v2301 = vld [vmem:[#allocation2 + $0x99] sm:$0xff]
        %v2302 = vld [vmem:[#allocation2 + $0xa9] sm:$0xff]
        %v2303 = vld [vmem:[#allocation2 + $0xb1] sm:$0xff]
        %2320 = vrot.lane.b32.xlu0 %v2288, 127
        %v2321 = vpop.permute.xlu0 %2320
        %2322 = vrot.lane.b32.xlu0 %v2289, 127
        %v2323 = vpop.permute.xlu0 %2322
        %2324 = vrot.lane.b32.xlu0 %v2290, 127
        %v2325 = vpop.permute.xlu0 %2324
        %2326 = vrot.lane.b32.xlu0 %v2291, 127
        %v2327 = vpop.permute.xlu0 %2326
        %2328 = vrot.lane.b32.xlu0 %v2292, 127
        %v2329 = vpop.permute.xlu0 %2328
        %2330 = vrot.lane.b32.xlu0 %v2293, 127
        %v2331 = vpop.permute.xlu0 %2330
        %2332 = vrot.lane.b32.xlu0 %v2294, 127
        %v2333 = vpop.permute.xlu0 %2332
        %2334 = vrot.lane.b32.xlu0 %v2295, 127
        %v2335 = vpop.permute.xlu0 %2334
        %2336 = vrot.lane.b32.xlu0 %v2296, 127
        %v2337 = vpop.permute.xlu0 %2336
        %2338 = vrot.lane.b32.xlu0 %v2297, 127
        %v2339 = vpop.permute.xlu0 %2338
        %2340 = vrot.lane.b32.xlu0 %v2298, 127
        %v2341 = vpop.permute.xlu0 %2340
        %2342 = vrot.lane.b32.xlu0 %v2299, 127
        %v2343 = vpop.permute.xlu0 %2342
        %2344 = vrot.lane.b32.xlu0 %v2300, 127
        %v2345 = vpop.permute.xlu0 %2344
        %2346 = vrot.lane.b32.xlu0 %v2301, 127
        %v2347 = vpop.permute.xlu0 %2346
        %2348 = vrot.lane.b32.xlu0 %v2302, 127
        %v2349 = vpop.permute.xlu0 %2348
        %2350 = vrot.lane.b32.xlu0 %v2303, 127
        %v2351 = vpop.permute.xlu0 %2350
        %v2368 = vrot.slane %v2329, 4
        %v2369 = vsel %vm762, %v2368, %v2321
        %v2370 = vrot.slane %v2321, 4
        %v2371 = vsel %vm762, %v2329, %v2370
        %v2373 = vunpack.c.l.s4 1983009808
        %v2374 = vunpack.c.0.s8 %v2373
        %v2375 = vperm.slane %v2369, %v2374
        %v2377 = vunpack.c.l.s4 1983009808
        %v2378 = vunpack.c.0.s8 %v2377
        %v2379 = vperm.slane %v2371, %v2378
        %v2380 = vrot.slane %v2333, 4
        %v2381 = vsel %vm762, %v2380, %v2325
        %v2382 = vrot.slane %v2325, 4
        %v2383 = vsel %vm762, %v2333, %v2382
        %v2385 = vunpack.c.l.s4 1983009808
        %v2386 = vunpack.c.0.s8 %v2385
        %v2387 = vperm.slane %v2381, %v2386
        %v2389 = vunpack.c.l.s4 1983009808
        %v2390 = vunpack.c.0.s8 %v2389
        %v2391 = vperm.slane %v2383, %v2390
        %v2392 = vrot.slane %v2345, 4
        %v2393 = vsel %vm762, %v2392, %v2337
        %v2394 = vrot.slane %v2337, 4
        %v2395 = vsel %vm762, %v2345, %v2394
        %v2397 = vunpack.c.l.s4 1983009808
        %v2398 = vunpack.c.0.s8 %v2397
        %v2399 = vperm.slane %v2393, %v2398
        %v2401 = vunpack.c.l.s4 1983009808
        %v2402 = vunpack.c.0.s8 %v2401
        %v2403 = vperm.slane %v2395, %v2402
        %v2404 = vrot.slane %v2349, 4
        %v2405 = vsel %vm762, %v2404, %v2341
        %v2406 = vrot.slane %v2341, 4
        %v2407 = vsel %vm762, %v2349, %v2406
        %v2409 = vunpack.c.l.s4 1983009808
        %v2410 = vunpack.c.0.s8 %v2409
        %v2411 = vperm.slane %v2405, %v2410
        %v2413 = vunpack.c.l.s4 1983009808
        %v2414 = vunpack.c.0.s8 %v2413
        %v2415 = vperm.slane %v2407, %v2414
        %v2416 = vrot.slane %v2387, 4
        %v2417 = vsel %vm762, %v2416, %v2375
        %v2418 = vrot.slane %v2375, 4
        %v2419 = vsel %vm762, %v2387, %v2418
        %v2421 = vunpack.c.l.s4 1934713408
        %v2422 = vunpack.c.0.s8 %v2421
        %v2423 = vperm.slane %v2417, %v2422
        %v2425 = vunpack.c.l.s4 1934713408
        %v2426 = vunpack.c.0.s8 %v2425
        %v2427 = vperm.slane %v2419, %v2426
        %v2428 = vrot.slane %v2391, 4
        %v2429 = vsel %vm762, %v2428, %v2379
        %v2430 = vrot.slane %v2379, 4
        %v2431 = vsel %vm762, %v2391, %v2430
        %v2433 = vunpack.c.l.s4 1934713408
        %v2434 = vunpack.c.0.s8 %v2433
        %v2435 = vperm.slane %v2429, %v2434
        %v2437 = vunpack.c.l.s4 1934713408
        %v2438 = vunpack.c.0.s8 %v2437
        %v2439 = vperm.slane %v2431, %v2438
        %v2440 = vrot.slane %v2411, 4
        %v2441 = vsel %vm762, %v2440, %v2399
        %v2442 = vrot.slane %v2399, 4
        %v2443 = vsel %vm762, %v2411, %v2442
        %v2445 = vunpack.c.l.s4 1934713408
        %v2446 = vunpack.c.0.s8 %v2445
        %v2447 = vperm.slane %v2441, %v2446
        %v2449 = vunpack.c.l.s4 1934713408
        %v2450 = vunpack.c.0.s8 %v2449
        %v2451 = vperm.slane %v2443, %v2450
        %v2452 = vrot.slane %v2415, 4
        %v2453 = vsel %vm762, %v2452, %v2403
        %v2454 = vrot.slane %v2403, 4
        %v2455 = vsel %vm762, %v2415, %v2454
        %v2457 = vunpack.c.l.s4 1934713408
        %v2458 = vunpack.c.0.s8 %v2457
        %v2459 = vperm.slane %v2453, %v2458
        %v2461 = vunpack.c.l.s4 1934713408
        %v2462 = vunpack.c.0.s8 %v2461
        %v2463 = vperm.slane %v2455, %v2462
        %v2464 = vrot.slane %v2447, 4
        %v2465 = vsel %vm762, %v2464, %v2423
        %v2466 = vrot.slane %v2423, 4
        %v2467 = vsel %vm762, %v2447, %v2466
        %v2468 = vrot.slane %v2451, 4
        %v2469 = vsel %vm762, %v2468, %v2427
        %v2470 = vrot.slane %v2427, 4
        %v2471 = vsel %vm762, %v2451, %v2470
        %v2472 = vrot.slane %v2459, 4
        %v2473 = vsel %vm762, %v2472, %v2435
        %v2474 = vrot.slane %v2435, 4
        %v2475 = vsel %vm762, %v2459, %v2474
        %v2476 = vrot.slane %v2463, 4
        %v2477 = vsel %vm762, %v2476, %v2439
        %v2478 = vrot.slane %v2439, 4
        %v2479 = vsel %vm762, %v2463, %v2478
        %v2480 = vrot.slane %v2331, 4
        %v2481 = vsel %vm762, %v2480, %v2323
        %v2482 = vrot.slane %v2323, 4
        %v2483 = vsel %vm762, %v2331, %v2482
        %v2485 = vunpack.c.l.s4 1983009808
        %v2486 = vunpack.c.0.s8 %v2485
        %v2487 = vperm.slane %v2481, %v2486
        %v2489 = vunpack.c.l.s4 1983009808
        %v2490 = vunpack.c.0.s8 %v2489
        %v2491 = vperm.slane %v2483, %v2490
        %v2492 = vrot.slane %v2335, 4
        %v2493 = vsel %vm762, %v2492, %v2327
        %v2494 = vrot.slane %v2327, 4
        %v2495 = vsel %vm762, %v2335, %v2494
        %v2497 = vunpack.c.l.s4 1983009808
        %v2498 = vunpack.c.0.s8 %v2497
        %v2499 = vperm.slane %v2493, %v2498
        %v2501 = vunpack.c.l.s4 1983009808
        %v2502 = vunpack.c.0.s8 %v2501
        %v2503 = vperm.slane %v2495, %v2502
        %v2504 = vrot.slane %v2347, 4
        %v2505 = vsel %vm762, %v2504, %v2339
        %v2506 = vrot.slane %v2339, 4
        %v2507 = vsel %vm762, %v2347, %v2506
        %v2509 = vunpack.c.l.s4 1983009808
        %v2510 = vunpack.c.0.s8 %v2509
        %v2511 = vperm.slane %v2505, %v2510
        %v2513 = vunpack.c.l.s4 1983009808
        %v2514 = vunpack.c.0.s8 %v2513
        %v2515 = vperm.slane %v2507, %v2514
        %v2516 = vrot.slane %v2351, 4
        %v2517 = vsel %vm762, %v2516, %v2343
        %v2518 = vrot.slane %v2343, 4
        %v2519 = vsel %vm762, %v2351, %v2518
        %v2521 = vunpack.c.l.s4 1983009808
        %v2522 = vunpack.c.0.s8 %v2521
        %v2523 = vperm.slane %v2517, %v2522
        %v2525 = vunpack.c.l.s4 1983009808
        %v2526 = vunpack.c.0.s8 %v2525
        %v2527 = vperm.slane %v2519, %v2526
        %v2528 = vrot.slane %v2499, 4
        %v2529 = vsel %vm762, %v2528, %v2487
        %v2530 = vrot.slane %v2487, 4
        %v2531 = vsel %vm762, %v2499, %v2530
        %v2533 = vunpack.c.l.s4 1934713408
        %v2534 = vunpack.c.0.s8 %v2533
        %v2535 = vperm.slane %v2529, %v2534
        %v2537 = vunpack.c.l.s4 1934713408
        %v2538 = vunpack.c.0.s8 %v2537
        %v2539 = vperm.slane %v2531, %v2538
        %v2540 = vrot.slane %v2503, 4
        %v2541 = vsel %vm762, %v2540, %v2491
        %v2542 = vrot.slane %v2491, 4
        %v2543 = vsel %vm762, %v2503, %v2542
        %v2545 = vunpack.c.l.s4 1934713408
        %v2546 = vunpack.c.0.s8 %v2545
        %v2547 = vperm.slane %v2541, %v2546
        %v2549 = vunpack.c.l.s4 1934713408
        %v2550 = vunpack.c.0.s8 %v2549
        %v2551 = vperm.slane %v2543, %v2550
        %v2552 = vrot.slane %v2523, 4
        %v2553 = vsel %vm762, %v2552, %v2511
        %v2554 = vrot.slane %v2511, 4
        %v2555 = vsel %vm762, %v2523, %v2554
        %v2557 = vunpack.c.l.s4 1934713408
        %v2558 = vunpack.c.0.s8 %v2557
        %v2559 = vperm.slane %v2553, %v2558
        %v2561 = vunpack.c.l.s4 1934713408
        %v2562 = vunpack.c.0.s8 %v2561
        %v2563 = vperm.slane %v2555, %v2562
        %v2564 = vrot.slane %v2527, 4
        %v2565 = vsel %vm762, %v2564, %v2515
        %v2566 = vrot.slane %v2515, 4
        %v2567 = vsel %vm762, %v2527, %v2566
        %v2569 = vunpack.c.l.s4 1934713408
        %v2570 = vunpack.c.0.s8 %v2569
        %v2571 = vperm.slane %v2565, %v2570
        %v2573 = vunpack.c.l.s4 1934713408
        %v2574 = vunpack.c.0.s8 %v2573
        %v2575 = vperm.slane %v2567, %v2574
        %v2576 = vrot.slane %v2559, 4
        %v2577 = vsel %vm762, %v2576, %v2535
        %v2578 = vrot.slane %v2535, 4
        %v2579 = vsel %vm762, %v2559, %v2578
        %v2580 = vrot.slane %v2563, 4
        %v2581 = vsel %vm762, %v2580, %v2539
        %v2582 = vrot.slane %v2539, 4
        %v2583 = vsel %vm762, %v2563, %v2582
        %v2584 = vrot.slane %v2571, 4
        %v2585 = vsel %vm762, %v2584, %v2547
        %v2586 = vrot.slane %v2547, 4
        %v2587 = vsel %vm762, %v2571, %v2586
        %v2588 = vrot.slane %v2575, 4
        %v2589 = vsel %vm762, %v2588, %v2551
        %v2590 = vrot.slane %v2551, 4
        %v2591 = vsel %vm762, %v2575, %v2590
        %2593 = vrot.lane.b32.xlu0 %v2467, 16
        %v2594 = vpop.permute.xlu0 %2593
        %2597 = vrot.lane.b32.xlu0 %v2469, 32
        %v2598 = vpop.permute.xlu0 %2597
        %2601 = vrot.lane.b32.xlu0 %v2471, 48
        %v2602 = vpop.permute.xlu0 %2601
        %2605 = vrot.lane.b32.xlu0 %v2473, 64
        %v2606 = vpop.permute.xlu0 %2605
        %2609 = vrot.lane.b32.xlu0 %v2475, 80
        %v2610 = vpop.permute.xlu0 %2609
        %2613 = vrot.lane.b32.xlu0 %v2477, 96
        %v2614 = vpop.permute.xlu0 %2613
        %2617 = vrot.lane.b32.xlu0 %v2479, 112
        %v2618 = vpop.permute.xlu0 %2617
        %2621 = vrot.lane.b32.xlu0 %v2579, 16
        %v2622 = vpop.permute.xlu0 %2621
        %2625 = vrot.lane.b32.xlu0 %v2581, 32
        %v2626 = vpop.permute.xlu0 %2625
        %2629 = vrot.lane.b32.xlu0 %v2583, 48
        %v2630 = vpop.permute.xlu0 %2629
        %2633 = vrot.lane.b32.xlu0 %v2585, 64
        %v2634 = vpop.permute.xlu0 %2633
        %2637 = vrot.lane.b32.xlu0 %v2587, 80
        %v2638 = vpop.permute.xlu0 %2637
        %2641 = vrot.lane.b32.xlu0 %v2589, 96
        %v2642 = vpop.permute.xlu0 %2641
        %2645 = vrot.lane.b32.xlu0 %v2591, 112
        %v2646 = vpop.permute.xlu0 %2645
        %v2648 = vsel %vm1042, %v2465, %v2594
        %v2649 = vsel %vm1044, %v2648, %v2598
        %v2650 = vsel %vm1046, %v2649, %v2602
        %v2651 = vsel %vm1048, %v2650, %v2606
        %v2652 = vsel %vm1050, %v2651, %v2610
        %v2653 = vsel %vm1052, %v2652, %v2614
        %v2654 = vsel %vm1054, %v2653, %v2618
        %v2655 = vsel %vm1042, %v2577, %v2622
        %v2656 = vsel %vm1044, %v2655, %v2626
        %v2657 = vsel %vm1046, %v2656, %v2630
        %v2658 = vsel %vm1048, %v2657, %v2634
        %v2659 = vsel %vm1050, %v2658, %v2638
        %v2660 = vsel %vm1052, %v2659, %v2642
        %v2661 = vsel %vm1054, %v2660, %v2646
        %s2662 = scalar_lea.vmem [#allocation8], 16
        %v2663 = vld [vmem:[%s2662] sm:$0xf]
        %v2665 = vsel %vm480, %v2663, 0
        %2667 = vmatpush.msra.mxu0 0.0
        %2668 = vmatpush.msra.mxu0 0.0
        %2669 = vmatpush.msra.mxu0 0.0
        %2670 = vmatpush.msra.mxu0 0.0
        %2671 = vmatpush.msra.mxu0 0.0
        %2672 = vmatpush.msra.mxu0 0.0
        %2673 = vmatpush.msra.mxu0 0.0
        %2674 = vmatpush.msra.mxu0 0.0
        %2675 = vmatpush.msra.mxu0 0.0
        %2676 = vmatpush.msra.mxu0 0.0
        %2677 = vmatpush.msra.mxu0 0.0
        %2678 = vmatpush.msra.mxu0 0.0
        %2679 = vmatpush.msra.mxu0 0.0
        %2680 = vmatpush.msra.mxu0 0.0
        %2681 = vmatpush.msra.mxu0 0.0
        %2682 = vmatpush.msra.mxu0 %v2654
        %2683 = vmatmul.f32.gmra.mxu0 %v2665
        %v2684 = vpop.f32.mrf.mxu0
        %v2685 = vadd.f32 0.0, %v2684
        %2686 = vdwg.mxu0
        %2687 = vmatpush.msra.mxu0 0.0
        %2688 = vmatpush.msra.mxu0 0.0
        %2689 = vmatpush.msra.mxu0 0.0
        %2690 = vmatpush.msra.mxu0 0.0
        %2691 = vmatpush.msra.mxu0 0.0
        %2692 = vmatpush.msra.mxu0 0.0
        %2693 = vmatpush.msra.mxu0 0.0
        %2694 = vmatpush.msra.mxu0 0.0
        %2695 = vmatpush.msra.mxu0 0.0
        %2696 = vmatpush.msra.mxu0 0.0
        %2697 = vmatpush.msra.mxu0 0.0
        %2698 = vmatpush.msra.mxu0 0.0
        %2699 = vmatpush.msra.mxu0 0.0
        %2700 = vmatpush.msra.mxu0 0.0
        %2701 = vmatpush.msra.mxu0 0.0
        %2702 = vmatpush.msra.mxu0 %v2661
        %2703 = vmatmul.f32.gmra.mxu0 %v2665
        %v2704 = vpop.f32.mrf.mxu0
        %v2705 = vadd.f32 0.0, %v2704
        %2706 = vdwg.mxu0
        %v2707 = vadd.f32 %v2286, %v2685
        %v2708 = vadd.f32 %v2287, %v2705
        %v2709 = vld [vmem:[#allocation2 + $0x1] sm:$0xff]
        %v2710 = vld [vmem:[#allocation2 + $0x9] sm:$0xff]
        %v2711 = vld [vmem:[#allocation2 + $0x19] sm:$0xff]
        %v2712 = vld [vmem:[#allocation2 + $0x21] sm:$0xff]
        %v2713 = vld [vmem:[#allocation2 + $0x31] sm:$0xff]
        %v2714 = vld [vmem:[#allocation2 + $0x39] sm:$0xff]
        %v2715 = vld [vmem:[#allocation2 + $0x49] sm:$0xff]
        %v2716 = vld [vmem:[#allocation2 + $0x51] sm:$0xff]
        %v2717 = vld [vmem:[#allocation2 + $0x61] sm:$0xff]
        %v2718 = vld [vmem:[#allocation2 + $0x69] sm:$0xff]
        %v2719 = vld [vmem:[#allocation2 + $0x79] sm:$0xff]
        %v2720 = vld [vmem:[#allocation2 + $0x81] sm:$0xff]
        %v2721 = vld [vmem:[#allocation2 + $0x91] sm:$0xff]
        %v2722 = vld [vmem:[#allocation2 + $0x99] sm:$0xff]
        %v2723 = vld [vmem:[#allocation2 + $0xa9] sm:$0xff]
        %v2724 = vld [vmem:[#allocation2 + $0xb1] sm:$0xff]
        %2741 = vrot.lane.b32.xlu0 %v2709, 126
        %v2742 = vpop.permute.xlu0 %2741
        %2743 = vrot.lane.b32.xlu0 %v2710, 126
        %v2744 = vpop.permute.xlu0 %2743
        %2745 = vrot.lane.b32.xlu0 %v2711, 126
        %v2746 = vpop.permute.xlu0 %2745
        %2747 = vrot.lane.b32.xlu0 %v2712, 126
        %v2748 = vpop.permute.xlu0 %2747
        %2749 = vrot.lane.b32.xlu0 %v2713, 126
        %v2750 = vpop.permute.xlu0 %2749
        %2751 = vrot.lane.b32.xlu0 %v2714, 126
        %v2752 = vpop.permute.xlu0 %2751
        %2753 = vrot.lane.b32.xlu0 %v2715, 126
        %v2754 = vpop.permute.xlu0 %2753
        %2755 = vrot.lane.b32.xlu0 %v2716, 126
        %v2756 = vpop.permute.xlu0 %2755
        %2757 = vrot.lane.b32.xlu0 %v2717, 126
        %v2758 = vpop.permute.xlu0 %2757
        %2759 = vrot.lane.b32.xlu0 %v2718, 126
        %v2760 = vpop.permute.xlu0 %2759
        %2761 = vrot.lane.b32.xlu0 %v2719, 126
        %v2762 = vpop.permute.xlu0 %2761
        %2763 = vrot.lane.b32.xlu0 %v2720, 126
        %v2764 = vpop.permute.xlu0 %2763
        %2765 = vrot.lane.b32.xlu0 %v2721, 126
        %v2766 = vpop.permute.xlu0 %2765
        %2767 = vrot.lane.b32.xlu0 %v2722, 126
        %v2768 = vpop.permute.xlu0 %2767
        %2769 = vrot.lane.b32.xlu0 %v2723, 126
        %v2770 = vpop.permute.xlu0 %2769
        %2771 = vrot.lane.b32.xlu0 %v2724, 126
        %v2772 = vpop.permute.xlu0 %2771
        %v2789 = vrot.slane %v2750, 4
        %v2790 = vsel %vm762, %v2789, %v2742
        %v2791 = vrot.slane %v2742, 4
        %v2792 = vsel %vm762, %v2750, %v2791
        %v2794 = vunpack.c.l.s4 1983009808
        %v2795 = vunpack.c.0.s8 %v2794
        %v2796 = vperm.slane %v2790, %v2795
        %v2798 = vunpack.c.l.s4 1983009808
        %v2799 = vunpack.c.0.s8 %v2798
        %v2800 = vperm.slane %v2792, %v2799
        %v2801 = vrot.slane %v2754, 4
        %v2802 = vsel %vm762, %v2801, %v2746
        %v2803 = vrot.slane %v2746, 4
        %v2804 = vsel %vm762, %v2754, %v2803
        %v2806 = vunpack.c.l.s4 1983009808
        %v2807 = vunpack.c.0.s8 %v2806
        %v2808 = vperm.slane %v2802, %v2807
        %v2810 = vunpack.c.l.s4 1983009808
        %v2811 = vunpack.c.0.s8 %v2810
        %v2812 = vperm.slane %v2804, %v2811
        %v2813 = vrot.slane %v2766, 4
        %v2814 = vsel %vm762, %v2813, %v2758
        %v2815 = vrot.slane %v2758, 4
        %v2816 = vsel %vm762, %v2766, %v2815
        %v2818 = vunpack.c.l.s4 1983009808
        %v2819 = vunpack.c.0.s8 %v2818
        %v2820 = vperm.slane %v2814, %v2819
        %v2822 = vunpack.c.l.s4 1983009808
        %v2823 = vunpack.c.0.s8 %v2822
        %v2824 = vperm.slane %v2816, %v2823
        %v2825 = vrot.slane %v2770, 4
        %v2826 = vsel %vm762, %v2825, %v2762
        %v2827 = vrot.slane %v2762, 4
        %v2828 = vsel %vm762, %v2770, %v2827
        %v2830 = vunpack.c.l.s4 1983009808
        %v2831 = vunpack.c.0.s8 %v2830
        %v2832 = vperm.slane %v2826, %v2831
        %v2834 = vunpack.c.l.s4 1983009808
        %v2835 = vunpack.c.0.s8 %v2834
        %v2836 = vperm.slane %v2828, %v2835
        %v2837 = vrot.slane %v2808, 4
        %v2838 = vsel %vm762, %v2837, %v2796
        %v2839 = vrot.slane %v2796, 4
        %v2840 = vsel %vm762, %v2808, %v2839
        %v2842 = vunpack.c.l.s4 1934713408
        %v2843 = vunpack.c.0.s8 %v2842
        %v2844 = vperm.slane %v2838, %v2843
        %v2846 = vunpack.c.l.s4 1934713408
        %v2847 = vunpack.c.0.s8 %v2846
        %v2848 = vperm.slane %v2840, %v2847
        %v2849 = vrot.slane %v2812, 4
        %v2850 = vsel %vm762, %v2849, %v2800
        %v2851 = vrot.slane %v2800, 4
        %v2852 = vsel %vm762, %v2812, %v2851
        %v2854 = vunpack.c.l.s4 1934713408
        %v2855 = vunpack.c.0.s8 %v2854
        %v2856 = vperm.slane %v2850, %v2855
        %v2858 = vunpack.c.l.s4 1934713408
        %v2859 = vunpack.c.0.s8 %v2858
        %v2860 = vperm.slane %v2852, %v2859
        %v2861 = vrot.slane %v2832, 4
        %v2862 = vsel %vm762, %v2861, %v2820
        %v2863 = vrot.slane %v2820, 4
        %v2864 = vsel %vm762, %v2832, %v2863
        %v2866 = vunpack.c.l.s4 1934713408
        %v2867 = vunpack.c.0.s8 %v2866
        %v2868 = vperm.slane %v2862, %v2867
        %v2870 = vunpack.c.l.s4 1934713408
        %v2871 = vunpack.c.0.s8 %v2870
        %v2872 = vperm.slane %v2864, %v2871
        %v2873 = vrot.slane %v2836, 4
        %v2874 = vsel %vm762, %v2873, %v2824
        %v2875 = vrot.slane %v2824, 4
        %v2876 = vsel %vm762, %v2836, %v2875
        %v2878 = vunpack.c.l.s4 1934713408
        %v2879 = vunpack.c.0.s8 %v2878
        %v2880 = vperm.slane %v2874, %v2879
        %v2882 = vunpack.c.l.s4 1934713408
        %v2883 = vunpack.c.0.s8 %v2882
        %v2884 = vperm.slane %v2876, %v2883
        %v2885 = vrot.slane %v2868, 4
        %v2886 = vsel %vm762, %v2885, %v2844
        %v2887 = vrot.slane %v2844, 4
        %v2888 = vsel %vm762, %v2868, %v2887
        %v2889 = vrot.slane %v2872, 4
        %v2890 = vsel %vm762, %v2889, %v2848
        %v2891 = vrot.slane %v2848, 4
        %v2892 = vsel %vm762, %v2872, %v2891
        %v2893 = vrot.slane %v2880, 4
        %v2894 = vsel %vm762, %v2893, %v2856
        %v2895 = vrot.slane %v2856, 4
        %v2896 = vsel %vm762, %v2880, %v2895
        %v2897 = vrot.slane %v2884, 4
        %v2898 = vsel %vm762, %v2897, %v2860
        %v2899 = vrot.slane %v2860, 4
        %v2900 = vsel %vm762, %v2884, %v2899
        %v2901 = vrot.slane %v2752, 4
        %v2902 = vsel %vm762, %v2901, %v2744
        %v2903 = vrot.slane %v2744, 4
        %v2904 = vsel %vm762, %v2752, %v2903
        %v2906 = vunpack.c.l.s4 1983009808
        %v2907 = vunpack.c.0.s8 %v2906
        %v2908 = vperm.slane %v2902, %v2907
        %v2910 = vunpack.c.l.s4 1983009808
        %v2911 = vunpack.c.0.s8 %v2910
        %v2912 = vperm.slane %v2904, %v2911
        %v2913 = vrot.slane %v2756, 4
        %v2914 = vsel %vm762, %v2913, %v2748
        %v2915 = vrot.slane %v2748, 4
        %v2916 = vsel %vm762, %v2756, %v2915
        %v2918 = vunpack.c.l.s4 1983009808
        %v2919 = vunpack.c.0.s8 %v2918
        %v2920 = vperm.slane %v2914, %v2919
        %v2922 = vunpack.c.l.s4 1983009808
        %v2923 = vunpack.c.0.s8 %v2922
        %v2924 = vperm.slane %v2916, %v2923
        %v2925 = vrot.slane %v2768, 4
        %v2926 = vsel %vm762, %v2925, %v2760
        %v2927 = vrot.slane %v2760, 4
        %v2928 = vsel %vm762, %v2768, %v2927
        %v2930 = vunpack.c.l.s4 1983009808
        %v2931 = vunpack.c.0.s8 %v2930
        %v2932 = vperm.slane %v2926, %v2931
        %v2934 = vunpack.c.l.s4 1983009808
        %v2935 = vunpack.c.0.s8 %v2934
        %v2936 = vperm.slane %v2928, %v2935
        %v2937 = vrot.slane %v2772, 4
        %v2938 = vsel %vm762, %v2937, %v2764
        %v2939 = vrot.slane %v2764, 4
        %v2940 = vsel %vm762, %v2772, %v2939
        %v2942 = vunpack.c.l.s4 1983009808
        %v2943 = vunpack.c.0.s8 %v2942
        %v2944 = vperm.slane %v2938, %v2943
        %v2946 = vunpack.c.l.s4 1983009808
        %v2947 = vunpack.c.0.s8 %v2946
        %v2948 = vperm.slane %v2940, %v2947
        %v2949 = vrot.slane %v2920, 4
        %v2950 = vsel %vm762, %v2949, %v2908
        %v2951 = vrot.slane %v2908, 4
        %v2952 = vsel %vm762, %v2920, %v2951
        %v2954 = vunpack.c.l.s4 1934713408
        %v2955 = vunpack.c.0.s8 %v2954
        %v2956 = vperm.slane %v2950, %v2955
        %v2958 = vunpack.c.l.s4 1934713408
        %v2959 = vunpack.c.0.s8 %v2958
        %v2960 = vperm.slane %v2952, %v2959
        %v2961 = vrot.slane %v2924, 4
        %v2962 = vsel %vm762, %v2961, %v2912
        %v2963 = vrot.slane %v2912, 4
        %v2964 = vsel %vm762, %v2924, %v2963
        %v2966 = vunpack.c.l.s4 1934713408
        %v2967 = vunpack.c.0.s8 %v2966
        %v2968 = vperm.slane %v2962, %v2967
        %v2970 = vunpack.c.l.s4 1934713408
        %v2971 = vunpack.c.0.s8 %v2970
        %v2972 = vperm.slane %v2964, %v2971
        %v2973 = vrot.slane %v2944, 4
        %v2974 = vsel %vm762, %v2973, %v2932
        %v2975 = vrot.slane %v2932, 4
        %v2976 = vsel %vm762, %v2944, %v2975
        %v2978 = vunpack.c.l.s4 1934713408
        %v2979 = vunpack.c.0.s8 %v2978
        %v2980 = vperm.slane %v2974, %v2979
        %v2982 = vunpack.c.l.s4 1934713408
        %v2983 = vunpack.c.0.s8 %v2982
        %v2984 = vperm.slane %v2976, %v2983
        %v2985 = vrot.slane %v2948, 4
        %v2986 = vsel %vm762, %v2985, %v2936
        %v2987 = vrot.slane %v2936, 4
        %v2988 = vsel %vm762, %v2948, %v2987
        %v2990 = vunpack.c.l.s4 1934713408
        %v2991 = vunpack.c.0.s8 %v2990
        %v2992 = vperm.slane %v2986, %v2991
        %v2994 = vunpack.c.l.s4 1934713408
        %v2995 = vunpack.c.0.s8 %v2994
        %v2996 = vperm.slane %v2988, %v2995
        %v2997 = vrot.slane %v2980, 4
        %v2998 = vsel %vm762, %v2997, %v2956
        %v2999 = vrot.slane %v2956, 4
        %v3000 = vsel %vm762, %v2980, %v2999
        %v3001 = vrot.slane %v2984, 4
        %v3002 = vsel %vm762, %v3001, %v2960
        %v3003 = vrot.slane %v2960, 4
        %v3004 = vsel %vm762, %v2984, %v3003
        %v3005 = vrot.slane %v2992, 4
        %v3006 = vsel %vm762, %v3005, %v2968
        %v3007 = vrot.slane %v2968, 4
        %v3008 = vsel %vm762, %v2992, %v3007
        %v3009 = vrot.slane %v2996, 4
        %v3010 = vsel %vm762, %v3009, %v2972
        %v3011 = vrot.slane %v2972, 4
        %v3012 = vsel %vm762, %v2996, %v3011
        %3014 = vrot.lane.b32.xlu0 %v2888, 16
        %v3015 = vpop.permute.xlu0 %3014
        %3018 = vrot.lane.b32.xlu0 %v2890, 32
        %v3019 = vpop.permute.xlu0 %3018
        %3022 = vrot.lane.b32.xlu0 %v2892, 48
        %v3023 = vpop.permute.xlu0 %3022
        %3026 = vrot.lane.b32.xlu0 %v2894, 64
        %v3027 = vpop.permute.xlu0 %3026
        %3030 = vrot.lane.b32.xlu0 %v2896, 80
        %v3031 = vpop.permute.xlu0 %3030
        %3034 = vrot.lane.b32.xlu0 %v2898, 96
        %v3035 = vpop.permute.xlu0 %3034
        %3038 = vrot.lane.b32.xlu0 %v2900, 112
        %v3039 = vpop.permute.xlu0 %3038
        %3042 = vrot.lane.b32.xlu0 %v3000, 16
        %v3043 = vpop.permute.xlu0 %3042
        %3046 = vrot.lane.b32.xlu0 %v3002, 32
        %v3047 = vpop.permute.xlu0 %3046
        %3050 = vrot.lane.b32.xlu0 %v3004, 48
        %v3051 = vpop.permute.xlu0 %3050
        %3054 = vrot.lane.b32.xlu0 %v3006, 64
        %v3055 = vpop.permute.xlu0 %3054
        %3058 = vrot.lane.b32.xlu0 %v3008, 80
        %v3059 = vpop.permute.xlu0 %3058
        %3062 = vrot.lane.b32.xlu0 %v3010, 96
        %v3063 = vpop.permute.xlu0 %3062
        %3066 = vrot.lane.b32.xlu0 %v3012, 112
        %v3067 = vpop.permute.xlu0 %3066
        %v3069 = vsel %vm1042, %v2886, %v3015
        %v3070 = vsel %vm1044, %v3069, %v3019
        %v3071 = vsel %vm1046, %v3070, %v3023
        %v3072 = vsel %vm1048, %v3071, %v3027
        %v3073 = vsel %vm1050, %v3072, %v3031
        %v3074 = vsel %vm1052, %v3073, %v3035
        %v3075 = vsel %vm1054, %v3074, %v3039
        %v3076 = vsel %vm1042, %v2998, %v3043
        %v3077 = vsel %vm1044, %v3076, %v3047
        %v3078 = vsel %vm1046, %v3077, %v3051
        %v3079 = vsel %vm1048, %v3078, %v3055
        %v3080 = vsel %vm1050, %v3079, %v3059
        %v3081 = vsel %vm1052, %v3080, %v3063
        %v3082 = vsel %vm1054, %v3081, %v3067
        %s3083 = scalar_lea.vmem [#allocation8], 20
        %v3084 = vld [vmem:[%s3083] sm:$0xf]
        %v3086 = vsel %vm480, %v3084, 0
        %3088 = vmatpush.msra.mxu0 0.0
        %3089 = vmatpush.msra.mxu0 0.0
        %3090 = vmatpush.msra.mxu0 0.0
        %3091 = vmatpush.msra.mxu0 0.0
        %3092 = vmatpush.msra.mxu0 0.0
        %3093 = vmatpush.msra.mxu0 0.0
        %3094 = vmatpush.msra.mxu0 0.0
        %3095 = vmatpush.msra.mxu0 0.0
        %3096 = vmatpush.msra.mxu0 0.0
        %3097 = vmatpush.msra.mxu0 0.0
        %3098 = vmatpush.msra.mxu0 0.0
        %3099 = vmatpush.msra.mxu0 0.0
        %3100 = vmatpush.msra.mxu0 0.0
        %3101 = vmatpush.msra.mxu0 0.0
        %3102 = vmatpush.msra.mxu0 0.0
        %3103 = vmatpush.msra.mxu0 %v3075
        %3104 = vmatmul.f32.gmra.mxu0 %v3086
        %v3105 = vpop.f32.mrf.mxu0
        %v3106 = vadd.f32 0.0, %v3105
        %3107 = vdwg.mxu0
        %3108 = vmatpush.msra.mxu0 0.0
        %3109 = vmatpush.msra.mxu0 0.0
        %3110 = vmatpush.msra.mxu0 0.0
        %3111 = vmatpush.msra.mxu0 0.0
        %3112 = vmatpush.msra.mxu0 0.0
        %3113 = vmatpush.msra.mxu0 0.0
        %3114 = vmatpush.msra.mxu0 0.0
        %3115 = vmatpush.msra.mxu0 0.0
        %3116 = vmatpush.msra.mxu0 0.0
        %3117 = vmatpush.msra.mxu0 0.0
        %3118 = vmatpush.msra.mxu0 0.0
        %3119 = vmatpush.msra.mxu0 0.0
        %3120 = vmatpush.msra.mxu0 0.0
        %3121 = vmatpush.msra.mxu0 0.0
        %3122 = vmatpush.msra.mxu0 0.0
        %3123 = vmatpush.msra.mxu0 %v3082
        %3124 = vmatmul.f32.gmra.mxu0 %v3086
        %v3125 = vpop.f32.mrf.mxu0
        %v3126 = vadd.f32 0.0, %v3125
        %3127 = vdwg.mxu0
        %v3128 = vadd.f32 %v2707, %v3106
        %v3129 = vadd.f32 %v2708, %v3126
        %v3130 = vld [vmem:[#allocation2 + $0x2] sm:$0xff]
        %v3131 = vld [vmem:[#allocation2 + $0xa] sm:$0xff]
        %v3132 = vld [vmem:[#allocation2 + $0x1a] sm:$0xff]
        %v3133 = vld [vmem:[#allocation2 + $0x22] sm:$0xff]
        %v3134 = vld [vmem:[#allocation2 + $0x32] sm:$0xff]
        %v3135 = vld [vmem:[#allocation2 + $0x3a] sm:$0xff]
        %v3136 = vld [vmem:[#allocation2 + $0x4a] sm:$0xff]
        %v3137 = vld [vmem:[#allocation2 + $0x52] sm:$0xff]
        %v3138 = vld [vmem:[#allocation2 + $0x62] sm:$0xff]
        %v3139 = vld [vmem:[#allocation2 + $0x6a] sm:$0xff]
        %v3140 = vld [vmem:[#allocation2 + $0x7a] sm:$0xff]
        %v3141 = vld [vmem:[#allocation2 + $0x82] sm:$0xff]
        %v3142 = vld [vmem:[#allocation2 + $0x92] sm:$0xff]
        %v3143 = vld [vmem:[#allocation2 + $0x9a] sm:$0xff]
        %v3144 = vld [vmem:[#allocation2 + $0xaa] sm:$0xff]
        %v3145 = vld [vmem:[#allocation2 + $0xb2] sm:$0xff]
        %v3146 = vrot.slane %v3134, 4
        %v3147 = vsel %vm762, %v3146, %v3130
        %v3148 = vrot.slane %v3130, 4
        %v3149 = vsel %vm762, %v3134, %v3148
        %v3151 = vunpack.c.l.s4 1983009808
        %v3152 = vunpack.c.0.s8 %v3151
        %v3153 = vperm.slane %v3147, %v3152
        %v3155 = vunpack.c.l.s4 1983009808
        %v3156 = vunpack.c.0.s8 %v3155
        %v3157 = vperm.slane %v3149, %v3156
        %v3158 = vrot.slane %v3136, 4
        %v3159 = vsel %vm762, %v3158, %v3132
        %v3160 = vrot.slane %v3132, 4
        %v3161 = vsel %vm762, %v3136, %v3160
        %v3163 = vunpack.c.l.s4 1983009808
        %v3164 = vunpack.c.0.s8 %v3163
        %v3165 = vperm.slane %v3159, %v3164
        %v3167 = vunpack.c.l.s4 1983009808
        %v3168 = vunpack.c.0.s8 %v3167
        %v3169 = vperm.slane %v3161, %v3168
        %v3170 = vrot.slane %v3142, 4
        %v3171 = vsel %vm762, %v3170, %v3138
        %v3172 = vrot.slane %v3138, 4
        %v3173 = vsel %vm762, %v3142, %v3172
        %v3175 = vunpack.c.l.s4 1983009808
        %v3176 = vunpack.c.0.s8 %v3175
        %v3177 = vperm.slane %v3171, %v3176
        %v3179 = vunpack.c.l.s4 1983009808
        %v3180 = vunpack.c.0.s8 %v3179
        %v3181 = vperm.slane %v3173, %v3180
        %v3182 = vrot.slane %v3144, 4
        %v3183 = vsel %vm762, %v3182, %v3140
        %v3184 = vrot.slane %v3140, 4
        %v3185 = vsel %vm762, %v3144, %v3184
        %v3187 = vunpack.c.l.s4 1983009808
        %v3188 = vunpack.c.0.s8 %v3187
        %v3189 = vperm.slane %v3183, %v3188
        %v3191 = vunpack.c.l.s4 1983009808
        %v3192 = vunpack.c.0.s8 %v3191
        %v3193 = vperm.slane %v3185, %v3192
        %v3194 = vrot.slane %v3165, 4
        %v3195 = vsel %vm762, %v3194, %v3153
        %v3196 = vrot.slane %v3153, 4
        %v3197 = vsel %vm762, %v3165, %v3196
        %v3199 = vunpack.c.l.s4 1934713408
        %v3200 = vunpack.c.0.s8 %v3199
        %v3201 = vperm.slane %v3195, %v3200
        %v3203 = vunpack.c.l.s4 1934713408
        %v3204 = vunpack.c.0.s8 %v3203
        %v3205 = vperm.slane %v3197, %v3204
        %v3206 = vrot.slane %v3169, 4
        %v3207 = vsel %vm762, %v3206, %v3157
        %v3208 = vrot.slane %v3157, 4
        %v3209 = vsel %vm762, %v3169, %v3208
        %v3211 = vunpack.c.l.s4 1934713408
        %v3212 = vunpack.c.0.s8 %v3211
        %v3213 = vperm.slane %v3207, %v3212
        %v3215 = vunpack.c.l.s4 1934713408
        %v3216 = vunpack.c.0.s8 %v3215
        %v3217 = vperm.slane %v3209, %v3216
        %v3218 = vrot.slane %v3189, 4
        %v3219 = vsel %vm762, %v3218, %v3177
        %v3220 = vrot.slane %v3177, 4
        %v3221 = vsel %vm762, %v3189, %v3220
        %v3223 = vunpack.c.l.s4 1934713408
        %v3224 = vunpack.c.0.s8 %v3223
        %v3225 = vperm.slane %v3219, %v3224
        %v3227 = vunpack.c.l.s4 1934713408
        %v3228 = vunpack.c.0.s8 %v3227
        %v3229 = vperm.slane %v3221, %v3228
        %v3230 = vrot.slane %v3193, 4
        %v3231 = vsel %vm762, %v3230, %v3181
        %v3232 = vrot.slane %v3181, 4
        %v3233 = vsel %vm762, %v3193, %v3232
        %v3235 = vunpack.c.l.s4 1934713408
        %v3236 = vunpack.c.0.s8 %v3235
        %v3237 = vperm.slane %v3231, %v3236
        %v3239 = vunpack.c.l.s4 1934713408
        %v3240 = vunpack.c.0.s8 %v3239
        %v3241 = vperm.slane %v3233, %v3240
        %v3242 = vrot.slane %v3225, 4
        %v3243 = vsel %vm762, %v3242, %v3201
        %v3244 = vrot.slane %v3201, 4
        %v3245 = vsel %vm762, %v3225, %v3244
        %v3246 = vrot.slane %v3229, 4
        %v3247 = vsel %vm762, %v3246, %v3205
        %v3248 = vrot.slane %v3205, 4
        %v3249 = vsel %vm762, %v3229, %v3248
        %v3250 = vrot.slane %v3237, 4
        %v3251 = vsel %vm762, %v3250, %v3213
        %v3252 = vrot.slane %v3213, 4
        %v3253 = vsel %vm762, %v3237, %v3252
        %v3254 = vrot.slane %v3241, 4
        %v3255 = vsel %vm762, %v3254, %v3217
        %v3256 = vrot.slane %v3217, 4
        %v3257 = vsel %vm762, %v3241, %v3256
        %v3258 = vrot.slane %v3135, 4
        %v3259 = vsel %vm762, %v3258, %v3131
        %v3260 = vrot.slane %v3131, 4
        %v3261 = vsel %vm762, %v3135, %v3260
        %v3263 = vunpack.c.l.s4 1983009808
        %v3264 = vunpack.c.0.s8 %v3263
        %v3265 = vperm.slane %v3259, %v3264
        %v3267 = vunpack.c.l.s4 1983009808
        %v3268 = vunpack.c.0.s8 %v3267
        %v3269 = vperm.slane %v3261, %v3268
        %v3270 = vrot.slane %v3137, 4
        %v3271 = vsel %vm762, %v3270, %v3133
        %v3272 = vrot.slane %v3133, 4
        %v3273 = vsel %vm762, %v3137, %v3272
        %v3275 = vunpack.c.l.s4 1983009808
        %v3276 = vunpack.c.0.s8 %v3275
        %v3277 = vperm.slane %v3271, %v3276
        %v3279 = vunpack.c.l.s4 1983009808
        %v3280 = vunpack.c.0.s8 %v3279
        %v3281 = vperm.slane %v3273, %v3280
        %v3282 = vrot.slane %v3143, 4
        %v3283 = vsel %vm762, %v3282, %v3139
        %v3284 = vrot.slane %v3139, 4
        %v3285 = vsel %vm762, %v3143, %v3284
        %v3287 = vunpack.c.l.s4 1983009808
        %v3288 = vunpack.c.0.s8 %v3287
        %v3289 = vperm.slane %v3283, %v3288
        %v3291 = vunpack.c.l.s4 1983009808
        %v3292 = vunpack.c.0.s8 %v3291
        %v3293 = vperm.slane %v3285, %v3292
        %v3294 = vrot.slane %v3145, 4
        %v3295 = vsel %vm762, %v3294, %v3141
        %v3296 = vrot.slane %v3141, 4
        %v3297 = vsel %vm762, %v3145, %v3296
        %v3299 = vunpack.c.l.s4 1983009808
        %v3300 = vunpack.c.0.s8 %v3299
        %v3301 = vperm.slane %v3295, %v3300
        %v3303 = vunpack.c.l.s4 1983009808
        %v3304 = vunpack.c.0.s8 %v3303
        %v3305 = vperm.slane %v3297, %v3304
        %v3306 = vrot.slane %v3277, 4
        %v3307 = vsel %vm762, %v3306, %v3265
        %v3308 = vrot.slane %v3265, 4
        %v3309 = vsel %vm762, %v3277, %v3308
        %v3311 = vunpack.c.l.s4 1934713408
        %v3312 = vunpack.c.0.s8 %v3311
        %v3313 = vperm.slane %v3307, %v3312
        %v3315 = vunpack.c.l.s4 1934713408
        %v3316 = vunpack.c.0.s8 %v3315
        %v3317 = vperm.slane %v3309, %v3316
        %v3318 = vrot.slane %v3281, 4
        %v3319 = vsel %vm762, %v3318, %v3269
        %v3320 = vrot.slane %v3269, 4
        %v3321 = vsel %vm762, %v3281, %v3320
        %v3323 = vunpack.c.l.s4 1934713408
        %v3324 = vunpack.c.0.s8 %v3323
        %v3325 = vperm.slane %v3319, %v3324
        %v3327 = vunpack.c.l.s4 1934713408
        %v3328 = vunpack.c.0.s8 %v3327
        %v3329 = vperm.slane %v3321, %v3328
        %v3330 = vrot.slane %v3301, 4
        %v3331 = vsel %vm762, %v3330, %v3289
        %v3332 = vrot.slane %v3289, 4
        %v3333 = vsel %vm762, %v3301, %v3332
        %v3335 = vunpack.c.l.s4 1934713408
        %v3336 = vunpack.c.0.s8 %v3335
        %v3337 = vperm.slane %v3331, %v3336
        %v3339 = vunpack.c.l.s4 1934713408
        %v3340 = vunpack.c.0.s8 %v3339
        %v3341 = vperm.slane %v3333, %v3340
        %v3342 = vrot.slane %v3305, 4
        %v3343 = vsel %vm762, %v3342, %v3293
        %v3344 = vrot.slane %v3293, 4
        %v3345 = vsel %vm762, %v3305, %v3344
        %v3347 = vunpack.c.l.s4 1934713408
        %v3348 = vunpack.c.0.s8 %v3347
        %v3349 = vperm.slane %v3343, %v3348
        %v3351 = vunpack.c.l.s4 1934713408
        %v3352 = vunpack.c.0.s8 %v3351
        %v3353 = vperm.slane %v3345, %v3352
        %v3354 = vrot.slane %v3337, 4
        %v3355 = vsel %vm762, %v3354, %v3313
        %v3356 = vrot.slane %v3313, 4
        %v3357 = vsel %vm762, %v3337, %v3356
        %v3358 = vrot.slane %v3341, 4
        %v3359 = vsel %vm762, %v3358, %v3317
        %v3360 = vrot.slane %v3317, 4
        %v3361 = vsel %vm762, %v3341, %v3360
        %v3362 = vrot.slane %v3349, 4
        %v3363 = vsel %vm762, %v3362, %v3325
        %v3364 = vrot.slane %v3325, 4
        %v3365 = vsel %vm762, %v3349, %v3364
        %v3366 = vrot.slane %v3353, 4
        %v3367 = vsel %vm762, %v3366, %v3329
        %v3368 = vrot.slane %v3329, 4
        %v3369 = vsel %vm762, %v3353, %v3368
        %3371 = vrot.lane.b32.xlu0 %v3245, 16
        %v3372 = vpop.permute.xlu0 %3371
        %3375 = vrot.lane.b32.xlu0 %v3247, 32
        %v3376 = vpop.permute.xlu0 %3375
        %3379 = vrot.lane.b32.xlu0 %v3249, 48
        %v3380 = vpop.permute.xlu0 %3379
        %3383 = vrot.lane.b32.xlu0 %v3251, 64
        %v3384 = vpop.permute.xlu0 %3383
        %3387 = vrot.lane.b32.xlu0 %v3253, 80
        %v3388 = vpop.permute.xlu0 %3387
        %3391 = vrot.lane.b32.xlu0 %v3255, 96
        %v3392 = vpop.permute.xlu0 %3391
        %3395 = vrot.lane.b32.xlu0 %v3257, 112
        %v3396 = vpop.permute.xlu0 %3395
        %3399 = vrot.lane.b32.xlu0 %v3357, 16
        %v3400 = vpop.permute.xlu0 %3399
        %3403 = vrot.lane.b32.xlu0 %v3359, 32
        %v3404 = vpop.permute.xlu0 %3403
        %3407 = vrot.lane.b32.xlu0 %v3361, 48
        %v3408 = vpop.permute.xlu0 %3407
        %3411 = vrot.lane.b32.xlu0 %v3363, 64
        %v3412 = vpop.permute.xlu0 %3411
        %3415 = vrot.lane.b32.xlu0 %v3365, 80
        %v3416 = vpop.permute.xlu0 %3415
        %3419 = vrot.lane.b32.xlu0 %v3367, 96
        %v3420 = vpop.permute.xlu0 %3419
        %3423 = vrot.lane.b32.xlu0 %v3369, 112
        %v3424 = vpop.permute.xlu0 %3423
        %v3426 = vsel %vm1042, %v3243, %v3372
        %v3427 = vsel %vm1044, %v3426, %v3376
        %v3428 = vsel %vm1046, %v3427, %v3380
        %v3429 = vsel %vm1048, %v3428, %v3384
        %v3430 = vsel %vm1050, %v3429, %v3388
        %v3431 = vsel %vm1052, %v3430, %v3392
        %v3432 = vsel %vm1054, %v3431, %v3396
        %v3433 = vsel %vm1042, %v3355, %v3400
        %v3434 = vsel %vm1044, %v3433, %v3404
        %v3435 = vsel %vm1046, %v3434, %v3408
        %v3436 = vsel %vm1048, %v3435, %v3412
        %v3437 = vsel %vm1050, %v3436, %v3416
        %v3438 = vsel %vm1052, %v3437, %v3420
        %v3439 = vsel %vm1054, %v3438, %v3424
        %s3440 = scalar_lea.vmem [#allocation8], 24
        %v3441 = vld [vmem:[%s3440] sm:$0xf]
        %v3443 = vsel %vm480, %v3441, 0
        %3445 = vmatpush.msra.mxu0 0.0
        %3446 = vmatpush.msra.mxu0 0.0
        %3447 = vmatpush.msra.mxu0 0.0
        %3448 = vmatpush.msra.mxu0 0.0
        %3449 = vmatpush.msra.mxu0 0.0
        %3450 = vmatpush.msra.mxu0 0.0
        %3451 = vmatpush.msra.mxu0 0.0
        %3452 = vmatpush.msra.mxu0 0.0
        %3453 = vmatpush.msra.mxu0 0.0
        %3454 = vmatpush.msra.mxu0 0.0
        %3455 = vmatpush.msra.mxu0 0.0
        %3456 = vmatpush.msra.mxu0 0.0
        %3457 = vmatpush.msra.mxu0 0.0
        %3458 = vmatpush.msra.mxu0 0.0
        %3459 = vmatpush.msra.mxu0 0.0
        %3460 = vmatpush.msra.mxu0 %v3432
        %3461 = vmatmul.f32.gmra.mxu0 %v3443
        %v3462 = vpop.f32.mrf.mxu0
        %v3463 = vadd.f32 0.0, %v3462
        %3464 = vdwg.mxu0
        %3465 = vmatpush.msra.mxu0 0.0
        %3466 = vmatpush.msra.mxu0 0.0
        %3467 = vmatpush.msra.mxu0 0.0
        %3468 = vmatpush.msra.mxu0 0.0
        %3469 = vmatpush.msra.mxu0 0.0
        %3470 = vmatpush.msra.mxu0 0.0
        %3471 = vmatpush.msra.mxu0 0.0
        %3472 = vmatpush.msra.mxu0 0.0
        %3473 = vmatpush.msra.mxu0 0.0
        %3474 = vmatpush.msra.mxu0 0.0
        %3475 = vmatpush.msra.mxu0 0.0
        %3476 = vmatpush.msra.mxu0 0.0
        %3477 = vmatpush.msra.mxu0 0.0
        %3478 = vmatpush.msra.mxu0 0.0
        %3479 = vmatpush.msra.mxu0 0.0
        %3480 = vmatpush.msra.mxu0 %v3439
        %3481 = vmatmul.f32.gmra.mxu0 %v3443
        %v3482 = vpop.f32.mrf.mxu0
        %v3483 = vadd.f32 0.0, %v3482
        %3484 = vdwg.mxu0
        %v3485 = vadd.f32 %v3128, %v3463
        %v3486 = vadd.f32 %v3129, %v3483
        %v3487 = vld [vmem:[#allocation2 + $0x2] sm:$0xff]
        %v3488 = vld [vmem:[#allocation2 + $0xa] sm:$0xff]
        %v3489 = vld [vmem:[#allocation2 + $0x1a] sm:$0xff]
        %v3490 = vld [vmem:[#allocation2 + $0x22] sm:$0xff]
        %v3491 = vld [vmem:[#allocation2 + $0x32] sm:$0xff]
        %v3492 = vld [vmem:[#allocation2 + $0x3a] sm:$0xff]
        %v3493 = vld [vmem:[#allocation2 + $0x4a] sm:$0xff]
        %v3494 = vld [vmem:[#allocation2 + $0x52] sm:$0xff]
        %v3495 = vld [vmem:[#allocation2 + $0x62] sm:$0xff]
        %v3496 = vld [vmem:[#allocation2 + $0x6a] sm:$0xff]
        %v3497 = vld [vmem:[#allocation2 + $0x7a] sm:$0xff]
        %v3498 = vld [vmem:[#allocation2 + $0x82] sm:$0xff]
        %v3499 = vld [vmem:[#allocation2 + $0x92] sm:$0xff]
        %v3500 = vld [vmem:[#allocation2 + $0x9a] sm:$0xff]
        %v3501 = vld [vmem:[#allocation2 + $0xaa] sm:$0xff]
        %v3502 = vld [vmem:[#allocation2 + $0xb2] sm:$0xff]
        %3519 = vrot.lane.b32.xlu0 %v3487, 127
        %v3520 = vpop.permute.xlu0 %3519
        %3521 = vrot.lane.b32.xlu0 %v3488, 127
        %v3522 = vpop.permute.xlu0 %3521
        %3523 = vrot.lane.b32.xlu0 %v3489, 127
        %v3524 = vpop.permute.xlu0 %3523
        %3525 = vrot.lane.b32.xlu0 %v3490, 127
        %v3526 = vpop.permute.xlu0 %3525
        %3527 = vrot.lane.b32.xlu0 %v3491, 127
        %v3528 = vpop.permute.xlu0 %3527
        %3529 = vrot.lane.b32.xlu0 %v3492, 127
        %v3530 = vpop.permute.xlu0 %3529
        %3531 = vrot.lane.b32.xlu0 %v3493, 127
        %v3532 = vpop.permute.xlu0 %3531
        %3533 = vrot.lane.b32.xlu0 %v3494, 127
        %v3534 = vpop.permute.xlu0 %3533
        %3535 = vrot.lane.b32.xlu0 %v3495, 127
        %v3536 = vpop.permute.xlu0 %3535
        %3537 = vrot.lane.b32.xlu0 %v3496, 127
        %v3538 = vpop.permute.xlu0 %3537
        %3539 = vrot.lane.b32.xlu0 %v3497, 127
        %v3540 = vpop.permute.xlu0 %3539
        %3541 = vrot.lane.b32.xlu0 %v3498, 127
        %v3542 = vpop.permute.xlu0 %3541
        %3543 = vrot.lane.b32.xlu0 %v3499, 127
        %v3544 = vpop.permute.xlu0 %3543
        %3545 = vrot.lane.b32.xlu0 %v3500, 127
        %v3546 = vpop.permute.xlu0 %3545
        %3547 = vrot.lane.b32.xlu0 %v3501, 127
        %v3548 = vpop.permute.xlu0 %3547
        %3549 = vrot.lane.b32.xlu0 %v3502, 127
        %v3550 = vpop.permute.xlu0 %3549
        %v3567 = vrot.slane %v3528, 4
        %v3568 = vsel %vm762, %v3567, %v3520
        %v3569 = vrot.slane %v3520, 4
        %v3570 = vsel %vm762, %v3528, %v3569
        %v3572 = vunpack.c.l.s4 1983009808
        %v3573 = vunpack.c.0.s8 %v3572
        %v3574 = vperm.slane %v3568, %v3573
        %v3576 = vunpack.c.l.s4 1983009808
        %v3577 = vunpack.c.0.s8 %v3576
        %v3578 = vperm.slane %v3570, %v3577
        %v3579 = vrot.slane %v3532, 4
        %v3580 = vsel %vm762, %v3579, %v3524
        %v3581 = vrot.slane %v3524, 4
        %v3582 = vsel %vm762, %v3532, %v3581
        %v3584 = vunpack.c.l.s4 1983009808
        %v3585 = vunpack.c.0.s8 %v3584
        %v3586 = vperm.slane %v3580, %v3585
        %v3588 = vunpack.c.l.s4 1983009808
        %v3589 = vunpack.c.0.s8 %v3588
        %v3590 = vperm.slane %v3582, %v3589
        %v3591 = vrot.slane %v3544, 4
        %v3592 = vsel %vm762, %v3591, %v3536
        %v3593 = vrot.slane %v3536, 4
        %v3594 = vsel %vm762, %v3544, %v3593
        %v3596 = vunpack.c.l.s4 1983009808
        %v3597 = vunpack.c.0.s8 %v3596
        %v3598 = vperm.slane %v3592, %v3597
        %v3600 = vunpack.c.l.s4 1983009808
        %v3601 = vunpack.c.0.s8 %v3600
        %v3602 = vperm.slane %v3594, %v3601
        %v3603 = vrot.slane %v3548, 4
        %v3604 = vsel %vm762, %v3603, %v3540
        %v3605 = vrot.slane %v3540, 4
        %v3606 = vsel %vm762, %v3548, %v3605
        %v3608 = vunpack.c.l.s4 1983009808
        %v3609 = vunpack.c.0.s8 %v3608
        %v3610 = vperm.slane %v3604, %v3609
        %v3612 = vunpack.c.l.s4 1983009808
        %v3613 = vunpack.c.0.s8 %v3612
        %v3614 = vperm.slane %v3606, %v3613
        %v3615 = vrot.slane %v3586, 4
        %v3616 = vsel %vm762, %v3615, %v3574
        %v3617 = vrot.slane %v3574, 4
        %v3618 = vsel %vm762, %v3586, %v3617
        %v3620 = vunpack.c.l.s4 1934713408
        %v3621 = vunpack.c.0.s8 %v3620
        %v3622 = vperm.slane %v3616, %v3621
        %v3624 = vunpack.c.l.s4 1934713408
        %v3625 = vunpack.c.0.s8 %v3624
        %v3626 = vperm.slane %v3618, %v3625
        %v3627 = vrot.slane %v3590, 4
        %v3628 = vsel %vm762, %v3627, %v3578
        %v3629 = vrot.slane %v3578, 4
        %v3630 = vsel %vm762, %v3590, %v3629
        %v3632 = vunpack.c.l.s4 1934713408
        %v3633 = vunpack.c.0.s8 %v3632
        %v3634 = vperm.slane %v3628, %v3633
        %v3636 = vunpack.c.l.s4 1934713408
        %v3637 = vunpack.c.0.s8 %v3636
        %v3638 = vperm.slane %v3630, %v3637
        %v3639 = vrot.slane %v3610, 4
        %v3640 = vsel %vm762, %v3639, %v3598
        %v3641 = vrot.slane %v3598, 4
        %v3642 = vsel %vm762, %v3610, %v3641
        %v3644 = vunpack.c.l.s4 1934713408
        %v3645 = vunpack.c.0.s8 %v3644
        %v3646 = vperm.slane %v3640, %v3645
        %v3648 = vunpack.c.l.s4 1934713408
        %v3649 = vunpack.c.0.s8 %v3648
        %v3650 = vperm.slane %v3642, %v3649
        %v3651 = vrot.slane %v3614, 4
        %v3652 = vsel %vm762, %v3651, %v3602
        %v3653 = vrot.slane %v3602, 4
        %v3654 = vsel %vm762, %v3614, %v3653
        %v3656 = vunpack.c.l.s4 1934713408
        %v3657 = vunpack.c.0.s8 %v3656
        %v3658 = vperm.slane %v3652, %v3657
        %v3660 = vunpack.c.l.s4 1934713408
        %v3661 = vunpack.c.0.s8 %v3660
        %v3662 = vperm.slane %v3654, %v3661
        %v3663 = vrot.slane %v3646, 4
        %v3664 = vsel %vm762, %v3663, %v3622
        %v3665 = vrot.slane %v3622, 4
        %v3666 = vsel %vm762, %v3646, %v3665
        %v3667 = vrot.slane %v3650, 4
        %v3668 = vsel %vm762, %v3667, %v3626
        %v3669 = vrot.slane %v3626, 4
        %v3670 = vsel %vm762, %v3650, %v3669
        %v3671 = vrot.slane %v3658, 4
        %v3672 = vsel %vm762, %v3671, %v3634
        %v3673 = vrot.slane %v3634, 4
        %v3674 = vsel %vm762, %v3658, %v3673
        %v3675 = vrot.slane %v3662, 4
        %v3676 = vsel %vm762, %v3675, %v3638
        %v3677 = vrot.slane %v3638, 4
        %v3678 = vsel %vm762, %v3662, %v3677
        %v3679 = vrot.slane %v3530, 4
        %v3680 = vsel %vm762, %v3679, %v3522
        %v3681 = vrot.slane %v3522, 4
        %v3682 = vsel %vm762, %v3530, %v3681
        %v3684 = vunpack.c.l.s4 1983009808
        %v3685 = vunpack.c.0.s8 %v3684
        %v3686 = vperm.slane %v3680, %v3685
        %v3688 = vunpack.c.l.s4 1983009808
        %v3689 = vunpack.c.0.s8 %v3688
        %v3690 = vperm.slane %v3682, %v3689
        %v3691 = vrot.slane %v3534, 4
        %v3692 = vsel %vm762, %v3691, %v3526
        %v3693 = vrot.slane %v3526, 4
        %v3694 = vsel %vm762, %v3534, %v3693
        %v3696 = vunpack.c.l.s4 1983009808
        %v3697 = vunpack.c.0.s8 %v3696
        %v3698 = vperm.slane %v3692, %v3697
        %v3700 = vunpack.c.l.s4 1983009808
        %v3701 = vunpack.c.0.s8 %v3700
        %v3702 = vperm.slane %v3694, %v3701
        %v3703 = vrot.slane %v3546, 4
        %v3704 = vsel %vm762, %v3703, %v3538
        %v3705 = vrot.slane %v3538, 4
        %v3706 = vsel %vm762, %v3546, %v3705
        %v3708 = vunpack.c.l.s4 1983009808
        %v3709 = vunpack.c.0.s8 %v3708
        %v3710 = vperm.slane %v3704, %v3709
        %v3712 = vunpack.c.l.s4 1983009808
        %v3713 = vunpack.c.0.s8 %v3712
        %v3714 = vperm.slane %v3706, %v3713
        %v3715 = vrot.slane %v3550, 4
        %v3716 = vsel %vm762, %v3715, %v3542
        %v3717 = vrot.slane %v3542, 4
        %v3718 = vsel %vm762, %v3550, %v3717
        %v3720 = vunpack.c.l.s4 1983009808
        %v3721 = vunpack.c.0.s8 %v3720
        %v3722 = vperm.slane %v3716, %v3721
        %v3724 = vunpack.c.l.s4 1983009808
        %v3725 = vunpack.c.0.s8 %v3724
        %v3726 = vperm.slane %v3718, %v3725
        %v3727 = vrot.slane %v3698, 4
        %v3728 = vsel %vm762, %v3727, %v3686
        %v3729 = vrot.slane %v3686, 4
        %v3730 = vsel %vm762, %v3698, %v3729
        %v3732 = vunpack.c.l.s4 1934713408
        %v3733 = vunpack.c.0.s8 %v3732
        %v3734 = vperm.slane %v3728, %v3733
        %v3736 = vunpack.c.l.s4 1934713408
        %v3737 = vunpack.c.0.s8 %v3736
        %v3738 = vperm.slane %v3730, %v3737
        %v3739 = vrot.slane %v3702, 4
        %v3740 = vsel %vm762, %v3739, %v3690
        %v3741 = vrot.slane %v3690, 4
        %v3742 = vsel %vm762, %v3702, %v3741
        %v3744 = vunpack.c.l.s4 1934713408
        %v3745 = vunpack.c.0.s8 %v3744
        %v3746 = vperm.slane %v3740, %v3745
        %v3748 = vunpack.c.l.s4 1934713408
        %v3749 = vunpack.c.0.s8 %v3748
        %v3750 = vperm.slane %v3742, %v3749
        %v3751 = vrot.slane %v3722, 4
        %v3752 = vsel %vm762, %v3751, %v3710
        %v3753 = vrot.slane %v3710, 4
        %v3754 = vsel %vm762, %v3722, %v3753
        %v3756 = vunpack.c.l.s4 1934713408
        %v3757 = vunpack.c.0.s8 %v3756
        %v3758 = vperm.slane %v3752, %v3757
        %v3760 = vunpack.c.l.s4 1934713408
        %v3761 = vunpack.c.0.s8 %v3760
        %v3762 = vperm.slane %v3754, %v3761
        %v3763 = vrot.slane %v3726, 4
        %v3764 = vsel %vm762, %v3763, %v3714
        %v3765 = vrot.slane %v3714, 4
        %v3766 = vsel %vm762, %v3726, %v3765
        %v3768 = vunpack.c.l.s4 1934713408
        %v3769 = vunpack.c.0.s8 %v3768
        %v3770 = vperm.slane %v3764, %v3769
        %v3772 = vunpack.c.l.s4 1934713408
        %v3773 = vunpack.c.0.s8 %v3772
        %v3774 = vperm.slane %v3766, %v3773
        %v3775 = vrot.slane %v3758, 4
        %v3776 = vsel %vm762, %v3775, %v3734
        %v3777 = vrot.slane %v3734, 4
        %v3778 = vsel %vm762, %v3758, %v3777
        %v3779 = vrot.slane %v3762, 4
        %v3780 = vsel %vm762, %v3779, %v3738
        %v3781 = vrot.slane %v3738, 4
        %v3782 = vsel %vm762, %v3762, %v3781
        %v3783 = vrot.slane %v3770, 4
        %v3784 = vsel %vm762, %v3783, %v3746
        %v3785 = vrot.slane %v3746, 4
        %v3786 = vsel %vm762, %v3770, %v3785
        %v3787 = vrot.slane %v3774, 4
        %v3788 = vsel %vm762, %v3787, %v3750
        %v3789 = vrot.slane %v3750, 4
        %v3790 = vsel %vm762, %v3774, %v3789
        %3792 = vrot.lane.b32.xlu0 %v3666, 16
        %v3793 = vpop.permute.xlu0 %3792
        %3796 = vrot.lane.b32.xlu0 %v3668, 32
        %v3797 = vpop.permute.xlu0 %3796
        %3800 = vrot.lane.b32.xlu0 %v3670, 48
        %v3801 = vpop.permute.xlu0 %3800
        %3804 = vrot.lane.b32.xlu0 %v3672, 64
        %v3805 = vpop.permute.xlu0 %3804
        %3808 = vrot.lane.b32.xlu0 %v3674, 80
        %v3809 = vpop.permute.xlu0 %3808
        %3812 = vrot.lane.b32.xlu0 %v3676, 96
        %v3813 = vpop.permute.xlu0 %3812
        %3816 = vrot.lane.b32.xlu0 %v3678, 112
        %v3817 = vpop.permute.xlu0 %3816
        %3820 = vrot.lane.b32.xlu0 %v3778, 16
        %v3821 = vpop.permute.xlu0 %3820
        %3824 = vrot.lane.b32.xlu0 %v3780, 32
        %v3825 = vpop.permute.xlu0 %3824
        %3828 = vrot.lane.b32.xlu0 %v3782, 48
        %v3829 = vpop.permute.xlu0 %3828
        %3832 = vrot.lane.b32.xlu0 %v3784, 64
        %v3833 = vpop.permute.xlu0 %3832
        %3836 = vrot.lane.b32.xlu0 %v3786, 80
        %v3837 = vpop.permute.xlu0 %3836
        %3840 = vrot.lane.b32.xlu0 %v3788, 96
        %v3841 = vpop.permute.xlu0 %3840
        %3844 = vrot.lane.b32.xlu0 %v3790, 112
        %v3845 = vpop.permute.xlu0 %3844
        %v3847 = vsel %vm1042, %v3664, %v3793
        %v3848 = vsel %vm1044, %v3847, %v3797
        %v3849 = vsel %vm1046, %v3848, %v3801
        %v3850 = vsel %vm1048, %v3849, %v3805
        %v3851 = vsel %vm1050, %v3850, %v3809
        %v3852 = vsel %vm1052, %v3851, %v3813
        %v3853 = vsel %vm1054, %v3852, %v3817
        %v3854 = vsel %vm1042, %v3776, %v3821
        %v3855 = vsel %vm1044, %v3854, %v3825
        %v3856 = vsel %vm1046, %v3855, %v3829
        %v3857 = vsel %vm1048, %v3856, %v3833
        %v3858 = vsel %vm1050, %v3857, %v3837
        %v3859 = vsel %vm1052, %v3858, %v3841
        %v3860 = vsel %vm1054, %v3859, %v3845
        %s3861 = scalar_lea.vmem [#allocation8], 28
        %v3862 = vld [vmem:[%s3861] sm:$0xf]
        %v3864 = vsel %vm480, %v3862, 0
        %3866 = vmatpush.msra.mxu0 0.0
        %3867 = vmatpush.msra.mxu0 0.0
        %3868 = vmatpush.msra.mxu0 0.0
        %3869 = vmatpush.msra.mxu0 0.0
        %3870 = vmatpush.msra.mxu0 0.0
        %3871 = vmatpush.msra.mxu0 0.0
        %3872 = vmatpush.msra.mxu0 0.0
        %3873 = vmatpush.msra.mxu0 0.0
        %3874 = vmatpush.msra.mxu0 0.0
        %3875 = vmatpush.msra.mxu0 0.0
        %3876 = vmatpush.msra.mxu0 0.0
        %3877 = vmatpush.msra.mxu0 0.0
        %3878 = vmatpush.msra.mxu0 0.0
        %3879 = vmatpush.msra.mxu0 0.0
        %3880 = vmatpush.msra.mxu0 0.0
        %3881 = vmatpush.msra.mxu0 %v3853
        %3882 = vmatmul.f32.gmra.mxu0 %v3864
        %v3883 = vpop.f32.mrf.mxu0
        %v3884 = vadd.f32 0.0, %v3883
        %3885 = vdwg.mxu0
        %3886 = vmatpush.msra.mxu0 0.0
        %3887 = vmatpush.msra.mxu0 0.0
        %3888 = vmatpush.msra.mxu0 0.0
        %3889 = vmatpush.msra.mxu0 0.0
        %3890 = vmatpush.msra.mxu0 0.0
        %3891 = vmatpush.msra.mxu0 0.0
        %3892 = vmatpush.msra.mxu0 0.0
        %3893 = vmatpush.msra.mxu0 0.0
        %3894 = vmatpush.msra.mxu0 0.0
        %3895 = vmatpush.msra.mxu0 0.0
        %3896 = vmatpush.msra.mxu0 0.0
        %3897 = vmatpush.msra.mxu0 0.0
        %3898 = vmatpush.msra.mxu0 0.0
        %3899 = vmatpush.msra.mxu0 0.0
        %3900 = vmatpush.msra.mxu0 0.0
        %3901 = vmatpush.msra.mxu0 %v3860
        %3902 = vmatmul.f32.gmra.mxu0 %v3864
        %v3903 = vpop.f32.mrf.mxu0
        %v3904 = vadd.f32 0.0, %v3903
        %3905 = vdwg.mxu0
        %v3906 = vadd.f32 %v3485, %v3884
        %v3907 = vadd.f32 %v3486, %v3904
        %v3908 = vld [vmem:[#allocation2 + $0x2] sm:$0xff]
        %v3909 = vld [vmem:[#allocation2 + $0xa] sm:$0xff]
        %v3910 = vld [vmem:[#allocation2 + $0x1a] sm:$0xff]
        %v3911 = vld [vmem:[#allocation2 + $0x22] sm:$0xff]
        %v3912 = vld [vmem:[#allocation2 + $0x32] sm:$0xff]
        %v3913 = vld [vmem:[#allocation2 + $0x3a] sm:$0xff]
        %v3914 = vld [vmem:[#allocation2 + $0x4a] sm:$0xff]
        %v3915 = vld [vmem:[#allocation2 + $0x52] sm:$0xff]
        %v3916 = vld [vmem:[#allocation2 + $0x62] sm:$0xff]
        %v3917 = vld [vmem:[#allocation2 + $0x6a] sm:$0xff]
        %v3918 = vld [vmem:[#allocation2 + $0x7a] sm:$0xff]
        %v3919 = vld [vmem:[#allocation2 + $0x82] sm:$0xff]
        %v3920 = vld [vmem:[#allocation2 + $0x92] sm:$0xff]
        %v3921 = vld [vmem:[#allocation2 + $0x9a] sm:$0xff]
        %v3922 = vld [vmem:[#allocation2 + $0xaa] sm:$0xff]
        %v3923 = vld [vmem:[#allocation2 + $0xb2] sm:$0xff]
        %3940 = vrot.lane.b32.xlu0 %v3908, 126
        %v3941 = vpop.permute.xlu0 %3940
        %3942 = vrot.lane.b32.xlu0 %v3909, 126
        %v3943 = vpop.permute.xlu0 %3942
        %3944 = vrot.lane.b32.xlu0 %v3910, 126
        %v3945 = vpop.permute.xlu0 %3944
        %3946 = vrot.lane.b32.xlu0 %v3911, 126
        %v3947 = vpop.permute.xlu0 %3946
        %3948 = vrot.lane.b32.xlu0 %v3912, 126
        %v3949 = vpop.permute.xlu0 %3948
        %3950 = vrot.lane.b32.xlu0 %v3913, 126
        %v3951 = vpop.permute.xlu0 %3950
        %3952 = vrot.lane.b32.xlu0 %v3914, 126
        %v3953 = vpop.permute.xlu0 %3952
        %3954 = vrot.lane.b32.xlu0 %v3915, 126
        %v3955 = vpop.permute.xlu0 %3954
        %3956 = vrot.lane.b32.xlu0 %v3916, 126
        %v3957 = vpop.permute.xlu0 %3956
        %3958 = vrot.lane.b32.xlu0 %v3917, 126
        %v3959 = vpop.permute.xlu0 %3958
        %3960 = vrot.lane.b32.xlu0 %v3918, 126
        %v3961 = vpop.permute.xlu0 %3960
        %3962 = vrot.lane.b32.xlu0 %v3919, 126
        %v3963 = vpop.permute.xlu0 %3962
        %3964 = vrot.lane.b32.xlu0 %v3920, 126
        %v3965 = vpop.permute.xlu0 %3964
        %3966 = vrot.lane.b32.xlu0 %v3921, 126
        %v3967 = vpop.permute.xlu0 %3966
        %3968 = vrot.lane.b32.xlu0 %v3922, 126
        %v3969 = vpop.permute.xlu0 %3968
        %3970 = vrot.lane.b32.xlu0 %v3923, 126
        %v3971 = vpop.permute.xlu0 %3970
        %v3988 = vrot.slane %v3949, 4
        %v3989 = vsel %vm762, %v3988, %v3941
        %v3990 = vrot.slane %v3941, 4
        %v3991 = vsel %vm762, %v3949, %v3990
        %v3993 = vunpack.c.l.s4 1983009808
        %v3994 = vunpack.c.0.s8 %v3993
        %v3995 = vperm.slane %v3989, %v3994
        %v3997 = vunpack.c.l.s4 1983009808
        %v3998 = vunpack.c.0.s8 %v3997
        %v3999 = vperm.slane %v3991, %v3998
        %v4000 = vrot.slane %v3953, 4
        %v4001 = vsel %vm762, %v4000, %v3945
        %v4002 = vrot.slane %v3945, 4
        %v4003 = vsel %vm762, %v3953, %v4002
        %v4005 = vunpack.c.l.s4 1983009808
        %v4006 = vunpack.c.0.s8 %v4005
        %v4007 = vperm.slane %v4001, %v4006
        %v4009 = vunpack.c.l.s4 1983009808
        %v4010 = vunpack.c.0.s8 %v4009
        %v4011 = vperm.slane %v4003, %v4010
        %v4012 = vrot.slane %v3965, 4
        %v4013 = vsel %vm762, %v4012, %v3957
        %v4014 = vrot.slane %v3957, 4
        %v4015 = vsel %vm762, %v3965, %v4014
        %v4017 = vunpack.c.l.s4 1983009808
        %v4018 = vunpack.c.0.s8 %v4017
        %v4019 = vperm.slane %v4013, %v4018
        %v4021 = vunpack.c.l.s4 1983009808
        %v4022 = vunpack.c.0.s8 %v4021
        %v4023 = vperm.slane %v4015, %v4022
        %v4024 = vrot.slane %v3969, 4
        %v4025 = vsel %vm762, %v4024, %v3961
        %v4026 = vrot.slane %v3961, 4
        %v4027 = vsel %vm762, %v3969, %v4026
        %v4029 = vunpack.c.l.s4 1983009808
        %v4030 = vunpack.c.0.s8 %v4029
        %v4031 = vperm.slane %v4025, %v4030
        %v4033 = vunpack.c.l.s4 1983009808
        %v4034 = vunpack.c.0.s8 %v4033
        %v4035 = vperm.slane %v4027, %v4034
        %v4036 = vrot.slane %v4007, 4
        %v4037 = vsel %vm762, %v4036, %v3995
        %v4038 = vrot.slane %v3995, 4
        %v4039 = vsel %vm762, %v4007, %v4038
        %v4041 = vunpack.c.l.s4 1934713408
        %v4042 = vunpack.c.0.s8 %v4041
        %v4043 = vperm.slane %v4037, %v4042
        %v4045 = vunpack.c.l.s4 1934713408
        %v4046 = vunpack.c.0.s8 %v4045
        %v4047 = vperm.slane %v4039, %v4046
        %v4048 = vrot.slane %v4011, 4
        %v4049 = vsel %vm762, %v4048, %v3999
        %v4050 = vrot.slane %v3999, 4
        %v4051 = vsel %vm762, %v4011, %v4050
        %v4053 = vunpack.c.l.s4 1934713408
        %v4054 = vunpack.c.0.s8 %v4053
        %v4055 = vperm.slane %v4049, %v4054
        %v4057 = vunpack.c.l.s4 1934713408
        %v4058 = vunpack.c.0.s8 %v4057
        %v4059 = vperm.slane %v4051, %v4058
        %v4060 = vrot.slane %v4031, 4
        %v4061 = vsel %vm762, %v4060, %v4019
        %v4062 = vrot.slane %v4019, 4
        %v4063 = vsel %vm762, %v4031, %v4062
        %v4065 = vunpack.c.l.s4 1934713408
        %v4066 = vunpack.c.0.s8 %v4065
        %v4067 = vperm.slane %v4061, %v4066
        %v4069 = vunpack.c.l.s4 1934713408
        %v4070 = vunpack.c.0.s8 %v4069
        %v4071 = vperm.slane %v4063, %v4070
        %v4072 = vrot.slane %v4035, 4
        %v4073 = vsel %vm762, %v4072, %v4023
        %v4074 = vrot.slane %v4023, 4
        %v4075 = vsel %vm762, %v4035, %v4074
        %v4077 = vunpack.c.l.s4 1934713408
        %v4078 = vunpack.c.0.s8 %v4077
        %v4079 = vperm.slane %v4073, %v4078
        %v4081 = vunpack.c.l.s4 1934713408
        %v4082 = vunpack.c.0.s8 %v4081
        %v4083 = vperm.slane %v4075, %v4082
        %v4084 = vrot.slane %v4067, 4
        %v4085 = vsel %vm762, %v4084, %v4043
        %v4086 = vrot.slane %v4043, 4
        %v4087 = vsel %vm762, %v4067, %v4086
        %v4088 = vrot.slane %v4071, 4
        %v4089 = vsel %vm762, %v4088, %v4047
        %v4090 = vrot.slane %v4047, 4
        %v4091 = vsel %vm762, %v4071, %v4090
        %v4092 = vrot.slane %v4079, 4
        %v4093 = vsel %vm762, %v4092, %v4055
        %v4094 = vrot.slane %v4055, 4
        %v4095 = vsel %vm762, %v4079, %v4094
        %v4096 = vrot.slane %v4083, 4
        %v4097 = vsel %vm762, %v4096, %v4059
        %v4098 = vrot.slane %v4059, 4
        %v4099 = vsel %vm762, %v4083, %v4098
        %v4100 = vrot.slane %v3951, 4
        %v4101 = vsel %vm762, %v4100, %v3943
        %v4102 = vrot.slane %v3943, 4
        %v4103 = vsel %vm762, %v3951, %v4102
        %v4105 = vunpack.c.l.s4 1983009808
        %v4106 = vunpack.c.0.s8 %v4105
        %v4107 = vperm.slane %v4101, %v4106
        %v4109 = vunpack.c.l.s4 1983009808
        %v4110 = vunpack.c.0.s8 %v4109
        %v4111 = vperm.slane %v4103, %v4110
        %v4112 = vrot.slane %v3955, 4
        %v4113 = vsel %vm762, %v4112, %v3947
        %v4114 = vrot.slane %v3947, 4
        %v4115 = vsel %vm762, %v3955, %v4114
        %v4117 = vunpack.c.l.s4 1983009808
        %v4118 = vunpack.c.0.s8 %v4117
        %v4119 = vperm.slane %v4113, %v4118
        %v4121 = vunpack.c.l.s4 1983009808
        %v4122 = vunpack.c.0.s8 %v4121
        %v4123 = vperm.slane %v4115, %v4122
        %v4124 = vrot.slane %v3967, 4
        %v4125 = vsel %vm762, %v4124, %v3959
        %v4126 = vrot.slane %v3959, 4
        %v4127 = vsel %vm762, %v3967, %v4126
        %v4129 = vunpack.c.l.s4 1983009808
        %v4130 = vunpack.c.0.s8 %v4129
        %v4131 = vperm.slane %v4125, %v4130
        %v4133 = vunpack.c.l.s4 1983009808
        %v4134 = vunpack.c.0.s8 %v4133
        %v4135 = vperm.slane %v4127, %v4134
        %v4136 = vrot.slane %v3971, 4
        %v4137 = vsel %vm762, %v4136, %v3963
        %v4138 = vrot.slane %v3963, 4
        %v4139 = vsel %vm762, %v3971, %v4138
        %v4141 = vunpack.c.l.s4 1983009808
        %v4142 = vunpack.c.0.s8 %v4141
        %v4143 = vperm.slane %v4137, %v4142
        %v4145 = vunpack.c.l.s4 1983009808
        %v4146 = vunpack.c.0.s8 %v4145
        %v4147 = vperm.slane %v4139, %v4146
        %v4148 = vrot.slane %v4119, 4
        %v4149 = vsel %vm762, %v4148, %v4107
        %v4150 = vrot.slane %v4107, 4
        %v4151 = vsel %vm762, %v4119, %v4150
        %v4153 = vunpack.c.l.s4 1934713408
        %v4154 = vunpack.c.0.s8 %v4153
        %v4155 = vperm.slane %v4149, %v4154
        %v4157 = vunpack.c.l.s4 1934713408
        %v4158 = vunpack.c.0.s8 %v4157
        %v4159 = vperm.slane %v4151, %v4158
        %v4160 = vrot.slane %v4123, 4
        %v4161 = vsel %vm762, %v4160, %v4111
        %v4162 = vrot.slane %v4111, 4
        %v4163 = vsel %vm762, %v4123, %v4162
        %v4165 = vunpack.c.l.s4 1934713408
        %v4166 = vunpack.c.0.s8 %v4165
        %v4167 = vperm.slane %v4161, %v4166
        %v4169 = vunpack.c.l.s4 1934713408
        %v4170 = vunpack.c.0.s8 %v4169
        %v4171 = vperm.slane %v4163, %v4170
        %v4172 = vrot.slane %v4143, 4
        %v4173 = vsel %vm762, %v4172, %v4131
        %v4174 = vrot.slane %v4131, 4
        %v4175 = vsel %vm762, %v4143, %v4174
        %v4177 = vunpack.c.l.s4 1934713408
        %v4178 = vunpack.c.0.s8 %v4177
        %v4179 = vperm.slane %v4173, %v4178
        %v4181 = vunpack.c.l.s4 1934713408
        %v4182 = vunpack.c.0.s8 %v4181
        %v4183 = vperm.slane %v4175, %v4182
        %v4184 = vrot.slane %v4147, 4
        %v4185 = vsel %vm762, %v4184, %v4135
        %v4186 = vrot.slane %v4135, 4
        %v4187 = vsel %vm762, %v4147, %v4186
        %v4189 = vunpack.c.l.s4 1934713408
        %v4190 = vunpack.c.0.s8 %v4189
        %v4191 = vperm.slane %v4185, %v4190
        %v4193 = vunpack.c.l.s4 1934713408
        %v4194 = vunpack.c.0.s8 %v4193
        %v4195 = vperm.slane %v4187, %v4194
        %v4196 = vrot.slane %v4179, 4
        %v4197 = vsel %vm762, %v4196, %v4155
        %v4198 = vrot.slane %v4155, 4
        %v4199 = vsel %vm762, %v4179, %v4198
        %v4200 = vrot.slane %v4183, 4
        %v4201 = vsel %vm762, %v4200, %v4159
        %v4202 = vrot.slane %v4159, 4
        %v4203 = vsel %vm762, %v4183, %v4202
        %v4204 = vrot.slane %v4191, 4
        %v4205 = vsel %vm762, %v4204, %v4167
        %v4206 = vrot.slane %v4167, 4
        %v4207 = vsel %vm762, %v4191, %v4206
        %v4208 = vrot.slane %v4195, 4
        %v4209 = vsel %vm762, %v4208, %v4171
        %v4210 = vrot.slane %v4171, 4
        %v4211 = vsel %vm762, %v4195, %v4210
        %4213 = vrot.lane.b32.xlu0 %v4087, 16
        %v4214 = vpop.permute.xlu0 %4213
        %4217 = vrot.lane.b32.xlu0 %v4089, 32
        %v4218 = vpop.permute.xlu0 %4217
        %4221 = vrot.lane.b32.xlu0 %v4091, 48
        %v4222 = vpop.permute.xlu0 %4221
        %4225 = vrot.lane.b32.xlu0 %v4093, 64
        %v4226 = vpop.permute.xlu0 %4225
        %4229 = vrot.lane.b32.xlu0 %v4095, 80
        %v4230 = vpop.permute.xlu0 %4229
        %4233 = vrot.lane.b32.xlu0 %v4097, 96
        %v4234 = vpop.permute.xlu0 %4233
        %4237 = vrot.lane.b32.xlu0 %v4099, 112
        %v4238 = vpop.permute.xlu0 %4237
        %4241 = vrot.lane.b32.xlu0 %v4199, 16
        %v4242 = vpop.permute.xlu0 %4241
        %4245 = vrot.lane.b32.xlu0 %v4201, 32
        %v4246 = vpop.permute.xlu0 %4245
        %4249 = vrot.lane.b32.xlu0 %v4203, 48
        %v4250 = vpop.permute.xlu0 %4249
        %4253 = vrot.lane.b32.xlu0 %v4205, 64
        %v4254 = vpop.permute.xlu0 %4253
        %4257 = vrot.lane.b32.xlu0 %v4207, 80
        %v4258 = vpop.permute.xlu0 %4257
        %4261 = vrot.lane.b32.xlu0 %v4209, 96
        %v4262 = vpop.permute.xlu0 %4261
        %4265 = vrot.lane.b32.xlu0 %v4211, 112
        %v4266 = vpop.permute.xlu0 %4265
        %v4268 = vsel %vm1042, %v4085, %v4214
        %v4269 = vsel %vm1044, %v4268, %v4218
        %v4270 = vsel %vm1046, %v4269, %v4222
        %v4271 = vsel %vm1048, %v4270, %v4226
        %v4272 = vsel %vm1050, %v4271, %v4230
        %v4273 = vsel %vm1052, %v4272, %v4234
        %v4274 = vsel %vm1054, %v4273, %v4238
        %v4275 = vsel %vm1042, %v4197, %v4242
        %v4276 = vsel %vm1044, %v4275, %v4246
        %v4277 = vsel %vm1046, %v4276, %v4250
        %v4278 = vsel %vm1048, %v4277, %v4254
        %v4279 = vsel %vm1050, %v4278, %v4258
        %v4280 = vsel %vm1052, %v4279, %v4262
        %v4281 = vsel %vm1054, %v4280, %v4266
        %s4282 = scalar_lea.vmem [#allocation8], 32
        %v4283 = vld [vmem:[%s4282] sm:$0xf]
        %v4285 = vsel %vm480, %v4283, 0
        %4287 = vmatpush.msra.mxu0 0.0
        %4288 = vmatpush.msra.mxu0 0.0
        %4289 = vmatpush.msra.mxu0 0.0
        %4290 = vmatpush.msra.mxu0 0.0
        %4291 = vmatpush.msra.mxu0 0.0
        %4292 = vmatpush.msra.mxu0 0.0
        %4293 = vmatpush.msra.mxu0 0.0
        %4294 = vmatpush.msra.mxu0 0.0
        %4295 = vmatpush.msra.mxu0 0.0
        %4296 = vmatpush.msra.mxu0 0.0
        %4297 = vmatpush.msra.mxu0 0.0
        %4298 = vmatpush.msra.mxu0 0.0
        %4299 = vmatpush.msra.mxu0 0.0
        %4300 = vmatpush.msra.mxu0 0.0
        %4301 = vmatpush.msra.mxu0 0.0
        %4302 = vmatpush.msra.mxu0 %v4274
        %4303 = vmatmul.f32.gmra.mxu0 %v4285
        %v4304 = vpop.f32.mrf.mxu0
        %v4305 = vadd.f32 0.0, %v4304
        %4306 = vdwg.mxu0
        %4307 = vmatpush.msra.mxu0 0.0
        %4308 = vmatpush.msra.mxu0 0.0
        %4309 = vmatpush.msra.mxu0 0.0
        %4310 = vmatpush.msra.mxu0 0.0
        %4311 = vmatpush.msra.mxu0 0.0
        %4312 = vmatpush.msra.mxu0 0.0
        %4313 = vmatpush.msra.mxu0 0.0
        %4314 = vmatpush.msra.mxu0 0.0
        %4315 = vmatpush.msra.mxu0 0.0
        %4316 = vmatpush.msra.mxu0 0.0
        %4317 = vmatpush.msra.mxu0 0.0
        %4318 = vmatpush.msra.mxu0 0.0
        %4319 = vmatpush.msra.mxu0 0.0
        %4320 = vmatpush.msra.mxu0 0.0
        %4321 = vmatpush.msra.mxu0 0.0
        %4322 = vmatpush.msra.mxu0 %v4281
        %4323 = vmatmul.f32.gmra.mxu0 %v4285
        %v4324 = vpop.f32.mrf.mxu0
        %v4325 = vadd.f32 0.0, %v4324
        %4326 = vdwg.mxu0
        %v4327 = vadd.f32 %v3906, %v4305
        %v4328 = vadd.f32 %v3907, %v4325
        %v4331 = vrot.slane %v4328, 4
        %vm4332 = vcmask 1043456
        %v4333 = vsel %vm4332, %v4327, %v4331
        %4335 = vst [vmem:[%s388] sm:$0xff] %v4333
        %v4336 = vsel %vm4332, %v4327, 0.0
        %v4337 = vsel %vm4332, %v4328, 0.0
        %v4338 = vadd.f32 %v4336, %v4337
        %4339 = vadd.xlane.f32.xlu0 %v4338
        %v4340 = vpop.xlane.xlu0 %4339
        %vm4341 = vcmask 3072
        %4342 = vst.msk [vmem:[%s392] sm:$0xf] %vm4341, %v4340
        %v4343 = vmul.f32 %v4327, %v4327
        %v4344 = vmul.f32 %v4328, %v4328
        %v4345 = vsel %vm4332, %v4343, 0.0
        %v4346 = vsel %vm4332, %v4344, 0.0
        %v4347 = vadd.f32 %v4345, %v4346
        %4348 = vadd.xlane.f32.xlu0 %v4347
        %v4349 = vpop.xlane.xlu0 %4348
        %4350 = vst.msk [vmem:[%s396] sm:$0xf] %vm4341, %v4349
        %p4351 = scmp.lt.s32.totalorder %s26, 1
        %s4352 = scalar_select %p4351, %s26, 1
        %s4353 = smul.addr %s4352, 2
        %s4354 = smul.addr %s4353, 4
        %s4355 = scalar_lea.vmem %s5, %s4354
        %p4356 = scmp.lt.s32.totalorder %s26, 1
        %s4357 = scalar_select %p4356, %s26, 1
        %s4358 = smul.addr %s4357, 4
        %s4359 = scalar_lea.vmem %s6, %s4358
        %p4360 = scmp.lt.s32.totalorder %s26, 1
        %s4361 = scalar_select %p4360, %s26, 1
        %s4362 = smul.addr %s4361, 4
        %s4363 = scalar_lea.vmem %s7, %s4362
        // Predicated region
        $region61: #{upscaling_forward.3} parent=39 // pred_check
          %p4364 = pneg %p159
        $region62: #{upscaling_forward.3} parent=39 // pred_check_branch
          %4366 = sbr.rel (%p4364) target = $region64
        $region63: #{upscaling_forward.3} parent=39 // pred_region
          _
        $region64: #{upscaling_forward.3} parent=39 // pred_fallthru
          _
        // Predicated region
        $region65: #{upscaling_forward.3} parent=39 // pred_check
          %p4367 = pneg %p185
        $region66: #{upscaling_forward.3} parent=39 // pred_check_branch
          %4369 = sbr.rel (%p4367) target = $region68
        $region67: #{upscaling_forward.3} parent=39 // pred_region
          _
        $region68: #{upscaling_forward.3} parent=39 // pred_fallthru
          _
        // Predicated region
        $region69: #{upscaling_forward.3} parent=39 // pred_check
          %p4370 = pneg %p211
        $region70: #{upscaling_forward.3} parent=39 // pred_check_branch
          %4372 = sbr.rel (%p4370) target = $region72
        $region71: #{upscaling_forward.3} parent=39 // pred_region
          _
        $region72: #{upscaling_forward.3} parent=39 // pred_fallthru
          _
      $region40: #{upscaling_forward.3} parent=5 // pred_fallthru
        _
      %p4373 = scmp.le.s32.totalorder 2, %s21
      // Predicated region
      $region73: #{upscaling_forward.3} parent=5 // pred_check
        %p4374 = pneg %p4373
      $region74: #{upscaling_forward.3} parent=5 // pred_check_branch
        %4376 = sbr.rel (%p4374) target = $region76
      $region75: #{upscaling_forward.3} parent=5 // pred_region
        %s4377 = ssub.s32 %s21, 2
        // Predicated region
        $region77: #{upscaling_forward.3} parent=75 // pred_check
          %p4378 = pneg %p165
        $region78: #{upscaling_forward.3} parent=75 // pred_check_branch
          %4380 = sbr.rel (%p4378) target = $region80
        $region79: #{upscaling_forward.3} parent=75 // pred_region
          %p4381 = scmp.lt.s32.totalorder %s27, 1
          %s4382 = scalar_select %p4381, %s27, 1
          %s4383 = smul.addr %s4382, 2
          %s4384 = smul.addr %s4383, 4
          %s4385 = scalar_lea.vmem %s5, %s4384
        $region80: #{upscaling_forward.3} parent=75 // pred_fallthru
          _
        // Predicated region
        $region81: #{upscaling_forward.3} parent=75 // pred_check
          %p4386 = pneg %p191
        $region82: #{upscaling_forward.3} parent=75 // pred_check_branch
          %4388 = sbr.rel (%p4386) target = $region84
        $region83: #{upscaling_forward.3} parent=75 // pred_region
          %p4389 = scmp.lt.s32.totalorder %s27, 1
          %s4390 = scalar_select %p4389, %s27, 1
          %s4391 = smul.addr %s4390, 4
          %s4392 = scalar_lea.vmem %s6, %s4391
        $region84: #{upscaling_forward.3} parent=75 // pred_fallthru
          _
        // Predicated region
        $region85: #{upscaling_forward.3} parent=75 // pred_check
          %p4393 = pneg %p217
        $region86: #{upscaling_forward.3} parent=75 // pred_check_branch
          %4395 = sbr.rel (%p4393) target = $region88
        $region87: #{upscaling_forward.3} parent=75 // pred_region
          %p4396 = scmp.lt.s32.totalorder %s27, 1
          %s4397 = scalar_select %p4396, %s27, 1
          %s4398 = smul.addr %s4397, 4
          %s4399 = scalar_lea.vmem %s7, %s4398
        $region88: #{upscaling_forward.3} parent=75 // pred_fallthru
          _
      $region76: #{upscaling_forward.3} parent=5 // pred_fallthru
        _
    $region6: #{upscaling_forward.3} parent=1 // loop_footer
      %s25 = sadd.s32 1, %s21
    $region7: #{upscaling_forward.3} parent=1 // loop_footer_branch
      %20 = sbr.rel target = $region3
    $region8: #{upscaling_forward.3} parent=1 // loop_exit
      _
    %4400 = vsyncpa [#allocation4], 1
    %s4401 = scalar_lea.sflag [#allocation4], 1
    %4402 = vsyncpa %s4401, 1
    %4403 = vsyncpa [#allocation6], 1
    %s4404 = scalar_lea.sflag [#allocation6], 1
    %4405 = vsyncpa %s4404, 1
    %4406 = vsyncpa [#allocation9], 1

</llo_original>
